<compile_context>
chip_gen: v6e
topology: v6e:2x2x1
jax: 0.10.0
libtpu: 0.0.40
codegen_flags: <defaults>
</compile_context>

<pallas_src>
import jax
import jax.numpy as jnp
from jax.experimental import pallas as pl
from jax.experimental.pallas import tpu as pltpu


def _make_residual_block_kernel(has_projection):
    """Kernel factory; the shortcut variant is static, so the identity path
    never pays for a (M, Cin) x (Cin, Cout) matmul."""

    def kernel(xp_ref, w1_ref, b1_ref, w2_ref, b2_ref, *rest):
        # xp_ref : (B, Hp, Wp, Cin)    zero-padded input batch block (NHWC)
        # w1_ref : (9*Cin,  Cout)      conv1 weights, im2col layout, BN1 folded
        # w2_ref : (9*Cout, Cout)      conv2 weights, im2col layout, BN2 folded
        # b*_ref : (1, Cout)           folded BatchNorm shifts (f32)
        # wsc_ref: (Cin, Cout)         1x1 projection weights, BNsc folded
        # out_ref: (B, H, W, Cout)
        # h1p_ref: (B, Hp, Wp, Cout)   VMEM scratch: zero-padded conv1 output
        if has_projection:
            wsc_ref, bsc_ref, out_ref, h1p_ref = rest
        else:
            out_ref, h1p_ref = rest

        B, Hp, Wp, Cin = xp_ref.shape
        H, W = Hp - 2, Wp - 2
        Cout = out_ref.shape[-1]
        M = B * H * W  # every output pixel of the batch block

        # -------- conv1 (3x3, pad=1) + bn1 + relu: single im2col MXU dot ----
        # cols[t] with t = kh*3 + kw matches the (kh, kw, ci) weight flattening.
        cols = [xp_ref[:, kh:kh + H, kw:kw + W, :].reshape(M, Cin)
                for kh in range(3) for kw in range(3)]
        patch1 = jnp.concatenate(cols, axis=-1)                   # (M, 9*Cin)
        h1 = jnp.dot(patch1, w1_ref[...], preferred_element_type=jnp.float32)
        h1 = jnp.maximum(h1 + b1_ref[...], 0.0)

        # -------- padded conv1 output for conv2 -----------------------------
        # Interior: one whole-tile store.  Border: only the 1-pixel frame that
        # conv2 reads; the two columns are narrowed to the interior rows
        # (corners are covered by the full top/bottom row stores).  Repeated
        # every grid step so megacore-sharded scratch stays correct.
        zdt = h1p_ref.dtype
        h1p_ref[:, 1:H + 1, 1:W + 1, :] = h1.reshape(B, H, W, Cout).astype(zdt)
        h1p_ref[:, 0:1, :, :] = jnp.zeros((B, 1, Wp, Cout), zdt)
        h1p_ref[:, Hp - 1:Hp, :, :] = jnp.zeros((B, 1, Wp, Cout), zdt)
        h1p_ref[:, 1:H + 1, 0:1, :] = jnp.zeros((B, H, 1, Cout), zdt)
        h1p_ref[:, 1:H + 1, Wp - 1:Wp, :] = jnp.zeros((B, H, 1, Cout), zdt)

        # -------- conv2 (3x3, pad=1) + bn2: single im2col MXU dot -----------
        cols2 = [h1p_ref[:, kh:kh + H, kw:kw + W, :].reshape(M, Cout)
                 for kh in range(3) for kw in range(3)]
        patch2 = jnp.concatenate(cols2, axis=-1)                  # (M, 9*Cout)
        y = jnp.dot(patch2, w2_ref[...], preferred_element_type=jnp.float32)
        y = y + b2_ref[...]

        # -------- shortcut + residual add + relu ----------------------------
        x_center = cols[4]  # kh=1, kw=1 tap == un-padded input pixels (M, Cin)
        if has_projection:
            sc = jnp.dot(x_center, wsc_ref[...],
                         preferred_element_type=jnp.float32) + bsc_ref[...]
        else:
            sc = x_center.astype(jnp.float32)  # identity: no matmul at all

        out = jnp.maximum(y + sc, 0.0)
        out_ref[...] = out.reshape(B, H, W, Cout).astype(out_ref.dtype)

    return kernel


# --------------------------------------------------------------------------
# VMEM-aware batch-block sizing
# --------------------------------------------------------------------------
def _round_up(x, m):
    return (x + m - 1) // m * m


def _vmem_bytes_estimate(B, H, W, Cin, Cout, act_bytes):
    """Rough, conservative per-grid-step VMEM footprint (lane/sublane padded:
    the f32 intermediates are the hidden 128/Cout multiplier)."""
    Hp, Wp = H + 2, W + 2
    M = _round_up(B * H * W, 8)
    lane = 128
    x_blk = B * Hp * _round_up(Wp, 8) * _round_up(Cin, lane) * act_bytes
    o_blk = B * H * _round_up(W, 8) * _round_up(Cout, lane) * act_bytes
    h1p = B * Hp * _round_up(Wp, 8) * _round_up(Cout, lane) * act_bytes
    patches = M * (_round_up(9 * Cin, lane) + _round_up(9 * Cout, lane)) * 4
    mats = 4 * M * _round_up(Cout, lane) * 4
    weights = 4 * (9 * max(Cin, Cout)) * _round_up(Cout, lane) * act_bytes
    # inputs/outputs are double-buffered by the Pallas pipeline
    return 2 * (x_blk + o_blk) + h1p + patches + mats + weights


def _vmem_capacity_bytes():
    try:
        cap = getattr(pltpu.get_tpu_info(), "vmem_capacity_bytes", None)
        if cap:
            return int(cap)
    except Exception:
        pass
    return 64 * 1024 * 1024  # v7x per-TensorCore VMEM (smallest current chip)


def _choose_batch_block(N, H, W, Cin, Cout, act_bytes, budget):
    divisors = [d for d in range(1, N + 1) if N % d == 0]
    fits = [d for d in divisors
            if _vmem_bytes_estimate(d, H, W, Cin, Cout, act_bytes) <= budget]
    if not fits:
        return 1
    b = max(fits)
    # v7x megacore: prefer a parallel grid extent >= 2 so both TensorCores get
    # work, but only when each step would still have >= 2048 matmul rows.
    if b == N and N > 1:
        smaller = [d for d in fits if d < N and d * H * W >= 2048]
        if smaller:
            b = max(smaller)
    return b


# --------------------------------------------------------------------------
# Public wrapper (NCHW in / NCHW out, like the PyTorch module)
# --------------------------------------------------------------------------
def residual_block_forward(x_nchw, params, *, stride=1, eps=1e-5):
    if stride != 1:
        # TODO(synk): stride > 1 (downsampling block) is not implemented.
        raise NotImplementedError("stride > 1 not implemented")
    N, Cin, H, W = x_nchw.shape
    Cout = params["w1"].shape[0]
    Hp, Wp = H + 2, W + 2

    has_projection = "wsc" in params
    if not has_projection and Cin != Cout:
        raise ValueError(
            "identity shortcut requires in_channels == out_channels; "
            "provide projection params ('wsc', 'gsc', ...) otherwise")

    act_dtype = x_nchw.dtype
    act_bytes = jnp.dtype(act_dtype).itemsize

    def fold_bn(gamma, beta, rmean, rvar):
        scale = (gamma / jnp.sqrt(rvar + eps)).astype(jnp.float32)   # (Cout,)
        shift = (beta - rmean * scale).astype(jnp.float32)           # (Cout,)
        return scale, shift.reshape(1, Cout)

    s1, b1 = fold_bn(params["g1"], params["be1"], params["rm1"], params["rv1"])
    s2, b2 = fold_bn(params["g2"], params["be2"], params["rm2"], params["rv2"])

    # OIHW -> (kh, kw, ci, co), BN scale folded into co, flattened to the
    # im2col layout (9*ci, co), cast to the activation dtype so bf16 callers
    # get the bf16 MXU path (accumulation stays f32 inside the kernel).
    def prep_conv_w(w_oihw, scale, cin):
        w = jnp.transpose(w_oihw, (2, 3, 1, 0)).astype(jnp.float32) * scale
        return w.reshape(9 * cin, Cout).astype(act_dtype)

    w1 = prep_conv_w(params["w1"], s1, Cin)
    w2 = prep_conv_w(params["w2"], s2, Cout)

    x_nhwc = jnp.transpose(x_nchw, (0, 2, 3, 1))
    xp = jnp.pad(x_nhwc, ((0, 0), (1, 1), (1, 1), (0, 0)))  # zero pad H, W

    vmem_cap = _vmem_capacity_bytes()
    vmem_limit = min(int(0.75 * vmem_cap), 100 * 1024 * 1024)
    B_blk = _choose_batch_block(N, H, W, Cin, Cout, act_bytes,
                                budget=int(0.6 * vmem_limit))
    grid = (N // B_blk,)

    vec_spec = pl.BlockSpec((1, Cout), lambda n: (0, 0))
    in_specs = [
        pl.BlockSpec((B_blk, Hp, Wp, Cin), lambda n: (n, 0, 0, 0)),
        pl.BlockSpec((9 * Cin, Cout), lambda n: (0, 0)),
        vec_spec,
        pl.BlockSpec((9 * Cout, Cout), lambda n: (0, 0)),
        vec_spec,
    ]
    operands = [xp, w1, b1, w2, b2]

    if has_projection:
        ssc, bsc = fold_bn(params["gsc"], params["besc"],
                           params["rmsc"], params["rvsc"])
        wsc = (jnp.transpose(params["wsc"][:, :, 0, 0], (1, 0)).astype(jnp.float32)
               * ssc).astype(act_dtype)                       # (Cin, Cout)
        in_specs += [pl.BlockSpec((Cin, Cout), lambda n: (0, 0)), vec_spec]
        operands += [wsc, bsc]

    grid_spec = pltpu.PrefetchScalarGridSpec(
        num_scalar_prefetch=0,
        grid=grid,
        in_specs=in_specs,
        out_specs=pl.BlockSpec((B_blk, H, W, Cout), lambda n: (n, 0, 0, 0)),
        scratch_shapes=[pltpu.VMEM((B_blk, Hp, Wp, Cout), act_dtype)],
    )

    out_nhwc = pl.pallas_call(
        _make_residual_block_kernel(has_projection),
        out_shape=jax.ShapeDtypeStruct((N, H, W, Cout), act_dtype),
        grid_spec=grid_spec,
        compiler_params=pltpu.CompilerParams(
            dimension_semantics=("parallel",),   # batch blocks are independent
            vmem_limit_bytes=vmem_limit,
        ),
    )(*operands)

    return jnp.transpose(out_nhwc, (0, 3, 1, 2))  # back to NCHW


# --------------------------------------------------------------------------
# Pure-JAX reference (inference-mode BN) and test harness
# --------------------------------------------------------------------------
def ref_forward(x, params, *, stride=1, eps=1e-5):
    dn = ("NCHW", "OIHW", "NCHW")

    def conv(x, w, s, pad):
        return jax.lax.conv_general_dilated(
            x, w, (s, s), ((pad, pad), (pad, pad)), dimension_numbers=dn)

    def bn(x, g, b, rm, rv):
        g, b, rm, rv = [a[None, :, None, None] for a in (g, b, rm, rv)]
        return (x - rm) / jnp.sqrt(rv + eps) * g + b

    out = jax.nn.relu(bn(conv(x, params["w1"], stride, 1),
                         params["g1"], params["be1"], params["rm1"], params["rv1"]))
    out = bn(conv(out, params["w2"], 1, 1),
             params["g2"], params["be2"], params["rm2"], params["rv2"])
    if "wsc" in params:
        sc = bn(conv(x, params["wsc"], stride, 0),
                params["gsc"], params["besc"], params["rmsc"], params["rvsc"])
    else:
        sc = x
    return jax.nn.relu(out + sc)


def _make_params(key, Cin, Cout, projection):
    ks = jax.random.split(key, 16)
    p = {
        "w1": 0.2 * jax.random.normal(ks[0], (Cout, Cin, 3, 3), jnp.float32),
        "g1": 1.0 + 0.1 * jax.random.normal(ks[1], (Cout,), jnp.float32),
        "be1": 0.1 * jax.random.normal(ks[2], (Cout,), jnp.float32),
        "rm1": 0.1 * jax.random.normal(ks[3], (Cout,), jnp.float32),
        "rv1": 0.5 + jax.random.uniform(ks[4], (Cout,), jnp.float32),
        "w2": 0.2 * jax.random.normal(ks[5], (Cout, Cout, 3, 3), jnp.float32),
        "g2": 1.0 + 0.1 * jax.random.normal(ks[6], (Cout,), jnp.float32),
        "be2": 0.1 * jax.random.normal(ks[7], (Cout,), jnp.float32),
        "rm2": 0.1 * jax.random.normal(ks[8], (Cout,), jnp.float32),
        "rv2": 0.5 + jax.random.uniform(ks[9], (Cout,), jnp.float32),
    }
    if projection:
        p.update({
            "wsc": 0.2 * jax.random.normal(ks[10], (Cout, Cin, 1, 1), jnp.float32),
            "gsc": 1.0 + 0.1 * jax.random.normal(ks[11], (Cout,), jnp.float32),
            "besc": 0.1 * jax.random.normal(ks[12], (Cout,), jnp.float32),
            "rmsc": 0.1 * jax.random.normal(ks[13], (Cout,), jnp.float32),
            "rvsc": 0.5 + jax.random.uniform(ks[14], (Cout,), jnp.float32),
        })
    return p, ks[15]


if __name__ == "__main__":
    key = jax.random.PRNGKey(0)

    # Case 1: projection shortcut (in_channels != out_channels), stride=1.
    params_p, key = _make_params(key, 4, 8, projection=True)
    x1 = jax.random.normal(jax.random.fold_in(key, 0), (2, 4, 16, 16), jnp.float32)
    out1 = jax.block_until_ready(residual_block_forward(x1, params_p, stride=1))
    ref1 = ref_forward(x1, params_p, stride=1)
    assert out1.shape == ref1.shape == (2, 8, 16, 16)
    err1 = float(jnp.max(jnp.abs(out1 - ref1)))
    assert err1 < 1e-3, f"projection path max abs err {err1}"

    # Case 2: identity shortcut (in_channels == out_channels), stride=1.
    params_i, key = _make_params(key, 8, 8, projection=False)
    x2 = jax.random.normal(jax.random.fold_in(key, 1), (2, 8, 16, 16), jnp.float32)
    out2 = jax.block_until_ready(residual_block_forward(x2, params_i, stride=1))
    ref2 = ref_forward(x2, params_i, stride=1)
    assert out2.shape == ref2.shape == (2, 8, 16, 16)
    err2 = float(jnp.max(jnp.abs(out2 - ref2)))
    assert err2 < 1e-3, f"identity path max abs err {err2}"

    print("KERNEL_OK")
</pallas_src>

<mosaic_0001>
module attributes {stable_mosaic.version = 11 : i64} {
  func.func @kernel(%arg0: i32, %arg1: memref<2x18x18x4xf32, #tpu.memory_space<vmem>>, %arg2: memref<36x8xf32, #tpu.memory_space<vmem>>, %arg3: memref<1x8xf32, #tpu.memory_space<vmem>>, %arg4: memref<72x8xf32, #tpu.memory_space<vmem>>, %arg5: memref<1x8xf32, #tpu.memory_space<vmem>>, %arg6: memref<4x8xf32, #tpu.memory_space<vmem>>, %arg7: memref<1x8xf32, #tpu.memory_space<vmem>>, %arg8: memref<2x16x16x8xf32, #tpu.memory_space<vmem>>, %arg9: memref<2x18x18x8xf32, #tpu.memory_space<vmem>>) attributes {dimension_semantics = [#tpu.dimension_semantics<parallel>], iteration_bounds = array<i64: 1>, scalar_prefetch = 0 : i64, scratch_operands = 1 : i64, tpu.core_type = #tpu.core_type<tc>, window_params = [{transform_indices = @transform_0, window_bounds = array<i64: 2, 18, 18, 4>}, {pipeline_mode = #tpu.pipeline_mode<synchronous>, transform_indices = @transform_1, window_bounds = array<i64: 36, 8>}, {pipeline_mode = #tpu.pipeline_mode<synchronous>, transform_indices = @transform_2, window_bounds = array<i64: 1, 8>}, {pipeline_mode = #tpu.pipeline_mode<synchronous>, transform_indices = @transform_3, window_bounds = array<i64: 72, 8>}, {pipeline_mode = #tpu.pipeline_mode<synchronous>, transform_indices = @transform_4, window_bounds = array<i64: 1, 8>}, {pipeline_mode = #tpu.pipeline_mode<synchronous>, transform_indices = @transform_5, window_bounds = array<i64: 4, 8>}, {pipeline_mode = #tpu.pipeline_mode<synchronous>, transform_indices = @transform_6, window_bounds = array<i64: 1, 8>}, {transform_indices = @transform_7, window_bounds = array<i64: 2, 16, 16, 8>}]} {
    %c0 = arith.constant 0 : index
    %c0_0 = arith.constant 0 : index
    %c0_1 = arith.constant 0 : index
    %c0_2 = arith.constant 0 : index
    %0 = vector.load %arg1[%c0, %c0_0, %c0_1, %c0_2] : memref<2x18x18x4xf32, #tpu.memory_space<vmem>>, vector<2x16x16x4xf32>
    %1 = vector.shape_cast %0 : vector<2x16x16x4xf32> to vector<512x4xf32>
    %c0_3 = arith.constant 0 : index
    %c0_4 = arith.constant 0 : index
    %c1 = arith.constant 1 : index
    %c0_5 = arith.constant 0 : index
    %2 = vector.load %arg1[%c0_3, %c0_4, %c1, %c0_5] : memref<2x18x18x4xf32, #tpu.memory_space<vmem>>, vector<2x16x16x4xf32>
    %3 = vector.shape_cast %2 : vector<2x16x16x4xf32> to vector<512x4xf32>
    %c0_6 = arith.constant 0 : index
    %c0_7 = arith.constant 0 : index
    %c2 = arith.constant 2 : index
    %c0_8 = arith.constant 0 : index
    %4 = vector.load %arg1[%c0_6, %c0_7, %c2, %c0_8] : memref<2x18x18x4xf32, #tpu.memory_space<vmem>>, vector<2x16x16x4xf32>
    %5 = vector.shape_cast %4 : vector<2x16x16x4xf32> to vector<512x4xf32>
    %c0_9 = arith.constant 0 : index
    %c1_10 = arith.constant 1 : index
    %c0_11 = arith.constant 0 : index
    %c0_12 = arith.constant 0 : index
    %6 = vector.load %arg1[%c0_9, %c1_10, %c0_11, %c0_12] : memref<2x18x18x4xf32, #tpu.memory_space<vmem>>, vector<2x16x16x4xf32>
    %7 = vector.shape_cast %6 : vector<2x16x16x4xf32> to vector<512x4xf32>
    %c0_13 = arith.constant 0 : index
    %c1_14 = arith.constant 1 : index
    %c1_15 = arith.constant 1 : index
    %c0_16 = arith.constant 0 : index
    %8 = vector.load %arg1[%c0_13, %c1_14, %c1_15, %c0_16] : memref<2x18x18x4xf32, #tpu.memory_space<vmem>>, vector<2x16x16x4xf32>
    %9 = vector.shape_cast %8 : vector<2x16x16x4xf32> to vector<512x4xf32>
    %c0_17 = arith.constant 0 : index
    %c1_18 = arith.constant 1 : index
    %c2_19 = arith.constant 2 : index
    %c0_20 = arith.constant 0 : index
    %10 = vector.load %arg1[%c0_17, %c1_18, %c2_19, %c0_20] : memref<2x18x18x4xf32, #tpu.memory_space<vmem>>, vector<2x16x16x4xf32>
    %11 = vector.shape_cast %10 : vector<2x16x16x4xf32> to vector<512x4xf32>
    %c0_21 = arith.constant 0 : index
    %c2_22 = arith.constant 2 : index
    %c0_23 = arith.constant 0 : index
    %c0_24 = arith.constant 0 : index
    %12 = vector.load %arg1[%c0_21, %c2_22, %c0_23, %c0_24] : memref<2x18x18x4xf32, #tpu.memory_space<vmem>>, vector<2x16x16x4xf32>
    %13 = vector.shape_cast %12 : vector<2x16x16x4xf32> to vector<512x4xf32>
    %c0_25 = arith.constant 0 : index
    %c2_26 = arith.constant 2 : index
    %c1_27 = arith.constant 1 : index
    %c0_28 = arith.constant 0 : index
    %14 = vector.load %arg1[%c0_25, %c2_26, %c1_27, %c0_28] : memref<2x18x18x4xf32, #tpu.memory_space<vmem>>, vector<2x16x16x4xf32>
    %15 = vector.shape_cast %14 : vector<2x16x16x4xf32> to vector<512x4xf32>
    %c0_29 = arith.constant 0 : index
    %c2_30 = arith.constant 2 : index
    %c2_31 = arith.constant 2 : index
    %c0_32 = arith.constant 0 : index
    %16 = vector.load %arg1[%c0_29, %c2_30, %c2_31, %c0_32] : memref<2x18x18x4xf32, #tpu.memory_space<vmem>>, vector<2x16x16x4xf32>
    %17 = vector.shape_cast %16 : vector<2x16x16x4xf32> to vector<512x4xf32>
    %18 = tpu.concatenate %1, %3, %5, %7, %9, %11, %13, %15, %17 in 1 : vector<512x4xf32>, vector<512x4xf32>, vector<512x4xf32>, vector<512x4xf32>, vector<512x4xf32>, vector<512x4xf32>, vector<512x4xf32>, vector<512x4xf32>, vector<512x4xf32> -> vector<512x36xf32>
    %c0_33 = arith.constant 0 : index
    %c0_34 = arith.constant 0 : index
    %19 = vector.load %arg2[%c0_33, %c0_34] : memref<36x8xf32, #tpu.memory_space<vmem>>, vector<36x8xf32>
    %cst = arith.constant dense<0.000000e+00> : vector<512x8xf32>
    %20 = tpu.matmul %18, %19, %cst {dimension_numbers = #tpu.dot_dimension_numbers<[1], [0], [0], [1], [0, 0, 1, 1], [], []>} : vector<512x36xf32>, vector<36x8xf32>, vector<512x8xf32> -> vector<512x8xf32>
    %c0_35 = arith.constant 0 : index
    %c0_36 = arith.constant 0 : index
    %21 = vector.load %arg3[%c0_35, %c0_36] : memref<1x8xf32, #tpu.memory_space<vmem>>, vector<1x8xf32>
    %22 = vector.broadcast %21 : vector<1x8xf32> to vector<512x8xf32>
    %23 = arith.addf %20, %22 : vector<512x8xf32>
    %cst_37 = arith.constant 0.000000e+00 : f32
    %24 = vector.broadcast %cst_37 : f32 to vector<512x8xf32>
    %25 = arith.maximumf %23, %24 : vector<512x8xf32>
    %26 = vector.shape_cast %25 : vector<512x8xf32> to vector<2x16x16x8xf32>
    %c0_38 = arith.constant 0 : index
    %c1_39 = arith.constant 1 : index
    %c1_40 = arith.constant 1 : index
    %c0_41 = arith.constant 0 : index
    %27 = vector.load %arg9[%c0_38, %c1_39, %c1_40, %c0_41] : memref<2x18x18x8xf32, #tpu.memory_space<vmem>>, vector<2x16x16x8xf32>
    tpu.vector_store %arg9[%c0_38, %c1_39, %c1_40, %c0_41], %26 {strides = array<i32>} : memref<2x18x18x8xf32, #tpu.memory_space<vmem>>, vector<2x16x16x8xf32>,
    %cst_42 = arith.constant 0.000000e+00 : f32
    %28 = vector.broadcast %cst_42 : f32 to vector<2x1x18x8xf32>
    %c0_43 = arith.constant 0 : index
    %c0_44 = arith.constant 0 : index
    %c0_45 = arith.constant 0 : index
    %c0_46 = arith.constant 0 : index
    %29 = vector.load %arg9[%c0_43, %c0_44, %c0_45, %c0_46] : memref<2x18x18x8xf32, #tpu.memory_space<vmem>>, vector<2x1x18x8xf32>
    tpu.vector_store %arg9[%c0_43, %c0_44, %c0_45, %c0_46], %28 {strides = array<i32>} : memref<2x18x18x8xf32, #tpu.memory_space<vmem>>, vector<2x1x18x8xf32>,
    %cst_47 = arith.constant 0.000000e+00 : f32
    %30 = vector.broadcast %cst_47 : f32 to vector<2x1x18x8xf32>
    %c0_48 = arith.constant 0 : index
    %c17 = arith.constant 17 : index
    %c0_49 = arith.constant 0 : index
    %c0_50 = arith.constant 0 : index
    %31 = vector.load %arg9[%c0_48, %c17, %c0_49, %c0_50] : memref<2x18x18x8xf32, #tpu.memory_space<vmem>>, vector<2x1x18x8xf32>
    tpu.vector_store %arg9[%c0_48, %c17, %c0_49, %c0_50], %30 {strides = array<i32>} : memref<2x18x18x8xf32, #tpu.memory_space<vmem>>, vector<2x1x18x8xf32>,
    %cst_51 = arith.constant 0.000000e+00 : f32
    %32 = vector.broadcast %cst_51 : f32 to vector<2x16x1x8xf32>
    %c0_52 = arith.constant 0 : index
    %c1_53 = arith.constant 1 : index
    %c0_54 = arith.constant 0 : index
    %c0_55 = arith.constant 0 : index
    %33 = vector.load %arg9[%c0_52, %c1_53, %c0_54, %c0_55] : memref<2x18x18x8xf32, #tpu.memory_space<vmem>>, vector<2x16x1x8xf32>
    tpu.vector_store %arg9[%c0_52, %c1_53, %c0_54, %c0_55], %32 {strides = array<i32>} : memref<2x18x18x8xf32, #tpu.memory_space<vmem>>, vector<2x16x1x8xf32>,
    %cst_56 = arith.constant 0.000000e+00 : f32
    %34 = vector.broadcast %cst_56 : f32 to vector<2x16x1x8xf32>
    %c0_57 = arith.constant 0 : index
    %c1_58 = arith.constant 1 : index
    %c17_59 = arith.constant 17 : index
    %c0_60 = arith.constant 0 : index
    %35 = vector.load %arg9[%c0_57, %c1_58, %c17_59, %c0_60] : memref<2x18x18x8xf32, #tpu.memory_space<vmem>>, vector<2x16x1x8xf32>
    tpu.vector_store %arg9[%c0_57, %c1_58, %c17_59, %c0_60], %34 {strides = array<i32>} : memref<2x18x18x8xf32, #tpu.memory_space<vmem>>, vector<2x16x1x8xf32>,
    %c0_61 = arith.constant 0 : index
    %c0_62 = arith.constant 0 : index
    %c0_63 = arith.constant 0 : index
    %c0_64 = arith.constant 0 : index
    %36 = vector.load %arg9[%c0_61, %c0_62, %c0_63, %c0_64] : memref<2x18x18x8xf32, #tpu.memory_space<vmem>>, vector<2x16x16x8xf32>
    %37 = vector.shape_cast %36 : vector<2x16x16x8xf32> to vector<512x8xf32>
    %c0_65 = arith.constant 0 : index
    %c0_66 = arith.constant 0 : index
    %c1_67 = arith.constant 1 : index
    %c0_68 = arith.constant 0 : index
    %38 = vector.load %arg9[%c0_65, %c0_66, %c1_67, %c0_68] : memref<2x18x18x8xf32, #tpu.memory_space<vmem>>, vector<2x16x16x8xf32>
    %39 = vector.shape_cast %38 : vector<2x16x16x8xf32> to vector<512x8xf32>
    %c0_69 = arith.constant 0 : index
    %c0_70 = arith.constant 0 : index
    %c2_71 = arith.constant 2 : index
    %c0_72 = arith.constant 0 : index
    %40 = vector.load %arg9[%c0_69, %c0_70, %c2_71, %c0_72] : memref<2x18x18x8xf32, #tpu.memory_space<vmem>>, vector<2x16x16x8xf32>
    %41 = vector.shape_cast %40 : vector<2x16x16x8xf32> to vector<512x8xf32>
    %c0_73 = arith.constant 0 : index
    %c1_74 = arith.constant 1 : index
    %c0_75 = arith.constant 0 : index
    %c0_76 = arith.constant 0 : index
    %42 = vector.load %arg9[%c0_73, %c1_74, %c0_75, %c0_76] : memref<2x18x18x8xf32, #tpu.memory_space<vmem>>, vector<2x16x16x8xf32>
    %43 = vector.shape_cast %42 : vector<2x16x16x8xf32> to vector<512x8xf32>
    %c0_77 = arith.constant 0 : index
    %c1_78 = arith.constant 1 : index
    %c1_79 = arith.constant 1 : index
    %c0_80 = arith.constant 0 : index
    %44 = vector.load %arg9[%c0_77, %c1_78, %c1_79, %c0_80] : memref<2x18x18x8xf32, #tpu.memory_space<vmem>>, vector<2x16x16x8xf32>
    %45 = vector.shape_cast %44 : vector<2x16x16x8xf32> to vector<512x8xf32>
    %c0_81 = arith.constant 0 : index
    %c1_82 = arith.constant 1 : index
    %c2_83 = arith.constant 2 : index
    %c0_84 = arith.constant 0 : index
    %46 = vector.load %arg9[%c0_81, %c1_82, %c2_83, %c0_84] : memref<2x18x18x8xf32, #tpu.memory_space<vmem>>, vector<2x16x16x8xf32>
    %47 = vector.shape_cast %46 : vector<2x16x16x8xf32> to vector<512x8xf32>
    %c0_85 = arith.constant 0 : index
    %c2_86 = arith.constant 2 : index
    %c0_87 = arith.constant 0 : index
    %c0_88 = arith.constant 0 : index
    %48 = vector.load %arg9[%c0_85, %c2_86, %c0_87, %c0_88] : memref<2x18x18x8xf32, #tpu.memory_space<vmem>>, vector<2x16x16x8xf32>
    %49 = vector.shape_cast %48 : vector<2x16x16x8xf32> to vector<512x8xf32>
    %c0_89 = arith.constant 0 : index
    %c2_90 = arith.constant 2 : index
    %c1_91 = arith.constant 1 : index
    %c0_92 = arith.constant 0 : index
    %50 = vector.load %arg9[%c0_89, %c2_90, %c1_91, %c0_92] : memref<2x18x18x8xf32, #tpu.memory_space<vmem>>, vector<2x16x16x8xf32>
    %51 = vector.shape_cast %50 : vector<2x16x16x8xf32> to vector<512x8xf32>
    %c0_93 = arith.constant 0 : index
    %c2_94 = arith.constant 2 : index
    %c2_95 = arith.constant 2 : index
    %c0_96 = arith.constant 0 : index
    %52 = vector.load %arg9[%c0_93, %c2_94, %c2_95, %c0_96] : memref<2x18x18x8xf32, #tpu.memory_space<vmem>>, vector<2x16x16x8xf32>
    %53 = vector.shape_cast %52 : vector<2x16x16x8xf32> to vector<512x8xf32>
    %54 = tpu.concatenate %37, %39, %41, %43, %45, %47, %49, %51, %53 in 1 : vector<512x8xf32>, vector<512x8xf32>, vector<512x8xf32>, vector<512x8xf32>, vector<512x8xf32>, vector<512x8xf32>, vector<512x8xf32>, vector<512x8xf32>, vector<512x8xf32> -> vector<512x72xf32>
    %c0_97 = arith.constant 0 : index
    %c0_98 = arith.constant 0 : index
    %55 = vector.load %arg4[%c0_97, %c0_98] : memref<72x8xf32, #tpu.memory_space<vmem>>, vector<72x8xf32>
    %cst_99 = arith.constant dense<0.000000e+00> : vector<512x8xf32>
    %56 = tpu.matmul %54, %55, %cst_99 {dimension_numbers = #tpu.dot_dimension_numbers<[1], [0], [0], [1], [0, 0, 1, 1], [], []>} : vector<512x72xf32>, vector<72x8xf32>, vector<512x8xf32> -> vector<512x8xf32>
    %c0_100 = arith.constant 0 : index
    %c0_101 = arith.constant 0 : index
    %57 = vector.load %arg5[%c0_100, %c0_101] : memref<1x8xf32, #tpu.memory_space<vmem>>, vector<1x8xf32>
    %58 = vector.broadcast %57 : vector<1x8xf32> to vector<512x8xf32>
    %59 = arith.addf %56, %58 : vector<512x8xf32>
    %c0_102 = arith.constant 0 : index
    %c0_103 = arith.constant 0 : index
    %60 = vector.load %arg6[%c0_102, %c0_103] : memref<4x8xf32, #tpu.memory_space<vmem>>, vector<4x8xf32>
    %cst_104 = arith.constant dense<0.000000e+00> : vector<512x8xf32>
    %61 = tpu.matmul %9, %60, %cst_104 {dimension_numbers = #tpu.dot_dimension_numbers<[1], [0], [0], [1], [0, 0, 1, 1], [], []>} : vector<512x4xf32>, vector<4x8xf32>, vector<512x8xf32> -> vector<512x8xf32>
    %c0_105 = arith.constant 0 : index
    %c0_106 = arith.constant 0 : index
    %62 = vector.load %arg7[%c0_105, %c0_106] : memref<1x8xf32, #tpu.memory_space<vmem>>, vector<1x8xf32>
    %63 = vector.broadcast %62 : vector<1x8xf32> to vector<512x8xf32>
    %64 = arith.addf %61, %63 : vector<512x8xf32>
    %65 = arith.addf %59, %64 : vector<512x8xf32>
    %cst_107 = arith.constant 0.000000e+00 : f32
    %66 = vector.broadcast %cst_107 : f32 to vector<512x8xf32>
    %67 = arith.maximumf %65, %66 : vector<512x8xf32>
    %68 = vector.shape_cast %67 : vector<512x8xf32> to vector<2x16x16x8xf32>
    %c0_108 = arith.constant 0 : index
    %c0_109 = arith.constant 0 : index
    %c0_110 = arith.constant 0 : index
    %c0_111 = arith.constant 0 : index
    %69 = vector.load %arg8[%c0_108, %c0_109, %c0_110, %c0_111] : memref<2x16x16x8xf32, #tpu.memory_space<vmem>>, vector<2x16x16x8xf32>
    tpu.vector_store %arg8[%c0_108, %c0_109, %c0_110, %c0_111], %68 {strides = array<i32>} : memref<2x16x16x8xf32, #tpu.memory_space<vmem>>, vector<2x16x16x8xf32>,
    return
  }
  func.func @transform_0(%arg0: i32) -> (i32, i32, i32, i32) {
    %c0_i32 = arith.constant 0 : i32
    %c0_i32_0 = arith.constant 0 : i32
    %c0_i32_1 = arith.constant 0 : i32
    %c0_i32_2 = arith.constant 0 : i32
    return %arg0, %c0_i32, %c0_i32_0, %c0_i32_1 : i32, i32, i32, i32
  }
  func.func @transform_1(%arg0: i32) -> (i32, i32) {
    %c0_i32 = arith.constant 0 : i32
    %c0_i32_0 = arith.constant 0 : i32
    %c0_i32_1 = arith.constant 0 : i32
    return %c0_i32, %c0_i32_0 : i32, i32
  }
  func.func @transform_2(%arg0: i32) -> (i32, i32) {
    %c0_i32 = arith.constant 0 : i32
    %c0_i32_0 = arith.constant 0 : i32
    %c0_i32_1 = arith.constant 0 : i32
    return %c0_i32, %c0_i32_0 : i32, i32
  }
  func.func @transform_3(%arg0: i32) -> (i32, i32) {
    %c0_i32 = arith.constant 0 : i32
    %c0_i32_0 = arith.constant 0 : i32
    %c0_i32_1 = arith.constant 0 : i32
    return %c0_i32, %c0_i32_0 : i32, i32
  }
  func.func @transform_4(%arg0: i32) -> (i32, i32) {
    %c0_i32 = arith.constant 0 : i32
    %c0_i32_0 = arith.constant 0 : i32
    %c0_i32_1 = arith.constant 0 : i32
    return %c0_i32, %c0_i32_0 : i32, i32
  }
  func.func @transform_5(%arg0: i32) -> (i32, i32) {
    %c0_i32 = arith.constant 0 : i32
    %c0_i32_0 = arith.constant 0 : i32
    %c0_i32_1 = arith.constant 0 : i32
    return %c0_i32, %c0_i32_0 : i32, i32
  }
  func.func @transform_6(%arg0: i32) -> (i32, i32) {
    %c0_i32 = arith.constant 0 : i32
    %c0_i32_0 = arith.constant 0 : i32
    %c0_i32_1 = arith.constant 0 : i32
    return %c0_i32, %c0_i32_0 : i32, i32
  }
  func.func @transform_7(%arg0: i32) -> (i32, i32, i32, i32) {
    %c0_i32 = arith.constant 0 : i32
    %c0_i32_0 = arith.constant 0 : i32
    %c0_i32_1 = arith.constant 0 : i32
    %c0_i32_2 = arith.constant 0 : i32
    return %arg0, %c0_i32, %c0_i32_0, %c0_i32_1 : i32, i32, i32, i32
  }
}

</mosaic_0001>

<llo_original>
// kernel: tpu_custom_call.1
$region0: #{tpu_custom_call.1}
  #allocation0 [shape = 'u32[]', space=smem, size = 0x4, offset = 0x4, fixed_abs, tag = 'smem constant byte address 0x4 - core index']
  #allocation1 [shape = 'u32[144,128]{1,0:T(1,128)}', space=vmem, size = 0x12000, scoped, tag = 'internal scratch']
  #allocation2 [shape = 'f32[2,18,18,8]{3,2,1,0:T(8,128)}', space=vmem, size = 0x6c000, scoped, tag = 'scratch operand']
  %s0 = inlined_call_operand.vmem [shape: f32[2,18,18,4], index: 0, kind: input, shape index: {}]
  %s1 = inlined_call_operand.vmem [shape: f32[36,8], index: 1, kind: input, shape index: {}]
  %s2 = inlined_call_operand.vmem [shape: f32[1,8], index: 2, kind: input, shape index: {}]
  %s3 = inlined_call_operand.vmem [shape: f32[72,8], index: 3, kind: input, shape index: {}]
  %s4 = inlined_call_operand.vmem [shape: f32[1,8], index: 4, kind: input, shape index: {}]
  %s5 = inlined_call_operand.vmem [shape: f32[4,8], index: 5, kind: input, shape index: {}]
  %s6 = inlined_call_operand.vmem [shape: f32[1,8], index: 6, kind: input, shape index: {}]
  %s7 = inlined_call_operand.vmem [shape: f32[2,16,16,8], index: 7, kind: output, shape index: {}]
  %s8 = sld [smem:[#allocation0]]
  $region38: #{tpu_custom_call.1} parent=0
    _
  %s10 = ssub.s32 1, %s8
  %s11 = scalar_select 0, %s10, %s8
  // Predicated region
  $region2: #{tpu_custom_call.1} parent=0 // pred_check
    _
  $region3: #{tpu_custom_call.1} parent=0 // pred_check_branch
    %13 = sbr.rel (0) target = $region5
  $region4: #{tpu_custom_call.1} parent=0 // pred_region
    _
  $region5: #{tpu_custom_call.1} parent=0 // pred_fallthru
    _
  // Predicated region
  $region6: #{tpu_custom_call.1} parent=0 // pred_check
    _
  $region7: #{tpu_custom_call.1} parent=0 // pred_check_branch
    %15 = sbr.rel (0) target = $region9
  $region8: #{tpu_custom_call.1} parent=0 // pred_region
    _
  $region9: #{tpu_custom_call.1} parent=0 // pred_fallthru
    _
  // Predicated region
  $region10: #{tpu_custom_call.1} parent=0 // pred_check
    _
  $region11: #{tpu_custom_call.1} parent=0 // pred_check_branch
    %17 = sbr.rel (0) target = $region13
  $region12: #{tpu_custom_call.1} parent=0 // pred_region
    _
  $region13: #{tpu_custom_call.1} parent=0 // pred_fallthru
    _
  // Predicated region
  $region14: #{tpu_custom_call.1} parent=0 // pred_check
    _
  $region15: #{tpu_custom_call.1} parent=0 // pred_check_branch
    %19 = sbr.rel (0) target = $region17
  $region16: #{tpu_custom_call.1} parent=0 // pred_region
    _
  $region17: #{tpu_custom_call.1} parent=0 // pred_fallthru
    _
  // Predicated region
  $region18: #{tpu_custom_call.1} parent=0 // pred_check
    _
  $region19: #{tpu_custom_call.1} parent=0 // pred_check_branch
    %21 = sbr.rel (0) target = $region21
  $region20: #{tpu_custom_call.1} parent=0 // pred_region
    _
  $region21: #{tpu_custom_call.1} parent=0 // pred_fallthru
    _
  // Predicated region
  $region22: #{tpu_custom_call.1} parent=0 // pred_check
    _
  $region23: #{tpu_custom_call.1} parent=0 // pred_check_branch
    %23 = sbr.rel (0) target = $region25
  $region24: #{tpu_custom_call.1} parent=0 // pred_region
    _
  $region25: #{tpu_custom_call.1} parent=0 // pred_fallthru
    _
  // Predicated region
  $region26: #{tpu_custom_call.1} parent=0 // pred_check
    _
  $region27: #{tpu_custom_call.1} parent=0 // pred_check_branch
    %25 = sbr.rel (0) target = $region29
  $region28: #{tpu_custom_call.1} parent=0 // pred_region
    _
  $region29: #{tpu_custom_call.1} parent=0 // pred_fallthru
    _
  %v26 = vld [vmem:[%s0] sm:$0xff]
  %v27 = vld [vmem:[%s0 + $0x8] sm:$0xff]
  %v28 = vld [vmem:[%s0 + $0x18] sm:$0xff]
  %v29 = vld [vmem:[%s0 + $0x20] sm:$0xff]
  %v30 = vld [vmem:[%s0 + $0x30] sm:$0xff]
  %v31 = vld [vmem:[%s0 + $0x38] sm:$0xff]
  %v32 = vld [vmem:[%s0 + $0x48] sm:$0xff]
  %v33 = vld [vmem:[%s0 + $0x50] sm:$0xff]
  %v34 = vld [vmem:[%s0 + $0x60] sm:$0xff]
  %v35 = vld [vmem:[%s0 + $0x68] sm:$0xff]
  %v36 = vld [vmem:[%s0 + $0x78] sm:$0xff]
  %v37 = vld [vmem:[%s0 + $0x80] sm:$0xff]
  %v38 = vld [vmem:[%s0 + $0x90] sm:$0xff]
  %v39 = vld [vmem:[%s0 + $0x98] sm:$0xff]
  %v40 = vld [vmem:[%s0 + $0xa8] sm:$0xff]
  %v41 = vld [vmem:[%s0 + $0xb0] sm:$0xff]
  %v42 = vld [vmem:[%s0 + $0xc0] sm:$0xff]
  %v43 = vld [vmem:[%s0 + $0xc8] sm:$0xff]
  %v44 = vld [vmem:[%s0 + $0xd8] sm:$0xff]
  %v45 = vld [vmem:[%s0 + $0xe0] sm:$0xff]
  %v46 = vld [vmem:[%s0 + $0xf0] sm:$0xff]
  %v47 = vld [vmem:[%s0 + $0xf8] sm:$0xff]
  %v48 = vld [vmem:[%s0 + $0x108] sm:$0xff]
  %v49 = vld [vmem:[%s0 + $0x110] sm:$0xff]
  %v50 = vld [vmem:[%s0 + $0x120] sm:$0xff]
  %v51 = vld [vmem:[%s0 + $0x128] sm:$0xff]
  %v52 = vld [vmem:[%s0 + $0x138] sm:$0xff]
  %v53 = vld [vmem:[%s0 + $0x140] sm:$0xff]
  %v54 = vld [vmem:[%s0 + $0x150] sm:$0xff]
  %v55 = vld [vmem:[%s0 + $0x158] sm:$0xff]
  %v56 = vld [vmem:[%s0 + $0x168] sm:$0xff]
  %v57 = vld [vmem:[%s0 + $0x170] sm:$0xff]
  %v58 = vld [vmem:[%s0 + $0x1b0] sm:$0xff]
  %v59 = vld [vmem:[%s0 + $0x1b8] sm:$0xff]
  %v60 = vld [vmem:[%s0 + $0x1c8] sm:$0xff]
  %v61 = vld [vmem:[%s0 + $0x1d0] sm:$0xff]
  %v62 = vld [vmem:[%s0 + $0x1e0] sm:$0xff]
  %v63 = vld [vmem:[%s0 + $0x1e8] sm:$0xff]
  %v64 = vld [vmem:[%s0 + $0x1f8] sm:$0xff]
  %v65 = vld [vmem:[%s0 + $0x200] sm:$0xff]
  %v66 = vld [vmem:[%s0 + $0x210] sm:$0xff]
  %v67 = vld [vmem:[%s0 + $0x218] sm:$0xff]
  %v68 = vld [vmem:[%s0 + $0x228] sm:$0xff]
  %v69 = vld [vmem:[%s0 + $0x230] sm:$0xff]
  %v70 = vld [vmem:[%s0 + $0x240] sm:$0xff]
  %v71 = vld [vmem:[%s0 + $0x248] sm:$0xff]
  %v72 = vld [vmem:[%s0 + $0x258] sm:$0xff]
  %v73 = vld [vmem:[%s0 + $0x260] sm:$0xff]
  %v74 = vld [vmem:[%s0 + $0x270] sm:$0xff]
  %v75 = vld [vmem:[%s0 + $0x278] sm:$0xff]
  %v76 = vld [vmem:[%s0 + $0x288] sm:$0xff]
  %v77 = vld [vmem:[%s0 + $0x290] sm:$0xff]
  %v78 = vld [vmem:[%s0 + $0x2a0] sm:$0xff]
  %v79 = vld [vmem:[%s0 + $0x2a8] sm:$0xff]
  %v80 = vld [vmem:[%s0 + $0x2b8] sm:$0xff]
  %v81 = vld [vmem:[%s0 + $0x2c0] sm:$0xff]
  %v82 = vld [vmem:[%s0 + $0x2d0] sm:$0xff]
  %v83 = vld [vmem:[%s0 + $0x2d8] sm:$0xff]
  %v84 = vld [vmem:[%s0 + $0x2e8] sm:$0xff]
  %v85 = vld [vmem:[%s0 + $0x2f0] sm:$0xff]
  %v86 = vld [vmem:[%s0 + $0x300] sm:$0xff]
  %v87 = vld [vmem:[%s0 + $0x308] sm:$0xff]
  %v88 = vld [vmem:[%s0 + $0x318] sm:$0xff]
  %v89 = vld [vmem:[%s0 + $0x320] sm:$0xff]
  %v90 = vld [vmem:[%s0 + $0x1] sm:$0xff]
  %v91 = vld [vmem:[%s0 + $0x9] sm:$0xff]
  %v92 = vld [vmem:[%s0 + $0x19] sm:$0xff]
  %v93 = vld [vmem:[%s0 + $0x21] sm:$0xff]
  %v94 = vld [vmem:[%s0 + $0x31] sm:$0xff]
  %v95 = vld [vmem:[%s0 + $0x39] sm:$0xff]
  %v96 = vld [vmem:[%s0 + $0x49] sm:$0xff]
  %v97 = vld [vmem:[%s0 + $0x51] sm:$0xff]
  %v98 = vld [vmem:[%s0 + $0x61] sm:$0xff]
  %v99 = vld [vmem:[%s0 + $0x69] sm:$0xff]
  %v100 = vld [vmem:[%s0 + $0x79] sm:$0xff]
  %v101 = vld [vmem:[%s0 + $0x81] sm:$0xff]
  %v102 = vld [vmem:[%s0 + $0x91] sm:$0xff]
  %v103 = vld [vmem:[%s0 + $0x99] sm:$0xff]
  %v104 = vld [vmem:[%s0 + $0xa9] sm:$0xff]
  %v105 = vld [vmem:[%s0 + $0xb1] sm:$0xff]
  %v106 = vld [vmem:[%s0 + $0xc1] sm:$0xff]
  %v107 = vld [vmem:[%s0 + $0xc9] sm:$0xff]
  %v108 = vld [vmem:[%s0 + $0xd9] sm:$0xff]
  %v109 = vld [vmem:[%s0 + $0xe1] sm:$0xff]
  %v110 = vld [vmem:[%s0 + $0xf1] sm:$0xff]
  %v111 = vld [vmem:[%s0 + $0xf9] sm:$0xff]
  %v112 = vld [vmem:[%s0 + $0x109] sm:$0xff]
  %v113 = vld [vmem:[%s0 + $0x111] sm:$0xff]
  %v114 = vld [vmem:[%s0 + $0x121] sm:$0xff]
  %v115 = vld [vmem:[%s0 + $0x129] sm:$0xff]
  %v116 = vld [vmem:[%s0 + $0x139] sm:$0xff]
  %v117 = vld [vmem:[%s0 + $0x141] sm:$0xff]
  %v118 = vld [vmem:[%s0 + $0x151] sm:$0xff]
  %v119 = vld [vmem:[%s0 + $0x159] sm:$0xff]
  %v120 = vld [vmem:[%s0 + $0x169] sm:$0xff]
  %v121 = vld [vmem:[%s0 + $0x171] sm:$0xff]
  %v122 = vld [vmem:[%s0 + $0x1b1] sm:$0xff]
  %v123 = vld [vmem:[%s0 + $0x1b9] sm:$0xff]
  %v124 = vld [vmem:[%s0 + $0x1c9] sm:$0xff]
  %v125 = vld [vmem:[%s0 + $0x1d1] sm:$0xff]
  %v126 = vld [vmem:[%s0 + $0x1e1] sm:$0xff]
  %v127 = vld [vmem:[%s0 + $0x1e9] sm:$0xff]
  %v128 = vld [vmem:[%s0 + $0x1f9] sm:$0xff]
  %v129 = vld [vmem:[%s0 + $0x201] sm:$0xff]
  %v130 = vld [vmem:[%s0 + $0x211] sm:$0xff]
  %v131 = vld [vmem:[%s0 + $0x219] sm:$0xff]
  %v132 = vld [vmem:[%s0 + $0x229] sm:$0xff]
  %v133 = vld [vmem:[%s0 + $0x231] sm:$0xff]
  %v134 = vld [vmem:[%s0 + $0x241] sm:$0xff]
  %v135 = vld [vmem:[%s0 + $0x249] sm:$0xff]
  %v136 = vld [vmem:[%s0 + $0x259] sm:$0xff]
  %v137 = vld [vmem:[%s0 + $0x261] sm:$0xff]
  %v138 = vld [vmem:[%s0 + $0x271] sm:$0xff]
  %v139 = vld [vmem:[%s0 + $0x279] sm:$0xff]
  %v140 = vld [vmem:[%s0 + $0x289] sm:$0xff]
  %v141 = vld [vmem:[%s0 + $0x291] sm:$0xff]
  %v142 = vld [vmem:[%s0 + $0x2a1] sm:$0xff]
  %v143 = vld [vmem:[%s0 + $0x2a9] sm:$0xff]
  %v144 = vld [vmem:[%s0 + $0x2b9] sm:$0xff]
  %v145 = vld [vmem:[%s0 + $0x2c1] sm:$0xff]
  %v146 = vld [vmem:[%s0 + $0x2d1] sm:$0xff]
  %v147 = vld [vmem:[%s0 + $0x2d9] sm:$0xff]
  %v148 = vld [vmem:[%s0 + $0x2e9] sm:$0xff]
  %v149 = vld [vmem:[%s0 + $0x2f1] sm:$0xff]
  %v150 = vld [vmem:[%s0 + $0x301] sm:$0xff]
  %v151 = vld [vmem:[%s0 + $0x309] sm:$0xff]
  %v152 = vld [vmem:[%s0 + $0x319] sm:$0xff]
  %v153 = vld [vmem:[%s0 + $0x321] sm:$0xff]
  %v154 = vld [vmem:[%s0 + $0x2] sm:$0xff]
  %v155 = vld [vmem:[%s0 + $0xa] sm:$0xff]
  %v156 = vld [vmem:[%s0 + $0x1a] sm:$0xff]
  %v157 = vld [vmem:[%s0 + $0x22] sm:$0xff]
  %v158 = vld [vmem:[%s0 + $0x32] sm:$0xff]
  %v159 = vld [vmem:[%s0 + $0x3a] sm:$0xff]
  %v160 = vld [vmem:[%s0 + $0x4a] sm:$0xff]
  %v161 = vld [vmem:[%s0 + $0x52] sm:$0xff]
  %v162 = vld [vmem:[%s0 + $0x62] sm:$0xff]
  %v163 = vld [vmem:[%s0 + $0x6a] sm:$0xff]
  %v164 = vld [vmem:[%s0 + $0x7a] sm:$0xff]
  %v165 = vld [vmem:[%s0 + $0x82] sm:$0xff]
  %v166 = vld [vmem:[%s0 + $0x92] sm:$0xff]
  %v167 = vld [vmem:[%s0 + $0x9a] sm:$0xff]
  %v168 = vld [vmem:[%s0 + $0xaa] sm:$0xff]
  %v169 = vld [vmem:[%s0 + $0xb2] sm:$0xff]
  %v170 = vld [vmem:[%s0 + $0xc2] sm:$0xff]
  %v171 = vld [vmem:[%s0 + $0xca] sm:$0xff]
  %v172 = vld [vmem:[%s0 + $0xda] sm:$0xff]
  %v173 = vld [vmem:[%s0 + $0xe2] sm:$0xff]
  %v174 = vld [vmem:[%s0 + $0xf2] sm:$0xff]
  %v175 = vld [vmem:[%s0 + $0xfa] sm:$0xff]
  %v176 = vld [vmem:[%s0 + $0x10a] sm:$0xff]
  %v177 = vld [vmem:[%s0 + $0x112] sm:$0xff]
  %v178 = vld [vmem:[%s0 + $0x122] sm:$0xff]
  %v179 = vld [vmem:[%s0 + $0x12a] sm:$0xff]
  %v180 = vld [vmem:[%s0 + $0x13a] sm:$0xff]
  %v181 = vld [vmem:[%s0 + $0x142] sm:$0xff]
  %v182 = vld [vmem:[%s0 + $0x152] sm:$0xff]
  %v183 = vld [vmem:[%s0 + $0x15a] sm:$0xff]
  %v184 = vld [vmem:[%s0 + $0x16a] sm:$0xff]
  %v185 = vld [vmem:[%s0 + $0x172] sm:$0xff]
  %v186 = vld [vmem:[%s0 + $0x1b2] sm:$0xff]
  %v187 = vld [vmem:[%s0 + $0x1ba] sm:$0xff]
  %v188 = vld [vmem:[%s0 + $0x1ca] sm:$0xff]
  %v189 = vld [vmem:[%s0 + $0x1d2] sm:$0xff]
  %v190 = vld [vmem:[%s0 + $0x1e2] sm:$0xff]
  %v191 = vld [vmem:[%s0 + $0x1ea] sm:$0xff]
  %v192 = vld [vmem:[%s0 + $0x1fa] sm:$0xff]
  %v193 = vld [vmem:[%s0 + $0x202] sm:$0xff]
  %v194 = vld [vmem:[%s0 + $0x212] sm:$0xff]
  %v195 = vld [vmem:[%s0 + $0x21a] sm:$0xff]
  %v196 = vld [vmem:[%s0 + $0x22a] sm:$0xff]
  %v197 = vld [vmem:[%s0 + $0x232] sm:$0xff]
  %v198 = vld [vmem:[%s0 + $0x242] sm:$0xff]
  %v199 = vld [vmem:[%s0 + $0x24a] sm:$0xff]
  %v200 = vld [vmem:[%s0 + $0x25a] sm:$0xff]
  %v201 = vld [vmem:[%s0 + $0x262] sm:$0xff]
  %v202 = vld [vmem:[%s0 + $0x272] sm:$0xff]
  %v203 = vld [vmem:[%s0 + $0x27a] sm:$0xff]
  %v204 = vld [vmem:[%s0 + $0x28a] sm:$0xff]
  %v205 = vld [vmem:[%s0 + $0x292] sm:$0xff]
  %v206 = vld [vmem:[%s0 + $0x2a2] sm:$0xff]
  %v207 = vld [vmem:[%s0 + $0x2aa] sm:$0xff]
  %v208 = vld [vmem:[%s0 + $0x2ba] sm:$0xff]
  %v209 = vld [vmem:[%s0 + $0x2c2] sm:$0xff]
  %v210 = vld [vmem:[%s0 + $0x2d2] sm:$0xff]
  %v211 = vld [vmem:[%s0 + $0x2da] sm:$0xff]
  %v212 = vld [vmem:[%s0 + $0x2ea] sm:$0xff]
  %v213 = vld [vmem:[%s0 + $0x2f2] sm:$0xff]
  %v214 = vld [vmem:[%s0 + $0x302] sm:$0xff]
  %v215 = vld [vmem:[%s0 + $0x30a] sm:$0xff]
  %v216 = vld [vmem:[%s0 + $0x31a] sm:$0xff]
  %v217 = vld [vmem:[%s0 + $0x322] sm:$0xff]
  %s218 = scalar_lea.vmem %s0, 24
  %v219 = vld [vmem:[%s218] sm:$0xff]
  %v220 = vld [vmem:[%s218 + $0x8] sm:$0xff]
  %v221 = vld [vmem:[%s218 + $0x18] sm:$0xff]
  %v222 = vld [vmem:[%s218 + $0x20] sm:$0xff]
  %v223 = vld [vmem:[%s218 + $0x30] sm:$0xff]
  %v224 = vld [vmem:[%s218 + $0x38] sm:$0xff]
  %v225 = vld [vmem:[%s218 + $0x48] sm:$0xff]
  %v226 = vld [vmem:[%s218 + $0x50] sm:$0xff]
  %v227 = vld [vmem:[%s218 + $0x60] sm:$0xff]
  %v228 = vld [vmem:[%s218 + $0x68] sm:$0xff]
  %v229 = vld [vmem:[%s218 + $0x78] sm:$0xff]
  %v230 = vld [vmem:[%s218 + $0x80] sm:$0xff]
  %v231 = vld [vmem:[%s218 + $0x90] sm:$0xff]
  %v232 = vld [vmem:[%s218 + $0x98] sm:$0xff]
  %v233 = vld [vmem:[%s218 + $0xa8] sm:$0xff]
  %v234 = vld [vmem:[%s218 + $0xb0] sm:$0xff]
  %v235 = vld [vmem:[%s218 + $0xc0] sm:$0xff]
  %v236 = vld [vmem:[%s218 + $0xc8] sm:$0xff]
  %v237 = vld [vmem:[%s218 + $0xd8] sm:$0xff]
  %v238 = vld [vmem:[%s218 + $0xe0] sm:$0xff]
  %v239 = vld [vmem:[%s218 + $0xf0] sm:$0xff]
  %v240 = vld [vmem:[%s218 + $0xf8] sm:$0xff]
  %v241 = vld [vmem:[%s218 + $0x108] sm:$0xff]
  %v242 = vld [vmem:[%s218 + $0x110] sm:$0xff]
  %v243 = vld [vmem:[%s218 + $0x120] sm:$0xff]
  %v244 = vld [vmem:[%s218 + $0x128] sm:$0xff]
  %v245 = vld [vmem:[%s218 + $0x138] sm:$0xff]
  %v246 = vld [vmem:[%s218 + $0x140] sm:$0xff]
  %v247 = vld [vmem:[%s218 + $0x150] sm:$0xff]
  %v248 = vld [vmem:[%s218 + $0x158] sm:$0xff]
  %v249 = vld [vmem:[%s218 + $0x168] sm:$0xff]
  %v250 = vld [vmem:[%s218 + $0x170] sm:$0xff]
  %v251 = vld [vmem:[%s218 + $0x1b0] sm:$0xff]
  %v252 = vld [vmem:[%s218 + $0x1b8] sm:$0xff]
  %v253 = vld [vmem:[%s218 + $0x1c8] sm:$0xff]
  %v254 = vld [vmem:[%s218 + $0x1d0] sm:$0xff]
  %v255 = vld [vmem:[%s218 + $0x1e0] sm:$0xff]
  %v256 = vld [vmem:[%s218 + $0x1e8] sm:$0xff]
  %v257 = vld [vmem:[%s218 + $0x1f8] sm:$0xff]
  %v258 = vld [vmem:[%s218 + $0x200] sm:$0xff]
  %v259 = vld [vmem:[%s218 + $0x210] sm:$0xff]
  %v260 = vld [vmem:[%s218 + $0x218] sm:$0xff]
  %v261 = vld [vmem:[%s218 + $0x228] sm:$0xff]
  %v262 = vld [vmem:[%s218 + $0x230] sm:$0xff]
  %v263 = vld [vmem:[%s218 + $0x240] sm:$0xff]
  %v264 = vld [vmem:[%s218 + $0x248] sm:$0xff]
  %v265 = vld [vmem:[%s218 + $0x258] sm:$0xff]
  %v266 = vld [vmem:[%s218 + $0x260] sm:$0xff]
  %v267 = vld [vmem:[%s218 + $0x270] sm:$0xff]
  %v268 = vld [vmem:[%s218 + $0x278] sm:$0xff]
  %v269 = vld [vmem:[%s218 + $0x288] sm:$0xff]
  %v270 = vld [vmem:[%s218 + $0x290] sm:$0xff]
  %v271 = vld [vmem:[%s218 + $0x2a0] sm:$0xff]
  %v272 = vld [vmem:[%s218 + $0x2a8] sm:$0xff]
  %v273 = vld [vmem:[%s218 + $0x2b8] sm:$0xff]
  %v274 = vld [vmem:[%s218 + $0x2c0] sm:$0xff]
  %v275 = vld [vmem:[%s218 + $0x2d0] sm:$0xff]
  %v276 = vld [vmem:[%s218 + $0x2d8] sm:$0xff]
  %v277 = vld [vmem:[%s218 + $0x2e8] sm:$0xff]
  %v278 = vld [vmem:[%s218 + $0x2f0] sm:$0xff]
  %v279 = vld [vmem:[%s218 + $0x300] sm:$0xff]
  %v280 = vld [vmem:[%s218 + $0x308] sm:$0xff]
  %v281 = vld [vmem:[%s218 + $0x318] sm:$0xff]
  %v282 = vld [vmem:[%s218 + $0x320] sm:$0xff]
  %v283 = vld [vmem:[%s218 + $0x1] sm:$0xff]
  %v284 = vld [vmem:[%s218 + $0x9] sm:$0xff]
  %v285 = vld [vmem:[%s218 + $0x19] sm:$0xff]
  %v286 = vld [vmem:[%s218 + $0x21] sm:$0xff]
  %v287 = vld [vmem:[%s218 + $0x31] sm:$0xff]
  %v288 = vld [vmem:[%s218 + $0x39] sm:$0xff]
  %v289 = vld [vmem:[%s218 + $0x49] sm:$0xff]
  %v290 = vld [vmem:[%s218 + $0x51] sm:$0xff]
  %v291 = vld [vmem:[%s218 + $0x61] sm:$0xff]
  %v292 = vld [vmem:[%s218 + $0x69] sm:$0xff]
  %v293 = vld [vmem:[%s218 + $0x79] sm:$0xff]
  %v294 = vld [vmem:[%s218 + $0x81] sm:$0xff]
  %v295 = vld [vmem:[%s218 + $0x91] sm:$0xff]
  %v296 = vld [vmem:[%s218 + $0x99] sm:$0xff]
  %v297 = vld [vmem:[%s218 + $0xa9] sm:$0xff]
  %v298 = vld [vmem:[%s218 + $0xb1] sm:$0xff]
  %v299 = vld [vmem:[%s218 + $0xc1] sm:$0xff]
  %v300 = vld [vmem:[%s218 + $0xc9] sm:$0xff]
  %v301 = vld [vmem:[%s218 + $0xd9] sm:$0xff]
  %v302 = vld [vmem:[%s218 + $0xe1] sm:$0xff]
  %v303 = vld [vmem:[%s218 + $0xf1] sm:$0xff]
  %v304 = vld [vmem:[%s218 + $0xf9] sm:$0xff]
  %v305 = vld [vmem:[%s218 + $0x109] sm:$0xff]
  %v306 = vld [vmem:[%s218 + $0x111] sm:$0xff]
  %v307 = vld [vmem:[%s218 + $0x121] sm:$0xff]
  %v308 = vld [vmem:[%s218 + $0x129] sm:$0xff]
  %v309 = vld [vmem:[%s218 + $0x139] sm:$0xff]
  %v310 = vld [vmem:[%s218 + $0x141] sm:$0xff]
  %v311 = vld [vmem:[%s218 + $0x151] sm:$0xff]
  %v312 = vld [vmem:[%s218 + $0x159] sm:$0xff]
  %v313 = vld [vmem:[%s218 + $0x169] sm:$0xff]
  %v314 = vld [vmem:[%s218 + $0x171] sm:$0xff]
  %v315 = vld [vmem:[%s218 + $0x1b1] sm:$0xff]
  %v316 = vld [vmem:[%s218 + $0x1b9] sm:$0xff]
  %v317 = vld [vmem:[%s218 + $0x1c9] sm:$0xff]
  %v318 = vld [vmem:[%s218 + $0x1d1] sm:$0xff]
  %v319 = vld [vmem:[%s218 + $0x1e1] sm:$0xff]
  %v320 = vld [vmem:[%s218 + $0x1e9] sm:$0xff]
  %v321 = vld [vmem:[%s218 + $0x1f9] sm:$0xff]
  %v322 = vld [vmem:[%s218 + $0x201] sm:$0xff]
  %v323 = vld [vmem:[%s218 + $0x211] sm:$0xff]
  %v324 = vld [vmem:[%s218 + $0x219] sm:$0xff]
  %v325 = vld [vmem:[%s218 + $0x229] sm:$0xff]
  %v326 = vld [vmem:[%s218 + $0x231] sm:$0xff]
  %v327 = vld [vmem:[%s218 + $0x241] sm:$0xff]
  %v328 = vld [vmem:[%s218 + $0x249] sm:$0xff]
  %v329 = vld [vmem:[%s218 + $0x259] sm:$0xff]
  %v330 = vld [vmem:[%s218 + $0x261] sm:$0xff]
  %v331 = vld [vmem:[%s218 + $0x271] sm:$0xff]
  %v332 = vld [vmem:[%s218 + $0x279] sm:$0xff]
  %v333 = vld [vmem:[%s218 + $0x289] sm:$0xff]
  %v334 = vld [vmem:[%s218 + $0x291] sm:$0xff]
  %v335 = vld [vmem:[%s218 + $0x2a1] sm:$0xff]
  %v336 = vld [vmem:[%s218 + $0x2a9] sm:$0xff]
  %v337 = vld [vmem:[%s218 + $0x2b9] sm:$0xff]
  %v338 = vld [vmem:[%s218 + $0x2c1] sm:$0xff]
  %v339 = vld [vmem:[%s218 + $0x2d1] sm:$0xff]
  %v340 = vld [vmem:[%s218 + $0x2d9] sm:$0xff]
  %v341 = vld [vmem:[%s218 + $0x2e9] sm:$0xff]
  %v342 = vld [vmem:[%s218 + $0x2f1] sm:$0xff]
  %v343 = vld [vmem:[%s218 + $0x301] sm:$0xff]
  %v344 = vld [vmem:[%s218 + $0x309] sm:$0xff]
  %v345 = vld [vmem:[%s218 + $0x319] sm:$0xff]
  %v346 = vld [vmem:[%s218 + $0x321] sm:$0xff]
  %v347 = vld [vmem:[%s218 + $0x2] sm:$0xff]
  %v348 = vld [vmem:[%s218 + $0xa] sm:$0xff]
  %v349 = vld [vmem:[%s218 + $0x1a] sm:$0xff]
  %v350 = vld [vmem:[%s218 + $0x22] sm:$0xff]
  %v351 = vld [vmem:[%s218 + $0x32] sm:$0xff]
  %v352 = vld [vmem:[%s218 + $0x3a] sm:$0xff]
  %v353 = vld [vmem:[%s218 + $0x4a] sm:$0xff]
  %v354 = vld [vmem:[%s218 + $0x52] sm:$0xff]
  %v355 = vld [vmem:[%s218 + $0x62] sm:$0xff]
  %v356 = vld [vmem:[%s218 + $0x6a] sm:$0xff]
  %v357 = vld [vmem:[%s218 + $0x7a] sm:$0xff]
  %v358 = vld [vmem:[%s218 + $0x82] sm:$0xff]
  %v359 = vld [vmem:[%s218 + $0x92] sm:$0xff]
  %v360 = vld [vmem:[%s218 + $0x9a] sm:$0xff]
  %v361 = vld [vmem:[%s218 + $0xaa] sm:$0xff]
  %v362 = vld [vmem:[%s218 + $0xb2] sm:$0xff]
  %v363 = vld [vmem:[%s218 + $0xc2] sm:$0xff]
  %v364 = vld [vmem:[%s218 + $0xca] sm:$0xff]
  %v365 = vld [vmem:[%s218 + $0xda] sm:$0xff]
  %v366 = vld [vmem:[%s218 + $0xe2] sm:$0xff]
  %v367 = vld [vmem:[%s218 + $0xf2] sm:$0xff]
  %v368 = vld [vmem:[%s218 + $0xfa] sm:$0xff]
  %v369 = vld [vmem:[%s218 + $0x10a] sm:$0xff]
  %v370 = vld [vmem:[%s218 + $0x112] sm:$0xff]
  %v371 = vld [vmem:[%s218 + $0x122] sm:$0xff]
  %v372 = vld [vmem:[%s218 + $0x12a] sm:$0xff]
  %v373 = vld [vmem:[%s218 + $0x13a] sm:$0xff]
  %v374 = vld [vmem:[%s218 + $0x142] sm:$0xff]
  %v375 = vld [vmem:[%s218 + $0x152] sm:$0xff]
  %v376 = vld [vmem:[%s218 + $0x15a] sm:$0xff]
  %v377 = vld [vmem:[%s218 + $0x16a] sm:$0xff]
  %v378 = vld [vmem:[%s218 + $0x172] sm:$0xff]
  %v379 = vld [vmem:[%s218 + $0x1b2] sm:$0xff]
  %v380 = vld [vmem:[%s218 + $0x1ba] sm:$0xff]
  %v381 = vld [vmem:[%s218 + $0x1ca] sm:$0xff]
  %v382 = vld [vmem:[%s218 + $0x1d2] sm:$0xff]
  %v383 = vld [vmem:[%s218 + $0x1e2] sm:$0xff]
  %v384 = vld [vmem:[%s218 + $0x1ea] sm:$0xff]
  %v385 = vld [vmem:[%s218 + $0x1fa] sm:$0xff]
  %v386 = vld [vmem:[%s218 + $0x202] sm:$0xff]
  %v387 = vld [vmem:[%s218 + $0x212] sm:$0xff]
  %v388 = vld [vmem:[%s218 + $0x21a] sm:$0xff]
  %v389 = vld [vmem:[%s218 + $0x22a] sm:$0xff]
  %v390 = vld [vmem:[%s218 + $0x232] sm:$0xff]
  %v391 = vld [vmem:[%s218 + $0x242] sm:$0xff]
  %v392 = vld [vmem:[%s218 + $0x24a] sm:$0xff]
  %v393 = vld [vmem:[%s218 + $0x25a] sm:$0xff]
  %v394 = vld [vmem:[%s218 + $0x262] sm:$0xff]
  %v395 = vld [vmem:[%s218 + $0x272] sm:$0xff]
  %v396 = vld [vmem:[%s218 + $0x27a] sm:$0xff]
  %v397 = vld [vmem:[%s218 + $0x28a] sm:$0xff]
  %v398 = vld [vmem:[%s218 + $0x292] sm:$0xff]
  %v399 = vld [vmem:[%s218 + $0x2a2] sm:$0xff]
  %v400 = vld [vmem:[%s218 + $0x2aa] sm:$0xff]
  %v401 = vld [vmem:[%s218 + $0x2ba] sm:$0xff]
  %v402 = vld [vmem:[%s218 + $0x2c2] sm:$0xff]
  %v403 = vld [vmem:[%s218 + $0x2d2] sm:$0xff]
  %v404 = vld [vmem:[%s218 + $0x2da] sm:$0xff]
  %v405 = vld [vmem:[%s218 + $0x2ea] sm:$0xff]
  %v406 = vld [vmem:[%s218 + $0x2f2] sm:$0xff]
  %v407 = vld [vmem:[%s218 + $0x302] sm:$0xff]
  %v408 = vld [vmem:[%s218 + $0x30a] sm:$0xff]
  %v409 = vld [vmem:[%s218 + $0x31a] sm:$0xff]
  %v410 = vld [vmem:[%s218 + $0x322] sm:$0xff]
  %s411 = scalar_lea.vmem %s0, 48
  %v412 = vld [vmem:[%s411] sm:$0xff]
  %v413 = vld [vmem:[%s411 + $0x8] sm:$0xff]
  %v414 = vld [vmem:[%s411 + $0x18] sm:$0xff]
  %v415 = vld [vmem:[%s411 + $0x20] sm:$0xff]
  %v416 = vld [vmem:[%s411 + $0x30] sm:$0xff]
  %v417 = vld [vmem:[%s411 + $0x38] sm:$0xff]
  %v418 = vld [vmem:[%s411 + $0x48] sm:$0xff]
  %v419 = vld [vmem:[%s411 + $0x50] sm:$0xff]
  %v420 = vld [vmem:[%s411 + $0x60] sm:$0xff]
  %v421 = vld [vmem:[%s411 + $0x68] sm:$0xff]
  %v422 = vld [vmem:[%s411 + $0x78] sm:$0xff]
  %v423 = vld [vmem:[%s411 + $0x80] sm:$0xff]
  %v424 = vld [vmem:[%s411 + $0x90] sm:$0xff]
  %v425 = vld [vmem:[%s411 + $0x98] sm:$0xff]
  %v426 = vld [vmem:[%s411 + $0xa8] sm:$0xff]
  %v427 = vld [vmem:[%s411 + $0xb0] sm:$0xff]
  %v428 = vld [vmem:[%s411 + $0xc0] sm:$0xff]
  %v429 = vld [vmem:[%s411 + $0xc8] sm:$0xff]
  %v430 = vld [vmem:[%s411 + $0xd8] sm:$0xff]
  %v431 = vld [vmem:[%s411 + $0xe0] sm:$0xff]
  %v432 = vld [vmem:[%s411 + $0xf0] sm:$0xff]
  %v433 = vld [vmem:[%s411 + $0xf8] sm:$0xff]
  %v434 = vld [vmem:[%s411 + $0x108] sm:$0xff]
  %v435 = vld [vmem:[%s411 + $0x110] sm:$0xff]
  %v436 = vld [vmem:[%s411 + $0x120] sm:$0xff]
  %v437 = vld [vmem:[%s411 + $0x128] sm:$0xff]
  %v438 = vld [vmem:[%s411 + $0x138] sm:$0xff]
  %v439 = vld [vmem:[%s411 + $0x140] sm:$0xff]
  %v440 = vld [vmem:[%s411 + $0x150] sm:$0xff]
  %v441 = vld [vmem:[%s411 + $0x158] sm:$0xff]
  %v442 = vld [vmem:[%s411 + $0x168] sm:$0xff]
  %v443 = vld [vmem:[%s411 + $0x170] sm:$0xff]
  %v444 = vld [vmem:[%s411 + $0x1b0] sm:$0xff]
  %v445 = vld [vmem:[%s411 + $0x1b8] sm:$0xff]
  %v446 = vld [vmem:[%s411 + $0x1c8] sm:$0xff]
  %v447 = vld [vmem:[%s411 + $0x1d0] sm:$0xff]
  %v448 = vld [vmem:[%s411 + $0x1e0] sm:$0xff]
  %v449 = vld [vmem:[%s411 + $0x1e8] sm:$0xff]
  %v450 = vld [vmem:[%s411 + $0x1f8] sm:$0xff]
  %v451 = vld [vmem:[%s411 + $0x200] sm:$0xff]
  %v452 = vld [vmem:[%s411 + $0x210] sm:$0xff]
  %v453 = vld [vmem:[%s411 + $0x218] sm:$0xff]
  %v454 = vld [vmem:[%s411 + $0x228] sm:$0xff]
  %v455 = vld [vmem:[%s411 + $0x230] sm:$0xff]
  %v456 = vld [vmem:[%s411 + $0x240] sm:$0xff]
  %v457 = vld [vmem:[%s411 + $0x248] sm:$0xff]
  %v458 = vld [vmem:[%s411 + $0x258] sm:$0xff]
  %v459 = vld [vmem:[%s411 + $0x260] sm:$0xff]
  %v460 = vld [vmem:[%s411 + $0x270] sm:$0xff]
  %v461 = vld [vmem:[%s411 + $0x278] sm:$0xff]
  %v462 = vld [vmem:[%s411 + $0x288] sm:$0xff]
  %v463 = vld [vmem:[%s411 + $0x290] sm:$0xff]
  %v464 = vld [vmem:[%s411 + $0x2a0] sm:$0xff]
  %v465 = vld [vmem:[%s411 + $0x2a8] sm:$0xff]
  %v466 = vld [vmem:[%s411 + $0x2b8] sm:$0xff]
  %v467 = vld [vmem:[%s411 + $0x2c0] sm:$0xff]
  %v468 = vld [vmem:[%s411 + $0x2d0] sm:$0xff]
  %v469 = vld [vmem:[%s411 + $0x2d8] sm:$0xff]
  %v470 = vld [vmem:[%s411 + $0x2e8] sm:$0xff]
  %v471 = vld [vmem:[%s411 + $0x2f0] sm:$0xff]
  %v472 = vld [vmem:[%s411 + $0x300] sm:$0xff]
  %v473 = vld [vmem:[%s411 + $0x308] sm:$0xff]
  %v474 = vld [vmem:[%s411 + $0x318] sm:$0xff]
  %v475 = vld [vmem:[%s411 + $0x320] sm:$0xff]
  %v476 = vld [vmem:[%s411 + $0x1] sm:$0xff]
  %v477 = vld [vmem:[%s411 + $0x9] sm:$0xff]
  %v478 = vld [vmem:[%s411 + $0x19] sm:$0xff]
  %v479 = vld [vmem:[%s411 + $0x21] sm:$0xff]
  %v480 = vld [vmem:[%s411 + $0x31] sm:$0xff]
  %v481 = vld [vmem:[%s411 + $0x39] sm:$0xff]
  %v482 = vld [vmem:[%s411 + $0x49] sm:$0xff]
  %v483 = vld [vmem:[%s411 + $0x51] sm:$0xff]
  %v484 = vld [vmem:[%s411 + $0x61] sm:$0xff]
  %v485 = vld [vmem:[%s411 + $0x69] sm:$0xff]
  %v486 = vld [vmem:[%s411 + $0x79] sm:$0xff]
  %v487 = vld [vmem:[%s411 + $0x81] sm:$0xff]
  %v488 = vld [vmem:[%s411 + $0x91] sm:$0xff]
  %v489 = vld [vmem:[%s411 + $0x99] sm:$0xff]
  %v490 = vld [vmem:[%s411 + $0xa9] sm:$0xff]
  %v491 = vld [vmem:[%s411 + $0xb1] sm:$0xff]
  %v492 = vld [vmem:[%s411 + $0xc1] sm:$0xff]
  %v493 = vld [vmem:[%s411 + $0xc9] sm:$0xff]
  %v494 = vld [vmem:[%s411 + $0xd9] sm:$0xff]
  %v495 = vld [vmem:[%s411 + $0xe1] sm:$0xff]
  %v496 = vld [vmem:[%s411 + $0xf1] sm:$0xff]
  %v497 = vld [vmem:[%s411 + $0xf9] sm:$0xff]
  %v498 = vld [vmem:[%s411 + $0x109] sm:$0xff]
  %v499 = vld [vmem:[%s411 + $0x111] sm:$0xff]
  %v500 = vld [vmem:[%s411 + $0x121] sm:$0xff]
  %v501 = vld [vmem:[%s411 + $0x129] sm:$0xff]
  %v502 = vld [vmem:[%s411 + $0x139] sm:$0xff]
  %v503 = vld [vmem:[%s411 + $0x141] sm:$0xff]
  %v504 = vld [vmem:[%s411 + $0x151] sm:$0xff]
  %v505 = vld [vmem:[%s411 + $0x159] sm:$0xff]
  %v506 = vld [vmem:[%s411 + $0x169] sm:$0xff]
  %v507 = vld [vmem:[%s411 + $0x171] sm:$0xff]
  %v508 = vld [vmem:[%s411 + $0x1b1] sm:$0xff]
  %v509 = vld [vmem:[%s411 + $0x1b9] sm:$0xff]
  %v510 = vld [vmem:[%s411 + $0x1c9] sm:$0xff]
  %v511 = vld [vmem:[%s411 + $0x1d1] sm:$0xff]
  %v512 = vld [vmem:[%s411 + $0x1e1] sm:$0xff]
  %v513 = vld [vmem:[%s411 + $0x1e9] sm:$0xff]
  %v514 = vld [vmem:[%s411 + $0x1f9] sm:$0xff]
  %v515 = vld [vmem:[%s411 + $0x201] sm:$0xff]
  %v516 = vld [vmem:[%s411 + $0x211] sm:$0xff]
  %v517 = vld [vmem:[%s411 + $0x219] sm:$0xff]
  %v518 = vld [vmem:[%s411 + $0x229] sm:$0xff]
  %v519 = vld [vmem:[%s411 + $0x231] sm:$0xff]
  %v520 = vld [vmem:[%s411 + $0x241] sm:$0xff]
  %v521 = vld [vmem:[%s411 + $0x249] sm:$0xff]
  %v522 = vld [vmem:[%s411 + $0x259] sm:$0xff]
  %v523 = vld [vmem:[%s411 + $0x261] sm:$0xff]
  %v524 = vld [vmem:[%s411 + $0x271] sm:$0xff]
  %v525 = vld [vmem:[%s411 + $0x279] sm:$0xff]
  %v526 = vld [vmem:[%s411 + $0x289] sm:$0xff]
  %v527 = vld [vmem:[%s411 + $0x291] sm:$0xff]
  %v528 = vld [vmem:[%s411 + $0x2a1] sm:$0xff]
  %v529 = vld [vmem:[%s411 + $0x2a9] sm:$0xff]
  %v530 = vld [vmem:[%s411 + $0x2b9] sm:$0xff]
  %v531 = vld [vmem:[%s411 + $0x2c1] sm:$0xff]
  %v532 = vld [vmem:[%s411 + $0x2d1] sm:$0xff]
  %v533 = vld [vmem:[%s411 + $0x2d9] sm:$0xff]
  %v534 = vld [vmem:[%s411 + $0x2e9] sm:$0xff]
  %v535 = vld [vmem:[%s411 + $0x2f1] sm:$0xff]
  %v536 = vld [vmem:[%s411 + $0x301] sm:$0xff]
  %v537 = vld [vmem:[%s411 + $0x309] sm:$0xff]
  %v538 = vld [vmem:[%s411 + $0x319] sm:$0xff]
  %v539 = vld [vmem:[%s411 + $0x321] sm:$0xff]
  %v540 = vld [vmem:[%s411 + $0x2] sm:$0xff]
  %v541 = vld [vmem:[%s411 + $0xa] sm:$0xff]
  %v542 = vld [vmem:[%s411 + $0x1a] sm:$0xff]
  %v543 = vld [vmem:[%s411 + $0x22] sm:$0xff]
  %v544 = vld [vmem:[%s411 + $0x32] sm:$0xff]
  %v545 = vld [vmem:[%s411 + $0x3a] sm:$0xff]
  %v546 = vld [vmem:[%s411 + $0x4a] sm:$0xff]
  %v547 = vld [vmem:[%s411 + $0x52] sm:$0xff]
  %v548 = vld [vmem:[%s411 + $0x62] sm:$0xff]
  %v549 = vld [vmem:[%s411 + $0x6a] sm:$0xff]
  %v550 = vld [vmem:[%s411 + $0x7a] sm:$0xff]
  %v551 = vld [vmem:[%s411 + $0x82] sm:$0xff]
  %v552 = vld [vmem:[%s411 + $0x92] sm:$0xff]
  %v553 = vld [vmem:[%s411 + $0x9a] sm:$0xff]
  %v554 = vld [vmem:[%s411 + $0xaa] sm:$0xff]
  %v555 = vld [vmem:[%s411 + $0xb2] sm:$0xff]
  %v556 = vld [vmem:[%s411 + $0xc2] sm:$0xff]
  %v557 = vld [vmem:[%s411 + $0xca] sm:$0xff]
  %v558 = vld [vmem:[%s411 + $0xda] sm:$0xff]
  %v559 = vld [vmem:[%s411 + $0xe2] sm:$0xff]
  %v560 = vld [vmem:[%s411 + $0xf2] sm:$0xff]
  %v561 = vld [vmem:[%s411 + $0xfa] sm:$0xff]
  %v562 = vld [vmem:[%s411 + $0x10a] sm:$0xff]
  %v563 = vld [vmem:[%s411 + $0x112] sm:$0xff]
  %v564 = vld [vmem:[%s411 + $0x122] sm:$0xff]
  %v565 = vld [vmem:[%s411 + $0x12a] sm:$0xff]
  %v566 = vld [vmem:[%s411 + $0x13a] sm:$0xff]
  %v567 = vld [vmem:[%s411 + $0x142] sm:$0xff]
  %v568 = vld [vmem:[%s411 + $0x152] sm:$0xff]
  %v569 = vld [vmem:[%s411 + $0x15a] sm:$0xff]
  %v570 = vld [vmem:[%s411 + $0x16a] sm:$0xff]
  %v571 = vld [vmem:[%s411 + $0x172] sm:$0xff]
  %v572 = vld [vmem:[%s411 + $0x1b2] sm:$0xff]
  %v573 = vld [vmem:[%s411 + $0x1ba] sm:$0xff]
  %v574 = vld [vmem:[%s411 + $0x1ca] sm:$0xff]
  %v575 = vld [vmem:[%s411 + $0x1d2] sm:$0xff]
  %v576 = vld [vmem:[%s411 + $0x1e2] sm:$0xff]
  %v577 = vld [vmem:[%s411 + $0x1ea] sm:$0xff]
  %v578 = vld [vmem:[%s411 + $0x1fa] sm:$0xff]
  %v579 = vld [vmem:[%s411 + $0x202] sm:$0xff]
  %v580 = vld [vmem:[%s411 + $0x212] sm:$0xff]
  %v581 = vld [vmem:[%s411 + $0x21a] sm:$0xff]
  %v582 = vld [vmem:[%s411 + $0x22a] sm:$0xff]
  %v583 = vld [vmem:[%s411 + $0x232] sm:$0xff]
  %v584 = vld [vmem:[%s411 + $0x242] sm:$0xff]
  %v585 = vld [vmem:[%s411 + $0x24a] sm:$0xff]
  %v586 = vld [vmem:[%s411 + $0x25a] sm:$0xff]
  %v587 = vld [vmem:[%s411 + $0x262] sm:$0xff]
  %v588 = vld [vmem:[%s411 + $0x272] sm:$0xff]
  %v589 = vld [vmem:[%s411 + $0x27a] sm:$0xff]
  %v590 = vld [vmem:[%s411 + $0x28a] sm:$0xff]
  %v591 = vld [vmem:[%s411 + $0x292] sm:$0xff]
  %v592 = vld [vmem:[%s411 + $0x2a2] sm:$0xff]
  %v593 = vld [vmem:[%s411 + $0x2aa] sm:$0xff]
  %v594 = vld [vmem:[%s411 + $0x2ba] sm:$0xff]
  %v595 = vld [vmem:[%s411 + $0x2c2] sm:$0xff]
  %v596 = vld [vmem:[%s411 + $0x2d2] sm:$0xff]
  %v597 = vld [vmem:[%s411 + $0x2da] sm:$0xff]
  %v598 = vld [vmem:[%s411 + $0x2ea] sm:$0xff]
  %v599 = vld [vmem:[%s411 + $0x2f2] sm:$0xff]
  %v600 = vld [vmem:[%s411 + $0x302] sm:$0xff]
  %v601 = vld [vmem:[%s411 + $0x30a] sm:$0xff]
  %v602 = vld [vmem:[%s411 + $0x31a] sm:$0xff]
  %v603 = vld [vmem:[%s411 + $0x322] sm:$0xff]
  %668 = vrot.lane.b32.xlu0 %v90, 4
  %v669 = vpop.permute.xlu0 %668
  %670 = vrot.lane.b32.xlu0 %v91, 4
  %v671 = vpop.permute.xlu0 %670
  %672 = vrot.lane.b32.xlu0 %v92, 4
  %v673 = vpop.permute.xlu0 %672
  %674 = vrot.lane.b32.xlu0 %v93, 4
  %v675 = vpop.permute.xlu0 %674
  %676 = vrot.lane.b32.xlu0 %v94, 4
  %v677 = vpop.permute.xlu0 %676
  %678 = vrot.lane.b32.xlu0 %v95, 4
  %v679 = vpop.permute.xlu0 %678
  %680 = vrot.lane.b32.xlu0 %v96, 4
  %v681 = vpop.permute.xlu0 %680
  %682 = vrot.lane.b32.xlu0 %v97, 4
  %v683 = vpop.permute.xlu0 %682
  %684 = vrot.lane.b32.xlu0 %v98, 4
  %v685 = vpop.permute.xlu0 %684
  %686 = vrot.lane.b32.xlu0 %v99, 4
  %v687 = vpop.permute.xlu0 %686
  %688 = vrot.lane.b32.xlu0 %v100, 4
  %v689 = vpop.permute.xlu0 %688
  %690 = vrot.lane.b32.xlu0 %v101, 4
  %v691 = vpop.permute.xlu0 %690
  %692 = vrot.lane.b32.xlu0 %v102, 4
  %v693 = vpop.permute.xlu0 %692
  %694 = vrot.lane.b32.xlu0 %v103, 4
  %v695 = vpop.permute.xlu0 %694
  %696 = vrot.lane.b32.xlu0 %v104, 4
  %v697 = vpop.permute.xlu0 %696
  %698 = vrot.lane.b32.xlu0 %v105, 4
  %v699 = vpop.permute.xlu0 %698
  %700 = vrot.lane.b32.xlu0 %v106, 4
  %v701 = vpop.permute.xlu0 %700
  %702 = vrot.lane.b32.xlu0 %v107, 4
  %v703 = vpop.permute.xlu0 %702
  %704 = vrot.lane.b32.xlu0 %v108, 4
  %v705 = vpop.permute.xlu0 %704
  %706 = vrot.lane.b32.xlu0 %v109, 4
  %v707 = vpop.permute.xlu0 %706
  %708 = vrot.lane.b32.xlu0 %v110, 4
  %v709 = vpop.permute.xlu0 %708
  %710 = vrot.lane.b32.xlu0 %v111, 4
  %v711 = vpop.permute.xlu0 %710
  %712 = vrot.lane.b32.xlu0 %v112, 4
  %v713 = vpop.permute.xlu0 %712
  %714 = vrot.lane.b32.xlu0 %v113, 4
  %v715 = vpop.permute.xlu0 %714
  %716 = vrot.lane.b32.xlu0 %v114, 4
  %v717 = vpop.permute.xlu0 %716
  %718 = vrot.lane.b32.xlu0 %v115, 4
  %v719 = vpop.permute.xlu0 %718
  %720 = vrot.lane.b32.xlu0 %v116, 4
  %v721 = vpop.permute.xlu0 %720
  %722 = vrot.lane.b32.xlu0 %v117, 4
  %v723 = vpop.permute.xlu0 %722
  %724 = vrot.lane.b32.xlu0 %v118, 4
  %v725 = vpop.permute.xlu0 %724
  %726 = vrot.lane.b32.xlu0 %v119, 4
  %v727 = vpop.permute.xlu0 %726
  %728 = vrot.lane.b32.xlu0 %v120, 4
  %v729 = vpop.permute.xlu0 %728
  %730 = vrot.lane.b32.xlu0 %v121, 4
  %v731 = vpop.permute.xlu0 %730
  %732 = vrot.lane.b32.xlu0 %v122, 4
  %v733 = vpop.permute.xlu0 %732
  %734 = vrot.lane.b32.xlu0 %v123, 4
  %v735 = vpop.permute.xlu0 %734
  %736 = vrot.lane.b32.xlu0 %v124, 4
  %v737 = vpop.permute.xlu0 %736
  %738 = vrot.lane.b32.xlu0 %v125, 4
  %v739 = vpop.permute.xlu0 %738
  %740 = vrot.lane.b32.xlu0 %v126, 4
  %v741 = vpop.permute.xlu0 %740
  %742 = vrot.lane.b32.xlu0 %v127, 4
  %v743 = vpop.permute.xlu0 %742
  %744 = vrot.lane.b32.xlu0 %v128, 4
  %v745 = vpop.permute.xlu0 %744
  %746 = vrot.lane.b32.xlu0 %v129, 4
  %v747 = vpop.permute.xlu0 %746
  %748 = vrot.lane.b32.xlu0 %v130, 4
  %v749 = vpop.permute.xlu0 %748
  %750 = vrot.lane.b32.xlu0 %v131, 4
  %v751 = vpop.permute.xlu0 %750
  %752 = vrot.lane.b32.xlu0 %v132, 4
  %v753 = vpop.permute.xlu0 %752
  %754 = vrot.lane.b32.xlu0 %v133, 4
  %v755 = vpop.permute.xlu0 %754
  %756 = vrot.lane.b32.xlu0 %v134, 4
  %v757 = vpop.permute.xlu0 %756
  %758 = vrot.lane.b32.xlu0 %v135, 4
  %v759 = vpop.permute.xlu0 %758
  %760 = vrot.lane.b32.xlu0 %v136, 4
  %v761 = vpop.permute.xlu0 %760
  %762 = vrot.lane.b32.xlu0 %v137, 4
  %v763 = vpop.permute.xlu0 %762
  %764 = vrot.lane.b32.xlu0 %v138, 4
  %v765 = vpop.permute.xlu0 %764
  %766 = vrot.lane.b32.xlu0 %v139, 4
  %v767 = vpop.permute.xlu0 %766
  %768 = vrot.lane.b32.xlu0 %v140, 4
  %v769 = vpop.permute.xlu0 %768
  %770 = vrot.lane.b32.xlu0 %v141, 4
  %v771 = vpop.permute.xlu0 %770
  %772 = vrot.lane.b32.xlu0 %v142, 4
  %v773 = vpop.permute.xlu0 %772
  %774 = vrot.lane.b32.xlu0 %v143, 4
  %v775 = vpop.permute.xlu0 %774
  %776 = vrot.lane.b32.xlu0 %v144, 4
  %v777 = vpop.permute.xlu0 %776
  %778 = vrot.lane.b32.xlu0 %v145, 4
  %v779 = vpop.permute.xlu0 %778
  %780 = vrot.lane.b32.xlu0 %v146, 4
  %v781 = vpop.permute.xlu0 %780
  %782 = vrot.lane.b32.xlu0 %v147, 4
  %v783 = vpop.permute.xlu0 %782
  %784 = vrot.lane.b32.xlu0 %v148, 4
  %v785 = vpop.permute.xlu0 %784
  %786 = vrot.lane.b32.xlu0 %v149, 4
  %v787 = vpop.permute.xlu0 %786
  %788 = vrot.lane.b32.xlu0 %v150, 4
  %v789 = vpop.permute.xlu0 %788
  %790 = vrot.lane.b32.xlu0 %v151, 4
  %v791 = vpop.permute.xlu0 %790
  %792 = vrot.lane.b32.xlu0 %v152, 4
  %v793 = vpop.permute.xlu0 %792
  %794 = vrot.lane.b32.xlu0 %v153, 4
  %v795 = vpop.permute.xlu0 %794
  %924 = vrot.lane.b32.xlu0 %v154, 8
  %v925 = vpop.permute.xlu0 %924
  %926 = vrot.lane.b32.xlu0 %v155, 8
  %v927 = vpop.permute.xlu0 %926
  %928 = vrot.lane.b32.xlu0 %v156, 8
  %v929 = vpop.permute.xlu0 %928
  %930 = vrot.lane.b32.xlu0 %v157, 8
  %v931 = vpop.permute.xlu0 %930
  %932 = vrot.lane.b32.xlu0 %v158, 8
  %v933 = vpop.permute.xlu0 %932
  %934 = vrot.lane.b32.xlu0 %v159, 8
  %v935 = vpop.permute.xlu0 %934
  %936 = vrot.lane.b32.xlu0 %v160, 8
  %v937 = vpop.permute.xlu0 %936
  %938 = vrot.lane.b32.xlu0 %v161, 8
  %v939 = vpop.permute.xlu0 %938
  %940 = vrot.lane.b32.xlu0 %v162, 8
  %v941 = vpop.permute.xlu0 %940
  %942 = vrot.lane.b32.xlu0 %v163, 8
  %v943 = vpop.permute.xlu0 %942
  %944 = vrot.lane.b32.xlu0 %v164, 8
  %v945 = vpop.permute.xlu0 %944
  %946 = vrot.lane.b32.xlu0 %v165, 8
  %v947 = vpop.permute.xlu0 %946
  %948 = vrot.lane.b32.xlu0 %v166, 8
  %v949 = vpop.permute.xlu0 %948
  %950 = vrot.lane.b32.xlu0 %v167, 8
  %v951 = vpop.permute.xlu0 %950
  %952 = vrot.lane.b32.xlu0 %v168, 8
  %v953 = vpop.permute.xlu0 %952
  %954 = vrot.lane.b32.xlu0 %v169, 8
  %v955 = vpop.permute.xlu0 %954
  %956 = vrot.lane.b32.xlu0 %v170, 8
  %v957 = vpop.permute.xlu0 %956
  %958 = vrot.lane.b32.xlu0 %v171, 8
  %v959 = vpop.permute.xlu0 %958
  %960 = vrot.lane.b32.xlu0 %v172, 8
  %v961 = vpop.permute.xlu0 %960
  %962 = vrot.lane.b32.xlu0 %v173, 8
  %v963 = vpop.permute.xlu0 %962
  %964 = vrot.lane.b32.xlu0 %v174, 8
  %v965 = vpop.permute.xlu0 %964
  %966 = vrot.lane.b32.xlu0 %v175, 8
  %v967 = vpop.permute.xlu0 %966
  %968 = vrot.lane.b32.xlu0 %v176, 8
  %v969 = vpop.permute.xlu0 %968
  %970 = vrot.lane.b32.xlu0 %v177, 8
  %v971 = vpop.permute.xlu0 %970
  %972 = vrot.lane.b32.xlu0 %v178, 8
  %v973 = vpop.permute.xlu0 %972
  %974 = vrot.lane.b32.xlu0 %v179, 8
  %v975 = vpop.permute.xlu0 %974
  %976 = vrot.lane.b32.xlu0 %v180, 8
  %v977 = vpop.permute.xlu0 %976
  %978 = vrot.lane.b32.xlu0 %v181, 8
  %v979 = vpop.permute.xlu0 %978
  %980 = vrot.lane.b32.xlu0 %v182, 8
  %v981 = vpop.permute.xlu0 %980
  %982 = vrot.lane.b32.xlu0 %v183, 8
  %v983 = vpop.permute.xlu0 %982
  %984 = vrot.lane.b32.xlu0 %v184, 8
  %v985 = vpop.permute.xlu0 %984
  %986 = vrot.lane.b32.xlu0 %v185, 8
  %v987 = vpop.permute.xlu0 %986
  %988 = vrot.lane.b32.xlu0 %v186, 8
  %v989 = vpop.permute.xlu0 %988
  %990 = vrot.lane.b32.xlu0 %v187, 8
  %v991 = vpop.permute.xlu0 %990
  %992 = vrot.lane.b32.xlu0 %v188, 8
  %v993 = vpop.permute.xlu0 %992
  %994 = vrot.lane.b32.xlu0 %v189, 8
  %v995 = vpop.permute.xlu0 %994
  %996 = vrot.lane.b32.xlu0 %v190, 8
  %v997 = vpop.permute.xlu0 %996
  %998 = vrot.lane.b32.xlu0 %v191, 8
  %v999 = vpop.permute.xlu0 %998
  %1000 = vrot.lane.b32.xlu0 %v192, 8
  %v1001 = vpop.permute.xlu0 %1000
  %1002 = vrot.lane.b32.xlu0 %v193, 8
  %v1003 = vpop.permute.xlu0 %1002
  %1004 = vrot.lane.b32.xlu0 %v194, 8
  %v1005 = vpop.permute.xlu0 %1004
  %1006 = vrot.lane.b32.xlu0 %v195, 8
  %v1007 = vpop.permute.xlu0 %1006
  %1008 = vrot.lane.b32.xlu0 %v196, 8
  %v1009 = vpop.permute.xlu0 %1008
  %1010 = vrot.lane.b32.xlu0 %v197, 8
  %v1011 = vpop.permute.xlu0 %1010
  %1012 = vrot.lane.b32.xlu0 %v198, 8
  %v1013 = vpop.permute.xlu0 %1012
  %1014 = vrot.lane.b32.xlu0 %v199, 8
  %v1015 = vpop.permute.xlu0 %1014
  %1016 = vrot.lane.b32.xlu0 %v200, 8
  %v1017 = vpop.permute.xlu0 %1016
  %1018 = vrot.lane.b32.xlu0 %v201, 8
  %v1019 = vpop.permute.xlu0 %1018
  %1020 = vrot.lane.b32.xlu0 %v202, 8
  %v1021 = vpop.permute.xlu0 %1020
  %1022 = vrot.lane.b32.xlu0 %v203, 8
  %v1023 = vpop.permute.xlu0 %1022
  %1024 = vrot.lane.b32.xlu0 %v204, 8
  %v1025 = vpop.permute.xlu0 %1024
  %1026 = vrot.lane.b32.xlu0 %v205, 8
  %v1027 = vpop.permute.xlu0 %1026
  %1028 = vrot.lane.b32.xlu0 %v206, 8
  %v1029 = vpop.permute.xlu0 %1028
  %1030 = vrot.lane.b32.xlu0 %v207, 8
  %v1031 = vpop.permute.xlu0 %1030
  %1032 = vrot.lane.b32.xlu0 %v208, 8
  %v1033 = vpop.permute.xlu0 %1032
  %1034 = vrot.lane.b32.xlu0 %v209, 8
  %v1035 = vpop.permute.xlu0 %1034
  %1036 = vrot.lane.b32.xlu0 %v210, 8
  %v1037 = vpop.permute.xlu0 %1036
  %1038 = vrot.lane.b32.xlu0 %v211, 8
  %v1039 = vpop.permute.xlu0 %1038
  %1040 = vrot.lane.b32.xlu0 %v212, 8
  %v1041 = vpop.permute.xlu0 %1040
  %1042 = vrot.lane.b32.xlu0 %v213, 8
  %v1043 = vpop.permute.xlu0 %1042
  %1044 = vrot.lane.b32.xlu0 %v214, 8
  %v1045 = vpop.permute.xlu0 %1044
  %1046 = vrot.lane.b32.xlu0 %v215, 8
  %v1047 = vpop.permute.xlu0 %1046
  %1048 = vrot.lane.b32.xlu0 %v216, 8
  %v1049 = vpop.permute.xlu0 %1048
  %1050 = vrot.lane.b32.xlu0 %v217, 8
  %v1051 = vpop.permute.xlu0 %1050
  %1180 = vrot.lane.b32.xlu0 %v219, 12
  %v1181 = vpop.permute.xlu0 %1180
  %1182 = vrot.lane.b32.xlu0 %v220, 12
  %v1183 = vpop.permute.xlu0 %1182
  %1184 = vrot.lane.b32.xlu0 %v221, 12
  %v1185 = vpop.permute.xlu0 %1184
  %1186 = vrot.lane.b32.xlu0 %v222, 12
  %v1187 = vpop.permute.xlu0 %1186
  %1188 = vrot.lane.b32.xlu0 %v223, 12
  %v1189 = vpop.permute.xlu0 %1188
  %1190 = vrot.lane.b32.xlu0 %v224, 12
  %v1191 = vpop.permute.xlu0 %1190
  %1192 = vrot.lane.b32.xlu0 %v225, 12
  %v1193 = vpop.permute.xlu0 %1192
  %1194 = vrot.lane.b32.xlu0 %v226, 12
  %v1195 = vpop.permute.xlu0 %1194
  %1196 = vrot.lane.b32.xlu0 %v227, 12
  %v1197 = vpop.permute.xlu0 %1196
  %1198 = vrot.lane.b32.xlu0 %v228, 12
  %v1199 = vpop.permute.xlu0 %1198
  %1200 = vrot.lane.b32.xlu0 %v229, 12
  %v1201 = vpop.permute.xlu0 %1200
  %1202 = vrot.lane.b32.xlu0 %v230, 12
  %v1203 = vpop.permute.xlu0 %1202
  %1204 = vrot.lane.b32.xlu0 %v231, 12
  %v1205 = vpop.permute.xlu0 %1204
  %1206 = vrot.lane.b32.xlu0 %v232, 12
  %v1207 = vpop.permute.xlu0 %1206
  %1208 = vrot.lane.b32.xlu0 %v233, 12
  %v1209 = vpop.permute.xlu0 %1208
  %1210 = vrot.lane.b32.xlu0 %v234, 12
  %v1211 = vpop.permute.xlu0 %1210
  %1212 = vrot.lane.b32.xlu0 %v235, 12
  %v1213 = vpop.permute.xlu0 %1212
  %1214 = vrot.lane.b32.xlu0 %v236, 12
  %v1215 = vpop.permute.xlu0 %1214
  %1216 = vrot.lane.b32.xlu0 %v237, 12
  %v1217 = vpop.permute.xlu0 %1216
  %1218 = vrot.lane.b32.xlu0 %v238, 12
  %v1219 = vpop.permute.xlu0 %1218
  %1220 = vrot.lane.b32.xlu0 %v239, 12
  %v1221 = vpop.permute.xlu0 %1220
  %1222 = vrot.lane.b32.xlu0 %v240, 12
  %v1223 = vpop.permute.xlu0 %1222
  %1224 = vrot.lane.b32.xlu0 %v241, 12
  %v1225 = vpop.permute.xlu0 %1224
  %1226 = vrot.lane.b32.xlu0 %v242, 12
  %v1227 = vpop.permute.xlu0 %1226
  %1228 = vrot.lane.b32.xlu0 %v243, 12
  %v1229 = vpop.permute.xlu0 %1228
  %1230 = vrot.lane.b32.xlu0 %v244, 12
  %v1231 = vpop.permute.xlu0 %1230
  %1232 = vrot.lane.b32.xlu0 %v245, 12
  %v1233 = vpop.permute.xlu0 %1232
  %1234 = vrot.lane.b32.xlu0 %v246, 12
  %v1235 = vpop.permute.xlu0 %1234
  %1236 = vrot.lane.b32.xlu0 %v247, 12
  %v1237 = vpop.permute.xlu0 %1236
  %1238 = vrot.lane.b32.xlu0 %v248, 12
  %v1239 = vpop.permute.xlu0 %1238
  %1240 = vrot.lane.b32.xlu0 %v249, 12
  %v1241 = vpop.permute.xlu0 %1240
  %1242 = vrot.lane.b32.xlu0 %v250, 12
  %v1243 = vpop.permute.xlu0 %1242
  %1244 = vrot.lane.b32.xlu0 %v251, 12
  %v1245 = vpop.permute.xlu0 %1244
  %1246 = vrot.lane.b32.xlu0 %v252, 12
  %v1247 = vpop.permute.xlu0 %1246
  %1248 = vrot.lane.b32.xlu0 %v253, 12
  %v1249 = vpop.permute.xlu0 %1248
  %1250 = vrot.lane.b32.xlu0 %v254, 12
  %v1251 = vpop.permute.xlu0 %1250
  %1252 = vrot.lane.b32.xlu0 %v255, 12
  %v1253 = vpop.permute.xlu0 %1252
  %1254 = vrot.lane.b32.xlu0 %v256, 12
  %v1255 = vpop.permute.xlu0 %1254
  %1256 = vrot.lane.b32.xlu0 %v257, 12
  %v1257 = vpop.permute.xlu0 %1256
  %1258 = vrot.lane.b32.xlu0 %v258, 12
  %v1259 = vpop.permute.xlu0 %1258
  %1260 = vrot.lane.b32.xlu0 %v259, 12
  %v1261 = vpop.permute.xlu0 %1260
  %1262 = vrot.lane.b32.xlu0 %v260, 12
  %v1263 = vpop.permute.xlu0 %1262
  %1264 = vrot.lane.b32.xlu0 %v261, 12
  %v1265 = vpop.permute.xlu0 %1264
  %1266 = vrot.lane.b32.xlu0 %v262, 12
  %v1267 = vpop.permute.xlu0 %1266
  %1268 = vrot.lane.b32.xlu0 %v263, 12
  %v1269 = vpop.permute.xlu0 %1268
  %1270 = vrot.lane.b32.xlu0 %v264, 12
  %v1271 = vpop.permute.xlu0 %1270
  %1272 = vrot.lane.b32.xlu0 %v265, 12
  %v1273 = vpop.permute.xlu0 %1272
  %1274 = vrot.lane.b32.xlu0 %v266, 12
  %v1275 = vpop.permute.xlu0 %1274
  %1276 = vrot.lane.b32.xlu0 %v267, 12
  %v1277 = vpop.permute.xlu0 %1276
  %1278 = vrot.lane.b32.xlu0 %v268, 12
  %v1279 = vpop.permute.xlu0 %1278
  %1280 = vrot.lane.b32.xlu0 %v269, 12
  %v1281 = vpop.permute.xlu0 %1280
  %1282 = vrot.lane.b32.xlu0 %v270, 12
  %v1283 = vpop.permute.xlu0 %1282
  %1284 = vrot.lane.b32.xlu0 %v271, 12
  %v1285 = vpop.permute.xlu0 %1284
  %1286 = vrot.lane.b32.xlu0 %v272, 12
  %v1287 = vpop.permute.xlu0 %1286
  %1288 = vrot.lane.b32.xlu0 %v273, 12
  %v1289 = vpop.permute.xlu0 %1288
  %1290 = vrot.lane.b32.xlu0 %v274, 12
  %v1291 = vpop.permute.xlu0 %1290
  %1292 = vrot.lane.b32.xlu0 %v275, 12
  %v1293 = vpop.permute.xlu0 %1292
  %1294 = vrot.lane.b32.xlu0 %v276, 12
  %v1295 = vpop.permute.xlu0 %1294
  %1296 = vrot.lane.b32.xlu0 %v277, 12
  %v1297 = vpop.permute.xlu0 %1296
  %1298 = vrot.lane.b32.xlu0 %v278, 12
  %v1299 = vpop.permute.xlu0 %1298
  %1300 = vrot.lane.b32.xlu0 %v279, 12
  %v1301 = vpop.permute.xlu0 %1300
  %1302 = vrot.lane.b32.xlu0 %v280, 12
  %v1303 = vpop.permute.xlu0 %1302
  %1304 = vrot.lane.b32.xlu0 %v281, 12
  %v1305 = vpop.permute.xlu0 %1304
  %1306 = vrot.lane.b32.xlu0 %v282, 12
  %v1307 = vpop.permute.xlu0 %1306
  %1436 = vrot.lane.b32.xlu0 %v283, 16
  %v1437 = vpop.permute.xlu0 %1436
  %1438 = vrot.lane.b32.xlu0 %v284, 16
  %v1439 = vpop.permute.xlu0 %1438
  %1440 = vrot.lane.b32.xlu0 %v285, 16
  %v1441 = vpop.permute.xlu0 %1440
  %1442 = vrot.lane.b32.xlu0 %v286, 16
  %v1443 = vpop.permute.xlu0 %1442
  %1444 = vrot.lane.b32.xlu0 %v287, 16
  %v1445 = vpop.permute.xlu0 %1444
  %1446 = vrot.lane.b32.xlu0 %v288, 16
  %v1447 = vpop.permute.xlu0 %1446
  %1448 = vrot.lane.b32.xlu0 %v289, 16
  %v1449 = vpop.permute.xlu0 %1448
  %1450 = vrot.lane.b32.xlu0 %v290, 16
  %v1451 = vpop.permute.xlu0 %1450
  %1452 = vrot.lane.b32.xlu0 %v291, 16
  %v1453 = vpop.permute.xlu0 %1452
  %1454 = vrot.lane.b32.xlu0 %v292, 16
  %v1455 = vpop.permute.xlu0 %1454
  %1456 = vrot.lane.b32.xlu0 %v293, 16
  %v1457 = vpop.permute.xlu0 %1456
  %1458 = vrot.lane.b32.xlu0 %v294, 16
  %v1459 = vpop.permute.xlu0 %1458
  %1460 = vrot.lane.b32.xlu0 %v295, 16
  %v1461 = vpop.permute.xlu0 %1460
  %1462 = vrot.lane.b32.xlu0 %v296, 16
  %v1463 = vpop.permute.xlu0 %1462
  %1464 = vrot.lane.b32.xlu0 %v297, 16
  %v1465 = vpop.permute.xlu0 %1464
  %1466 = vrot.lane.b32.xlu0 %v298, 16
  %v1467 = vpop.permute.xlu0 %1466
  %1468 = vrot.lane.b32.xlu0 %v299, 16
  %v1469 = vpop.permute.xlu0 %1468
  %1470 = vrot.lane.b32.xlu0 %v300, 16
  %v1471 = vpop.permute.xlu0 %1470
  %1472 = vrot.lane.b32.xlu0 %v301, 16
  %v1473 = vpop.permute.xlu0 %1472
  %1474 = vrot.lane.b32.xlu0 %v302, 16
  %v1475 = vpop.permute.xlu0 %1474
  %1476 = vrot.lane.b32.xlu0 %v303, 16
  %v1477 = vpop.permute.xlu0 %1476
  %1478 = vrot.lane.b32.xlu0 %v304, 16
  %v1479 = vpop.permute.xlu0 %1478
  %1480 = vrot.lane.b32.xlu0 %v305, 16
  %v1481 = vpop.permute.xlu0 %1480
  %1482 = vrot.lane.b32.xlu0 %v306, 16
  %v1483 = vpop.permute.xlu0 %1482
  %1484 = vrot.lane.b32.xlu0 %v307, 16
  %v1485 = vpop.permute.xlu0 %1484
  %1486 = vrot.lane.b32.xlu0 %v308, 16
  %v1487 = vpop.permute.xlu0 %1486
  %1488 = vrot.lane.b32.xlu0 %v309, 16
  %v1489 = vpop.permute.xlu0 %1488
  %1490 = vrot.lane.b32.xlu0 %v310, 16
  %v1491 = vpop.permute.xlu0 %1490
  %1492 = vrot.lane.b32.xlu0 %v311, 16
  %v1493 = vpop.permute.xlu0 %1492
  %1494 = vrot.lane.b32.xlu0 %v312, 16
  %v1495 = vpop.permute.xlu0 %1494
  %1496 = vrot.lane.b32.xlu0 %v313, 16
  %v1497 = vpop.permute.xlu0 %1496
  %1498 = vrot.lane.b32.xlu0 %v314, 16
  %v1499 = vpop.permute.xlu0 %1498
  %1500 = vrot.lane.b32.xlu0 %v315, 16
  %v1501 = vpop.permute.xlu0 %1500
  %1502 = vrot.lane.b32.xlu0 %v316, 16
  %v1503 = vpop.permute.xlu0 %1502
  %1504 = vrot.lane.b32.xlu0 %v317, 16
  %v1505 = vpop.permute.xlu0 %1504
  %1506 = vrot.lane.b32.xlu0 %v318, 16
  %v1507 = vpop.permute.xlu0 %1506
  %1508 = vrot.lane.b32.xlu0 %v319, 16
  %v1509 = vpop.permute.xlu0 %1508
  %1510 = vrot.lane.b32.xlu0 %v320, 16
  %v1511 = vpop.permute.xlu0 %1510
  %1512 = vrot.lane.b32.xlu0 %v321, 16
  %v1513 = vpop.permute.xlu0 %1512
  %1514 = vrot.lane.b32.xlu0 %v322, 16
  %v1515 = vpop.permute.xlu0 %1514
  %1516 = vrot.lane.b32.xlu0 %v323, 16
  %v1517 = vpop.permute.xlu0 %1516
  %1518 = vrot.lane.b32.xlu0 %v324, 16
  %v1519 = vpop.permute.xlu0 %1518
  %1520 = vrot.lane.b32.xlu0 %v325, 16
  %v1521 = vpop.permute.xlu0 %1520
  %1522 = vrot.lane.b32.xlu0 %v326, 16
  %v1523 = vpop.permute.xlu0 %1522
  %1524 = vrot.lane.b32.xlu0 %v327, 16
  %v1525 = vpop.permute.xlu0 %1524
  %1526 = vrot.lane.b32.xlu0 %v328, 16
  %v1527 = vpop.permute.xlu0 %1526
  %1528 = vrot.lane.b32.xlu0 %v329, 16
  %v1529 = vpop.permute.xlu0 %1528
  %1530 = vrot.lane.b32.xlu0 %v330, 16
  %v1531 = vpop.permute.xlu0 %1530
  %1532 = vrot.lane.b32.xlu0 %v331, 16
  %v1533 = vpop.permute.xlu0 %1532
  %1534 = vrot.lane.b32.xlu0 %v332, 16
  %v1535 = vpop.permute.xlu0 %1534
  %1536 = vrot.lane.b32.xlu0 %v333, 16
  %v1537 = vpop.permute.xlu0 %1536
  %1538 = vrot.lane.b32.xlu0 %v334, 16
  %v1539 = vpop.permute.xlu0 %1538
  %1540 = vrot.lane.b32.xlu0 %v335, 16
  %v1541 = vpop.permute.xlu0 %1540
  %1542 = vrot.lane.b32.xlu0 %v336, 16
  %v1543 = vpop.permute.xlu0 %1542
  %1544 = vrot.lane.b32.xlu0 %v337, 16
  %v1545 = vpop.permute.xlu0 %1544
  %1546 = vrot.lane.b32.xlu0 %v338, 16
  %v1547 = vpop.permute.xlu0 %1546
  %1548 = vrot.lane.b32.xlu0 %v339, 16
  %v1549 = vpop.permute.xlu0 %1548
  %1550 = vrot.lane.b32.xlu0 %v340, 16
  %v1551 = vpop.permute.xlu0 %1550
  %1552 = vrot.lane.b32.xlu0 %v341, 16
  %v1553 = vpop.permute.xlu0 %1552
  %1554 = vrot.lane.b32.xlu0 %v342, 16
  %v1555 = vpop.permute.xlu0 %1554
  %1556 = vrot.lane.b32.xlu0 %v343, 16
  %v1557 = vpop.permute.xlu0 %1556
  %1558 = vrot.lane.b32.xlu0 %v344, 16
  %v1559 = vpop.permute.xlu0 %1558
  %1560 = vrot.lane.b32.xlu0 %v345, 16
  %v1561 = vpop.permute.xlu0 %1560
  %1562 = vrot.lane.b32.xlu0 %v346, 16
  %v1563 = vpop.permute.xlu0 %1562
  %1692 = vrot.lane.b32.xlu0 %v347, 20
  %v1693 = vpop.permute.xlu0 %1692
  %1694 = vrot.lane.b32.xlu0 %v348, 20
  %v1695 = vpop.permute.xlu0 %1694
  %1696 = vrot.lane.b32.xlu0 %v349, 20
  %v1697 = vpop.permute.xlu0 %1696
  %1698 = vrot.lane.b32.xlu0 %v350, 20
  %v1699 = vpop.permute.xlu0 %1698
  %1700 = vrot.lane.b32.xlu0 %v351, 20
  %v1701 = vpop.permute.xlu0 %1700
  %1702 = vrot.lane.b32.xlu0 %v352, 20
  %v1703 = vpop.permute.xlu0 %1702
  %1704 = vrot.lane.b32.xlu0 %v353, 20
  %v1705 = vpop.permute.xlu0 %1704
  %1706 = vrot.lane.b32.xlu0 %v354, 20
  %v1707 = vpop.permute.xlu0 %1706
  %1708 = vrot.lane.b32.xlu0 %v355, 20
  %v1709 = vpop.permute.xlu0 %1708
  %1710 = vrot.lane.b32.xlu0 %v356, 20
  %v1711 = vpop.permute.xlu0 %1710
  %1712 = vrot.lane.b32.xlu0 %v357, 20
  %v1713 = vpop.permute.xlu0 %1712
  %1714 = vrot.lane.b32.xlu0 %v358, 20
  %v1715 = vpop.permute.xlu0 %1714
  %1716 = vrot.lane.b32.xlu0 %v359, 20
  %v1717 = vpop.permute.xlu0 %1716
  %1718 = vrot.lane.b32.xlu0 %v360, 20
  %v1719 = vpop.permute.xlu0 %1718
  %1720 = vrot.lane.b32.xlu0 %v361, 20
  %v1721 = vpop.permute.xlu0 %1720
  %1722 = vrot.lane.b32.xlu0 %v362, 20
  %v1723 = vpop.permute.xlu0 %1722
  %1724 = vrot.lane.b32.xlu0 %v363, 20
  %v1725 = vpop.permute.xlu0 %1724
  %1726 = vrot.lane.b32.xlu0 %v364, 20
  %v1727 = vpop.permute.xlu0 %1726
  %1728 = vrot.lane.b32.xlu0 %v365, 20
  %v1729 = vpop.permute.xlu0 %1728
  %1730 = vrot.lane.b32.xlu0 %v366, 20
  %v1731 = vpop.permute.xlu0 %1730
  %1732 = vrot.lane.b32.xlu0 %v367, 20
  %v1733 = vpop.permute.xlu0 %1732
  %1734 = vrot.lane.b32.xlu0 %v368, 20
  %v1735 = vpop.permute.xlu0 %1734
  %1736 = vrot.lane.b32.xlu0 %v369, 20
  %v1737 = vpop.permute.xlu0 %1736
  %1738 = vrot.lane.b32.xlu0 %v370, 20
  %v1739 = vpop.permute.xlu0 %1738
  %1740 = vrot.lane.b32.xlu0 %v371, 20
  %v1741 = vpop.permute.xlu0 %1740
  %1742 = vrot.lane.b32.xlu0 %v372, 20
  %v1743 = vpop.permute.xlu0 %1742
  %1744 = vrot.lane.b32.xlu0 %v373, 20
  %v1745 = vpop.permute.xlu0 %1744
  %1746 = vrot.lane.b32.xlu0 %v374, 20
  %v1747 = vpop.permute.xlu0 %1746
  %1748 = vrot.lane.b32.xlu0 %v375, 20
  %v1749 = vpop.permute.xlu0 %1748
  %1750 = vrot.lane.b32.xlu0 %v376, 20
  %v1751 = vpop.permute.xlu0 %1750
  %1752 = vrot.lane.b32.xlu0 %v377, 20
  %v1753 = vpop.permute.xlu0 %1752
  %1754 = vrot.lane.b32.xlu0 %v378, 20
  %v1755 = vpop.permute.xlu0 %1754
  %1756 = vrot.lane.b32.xlu0 %v379, 20
  %v1757 = vpop.permute.xlu0 %1756
  %1758 = vrot.lane.b32.xlu0 %v380, 20
  %v1759 = vpop.permute.xlu0 %1758
  %1760 = vrot.lane.b32.xlu0 %v381, 20
  %v1761 = vpop.permute.xlu0 %1760
  %1762 = vrot.lane.b32.xlu0 %v382, 20
  %v1763 = vpop.permute.xlu0 %1762
  %1764 = vrot.lane.b32.xlu0 %v383, 20
  %v1765 = vpop.permute.xlu0 %1764
  %1766 = vrot.lane.b32.xlu0 %v384, 20
  %v1767 = vpop.permute.xlu0 %1766
  %1768 = vrot.lane.b32.xlu0 %v385, 20
  %v1769 = vpop.permute.xlu0 %1768
  %1770 = vrot.lane.b32.xlu0 %v386, 20
  %v1771 = vpop.permute.xlu0 %1770
  %1772 = vrot.lane.b32.xlu0 %v387, 20
  %v1773 = vpop.permute.xlu0 %1772
  %1774 = vrot.lane.b32.xlu0 %v388, 20
  %v1775 = vpop.permute.xlu0 %1774
  %1776 = vrot.lane.b32.xlu0 %v389, 20
  %v1777 = vpop.permute.xlu0 %1776
  %1778 = vrot.lane.b32.xlu0 %v390, 20
  %v1779 = vpop.permute.xlu0 %1778
  %1780 = vrot.lane.b32.xlu0 %v391, 20
  %v1781 = vpop.permute.xlu0 %1780
  %1782 = vrot.lane.b32.xlu0 %v392, 20
  %v1783 = vpop.permute.xlu0 %1782
  %1784 = vrot.lane.b32.xlu0 %v393, 20
  %v1785 = vpop.permute.xlu0 %1784
  %1786 = vrot.lane.b32.xlu0 %v394, 20
  %v1787 = vpop.permute.xlu0 %1786
  %1788 = vrot.lane.b32.xlu0 %v395, 20
  %v1789 = vpop.permute.xlu0 %1788
  %1790 = vrot.lane.b32.xlu0 %v396, 20
  %v1791 = vpop.permute.xlu0 %1790
  %1792 = vrot.lane.b32.xlu0 %v397, 20
  %v1793 = vpop.permute.xlu0 %1792
  %1794 = vrot.lane.b32.xlu0 %v398, 20
  %v1795 = vpop.permute.xlu0 %1794
  %1796 = vrot.lane.b32.xlu0 %v399, 20
  %v1797 = vpop.permute.xlu0 %1796
  %1798 = vrot.lane.b32.xlu0 %v400, 20
  %v1799 = vpop.permute.xlu0 %1798
  %1800 = vrot.lane.b32.xlu0 %v401, 20
  %v1801 = vpop.permute.xlu0 %1800
  %1802 = vrot.lane.b32.xlu0 %v402, 20
  %v1803 = vpop.permute.xlu0 %1802
  %1804 = vrot.lane.b32.xlu0 %v403, 20
  %v1805 = vpop.permute.xlu0 %1804
  %1806 = vrot.lane.b32.xlu0 %v404, 20
  %v1807 = vpop.permute.xlu0 %1806
  %1808 = vrot.lane.b32.xlu0 %v405, 20
  %v1809 = vpop.permute.xlu0 %1808
  %1810 = vrot.lane.b32.xlu0 %v406, 20
  %v1811 = vpop.permute.xlu0 %1810
  %1812 = vrot.lane.b32.xlu0 %v407, 20
  %v1813 = vpop.permute.xlu0 %1812
  %1814 = vrot.lane.b32.xlu0 %v408, 20
  %v1815 = vpop.permute.xlu0 %1814
  %1816 = vrot.lane.b32.xlu0 %v409, 20
  %v1817 = vpop.permute.xlu0 %1816
  %1818 = vrot.lane.b32.xlu0 %v410, 20
  %v1819 = vpop.permute.xlu0 %1818
  %1948 = vrot.lane.b32.xlu0 %v412, 24
  %v1949 = vpop.permute.xlu0 %1948
  %1950 = vrot.lane.b32.xlu0 %v413, 24
  %v1951 = vpop.permute.xlu0 %1950
  %1952 = vrot.lane.b32.xlu0 %v414, 24
  %v1953 = vpop.permute.xlu0 %1952
  %1954 = vrot.lane.b32.xlu0 %v415, 24
  %v1955 = vpop.permute.xlu0 %1954
  %1956 = vrot.lane.b32.xlu0 %v416, 24
  %v1957 = vpop.permute.xlu0 %1956
  %1958 = vrot.lane.b32.xlu0 %v417, 24
  %v1959 = vpop.permute.xlu0 %1958
  %1960 = vrot.lane.b32.xlu0 %v418, 24
  %v1961 = vpop.permute.xlu0 %1960
  %1962 = vrot.lane.b32.xlu0 %v419, 24
  %v1963 = vpop.permute.xlu0 %1962
  %1964 = vrot.lane.b32.xlu0 %v420, 24
  %v1965 = vpop.permute.xlu0 %1964
  %1966 = vrot.lane.b32.xlu0 %v421, 24
  %v1967 = vpop.permute.xlu0 %1966
  %1968 = vrot.lane.b32.xlu0 %v422, 24
  %v1969 = vpop.permute.xlu0 %1968
  %1970 = vrot.lane.b32.xlu0 %v423, 24
  %v1971 = vpop.permute.xlu0 %1970
  %1972 = vrot.lane.b32.xlu0 %v424, 24
  %v1973 = vpop.permute.xlu0 %1972
  %1974 = vrot.lane.b32.xlu0 %v425, 24
  %v1975 = vpop.permute.xlu0 %1974
  %1976 = vrot.lane.b32.xlu0 %v426, 24
  %v1977 = vpop.permute.xlu0 %1976
  %1978 = vrot.lane.b32.xlu0 %v427, 24
  %v1979 = vpop.permute.xlu0 %1978
  %1980 = vrot.lane.b32.xlu0 %v428, 24
  %v1981 = vpop.permute.xlu0 %1980
  %1982 = vrot.lane.b32.xlu0 %v429, 24
  %v1983 = vpop.permute.xlu0 %1982
  %1984 = vrot.lane.b32.xlu0 %v430, 24
  %v1985 = vpop.permute.xlu0 %1984
  %1986 = vrot.lane.b32.xlu0 %v431, 24
  %v1987 = vpop.permute.xlu0 %1986
  %1988 = vrot.lane.b32.xlu0 %v432, 24
  %v1989 = vpop.permute.xlu0 %1988
  %1990 = vrot.lane.b32.xlu0 %v433, 24
  %v1991 = vpop.permute.xlu0 %1990
  %1992 = vrot.lane.b32.xlu0 %v434, 24
  %v1993 = vpop.permute.xlu0 %1992
  %1994 = vrot.lane.b32.xlu0 %v435, 24
  %v1995 = vpop.permute.xlu0 %1994
  %1996 = vrot.lane.b32.xlu0 %v436, 24
  %v1997 = vpop.permute.xlu0 %1996
  %1998 = vrot.lane.b32.xlu0 %v437, 24
  %v1999 = vpop.permute.xlu0 %1998
  %2000 = vrot.lane.b32.xlu0 %v438, 24
  %v2001 = vpop.permute.xlu0 %2000
  %2002 = vrot.lane.b32.xlu0 %v439, 24
  %v2003 = vpop.permute.xlu0 %2002
  %2004 = vrot.lane.b32.xlu0 %v440, 24
  %v2005 = vpop.permute.xlu0 %2004
  %2006 = vrot.lane.b32.xlu0 %v441, 24
  %v2007 = vpop.permute.xlu0 %2006
  %2008 = vrot.lane.b32.xlu0 %v442, 24
  %v2009 = vpop.permute.xlu0 %2008
  %2010 = vrot.lane.b32.xlu0 %v443, 24
  %v2011 = vpop.permute.xlu0 %2010
  %2012 = vrot.lane.b32.xlu0 %v444, 24
  %v2013 = vpop.permute.xlu0 %2012
  %2014 = vrot.lane.b32.xlu0 %v445, 24
  %v2015 = vpop.permute.xlu0 %2014
  %2016 = vrot.lane.b32.xlu0 %v446, 24
  %v2017 = vpop.permute.xlu0 %2016
  %2018 = vrot.lane.b32.xlu0 %v447, 24
  %v2019 = vpop.permute.xlu0 %2018
  %2020 = vrot.lane.b32.xlu0 %v448, 24
  %v2021 = vpop.permute.xlu0 %2020
  %2022 = vrot.lane.b32.xlu0 %v449, 24
  %v2023 = vpop.permute.xlu0 %2022
  %2024 = vrot.lane.b32.xlu0 %v450, 24
  %v2025 = vpop.permute.xlu0 %2024
  %2026 = vrot.lane.b32.xlu0 %v451, 24
  %v2027 = vpop.permute.xlu0 %2026
  %2028 = vrot.lane.b32.xlu0 %v452, 24
  %v2029 = vpop.permute.xlu0 %2028
  %2030 = vrot.lane.b32.xlu0 %v453, 24
  %v2031 = vpop.permute.xlu0 %2030
  %2032 = vrot.lane.b32.xlu0 %v454, 24
  %v2033 = vpop.permute.xlu0 %2032
  %2034 = vrot.lane.b32.xlu0 %v455, 24
  %v2035 = vpop.permute.xlu0 %2034
  %2036 = vrot.lane.b32.xlu0 %v456, 24
  %v2037 = vpop.permute.xlu0 %2036
  %2038 = vrot.lane.b32.xlu0 %v457, 24
  %v2039 = vpop.permute.xlu0 %2038
  %2040 = vrot.lane.b32.xlu0 %v458, 24
  %v2041 = vpop.permute.xlu0 %2040
  %2042 = vrot.lane.b32.xlu0 %v459, 24
  %v2043 = vpop.permute.xlu0 %2042
  %2044 = vrot.lane.b32.xlu0 %v460, 24
  %v2045 = vpop.permute.xlu0 %2044
  %2046 = vrot.lane.b32.xlu0 %v461, 24
  %v2047 = vpop.permute.xlu0 %2046
  %2048 = vrot.lane.b32.xlu0 %v462, 24
  %v2049 = vpop.permute.xlu0 %2048
  %2050 = vrot.lane.b32.xlu0 %v463, 24
  %v2051 = vpop.permute.xlu0 %2050
  %2052 = vrot.lane.b32.xlu0 %v464, 24
  %v2053 = vpop.permute.xlu0 %2052
  %2054 = vrot.lane.b32.xlu0 %v465, 24
  %v2055 = vpop.permute.xlu0 %2054
  %2056 = vrot.lane.b32.xlu0 %v466, 24
  %v2057 = vpop.permute.xlu0 %2056
  %2058 = vrot.lane.b32.xlu0 %v467, 24
  %v2059 = vpop.permute.xlu0 %2058
  %2060 = vrot.lane.b32.xlu0 %v468, 24
  %v2061 = vpop.permute.xlu0 %2060
  %2062 = vrot.lane.b32.xlu0 %v469, 24
  %v2063 = vpop.permute.xlu0 %2062
  %2064 = vrot.lane.b32.xlu0 %v470, 24
  %v2065 = vpop.permute.xlu0 %2064
  %2066 = vrot.lane.b32.xlu0 %v471, 24
  %v2067 = vpop.permute.xlu0 %2066
  %2068 = vrot.lane.b32.xlu0 %v472, 24
  %v2069 = vpop.permute.xlu0 %2068
  %2070 = vrot.lane.b32.xlu0 %v473, 24
  %v2071 = vpop.permute.xlu0 %2070
  %2072 = vrot.lane.b32.xlu0 %v474, 24
  %v2073 = vpop.permute.xlu0 %2072
  %2074 = vrot.lane.b32.xlu0 %v475, 24
  %v2075 = vpop.permute.xlu0 %2074
  %2204 = vrot.lane.b32.xlu0 %v476, 28
  %v2205 = vpop.permute.xlu0 %2204
  %2206 = vrot.lane.b32.xlu0 %v477, 28
  %v2207 = vpop.permute.xlu0 %2206
  %2208 = vrot.lane.b32.xlu0 %v478, 28
  %v2209 = vpop.permute.xlu0 %2208
  %2210 = vrot.lane.b32.xlu0 %v479, 28
  %v2211 = vpop.permute.xlu0 %2210
  %2212 = vrot.lane.b32.xlu0 %v480, 28
  %v2213 = vpop.permute.xlu0 %2212
  %2214 = vrot.lane.b32.xlu0 %v481, 28
  %v2215 = vpop.permute.xlu0 %2214
  %2216 = vrot.lane.b32.xlu0 %v482, 28
  %v2217 = vpop.permute.xlu0 %2216
  %2218 = vrot.lane.b32.xlu0 %v483, 28
  %v2219 = vpop.permute.xlu0 %2218
  %2220 = vrot.lane.b32.xlu0 %v484, 28
  %v2221 = vpop.permute.xlu0 %2220
  %2222 = vrot.lane.b32.xlu0 %v485, 28
  %v2223 = vpop.permute.xlu0 %2222
  %2224 = vrot.lane.b32.xlu0 %v486, 28
  %v2225 = vpop.permute.xlu0 %2224
  %2226 = vrot.lane.b32.xlu0 %v487, 28
  %v2227 = vpop.permute.xlu0 %2226
  %2228 = vrot.lane.b32.xlu0 %v488, 28
  %v2229 = vpop.permute.xlu0 %2228
  %2230 = vrot.lane.b32.xlu0 %v489, 28
  %v2231 = vpop.permute.xlu0 %2230
  %2232 = vrot.lane.b32.xlu0 %v490, 28
  %v2233 = vpop.permute.xlu0 %2232
  %2234 = vrot.lane.b32.xlu0 %v491, 28
  %v2235 = vpop.permute.xlu0 %2234
  %2236 = vrot.lane.b32.xlu0 %v492, 28
  %v2237 = vpop.permute.xlu0 %2236
  %2238 = vrot.lane.b32.xlu0 %v493, 28
  %v2239 = vpop.permute.xlu0 %2238
  %2240 = vrot.lane.b32.xlu0 %v494, 28
  %v2241 = vpop.permute.xlu0 %2240
  %2242 = vrot.lane.b32.xlu0 %v495, 28
  %v2243 = vpop.permute.xlu0 %2242
  %2244 = vrot.lane.b32.xlu0 %v496, 28
  %v2245 = vpop.permute.xlu0 %2244
  %2246 = vrot.lane.b32.xlu0 %v497, 28
  %v2247 = vpop.permute.xlu0 %2246
  %2248 = vrot.lane.b32.xlu0 %v498, 28
  %v2249 = vpop.permute.xlu0 %2248
  %2250 = vrot.lane.b32.xlu0 %v499, 28
  %v2251 = vpop.permute.xlu0 %2250
  %2252 = vrot.lane.b32.xlu0 %v500, 28
  %v2253 = vpop.permute.xlu0 %2252
  %2254 = vrot.lane.b32.xlu0 %v501, 28
  %v2255 = vpop.permute.xlu0 %2254
  %2256 = vrot.lane.b32.xlu0 %v502, 28
  %v2257 = vpop.permute.xlu0 %2256
  %2258 = vrot.lane.b32.xlu0 %v503, 28
  %v2259 = vpop.permute.xlu0 %2258
  %2260 = vrot.lane.b32.xlu0 %v504, 28
  %v2261 = vpop.permute.xlu0 %2260
  %2262 = vrot.lane.b32.xlu0 %v505, 28
  %v2263 = vpop.permute.xlu0 %2262
  %2264 = vrot.lane.b32.xlu0 %v506, 28
  %v2265 = vpop.permute.xlu0 %2264
  %2266 = vrot.lane.b32.xlu0 %v507, 28
  %v2267 = vpop.permute.xlu0 %2266
  %2268 = vrot.lane.b32.xlu0 %v508, 28
  %v2269 = vpop.permute.xlu0 %2268
  %2270 = vrot.lane.b32.xlu0 %v509, 28
  %v2271 = vpop.permute.xlu0 %2270
  %2272 = vrot.lane.b32.xlu0 %v510, 28
  %v2273 = vpop.permute.xlu0 %2272
  %2274 = vrot.lane.b32.xlu0 %v511, 28
  %v2275 = vpop.permute.xlu0 %2274
  %2276 = vrot.lane.b32.xlu0 %v512, 28
  %v2277 = vpop.permute.xlu0 %2276
  %2278 = vrot.lane.b32.xlu0 %v513, 28
  %v2279 = vpop.permute.xlu0 %2278
  %2280 = vrot.lane.b32.xlu0 %v514, 28
  %v2281 = vpop.permute.xlu0 %2280
  %2282 = vrot.lane.b32.xlu0 %v515, 28
  %v2283 = vpop.permute.xlu0 %2282
  %2284 = vrot.lane.b32.xlu0 %v516, 28
  %v2285 = vpop.permute.xlu0 %2284
  %2286 = vrot.lane.b32.xlu0 %v517, 28
  %v2287 = vpop.permute.xlu0 %2286
  %2288 = vrot.lane.b32.xlu0 %v518, 28
  %v2289 = vpop.permute.xlu0 %2288
  %2290 = vrot.lane.b32.xlu0 %v519, 28
  %v2291 = vpop.permute.xlu0 %2290
  %2292 = vrot.lane.b32.xlu0 %v520, 28
  %v2293 = vpop.permute.xlu0 %2292
  %2294 = vrot.lane.b32.xlu0 %v521, 28
  %v2295 = vpop.permute.xlu0 %2294
  %2296 = vrot.lane.b32.xlu0 %v522, 28
  %v2297 = vpop.permute.xlu0 %2296
  %2298 = vrot.lane.b32.xlu0 %v523, 28
  %v2299 = vpop.permute.xlu0 %2298
  %2300 = vrot.lane.b32.xlu0 %v524, 28
  %v2301 = vpop.permute.xlu0 %2300
  %2302 = vrot.lane.b32.xlu0 %v525, 28
  %v2303 = vpop.permute.xlu0 %2302
  %2304 = vrot.lane.b32.xlu0 %v526, 28
  %v2305 = vpop.permute.xlu0 %2304
  %2306 = vrot.lane.b32.xlu0 %v527, 28
  %v2307 = vpop.permute.xlu0 %2306
  %2308 = vrot.lane.b32.xlu0 %v528, 28
  %v2309 = vpop.permute.xlu0 %2308
  %2310 = vrot.lane.b32.xlu0 %v529, 28
  %v2311 = vpop.permute.xlu0 %2310
  %2312 = vrot.lane.b32.xlu0 %v530, 28
  %v2313 = vpop.permute.xlu0 %2312
  %2314 = vrot.lane.b32.xlu0 %v531, 28
  %v2315 = vpop.permute.xlu0 %2314
  %2316 = vrot.lane.b32.xlu0 %v532, 28
  %v2317 = vpop.permute.xlu0 %2316
  %2318 = vrot.lane.b32.xlu0 %v533, 28
  %v2319 = vpop.permute.xlu0 %2318
  %2320 = vrot.lane.b32.xlu0 %v534, 28
  %v2321 = vpop.permute.xlu0 %2320
  %2322 = vrot.lane.b32.xlu0 %v535, 28
  %v2323 = vpop.permute.xlu0 %2322
  %2324 = vrot.lane.b32.xlu0 %v536, 28
  %v2325 = vpop.permute.xlu0 %2324
  %2326 = vrot.lane.b32.xlu0 %v537, 28
  %v2327 = vpop.permute.xlu0 %2326
  %2328 = vrot.lane.b32.xlu0 %v538, 28
  %v2329 = vpop.permute.xlu0 %2328
  %2330 = vrot.lane.b32.xlu0 %v539, 28
  %v2331 = vpop.permute.xlu0 %2330
  %2460 = vrot.lane.b32.xlu0 %v540, 32
  %v2461 = vpop.permute.xlu0 %2460
  %2462 = vrot.lane.b32.xlu0 %v541, 32
  %v2463 = vpop.permute.xlu0 %2462
  %2464 = vrot.lane.b32.xlu0 %v542, 32
  %v2465 = vpop.permute.xlu0 %2464
  %2466 = vrot.lane.b32.xlu0 %v543, 32
  %v2467 = vpop.permute.xlu0 %2466
  %2468 = vrot.lane.b32.xlu0 %v544, 32
  %v2469 = vpop.permute.xlu0 %2468
  %2470 = vrot.lane.b32.xlu0 %v545, 32
  %v2471 = vpop.permute.xlu0 %2470
  %2472 = vrot.lane.b32.xlu0 %v546, 32
  %v2473 = vpop.permute.xlu0 %2472
  %2474 = vrot.lane.b32.xlu0 %v547, 32
  %v2475 = vpop.permute.xlu0 %2474
  %2476 = vrot.lane.b32.xlu0 %v548, 32
  %v2477 = vpop.permute.xlu0 %2476
  %2478 = vrot.lane.b32.xlu0 %v549, 32
  %v2479 = vpop.permute.xlu0 %2478
  %2480 = vrot.lane.b32.xlu0 %v550, 32
  %v2481 = vpop.permute.xlu0 %2480
  %2482 = vrot.lane.b32.xlu0 %v551, 32
  %v2483 = vpop.permute.xlu0 %2482
  %2484 = vrot.lane.b32.xlu0 %v552, 32
  %v2485 = vpop.permute.xlu0 %2484
  %2486 = vrot.lane.b32.xlu0 %v553, 32
  %v2487 = vpop.permute.xlu0 %2486
  %2488 = vrot.lane.b32.xlu0 %v554, 32
  %v2489 = vpop.permute.xlu0 %2488
  %2490 = vrot.lane.b32.xlu0 %v555, 32
  %v2491 = vpop.permute.xlu0 %2490
  %2492 = vrot.lane.b32.xlu0 %v556, 32
  %v2493 = vpop.permute.xlu0 %2492
  %2494 = vrot.lane.b32.xlu0 %v557, 32
  %v2495 = vpop.permute.xlu0 %2494
  %2496 = vrot.lane.b32.xlu0 %v558, 32
  %v2497 = vpop.permute.xlu0 %2496
  %2498 = vrot.lane.b32.xlu0 %v559, 32
  %v2499 = vpop.permute.xlu0 %2498
  %2500 = vrot.lane.b32.xlu0 %v560, 32
  %v2501 = vpop.permute.xlu0 %2500
  %2502 = vrot.lane.b32.xlu0 %v561, 32
  %v2503 = vpop.permute.xlu0 %2502
  %2504 = vrot.lane.b32.xlu0 %v562, 32
  %v2505 = vpop.permute.xlu0 %2504
  %2506 = vrot.lane.b32.xlu0 %v563, 32
  %v2507 = vpop.permute.xlu0 %2506
  %2508 = vrot.lane.b32.xlu0 %v564, 32
  %v2509 = vpop.permute.xlu0 %2508
  %2510 = vrot.lane.b32.xlu0 %v565, 32
  %v2511 = vpop.permute.xlu0 %2510
  %2512 = vrot.lane.b32.xlu0 %v566, 32
  %v2513 = vpop.permute.xlu0 %2512
  %2514 = vrot.lane.b32.xlu0 %v567, 32
  %v2515 = vpop.permute.xlu0 %2514
  %2516 = vrot.lane.b32.xlu0 %v568, 32
  %v2517 = vpop.permute.xlu0 %2516
  %2518 = vrot.lane.b32.xlu0 %v569, 32
  %v2519 = vpop.permute.xlu0 %2518
  %2520 = vrot.lane.b32.xlu0 %v570, 32
  %v2521 = vpop.permute.xlu0 %2520
  %2522 = vrot.lane.b32.xlu0 %v571, 32
  %v2523 = vpop.permute.xlu0 %2522
  %2524 = vrot.lane.b32.xlu0 %v572, 32
  %v2525 = vpop.permute.xlu0 %2524
  %2526 = vrot.lane.b32.xlu0 %v573, 32
  %v2527 = vpop.permute.xlu0 %2526
  %2528 = vrot.lane.b32.xlu0 %v574, 32
  %v2529 = vpop.permute.xlu0 %2528
  %2530 = vrot.lane.b32.xlu0 %v575, 32
  %v2531 = vpop.permute.xlu0 %2530
  %2532 = vrot.lane.b32.xlu0 %v576, 32
  %v2533 = vpop.permute.xlu0 %2532
  %2534 = vrot.lane.b32.xlu0 %v577, 32
  %v2535 = vpop.permute.xlu0 %2534
  %2536 = vrot.lane.b32.xlu0 %v578, 32
  %v2537 = vpop.permute.xlu0 %2536
  %2538 = vrot.lane.b32.xlu0 %v579, 32
  %v2539 = vpop.permute.xlu0 %2538
  %2540 = vrot.lane.b32.xlu0 %v580, 32
  %v2541 = vpop.permute.xlu0 %2540
  %2542 = vrot.lane.b32.xlu0 %v581, 32
  %v2543 = vpop.permute.xlu0 %2542
  %2544 = vrot.lane.b32.xlu0 %v582, 32
  %v2545 = vpop.permute.xlu0 %2544
  %2546 = vrot.lane.b32.xlu0 %v583, 32
  %v2547 = vpop.permute.xlu0 %2546
  %2548 = vrot.lane.b32.xlu0 %v584, 32
  %v2549 = vpop.permute.xlu0 %2548
  %2550 = vrot.lane.b32.xlu0 %v585, 32
  %v2551 = vpop.permute.xlu0 %2550
  %2552 = vrot.lane.b32.xlu0 %v586, 32
  %v2553 = vpop.permute.xlu0 %2552
  %2554 = vrot.lane.b32.xlu0 %v587, 32
  %v2555 = vpop.permute.xlu0 %2554
  %2556 = vrot.lane.b32.xlu0 %v588, 32
  %v2557 = vpop.permute.xlu0 %2556
  %2558 = vrot.lane.b32.xlu0 %v589, 32
  %v2559 = vpop.permute.xlu0 %2558
  %2560 = vrot.lane.b32.xlu0 %v590, 32
  %v2561 = vpop.permute.xlu0 %2560
  %2562 = vrot.lane.b32.xlu0 %v591, 32
  %v2563 = vpop.permute.xlu0 %2562
  %2564 = vrot.lane.b32.xlu0 %v592, 32
  %v2565 = vpop.permute.xlu0 %2564
  %2566 = vrot.lane.b32.xlu0 %v593, 32
  %v2567 = vpop.permute.xlu0 %2566
  %2568 = vrot.lane.b32.xlu0 %v594, 32
  %v2569 = vpop.permute.xlu0 %2568
  %2570 = vrot.lane.b32.xlu0 %v595, 32
  %v2571 = vpop.permute.xlu0 %2570
  %2572 = vrot.lane.b32.xlu0 %v596, 32
  %v2573 = vpop.permute.xlu0 %2572
  %2574 = vrot.lane.b32.xlu0 %v597, 32
  %v2575 = vpop.permute.xlu0 %2574
  %2576 = vrot.lane.b32.xlu0 %v598, 32
  %v2577 = vpop.permute.xlu0 %2576
  %2578 = vrot.lane.b32.xlu0 %v599, 32
  %v2579 = vpop.permute.xlu0 %2578
  %2580 = vrot.lane.b32.xlu0 %v600, 32
  %v2581 = vpop.permute.xlu0 %2580
  %2582 = vrot.lane.b32.xlu0 %v601, 32
  %v2583 = vpop.permute.xlu0 %2582
  %2584 = vrot.lane.b32.xlu0 %v602, 32
  %v2585 = vpop.permute.xlu0 %2584
  %2586 = vrot.lane.b32.xlu0 %v603, 32
  %v2587 = vpop.permute.xlu0 %2586
  %vm2652 = vcmask 31744
  %v2653 = vsel %vm2652, %v26, %v669
  %v2654 = vsel %vm2652, %v27, %v671
  %v2655 = vsel %vm2652, %v28, %v673
  %v2656 = vsel %vm2652, %v29, %v675
  %v2657 = vsel %vm2652, %v30, %v677
  %v2658 = vsel %vm2652, %v31, %v679
  %v2659 = vsel %vm2652, %v32, %v681
  %v2660 = vsel %vm2652, %v33, %v683
  %v2661 = vsel %vm2652, %v34, %v685
  %v2662 = vsel %vm2652, %v35, %v687
  %v2663 = vsel %vm2652, %v36, %v689
  %v2664 = vsel %vm2652, %v37, %v691
  %v2665 = vsel %vm2652, %v38, %v693
  %v2666 = vsel %vm2652, %v39, %v695
  %v2667 = vsel %vm2652, %v40, %v697
  %v2668 = vsel %vm2652, %v41, %v699
  %v2669 = vsel %vm2652, %v42, %v701
  %v2670 = vsel %vm2652, %v43, %v703
  %v2671 = vsel %vm2652, %v44, %v705
  %v2672 = vsel %vm2652, %v45, %v707
  %v2673 = vsel %vm2652, %v46, %v709
  %v2674 = vsel %vm2652, %v47, %v711
  %v2675 = vsel %vm2652, %v48, %v713
  %v2676 = vsel %vm2652, %v49, %v715
  %v2677 = vsel %vm2652, %v50, %v717
  %v2678 = vsel %vm2652, %v51, %v719
  %v2679 = vsel %vm2652, %v52, %v721
  %v2680 = vsel %vm2652, %v53, %v723
  %v2681 = vsel %vm2652, %v54, %v725
  %v2682 = vsel %vm2652, %v55, %v727
  %v2683 = vsel %vm2652, %v56, %v729
  %v2684 = vsel %vm2652, %v57, %v731
  %v2685 = vsel %vm2652, %v58, %v733
  %v2686 = vsel %vm2652, %v59, %v735
  %v2687 = vsel %vm2652, %v60, %v737
  %v2688 = vsel %vm2652, %v61, %v739
  %v2689 = vsel %vm2652, %v62, %v741
  %v2690 = vsel %vm2652, %v63, %v743
  %v2691 = vsel %vm2652, %v64, %v745
  %v2692 = vsel %vm2652, %v65, %v747
  %v2693 = vsel %vm2652, %v66, %v749
  %v2694 = vsel %vm2652, %v67, %v751
  %v2695 = vsel %vm2652, %v68, %v753
  %v2696 = vsel %vm2652, %v69, %v755
  %v2697 = vsel %vm2652, %v70, %v757
  %v2698 = vsel %vm2652, %v71, %v759
  %v2699 = vsel %vm2652, %v72, %v761
  %v2700 = vsel %vm2652, %v73, %v763
  %v2701 = vsel %vm2652, %v74, %v765
  %v2702 = vsel %vm2652, %v75, %v767
  %v2703 = vsel %vm2652, %v76, %v769
  %v2704 = vsel %vm2652, %v77, %v771
  %v2705 = vsel %vm2652, %v78, %v773
  %v2706 = vsel %vm2652, %v79, %v775
  %v2707 = vsel %vm2652, %v80, %v777
  %v2708 = vsel %vm2652, %v81, %v779
  %v2709 = vsel %vm2652, %v82, %v781
  %v2710 = vsel %vm2652, %v83, %v783
  %v2711 = vsel %vm2652, %v84, %v785
  %v2712 = vsel %vm2652, %v85, %v787
  %v2713 = vsel %vm2652, %v86, %v789
  %v2714 = vsel %vm2652, %v87, %v791
  %v2715 = vsel %vm2652, %v88, %v793
  %v2716 = vsel %vm2652, %v89, %v795
  %vm2717 = vcmask 64512
  %v2718 = vsel %vm2717, %v2653, %v925
  %v2719 = vsel %vm2717, %v2654, %v927
  %v2720 = vsel %vm2717, %v2655, %v929
  %v2721 = vsel %vm2717, %v2656, %v931
  %v2722 = vsel %vm2717, %v2657, %v933
  %v2723 = vsel %vm2717, %v2658, %v935
  %v2724 = vsel %vm2717, %v2659, %v937
  %v2725 = vsel %vm2717, %v2660, %v939
  %v2726 = vsel %vm2717, %v2661, %v941
  %v2727 = vsel %vm2717, %v2662, %v943
  %v2728 = vsel %vm2717, %v2663, %v945
  %v2729 = vsel %vm2717, %v2664, %v947
  %v2730 = vsel %vm2717, %v2665, %v949
  %v2731 = vsel %vm2717, %v2666, %v951
  %v2732 = vsel %vm2717, %v2667, %v953
  %v2733 = vsel %vm2717, %v2668, %v955
  %v2734 = vsel %vm2717, %v2669, %v957
  %v2735 = vsel %vm2717, %v2670, %v959
  %v2736 = vsel %vm2717, %v2671, %v961
  %v2737 = vsel %vm2717, %v2672, %v963
  %v2738 = vsel %vm2717, %v2673, %v965
  %v2739 = vsel %vm2717, %v2674, %v967
  %v2740 = vsel %vm2717, %v2675, %v969
  %v2741 = vsel %vm2717, %v2676, %v971
  %v2742 = vsel %vm2717, %v2677, %v973
  %v2743 = vsel %vm2717, %v2678, %v975
  %v2744 = vsel %vm2717, %v2679, %v977
  %v2745 = vsel %vm2717, %v2680, %v979
  %v2746 = vsel %vm2717, %v2681, %v981
  %v2747 = vsel %vm2717, %v2682, %v983
  %v2748 = vsel %vm2717, %v2683, %v985
  %v2749 = vsel %vm2717, %v2684, %v987
  %v2750 = vsel %vm2717, %v2685, %v989
  %v2751 = vsel %vm2717, %v2686, %v991
  %v2752 = vsel %vm2717, %v2687, %v993
  %v2753 = vsel %vm2717, %v2688, %v995
  %v2754 = vsel %vm2717, %v2689, %v997
  %v2755 = vsel %vm2717, %v2690, %v999
  %v2756 = vsel %vm2717, %v2691, %v1001
  %v2757 = vsel %vm2717, %v2692, %v1003
  %v2758 = vsel %vm2717, %v2693, %v1005
  %v2759 = vsel %vm2717, %v2694, %v1007
  %v2760 = vsel %vm2717, %v2695, %v1009
  %v2761 = vsel %vm2717, %v2696, %v1011
  %v2762 = vsel %vm2717, %v2697, %v1013
  %v2763 = vsel %vm2717, %v2698, %v1015
  %v2764 = vsel %vm2717, %v2699, %v1017
  %v2765 = vsel %vm2717, %v2700, %v1019
  %v2766 = vsel %vm2717, %v2701, %v1021
  %v2767 = vsel %vm2717, %v2702, %v1023
  %v2768 = vsel %vm2717, %v2703, %v1025
  %v2769 = vsel %vm2717, %v2704, %v1027
  %v2770 = vsel %vm2717, %v2705, %v1029
  %v2771 = vsel %vm2717, %v2706, %v1031
  %v2772 = vsel %vm2717, %v2707, %v1033
  %v2773 = vsel %vm2717, %v2708, %v1035
  %v2774 = vsel %vm2717, %v2709, %v1037
  %v2775 = vsel %vm2717, %v2710, %v1039
  %v2776 = vsel %vm2717, %v2711, %v1041
  %v2777 = vsel %vm2717, %v2712, %v1043
  %v2778 = vsel %vm2717, %v2713, %v1045
  %v2779 = vsel %vm2717, %v2714, %v1047
  %v2780 = vsel %vm2717, %v2715, %v1049
  %v2781 = vsel %vm2717, %v2716, %v1051
  %vm2782 = vcmask 97280
  %v2783 = vsel %vm2782, %v2718, %v1181
  %v2784 = vsel %vm2782, %v2719, %v1183
  %v2785 = vsel %vm2782, %v2720, %v1185
  %v2786 = vsel %vm2782, %v2721, %v1187
  %v2787 = vsel %vm2782, %v2722, %v1189
  %v2788 = vsel %vm2782, %v2723, %v1191
  %v2789 = vsel %vm2782, %v2724, %v1193
  %v2790 = vsel %vm2782, %v2725, %v1195
  %v2791 = vsel %vm2782, %v2726, %v1197
  %v2792 = vsel %vm2782, %v2727, %v1199
  %v2793 = vsel %vm2782, %v2728, %v1201
  %v2794 = vsel %vm2782, %v2729, %v1203
  %v2795 = vsel %vm2782, %v2730, %v1205
  %v2796 = vsel %vm2782, %v2731, %v1207
  %v2797 = vsel %vm2782, %v2732, %v1209
  %v2798 = vsel %vm2782, %v2733, %v1211
  %v2799 = vsel %vm2782, %v2734, %v1213
  %v2800 = vsel %vm2782, %v2735, %v1215
  %v2801 = vsel %vm2782, %v2736, %v1217
  %v2802 = vsel %vm2782, %v2737, %v1219
  %v2803 = vsel %vm2782, %v2738, %v1221
  %v2804 = vsel %vm2782, %v2739, %v1223
  %v2805 = vsel %vm2782, %v2740, %v1225
  %v2806 = vsel %vm2782, %v2741, %v1227
  %v2807 = vsel %vm2782, %v2742, %v1229
  %v2808 = vsel %vm2782, %v2743, %v1231
  %v2809 = vsel %vm2782, %v2744, %v1233
  %v2810 = vsel %vm2782, %v2745, %v1235
  %v2811 = vsel %vm2782, %v2746, %v1237
  %v2812 = vsel %vm2782, %v2747, %v1239
  %v2813 = vsel %vm2782, %v2748, %v1241
  %v2814 = vsel %vm2782, %v2749, %v1243
  %v2815 = vsel %vm2782, %v2750, %v1245
  %v2816 = vsel %vm2782, %v2751, %v1247
  %v2817 = vsel %vm2782, %v2752, %v1249
  %v2818 = vsel %vm2782, %v2753, %v1251
  %v2819 = vsel %vm2782, %v2754, %v1253
  %v2820 = vsel %vm2782, %v2755, %v1255
  %v2821 = vsel %vm2782, %v2756, %v1257
  %v2822 = vsel %vm2782, %v2757, %v1259
  %v2823 = vsel %vm2782, %v2758, %v1261
  %v2824 = vsel %vm2782, %v2759, %v1263
  %v2825 = vsel %vm2782, %v2760, %v1265
  %v2826 = vsel %vm2782, %v2761, %v1267
  %v2827 = vsel %vm2782, %v2762, %v1269
  %v2828 = vsel %vm2782, %v2763, %v1271
  %v2829 = vsel %vm2782, %v2764, %v1273
  %v2830 = vsel %vm2782, %v2765, %v1275
  %v2831 = vsel %vm2782, %v2766, %v1277
  %v2832 = vsel %vm2782, %v2767, %v1279
  %v2833 = vsel %vm2782, %v2768, %v1281
  %v2834 = vsel %vm2782, %v2769, %v1283
  %v2835 = vsel %vm2782, %v2770, %v1285
  %v2836 = vsel %vm2782, %v2771, %v1287
  %v2837 = vsel %vm2782, %v2772, %v1289
  %v2838 = vsel %vm2782, %v2773, %v1291
  %v2839 = vsel %vm2782, %v2774, %v1293
  %v2840 = vsel %vm2782, %v2775, %v1295
  %v2841 = vsel %vm2782, %v2776, %v1297
  %v2842 = vsel %vm2782, %v2777, %v1299
  %v2843 = vsel %vm2782, %v2778, %v1301
  %v2844 = vsel %vm2782, %v2779, %v1303
  %v2845 = vsel %vm2782, %v2780, %v1305
  %v2846 = vsel %vm2782, %v2781, %v1307
  %vm2847 = vcmask 130048
  %v2848 = vsel %vm2847, %v2783, %v1437
  %v2849 = vsel %vm2847, %v2784, %v1439
  %v2850 = vsel %vm2847, %v2785, %v1441
  %v2851 = vsel %vm2847, %v2786, %v1443
  %v2852 = vsel %vm2847, %v2787, %v1445
  %v2853 = vsel %vm2847, %v2788, %v1447
  %v2854 = vsel %vm2847, %v2789, %v1449
  %v2855 = vsel %vm2847, %v2790, %v1451
  %v2856 = vsel %vm2847, %v2791, %v1453
  %v2857 = vsel %vm2847, %v2792, %v1455
  %v2858 = vsel %vm2847, %v2793, %v1457
  %v2859 = vsel %vm2847, %v2794, %v1459
  %v2860 = vsel %vm2847, %v2795, %v1461
  %v2861 = vsel %vm2847, %v2796, %v1463
  %v2862 = vsel %vm2847, %v2797, %v1465
  %v2863 = vsel %vm2847, %v2798, %v1467
  %v2864 = vsel %vm2847, %v2799, %v1469
  %v2865 = vsel %vm2847, %v2800, %v1471
  %v2866 = vsel %vm2847, %v2801, %v1473
  %v2867 = vsel %vm2847, %v2802, %v1475
  %v2868 = vsel %vm2847, %v2803, %v1477
  %v2869 = vsel %vm2847, %v2804, %v1479
  %v2870 = vsel %vm2847, %v2805, %v1481
  %v2871 = vsel %vm2847, %v2806, %v1483
  %v2872 = vsel %vm2847, %v2807, %v1485
  %v2873 = vsel %vm2847, %v2808, %v1487
  %v2874 = vsel %vm2847, %v2809, %v1489
  %v2875 = vsel %vm2847, %v2810, %v1491
  %v2876 = vsel %vm2847, %v2811, %v1493
  %v2877 = vsel %vm2847, %v2812, %v1495
  %v2878 = vsel %vm2847, %v2813, %v1497
  %v2879 = vsel %vm2847, %v2814, %v1499
  %v2880 = vsel %vm2847, %v2815, %v1501
  %v2881 = vsel %vm2847, %v2816, %v1503
  %v2882 = vsel %vm2847, %v2817, %v1505
  %v2883 = vsel %vm2847, %v2818, %v1507
  %v2884 = vsel %vm2847, %v2819, %v1509
  %v2885 = vsel %vm2847, %v2820, %v1511
  %v2886 = vsel %vm2847, %v2821, %v1513
  %v2887 = vsel %vm2847, %v2822, %v1515
  %v2888 = vsel %vm2847, %v2823, %v1517
  %v2889 = vsel %vm2847, %v2824, %v1519
  %v2890 = vsel %vm2847, %v2825, %v1521
  %v2891 = vsel %vm2847, %v2826, %v1523
  %v2892 = vsel %vm2847, %v2827, %v1525
  %v2893 = vsel %vm2847, %v2828, %v1527
  %v2894 = vsel %vm2847, %v2829, %v1529
  %v2895 = vsel %vm2847, %v2830, %v1531
  %v2896 = vsel %vm2847, %v2831, %v1533
  %v2897 = vsel %vm2847, %v2832, %v1535
  %v2898 = vsel %vm2847, %v2833, %v1537
  %v2899 = vsel %vm2847, %v2834, %v1539
  %v2900 = vsel %vm2847, %v2835, %v1541
  %v2901 = vsel %vm2847, %v2836, %v1543
  %v2902 = vsel %vm2847, %v2837, %v1545
  %v2903 = vsel %vm2847, %v2838, %v1547
  %v2904 = vsel %vm2847, %v2839, %v1549
  %v2905 = vsel %vm2847, %v2840, %v1551
  %v2906 = vsel %vm2847, %v2841, %v1553
  %v2907 = vsel %vm2847, %v2842, %v1555
  %v2908 = vsel %vm2847, %v2843, %v1557
  %v2909 = vsel %vm2847, %v2844, %v1559
  %v2910 = vsel %vm2847, %v2845, %v1561
  %v2911 = vsel %vm2847, %v2846, %v1563
  %vm2912 = vcmask 162816
  %v2913 = vsel %vm2912, %v2848, %v1693
  %v2914 = vsel %vm2912, %v2849, %v1695
  %v2915 = vsel %vm2912, %v2850, %v1697
  %v2916 = vsel %vm2912, %v2851, %v1699
  %v2917 = vsel %vm2912, %v2852, %v1701
  %v2918 = vsel %vm2912, %v2853, %v1703
  %v2919 = vsel %vm2912, %v2854, %v1705
  %v2920 = vsel %vm2912, %v2855, %v1707
  %v2921 = vsel %vm2912, %v2856, %v1709
  %v2922 = vsel %vm2912, %v2857, %v1711
  %v2923 = vsel %vm2912, %v2858, %v1713
  %v2924 = vsel %vm2912, %v2859, %v1715
  %v2925 = vsel %vm2912, %v2860, %v1717
  %v2926 = vsel %vm2912, %v2861, %v1719
  %v2927 = vsel %vm2912, %v2862, %v1721
  %v2928 = vsel %vm2912, %v2863, %v1723
  %v2929 = vsel %vm2912, %v2864, %v1725
  %v2930 = vsel %vm2912, %v2865, %v1727
  %v2931 = vsel %vm2912, %v2866, %v1729
  %v2932 = vsel %vm2912, %v2867, %v1731
  %v2933 = vsel %vm2912, %v2868, %v1733
  %v2934 = vsel %vm2912, %v2869, %v1735
  %v2935 = vsel %vm2912, %v2870, %v1737
  %v2936 = vsel %vm2912, %v2871, %v1739
  %v2937 = vsel %vm2912, %v2872, %v1741
  %v2938 = vsel %vm2912, %v2873, %v1743
  %v2939 = vsel %vm2912, %v2874, %v1745
  %v2940 = vsel %vm2912, %v2875, %v1747
  %v2941 = vsel %vm2912, %v2876, %v1749
  %v2942 = vsel %vm2912, %v2877, %v1751
  %v2943 = vsel %vm2912, %v2878, %v1753
  %v2944 = vsel %vm2912, %v2879, %v1755
  %v2945 = vsel %vm2912, %v2880, %v1757
  %v2946 = vsel %vm2912, %v2881, %v1759
  %v2947 = vsel %vm2912, %v2882, %v1761
  %v2948 = vsel %vm2912, %v2883, %v1763
  %v2949 = vsel %vm2912, %v2884, %v1765
  %v2950 = vsel %vm2912, %v2885, %v1767
  %v2951 = vsel %vm2912, %v2886, %v1769
  %v2952 = vsel %vm2912, %v2887, %v1771
  %v2953 = vsel %vm2912, %v2888, %v1773
  %v2954 = vsel %vm2912, %v2889, %v1775
  %v2955 = vsel %vm2912, %v2890, %v1777
  %v2956 = vsel %vm2912, %v2891, %v1779
  %v2957 = vsel %vm2912, %v2892, %v1781
  %v2958 = vsel %vm2912, %v2893, %v1783
  %v2959 = vsel %vm2912, %v2894, %v1785
  %v2960 = vsel %vm2912, %v2895, %v1787
  %v2961 = vsel %vm2912, %v2896, %v1789
  %v2962 = vsel %vm2912, %v2897, %v1791
  %v2963 = vsel %vm2912, %v2898, %v1793
  %v2964 = vsel %vm2912, %v2899, %v1795
  %v2965 = vsel %vm2912, %v2900, %v1797
  %v2966 = vsel %vm2912, %v2901, %v1799
  %v2967 = vsel %vm2912, %v2902, %v1801
  %v2968 = vsel %vm2912, %v2903, %v1803
  %v2969 = vsel %vm2912, %v2904, %v1805
  %v2970 = vsel %vm2912, %v2905, %v1807
  %v2971 = vsel %vm2912, %v2906, %v1809
  %v2972 = vsel %vm2912, %v2907, %v1811
  %v2973 = vsel %vm2912, %v2908, %v1813
  %v2974 = vsel %vm2912, %v2909, %v1815
  %v2975 = vsel %vm2912, %v2910, %v1817
  %v2976 = vsel %vm2912, %v2911, %v1819
  %vm2977 = vcmask 195584
  %v2978 = vsel %vm2977, %v2913, %v1949
  %v2979 = vsel %vm2977, %v2914, %v1951
  %v2980 = vsel %vm2977, %v2915, %v1953
  %v2981 = vsel %vm2977, %v2916, %v1955
  %v2982 = vsel %vm2977, %v2917, %v1957
  %v2983 = vsel %vm2977, %v2918, %v1959
  %v2984 = vsel %vm2977, %v2919, %v1961
  %v2985 = vsel %vm2977, %v2920, %v1963
  %v2986 = vsel %vm2977, %v2921, %v1965
  %v2987 = vsel %vm2977, %v2922, %v1967
  %v2988 = vsel %vm2977, %v2923, %v1969
  %v2989 = vsel %vm2977, %v2924, %v1971
  %v2990 = vsel %vm2977, %v2925, %v1973
  %v2991 = vsel %vm2977, %v2926, %v1975
  %v2992 = vsel %vm2977, %v2927, %v1977
  %v2993 = vsel %vm2977, %v2928, %v1979
  %v2994 = vsel %vm2977, %v2929, %v1981
  %v2995 = vsel %vm2977, %v2930, %v1983
  %v2996 = vsel %vm2977, %v2931, %v1985
  %v2997 = vsel %vm2977, %v2932, %v1987
  %v2998 = vsel %vm2977, %v2933, %v1989
  %v2999 = vsel %vm2977, %v2934, %v1991
  %v3000 = vsel %vm2977, %v2935, %v1993
  %v3001 = vsel %vm2977, %v2936, %v1995
  %v3002 = vsel %vm2977, %v2937, %v1997
  %v3003 = vsel %vm2977, %v2938, %v1999
  %v3004 = vsel %vm2977, %v2939, %v2001
  %v3005 = vsel %vm2977, %v2940, %v2003
  %v3006 = vsel %vm2977, %v2941, %v2005
  %v3007 = vsel %vm2977, %v2942, %v2007
  %v3008 = vsel %vm2977, %v2943, %v2009
  %v3009 = vsel %vm2977, %v2944, %v2011
  %v3010 = vsel %vm2977, %v2945, %v2013
  %v3011 = vsel %vm2977, %v2946, %v2015
  %v3012 = vsel %vm2977, %v2947, %v2017
  %v3013 = vsel %vm2977, %v2948, %v2019
  %v3014 = vsel %vm2977, %v2949, %v2021
  %v3015 = vsel %vm2977, %v2950, %v2023
  %v3016 = vsel %vm2977, %v2951, %v2025
  %v3017 = vsel %vm2977, %v2952, %v2027
  %v3018 = vsel %vm2977, %v2953, %v2029
  %v3019 = vsel %vm2977, %v2954, %v2031
  %v3020 = vsel %vm2977, %v2955, %v2033
  %v3021 = vsel %vm2977, %v2956, %v2035
  %v3022 = vsel %vm2977, %v2957, %v2037
  %v3023 = vsel %vm2977, %v2958, %v2039
  %v3024 = vsel %vm2977, %v2959, %v2041
  %v3025 = vsel %vm2977, %v2960, %v2043
  %v3026 = vsel %vm2977, %v2961, %v2045
  %v3027 = vsel %vm2977, %v2962, %v2047
  %v3028 = vsel %vm2977, %v2963, %v2049
  %v3029 = vsel %vm2977, %v2964, %v2051
  %v3030 = vsel %vm2977, %v2965, %v2053
  %v3031 = vsel %vm2977, %v2966, %v2055
  %v3032 = vsel %vm2977, %v2967, %v2057
  %v3033 = vsel %vm2977, %v2968, %v2059
  %v3034 = vsel %vm2977, %v2969, %v2061
  %v3035 = vsel %vm2977, %v2970, %v2063
  %v3036 = vsel %vm2977, %v2971, %v2065
  %v3037 = vsel %vm2977, %v2972, %v2067
  %v3038 = vsel %vm2977, %v2973, %v2069
  %v3039 = vsel %vm2977, %v2974, %v2071
  %v3040 = vsel %vm2977, %v2975, %v2073
  %v3041 = vsel %vm2977, %v2976, %v2075
  %vm3042 = vcmask 228352
  %v3043 = vsel %vm3042, %v2978, %v2205
  %v3044 = vsel %vm3042, %v2979, %v2207
  %v3045 = vsel %vm3042, %v2980, %v2209
  %v3046 = vsel %vm3042, %v2981, %v2211
  %v3047 = vsel %vm3042, %v2982, %v2213
  %v3048 = vsel %vm3042, %v2983, %v2215
  %v3049 = vsel %vm3042, %v2984, %v2217
  %v3050 = vsel %vm3042, %v2985, %v2219
  %v3051 = vsel %vm3042, %v2986, %v2221
  %v3052 = vsel %vm3042, %v2987, %v2223
  %v3053 = vsel %vm3042, %v2988, %v2225
  %v3054 = vsel %vm3042, %v2989, %v2227
  %v3055 = vsel %vm3042, %v2990, %v2229
  %v3056 = vsel %vm3042, %v2991, %v2231
  %v3057 = vsel %vm3042, %v2992, %v2233
  %v3058 = vsel %vm3042, %v2993, %v2235
  %v3059 = vsel %vm3042, %v2994, %v2237
  %v3060 = vsel %vm3042, %v2995, %v2239
  %v3061 = vsel %vm3042, %v2996, %v2241
  %v3062 = vsel %vm3042, %v2997, %v2243
  %v3063 = vsel %vm3042, %v2998, %v2245
  %v3064 = vsel %vm3042, %v2999, %v2247
  %v3065 = vsel %vm3042, %v3000, %v2249
  %v3066 = vsel %vm3042, %v3001, %v2251
  %v3067 = vsel %vm3042, %v3002, %v2253
  %v3068 = vsel %vm3042, %v3003, %v2255
  %v3069 = vsel %vm3042, %v3004, %v2257
  %v3070 = vsel %vm3042, %v3005, %v2259
  %v3071 = vsel %vm3042, %v3006, %v2261
  %v3072 = vsel %vm3042, %v3007, %v2263
  %v3073 = vsel %vm3042, %v3008, %v2265
  %v3074 = vsel %vm3042, %v3009, %v2267
  %v3075 = vsel %vm3042, %v3010, %v2269
  %v3076 = vsel %vm3042, %v3011, %v2271
  %v3077 = vsel %vm3042, %v3012, %v2273
  %v3078 = vsel %vm3042, %v3013, %v2275
  %v3079 = vsel %vm3042, %v3014, %v2277
  %v3080 = vsel %vm3042, %v3015, %v2279
  %v3081 = vsel %vm3042, %v3016, %v2281
  %v3082 = vsel %vm3042, %v3017, %v2283
  %v3083 = vsel %vm3042, %v3018, %v2285
  %v3084 = vsel %vm3042, %v3019, %v2287
  %v3085 = vsel %vm3042, %v3020, %v2289
  %v3086 = vsel %vm3042, %v3021, %v2291
  %v3087 = vsel %vm3042, %v3022, %v2293
  %v3088 = vsel %vm3042, %v3023, %v2295
  %v3089 = vsel %vm3042, %v3024, %v2297
  %v3090 = vsel %vm3042, %v3025, %v2299
  %v3091 = vsel %vm3042, %v3026, %v2301
  %v3092 = vsel %vm3042, %v3027, %v2303
  %v3093 = vsel %vm3042, %v3028, %v2305
  %v3094 = vsel %vm3042, %v3029, %v2307
  %v3095 = vsel %vm3042, %v3030, %v2309
  %v3096 = vsel %vm3042, %v3031, %v2311
  %v3097 = vsel %vm3042, %v3032, %v2313
  %v3098 = vsel %vm3042, %v3033, %v2315
  %v3099 = vsel %vm3042, %v3034, %v2317
  %v3100 = vsel %vm3042, %v3035, %v2319
  %v3101 = vsel %vm3042, %v3036, %v2321
  %v3102 = vsel %vm3042, %v3037, %v2323
  %v3103 = vsel %vm3042, %v3038, %v2325
  %v3104 = vsel %vm3042, %v3039, %v2327
  %v3105 = vsel %vm3042, %v3040, %v2329
  %v3106 = vsel %vm3042, %v3041, %v2331
  %vm3107 = vcmask 261120
  %v3108 = vsel %vm3107, %v3043, %v2461
  %v3109 = vsel %vm3107, %v3044, %v2463
  %v3110 = vsel %vm3107, %v3045, %v2465
  %v3111 = vsel %vm3107, %v3046, %v2467
  %v3112 = vsel %vm3107, %v3047, %v2469
  %v3113 = vsel %vm3107, %v3048, %v2471
  %v3114 = vsel %vm3107, %v3049, %v2473
  %v3115 = vsel %vm3107, %v3050, %v2475
  %v3116 = vsel %vm3107, %v3051, %v2477
  %v3117 = vsel %vm3107, %v3052, %v2479
  %v3118 = vsel %vm3107, %v3053, %v2481
  %v3119 = vsel %vm3107, %v3054, %v2483
  %v3120 = vsel %vm3107, %v3055, %v2485
  %v3121 = vsel %vm3107, %v3056, %v2487
  %v3122 = vsel %vm3107, %v3057, %v2489
  %v3123 = vsel %vm3107, %v3058, %v2491
  %v3124 = vsel %vm3107, %v3059, %v2493
  %v3125 = vsel %vm3107, %v3060, %v2495
  %v3126 = vsel %vm3107, %v3061, %v2497
  %v3127 = vsel %vm3107, %v3062, %v2499
  %v3128 = vsel %vm3107, %v3063, %v2501
  %v3129 = vsel %vm3107, %v3064, %v2503
  %v3130 = vsel %vm3107, %v3065, %v2505
  %v3131 = vsel %vm3107, %v3066, %v2507
  %v3132 = vsel %vm3107, %v3067, %v2509
  %v3133 = vsel %vm3107, %v3068, %v2511
  %v3134 = vsel %vm3107, %v3069, %v2513
  %v3135 = vsel %vm3107, %v3070, %v2515
  %v3136 = vsel %vm3107, %v3071, %v2517
  %v3137 = vsel %vm3107, %v3072, %v2519
  %v3138 = vsel %vm3107, %v3073, %v2521
  %v3139 = vsel %vm3107, %v3074, %v2523
  %v3140 = vsel %vm3107, %v3075, %v2525
  %v3141 = vsel %vm3107, %v3076, %v2527
  %v3142 = vsel %vm3107, %v3077, %v2529
  %v3143 = vsel %vm3107, %v3078, %v2531
  %v3144 = vsel %vm3107, %v3079, %v2533
  %v3145 = vsel %vm3107, %v3080, %v2535
  %v3146 = vsel %vm3107, %v3081, %v2537
  %v3147 = vsel %vm3107, %v3082, %v2539
  %v3148 = vsel %vm3107, %v3083, %v2541
  %v3149 = vsel %vm3107, %v3084, %v2543
  %v3150 = vsel %vm3107, %v3085, %v2545
  %v3151 = vsel %vm3107, %v3086, %v2547
  %v3152 = vsel %vm3107, %v3087, %v2549
  %v3153 = vsel %vm3107, %v3088, %v2551
  %v3154 = vsel %vm3107, %v3089, %v2553
  %v3155 = vsel %vm3107, %v3090, %v2555
  %v3156 = vsel %vm3107, %v3091, %v2557
  %v3157 = vsel %vm3107, %v3092, %v2559
  %v3158 = vsel %vm3107, %v3093, %v2561
  %v3159 = vsel %vm3107, %v3094, %v2563
  %v3160 = vsel %vm3107, %v3095, %v2565
  %v3161 = vsel %vm3107, %v3096, %v2567
  %v3162 = vsel %vm3107, %v3097, %v2569
  %v3163 = vsel %vm3107, %v3098, %v2571
  %v3164 = vsel %vm3107, %v3099, %v2573
  %v3165 = vsel %vm3107, %v3100, %v2575
  %v3166 = vsel %vm3107, %v3101, %v2577
  %v3167 = vsel %vm3107, %v3102, %v2579
  %v3168 = vsel %vm3107, %v3103, %v2581
  %v3169 = vsel %vm3107, %v3104, %v2583
  %v3170 = vsel %vm3107, %v3105, %v2585
  %v3171 = vsel %vm3107, %v3106, %v2587
  %v3172 = vld [vmem:[%s1] sm:$0xff]
  %v3173 = vld [vmem:[%s1 + $0x8] sm:$0xff]
  %v3174 = vld [vmem:[%s1 + $0x10] sm:$0xff]
  %v3175 = vld [vmem:[%s1 + $0x18] sm:$0xff]
  %v3176 = vld [vmem:[%s1 + $0x20] sm:$0xf]
  %v3177 = vld [vmem:[%s2] sm:$0x1]
  %v3179 = vlaneseq
  %v3180 = vshrl.u32 %v3179, 7
  %v3181 = vsub.s32 0, %v3180
  %v3182 = vrot.slane %v3177, %v3181
  %vm3184 = vcmask 293888
  %v3186 = vsel %vm3184, %v3108, 0
  %v3189 = vsel %vm3184, %v3109, 0
  %v3192 = vsel %vm3184, %v3110, 0
  %v3195 = vsel %vm3184, %v3111, 0
  %v3198 = vsel %vm3184, %v3112, 0
  %v3201 = vsel %vm3184, %v3113, 0
  %v3204 = vsel %vm3184, %v3114, 0
  %v3207 = vsel %vm3184, %v3115, 0
  %v3210 = vsel %vm3184, %v3116, 0
  %v3213 = vsel %vm3184, %v3117, 0
  %v3216 = vsel %vm3184, %v3118, 0
  %v3219 = vsel %vm3184, %v3119, 0
  %v3222 = vsel %vm3184, %v3120, 0
  %v3225 = vsel %vm3184, %v3121, 0
  %v3228 = vsel %vm3184, %v3122, 0
  %v3231 = vsel %vm3184, %v3123, 0
  %v3234 = vsel %vm3184, %v3124, 0
  %v3237 = vsel %vm3184, %v3125, 0
  %v3240 = vsel %vm3184, %v3126, 0
  %v3243 = vsel %vm3184, %v3127, 0
  %v3246 = vsel %vm3184, %v3128, 0
  %v3249 = vsel %vm3184, %v3129, 0
  %v3252 = vsel %vm3184, %v3130, 0
  %v3255 = vsel %vm3184, %v3131, 0
  %v3258 = vsel %vm3184, %v3132, 0
  %v3261 = vsel %vm3184, %v3133, 0
  %v3264 = vsel %vm3184, %v3134, 0
  %v3267 = vsel %vm3184, %v3135, 0
  %v3270 = vsel %vm3184, %v3136, 0
  %v3273 = vsel %vm3184, %v3137, 0
  %v3276 = vsel %vm3184, %v3138, 0
  %v3279 = vsel %vm3184, %v3139, 0
  %v3282 = vsel %vm3184, %v3140, 0
  %v3285 = vsel %vm3184, %v3141, 0
  %v3288 = vsel %vm3184, %v3142, 0
  %v3291 = vsel %vm3184, %v3143, 0
  %v3294 = vsel %vm3184, %v3144, 0
  %v3297 = vsel %vm3184, %v3145, 0
  %v3300 = vsel %vm3184, %v3146, 0
  %v3303 = vsel %vm3184, %v3147, 0
  %v3306 = vsel %vm3184, %v3148, 0
  %v3309 = vsel %vm3184, %v3149, 0
  %v3312 = vsel %vm3184, %v3150, 0
  %v3315 = vsel %vm3184, %v3151, 0
  %v3318 = vsel %vm3184, %v3152, 0
  %v3321 = vsel %vm3184, %v3153, 0
  %v3324 = vsel %vm3184, %v3154, 0
  %v3327 = vsel %vm3184, %v3155, 0
  %v3330 = vsel %vm3184, %v3156, 0
  %v3333 = vsel %vm3184, %v3157, 0
  %v3336 = vsel %vm3184, %v3158, 0
  %v3339 = vsel %vm3184, %v3159, 0
  %v3342 = vsel %vm3184, %v3160, 0
  %v3345 = vsel %vm3184, %v3161, 0
  %v3348 = vsel %vm3184, %v3162, 0
  %v3351 = vsel %vm3184, %v3163, 0
  %v3354 = vsel %vm3184, %v3164, 0
  %v3357 = vsel %vm3184, %v3165, 0
  %v3360 = vsel %vm3184, %v3166, 0
  %v3363 = vsel %vm3184, %v3167, 0
  %v3366 = vsel %vm3184, %v3168, 0
  %v3369 = vsel %vm3184, %v3169, 0
  %v3372 = vsel %vm3184, %v3170, 0
  %v3375 = vsel %vm3184, %v3171, 0
  %vm3377 = vcmask 1043456
  %v3379 = vsel %vm3377, %v3176, 0
  %3381 = vmatprep.subr.mxu0 0.0
  %3382 = vmatpush1.msra.mxu0 0.0
  %3383 = vmatprep.subr.mxu0 0.0
  %3384 = vmatpush1.msra.mxu0 0.0
  %3385 = vmatprep.subr.mxu0 0.0
  %3386 = vmatpush1.msra.mxu0 0.0
  %3387 = vmatprep.subr.mxu0 0.0
  %3388 = vmatpush1.msra.mxu0 0.0
  %3389 = vmatprep.subr.mxu0 0.0
  %3390 = vmatpush1.msra.mxu0 0.0
  %3391 = vmatprep.subr.mxu0 0.0
  %3392 = vmatpush1.msra.mxu0 0.0
  %3393 = vmatprep.subr.mxu0 0.0
  %3394 = vmatpush1.msra.mxu0 0.0
  %3395 = vmatprep.subr.mxu0 0.0
  %3396 = vmatpush1.msra.mxu0 0.0
  %3397 = vmatprep.subr.mxu0 0.0
  %3398 = vmatpush1.msra.mxu0 0.0
  %3399 = vmatprep.subr.mxu0 0.0
  %3400 = vmatpush1.msra.mxu0 0.0
  %3401 = vmatprep.subr.mxu0 0.0
  %3402 = vmatpush1.msra.mxu0 0.0
  %3403 = vmatprep.subr.mxu0 0.0
  %3404 = vmatpush1.msra.mxu0 %v3379
  %3405 = vmatprep.subr.mxu0 0.0
  %3406 = vmatpush1.msra.mxu0 %v3175
  %3407 = vmatprep.subr.mxu0 0.0
  %3408 = vmatpush1.msra.mxu0 %v3174
  %3409 = vmatprep.subr.mxu0 0.0
  %3410 = vmatpush1.msra.mxu0 %v3173
  %3411 = vmatprep.subr.mxu0 0.0
  %3412 = vmatpush1.msra.mxu0 %v3172
  %3413 = vmatprep.subr.mxu0 0.0
  %3414 = vmatpush2.msra.mxu0 0.0
  %3415 = vmatprep.subr.mxu0 0.0
  %3416 = vmatpush2.msra.mxu0 0.0
  %3417 = vmatprep.subr.mxu0 0.0
  %3418 = vmatpush2.msra.mxu0 0.0
  %3419 = vmatprep.subr.mxu0 0.0
  %3420 = vmatpush2.msra.mxu0 0.0
  %3421 = vmatprep.subr.mxu0 0.0
  %3422 = vmatpush2.msra.mxu0 0.0
  %3423 = vmatprep.subr.mxu0 0.0
  %3424 = vmatpush2.msra.mxu0 0.0
  %3425 = vmatprep.subr.mxu0 0.0
  %3426 = vmatpush2.msra.mxu0 0.0
  %3427 = vmatprep.subr.mxu0 0.0
  %3428 = vmatpush2.msra.mxu0 0.0
  %3429 = vmatprep.subr.mxu0 0.0
  %3430 = vmatpush2.msra.mxu0 0.0
  %3431 = vmatprep.subr.mxu0 0.0
  %3432 = vmatpush2.msra.mxu0 0.0
  %3433 = vmatprep.subr.mxu0 0.0
  %3434 = vmatpush2.msra.mxu0 0.0
  %3435 = vmatprep.subr.mxu0 0.0
  %3436 = vmatpush2.msra.mxu0 0.0
  %3437 = vmatprep.subr.mxu0 0.0
  %3438 = vmatpush2.msra.mxu0 0.0
  %3439 = vmatprep.subr.mxu0 0.0
  %3440 = vmatpush2.msra.mxu0 0.0
  %3441 = vmatprep.subr.mxu0 0.0
  %3442 = vmatpush2.msra.mxu0 0.0
  %3443 = vmatprep.subr.mxu0 0.0
  %3444 = vmatpush2.msra.mxu0 0.0
  %3445 = vmatprep.mubr.f32.mxu0 0.0
  %3446 = vmatmul.mubr.f32.gmra.mxu0 %v3186
  %v3447 = vpop.f32.mrf.mxu0
  %v3448 = vadd.f32 %v3182, %v3447
  %v3449 = vpop.f32.mrf.mxu0
  %3450 = vmatprep.mubr.f32.mxu0 0.0
  %3451 = vmatmul.mubr.f32.gmra.mxu0 %v3189
  %v3452 = vpop.f32.mrf.mxu0
  %v3453 = vadd.f32 %v3182, %v3452
  %v3454 = vpop.f32.mrf.mxu0
  %3455 = vmatprep.mubr.f32.mxu0 0.0
  %3456 = vmatmul.mubr.f32.gmra.mxu0 %v3192
  %v3457 = vpop.f32.mrf.mxu0
  %v3458 = vadd.f32 %v3182, %v3457
  %v3459 = vpop.f32.mrf.mxu0
  %3460 = vmatprep.mubr.f32.mxu0 0.0
  %3461 = vmatmul.mubr.f32.gmra.mxu0 %v3195
  %v3462 = vpop.f32.mrf.mxu0
  %v3463 = vadd.f32 %v3182, %v3462
  %v3464 = vpop.f32.mrf.mxu0
  %3465 = vmatprep.mubr.f32.mxu0 0.0
  %3466 = vmatmul.mubr.f32.gmra.mxu0 %v3198
  %v3467 = vpop.f32.mrf.mxu0
  %v3468 = vadd.f32 %v3182, %v3467
  %v3469 = vpop.f32.mrf.mxu0
  %3470 = vmatprep.mubr.f32.mxu0 0.0
  %3471 = vmatmul.mubr.f32.gmra.mxu0 %v3201
  %v3472 = vpop.f32.mrf.mxu0
  %v3473 = vadd.f32 %v3182, %v3472
  %v3474 = vpop.f32.mrf.mxu0
  %3475 = vmatprep.mubr.f32.mxu0 0.0
  %3476 = vmatmul.mubr.f32.gmra.mxu0 %v3204
  %v3477 = vpop.f32.mrf.mxu0
  %v3478 = vadd.f32 %v3182, %v3477
  %v3479 = vpop.f32.mrf.mxu0
  %3480 = vmatprep.mubr.f32.mxu0 0.0
  %3481 = vmatmul.mubr.f32.gmra.mxu0 %v3207
  %v3482 = vpop.f32.mrf.mxu0
  %v3483 = vadd.f32 %v3182, %v3482
  %v3484 = vpop.f32.mrf.mxu0
  %3485 = vmatprep.mubr.f32.mxu0 0.0
  %3486 = vmatmul.mubr.f32.gmra.mxu0 %v3210
  %v3487 = vpop.f32.mrf.mxu0
  %v3488 = vadd.f32 %v3182, %v3487
  %v3489 = vpop.f32.mrf.mxu0
  %3490 = vmatprep.mubr.f32.mxu0 0.0
  %3491 = vmatmul.mubr.f32.gmra.mxu0 %v3213
  %v3492 = vpop.f32.mrf.mxu0
  %v3493 = vadd.f32 %v3182, %v3492
  %v3494 = vpop.f32.mrf.mxu0
  %3495 = vmatprep.mubr.f32.mxu0 0.0
  %3496 = vmatmul.mubr.f32.gmra.mxu0 %v3216
  %v3497 = vpop.f32.mrf.mxu0
  %v3498 = vadd.f32 %v3182, %v3497
  %v3499 = vpop.f32.mrf.mxu0
  %3500 = vmatprep.mubr.f32.mxu0 0.0
  %3501 = vmatmul.mubr.f32.gmra.mxu0 %v3219
  %v3502 = vpop.f32.mrf.mxu0
  %v3503 = vadd.f32 %v3182, %v3502
  %v3504 = vpop.f32.mrf.mxu0
  %3505 = vmatprep.mubr.f32.mxu0 0.0
  %3506 = vmatmul.mubr.f32.gmra.mxu0 %v3222
  %v3507 = vpop.f32.mrf.mxu0
  %v3508 = vadd.f32 %v3182, %v3507
  %v3509 = vpop.f32.mrf.mxu0
  %3510 = vmatprep.mubr.f32.mxu0 0.0
  %3511 = vmatmul.mubr.f32.gmra.mxu0 %v3225
  %v3512 = vpop.f32.mrf.mxu0
  %v3513 = vadd.f32 %v3182, %v3512
  %v3514 = vpop.f32.mrf.mxu0
  %3515 = vmatprep.mubr.f32.mxu0 0.0
  %3516 = vmatmul.mubr.f32.gmra.mxu0 %v3228
  %v3517 = vpop.f32.mrf.mxu0
  %v3518 = vadd.f32 %v3182, %v3517
  %v3519 = vpop.f32.mrf.mxu0
  %3520 = vmatprep.mubr.f32.mxu0 0.0
  %3521 = vmatmul.mubr.f32.gmra.mxu0 %v3231
  %v3522 = vpop.f32.mrf.mxu0
  %v3523 = vadd.f32 %v3182, %v3522
  %v3524 = vpop.f32.mrf.mxu0
  %3525 = vmatprep.mubr.f32.mxu0 0.0
  %3526 = vmatmul.mubr.f32.gmra.mxu0 %v3234
  %v3527 = vpop.f32.mrf.mxu0
  %v3528 = vadd.f32 %v3182, %v3527
  %v3529 = vpop.f32.mrf.mxu0
  %3530 = vmatprep.mubr.f32.mxu0 0.0
  %3531 = vmatmul.mubr.f32.gmra.mxu0 %v3237
  %v3532 = vpop.f32.mrf.mxu0
  %v3533 = vadd.f32 %v3182, %v3532
  %v3534 = vpop.f32.mrf.mxu0
  %3535 = vmatprep.mubr.f32.mxu0 0.0
  %3536 = vmatmul.mubr.f32.gmra.mxu0 %v3240
  %v3537 = vpop.f32.mrf.mxu0
  %v3538 = vadd.f32 %v3182, %v3537
  %v3539 = vpop.f32.mrf.mxu0
  %3540 = vmatprep.mubr.f32.mxu0 0.0
  %3541 = vmatmul.mubr.f32.gmra.mxu0 %v3243
  %v3542 = vpop.f32.mrf.mxu0
  %v3543 = vadd.f32 %v3182, %v3542
  %v3544 = vpop.f32.mrf.mxu0
  %3545 = vmatprep.mubr.f32.mxu0 0.0
  %3546 = vmatmul.mubr.f32.gmra.mxu0 %v3246
  %v3547 = vpop.f32.mrf.mxu0
  %v3548 = vadd.f32 %v3182, %v3547
  %v3549 = vpop.f32.mrf.mxu0
  %3550 = vmatprep.mubr.f32.mxu0 0.0
  %3551 = vmatmul.mubr.f32.gmra.mxu0 %v3249
  %v3552 = vpop.f32.mrf.mxu0
  %v3553 = vadd.f32 %v3182, %v3552
  %v3554 = vpop.f32.mrf.mxu0
  %3555 = vmatprep.mubr.f32.mxu0 0.0
  %3556 = vmatmul.mubr.f32.gmra.mxu0 %v3252
  %v3557 = vpop.f32.mrf.mxu0
  %v3558 = vadd.f32 %v3182, %v3557
  %v3559 = vpop.f32.mrf.mxu0
  %3560 = vmatprep.mubr.f32.mxu0 0.0
  %3561 = vmatmul.mubr.f32.gmra.mxu0 %v3255
  %v3562 = vpop.f32.mrf.mxu0
  %v3563 = vadd.f32 %v3182, %v3562
  %v3564 = vpop.f32.mrf.mxu0
  %3565 = vmatprep.mubr.f32.mxu0 0.0
  %3566 = vmatmul.mubr.f32.gmra.mxu0 %v3258
  %v3567 = vpop.f32.mrf.mxu0
  %v3568 = vadd.f32 %v3182, %v3567
  %v3569 = vpop.f32.mrf.mxu0
  %3570 = vmatprep.mubr.f32.mxu0 0.0
  %3571 = vmatmul.mubr.f32.gmra.mxu0 %v3261
  %v3572 = vpop.f32.mrf.mxu0
  %v3573 = vadd.f32 %v3182, %v3572
  %v3574 = vpop.f32.mrf.mxu0
  %3575 = vmatprep.mubr.f32.mxu0 0.0
  %3576 = vmatmul.mubr.f32.gmra.mxu0 %v3264
  %v3577 = vpop.f32.mrf.mxu0
  %v3578 = vadd.f32 %v3182, %v3577
  %v3579 = vpop.f32.mrf.mxu0
  %3580 = vmatprep.mubr.f32.mxu0 0.0
  %3581 = vmatmul.mubr.f32.gmra.mxu0 %v3267
  %v3582 = vpop.f32.mrf.mxu0
  %v3583 = vadd.f32 %v3182, %v3582
  %v3584 = vpop.f32.mrf.mxu0
  %3585 = vmatprep.mubr.f32.mxu0 0.0
  %3586 = vmatmul.mubr.f32.gmra.mxu0 %v3270
  %v3587 = vpop.f32.mrf.mxu0
  %v3588 = vadd.f32 %v3182, %v3587
  %v3589 = vpop.f32.mrf.mxu0
  %3590 = vmatprep.mubr.f32.mxu0 0.0
  %3591 = vmatmul.mubr.f32.gmra.mxu0 %v3273
  %v3592 = vpop.f32.mrf.mxu0
  %v3593 = vadd.f32 %v3182, %v3592
  %v3594 = vpop.f32.mrf.mxu0
  %3595 = vmatprep.mubr.f32.mxu0 0.0
  %3596 = vmatmul.mubr.f32.gmra.mxu0 %v3276
  %v3597 = vpop.f32.mrf.mxu0
  %v3598 = vadd.f32 %v3182, %v3597
  %v3599 = vpop.f32.mrf.mxu0
  %3600 = vmatprep.mubr.f32.mxu0 0.0
  %3601 = vmatmul.mubr.f32.gmra.mxu0 %v3279
  %v3602 = vpop.f32.mrf.mxu0
  %v3603 = vadd.f32 %v3182, %v3602
  %v3604 = vpop.f32.mrf.mxu0
  %3605 = vmatprep.mubr.f32.mxu0 0.0
  %3606 = vmatmul.mubr.f32.gmra.mxu0 %v3282
  %v3607 = vpop.f32.mrf.mxu0
  %v3608 = vadd.f32 %v3182, %v3607
  %v3609 = vpop.f32.mrf.mxu0
  %3610 = vmatprep.mubr.f32.mxu0 0.0
  %3611 = vmatmul.mubr.f32.gmra.mxu0 %v3285
  %v3612 = vpop.f32.mrf.mxu0
  %v3613 = vadd.f32 %v3182, %v3612
  %v3614 = vpop.f32.mrf.mxu0
  %3615 = vmatprep.mubr.f32.mxu0 0.0
  %3616 = vmatmul.mubr.f32.gmra.mxu0 %v3288
  %v3617 = vpop.f32.mrf.mxu0
  %v3618 = vadd.f32 %v3182, %v3617
  %v3619 = vpop.f32.mrf.mxu0
  %3620 = vmatprep.mubr.f32.mxu0 0.0
  %3621 = vmatmul.mubr.f32.gmra.mxu0 %v3291
  %v3622 = vpop.f32.mrf.mxu0
  %v3623 = vadd.f32 %v3182, %v3622
  %v3624 = vpop.f32.mrf.mxu0
  %3625 = vmatprep.mubr.f32.mxu0 0.0
  %3626 = vmatmul.mubr.f32.gmra.mxu0 %v3294
  %v3627 = vpop.f32.mrf.mxu0
  %v3628 = vadd.f32 %v3182, %v3627
  %v3629 = vpop.f32.mrf.mxu0
  %3630 = vmatprep.mubr.f32.mxu0 0.0
  %3631 = vmatmul.mubr.f32.gmra.mxu0 %v3297
  %v3632 = vpop.f32.mrf.mxu0
  %v3633 = vadd.f32 %v3182, %v3632
  %v3634 = vpop.f32.mrf.mxu0
  %3635 = vmatprep.mubr.f32.mxu0 0.0
  %3636 = vmatmul.mubr.f32.gmra.mxu0 %v3300
  %v3637 = vpop.f32.mrf.mxu0
  %v3638 = vadd.f32 %v3182, %v3637
  %v3639 = vpop.f32.mrf.mxu0
  %3640 = vmatprep.mubr.f32.mxu0 0.0
  %3641 = vmatmul.mubr.f32.gmra.mxu0 %v3303
  %v3642 = vpop.f32.mrf.mxu0
  %v3643 = vadd.f32 %v3182, %v3642
  %v3644 = vpop.f32.mrf.mxu0
  %3645 = vmatprep.mubr.f32.mxu0 0.0
  %3646 = vmatmul.mubr.f32.gmra.mxu0 %v3306
  %v3647 = vpop.f32.mrf.mxu0
  %v3648 = vadd.f32 %v3182, %v3647
  %v3649 = vpop.f32.mrf.mxu0
  %3650 = vmatprep.mubr.f32.mxu0 0.0
  %3651 = vmatmul.mubr.f32.gmra.mxu0 %v3309
  %v3652 = vpop.f32.mrf.mxu0
  %v3653 = vadd.f32 %v3182, %v3652
  %v3654 = vpop.f32.mrf.mxu0
  %3655 = vmatprep.mubr.f32.mxu0 0.0
  %3656 = vmatmul.mubr.f32.gmra.mxu0 %v3312
  %v3657 = vpop.f32.mrf.mxu0
  %v3658 = vadd.f32 %v3182, %v3657
  %v3659 = vpop.f32.mrf.mxu0
  %3660 = vmatprep.mubr.f32.mxu0 0.0
  %3661 = vmatmul.mubr.f32.gmra.mxu0 %v3315
  %v3662 = vpop.f32.mrf.mxu0
  %v3663 = vadd.f32 %v3182, %v3662
  %v3664 = vpop.f32.mrf.mxu0
  %3665 = vmatprep.mubr.f32.mxu0 0.0
  %3666 = vmatmul.mubr.f32.gmra.mxu0 %v3318
  %v3667 = vpop.f32.mrf.mxu0
  %v3668 = vadd.f32 %v3182, %v3667
  %v3669 = vpop.f32.mrf.mxu0
  %3670 = vmatprep.mubr.f32.mxu0 0.0
  %3671 = vmatmul.mubr.f32.gmra.mxu0 %v3321
  %v3672 = vpop.f32.mrf.mxu0
  %v3673 = vadd.f32 %v3182, %v3672
  %v3674 = vpop.f32.mrf.mxu0
  %3675 = vmatprep.mubr.f32.mxu0 0.0
  %3676 = vmatmul.mubr.f32.gmra.mxu0 %v3324
  %v3677 = vpop.f32.mrf.mxu0
  %v3678 = vadd.f32 %v3182, %v3677
  %v3679 = vpop.f32.mrf.mxu0
  %3680 = vmatprep.mubr.f32.mxu0 0.0
  %3681 = vmatmul.mubr.f32.gmra.mxu0 %v3327
  %v3682 = vpop.f32.mrf.mxu0
  %v3683 = vadd.f32 %v3182, %v3682
  %v3684 = vpop.f32.mrf.mxu0
  %3685 = vmatprep.mubr.f32.mxu0 0.0
  %3686 = vmatmul.mubr.f32.gmra.mxu0 %v3330
  %v3687 = vpop.f32.mrf.mxu0
  %v3688 = vadd.f32 %v3182, %v3687
  %v3689 = vpop.f32.mrf.mxu0
  %3690 = vmatprep.mubr.f32.mxu0 0.0
  %3691 = vmatmul.mubr.f32.gmra.mxu0 %v3333
  %v3692 = vpop.f32.mrf.mxu0
  %v3693 = vadd.f32 %v3182, %v3692
  %v3694 = vpop.f32.mrf.mxu0
  %3695 = vmatprep.mubr.f32.mxu0 0.0
  %3696 = vmatmul.mubr.f32.gmra.mxu0 %v3336
  %v3697 = vpop.f32.mrf.mxu0
  %v3698 = vadd.f32 %v3182, %v3697
  %v3699 = vpop.f32.mrf.mxu0
  %3700 = vmatprep.mubr.f32.mxu0 0.0
  %3701 = vmatmul.mubr.f32.gmra.mxu0 %v3339
  %v3702 = vpop.f32.mrf.mxu0
  %v3703 = vadd.f32 %v3182, %v3702
  %v3704 = vpop.f32.mrf.mxu0
  %3705 = vmatprep.mubr.f32.mxu0 0.0
  %3706 = vmatmul.mubr.f32.gmra.mxu0 %v3342
  %v3707 = vpop.f32.mrf.mxu0
  %v3708 = vadd.f32 %v3182, %v3707
  %v3709 = vpop.f32.mrf.mxu0
  %3710 = vmatprep.mubr.f32.mxu0 0.0
  %3711 = vmatmul.mubr.f32.gmra.mxu0 %v3345
  %v3712 = vpop.f32.mrf.mxu0
  %v3713 = vadd.f32 %v3182, %v3712
  %v3714 = vpop.f32.mrf.mxu0
  %3715 = vmatprep.mubr.f32.mxu0 0.0
  %3716 = vmatmul.mubr.f32.gmra.mxu0 %v3348
  %v3717 = vpop.f32.mrf.mxu0
  %v3718 = vadd.f32 %v3182, %v3717
  %v3719 = vpop.f32.mrf.mxu0
  %3720 = vmatprep.mubr.f32.mxu0 0.0
  %3721 = vmatmul.mubr.f32.gmra.mxu0 %v3351
  %v3722 = vpop.f32.mrf.mxu0
  %v3723 = vadd.f32 %v3182, %v3722
  %v3724 = vpop.f32.mrf.mxu0
  %3725 = vmatprep.mubr.f32.mxu0 0.0
  %3726 = vmatmul.mubr.f32.gmra.mxu0 %v3354
  %v3727 = vpop.f32.mrf.mxu0
  %v3728 = vadd.f32 %v3182, %v3727
  %v3729 = vpop.f32.mrf.mxu0
  %3730 = vmatprep.mubr.f32.mxu0 0.0
  %3731 = vmatmul.mubr.f32.gmra.mxu0 %v3357
  %v3732 = vpop.f32.mrf.mxu0
  %v3733 = vadd.f32 %v3182, %v3732
  %v3734 = vpop.f32.mrf.mxu0
  %3735 = vmatprep.mubr.f32.mxu0 0.0
  %3736 = vmatmul.mubr.f32.gmra.mxu0 %v3360
  %v3737 = vpop.f32.mrf.mxu0
  %v3738 = vadd.f32 %v3182, %v3737
  %v3739 = vpop.f32.mrf.mxu0
  %3740 = vmatprep.mubr.f32.mxu0 0.0
  %3741 = vmatmul.mubr.f32.gmra.mxu0 %v3363
  %v3742 = vpop.f32.mrf.mxu0
  %v3743 = vadd.f32 %v3182, %v3742
  %v3744 = vpop.f32.mrf.mxu0
  %3745 = vmatprep.mubr.f32.mxu0 0.0
  %3746 = vmatmul.mubr.f32.gmra.mxu0 %v3366
  %v3747 = vpop.f32.mrf.mxu0
  %v3748 = vadd.f32 %v3182, %v3747
  %v3749 = vpop.f32.mrf.mxu0
  %3750 = vmatprep.mubr.f32.mxu0 0.0
  %3751 = vmatmul.mubr.f32.gmra.mxu0 %v3369
  %v3752 = vpop.f32.mrf.mxu0
  %v3753 = vadd.f32 %v3182, %v3752
  %v3754 = vpop.f32.mrf.mxu0
  %3755 = vmatprep.mubr.f32.mxu0 0.0
  %3756 = vmatmul.mubr.f32.gmra.mxu0 %v3372
  %v3757 = vpop.f32.mrf.mxu0
  %v3758 = vadd.f32 %v3182, %v3757
  %v3759 = vpop.f32.mrf.mxu0
  %3760 = vmatprep.mubr.f32.mxu0 0.0
  %3761 = vmatmul.mubr.f32.gmra.mxu0 %v3375
  %v3762 = vpop.f32.mrf.mxu0
  %v3763 = vadd.f32 %v3182, %v3762
  %v3764 = vpop.f32.mrf.mxu0
  %3765 = vdwg.mxu0
  %v3766 = vmax.f32 %v3448, 0.0
  %v3767 = vmax.f32 %v3453, 0.0
  %v3768 = vmax.f32 %v3458, 0.0
  %v3769 = vmax.f32 %v3463, 0.0
  %v3770 = vmax.f32 %v3468, 0.0
  %v3771 = vmax.f32 %v3473, 0.0
  %v3772 = vmax.f32 %v3478, 0.0
  %v3773 = vmax.f32 %v3483, 0.0
  %v3774 = vmax.f32 %v3488, 0.0
  %v3775 = vmax.f32 %v3493, 0.0
  %v3776 = vmax.f32 %v3498, 0.0
  %v3777 = vmax.f32 %v3503, 0.0
  %v3778 = vmax.f32 %v3508, 0.0
  %v3779 = vmax.f32 %v3513, 0.0
  %v3780 = vmax.f32 %v3518, 0.0
  %v3781 = vmax.f32 %v3523, 0.0
  %v3782 = vmax.f32 %v3528, 0.0
  %v3783 = vmax.f32 %v3533, 0.0
  %v3784 = vmax.f32 %v3538, 0.0
  %v3785 = vmax.f32 %v3543, 0.0
  %v3786 = vmax.f32 %v3548, 0.0
  %v3787 = vmax.f32 %v3553, 0.0
  %v3788 = vmax.f32 %v3558, 0.0
  %v3789 = vmax.f32 %v3563, 0.0
  %v3790 = vmax.f32 %v3568, 0.0
  %v3791 = vmax.f32 %v3573, 0.0
  %v3792 = vmax.f32 %v3578, 0.0
  %v3793 = vmax.f32 %v3583, 0.0
  %v3794 = vmax.f32 %v3588, 0.0
  %v3795 = vmax.f32 %v3593, 0.0
  %v3796 = vmax.f32 %v3598, 0.0
  %v3797 = vmax.f32 %v3603, 0.0
  %v3798 = vmax.f32 %v3608, 0.0
  %v3799 = vmax.f32 %v3613, 0.0
  %v3800 = vmax.f32 %v3618, 0.0
  %v3801 = vmax.f32 %v3623, 0.0
  %v3802 = vmax.f32 %v3628, 0.0
  %v3803 = vmax.f32 %v3633, 0.0
  %v3804 = vmax.f32 %v3638, 0.0
  %v3805 = vmax.f32 %v3643, 0.0
  %v3806 = vmax.f32 %v3648, 0.0
  %v3807 = vmax.f32 %v3653, 0.0
  %v3808 = vmax.f32 %v3658, 0.0
  %v3809 = vmax.f32 %v3663, 0.0
  %v3810 = vmax.f32 %v3668, 0.0
  %v3811 = vmax.f32 %v3673, 0.0
  %v3812 = vmax.f32 %v3678, 0.0
  %v3813 = vmax.f32 %v3683, 0.0
  %v3814 = vmax.f32 %v3688, 0.0
  %v3815 = vmax.f32 %v3693, 0.0
  %v3816 = vmax.f32 %v3698, 0.0
  %v3817 = vmax.f32 %v3703, 0.0
  %v3818 = vmax.f32 %v3708, 0.0
  %v3819 = vmax.f32 %v3713, 0.0
  %v3820 = vmax.f32 %v3718, 0.0
  %v3821 = vmax.f32 %v3723, 0.0
  %v3822 = vmax.f32 %v3728, 0.0
  %v3823 = vmax.f32 %v3733, 0.0
  %v3824 = vmax.f32 %v3738, 0.0
  %v3825 = vmax.f32 %v3743, 0.0
  %v3826 = vmax.f32 %v3748, 0.0
  %v3827 = vmax.f32 %v3753, 0.0
  %v3828 = vmax.f32 %v3758, 0.0
  %v3829 = vmax.f32 %v3763, 0.0
  %s3830 = scalar_lea.vmem [#allocation2], 24
  %3831 = vst.msk [vmem:[%s3830 + $0x1] sm:$0xff] %vm2717, %v3766
  %3832 = vst.msk [vmem:[%s3830 + $0x9] sm:$0xff] %vm2717, %v3767
  %3833 = vst.msk [vmem:[%s3830 + $0x19] sm:$0xff] %vm2717, %v3768
  %3834 = vst.msk [vmem:[%s3830 + $0x21] sm:$0xff] %vm2717, %v3769
  %3835 = vst.msk [vmem:[%s3830 + $0x31] sm:$0xff] %vm2717, %v3770
  %3836 = vst.msk [vmem:[%s3830 + $0x39] sm:$0xff] %vm2717, %v3771
  %3837 = vst.msk [vmem:[%s3830 + $0x49] sm:$0xff] %vm2717, %v3772
  %3838 = vst.msk [vmem:[%s3830 + $0x51] sm:$0xff] %vm2717, %v3773
  %3839 = vst.msk [vmem:[%s3830 + $0x61] sm:$0xff] %vm2717, %v3774
  %3840 = vst.msk [vmem:[%s3830 + $0x69] sm:$0xff] %vm2717, %v3775
  %3841 = vst.msk [vmem:[%s3830 + $0x79] sm:$0xff] %vm2717, %v3776
  %3842 = vst.msk [vmem:[%s3830 + $0x81] sm:$0xff] %vm2717, %v3777
  %3843 = vst.msk [vmem:[%s3830 + $0x91] sm:$0xff] %vm2717, %v3778
  %3844 = vst.msk [vmem:[%s3830 + $0x99] sm:$0xff] %vm2717, %v3779
  %3845 = vst.msk [vmem:[%s3830 + $0xa9] sm:$0xff] %vm2717, %v3780
  %3846 = vst.msk [vmem:[%s3830 + $0xb1] sm:$0xff] %vm2717, %v3781
  %3847 = vst.msk [vmem:[%s3830 + $0xc1] sm:$0xff] %vm2717, %v3782
  %3848 = vst.msk [vmem:[%s3830 + $0xc9] sm:$0xff] %vm2717, %v3783
  %3849 = vst.msk [vmem:[%s3830 + $0xd9] sm:$0xff] %vm2717, %v3784
  %3850 = vst.msk [vmem:[%s3830 + $0xe1] sm:$0xff] %vm2717, %v3785
  %3851 = vst.msk [vmem:[%s3830 + $0xf1] sm:$0xff] %vm2717, %v3786
  %3852 = vst.msk [vmem:[%s3830 + $0xf9] sm:$0xff] %vm2717, %v3787
  %3853 = vst.msk [vmem:[%s3830 + $0x109] sm:$0xff] %vm2717, %v3788
  %3854 = vst.msk [vmem:[%s3830 + $0x111] sm:$0xff] %vm2717, %v3789
  %3855 = vst.msk [vmem:[%s3830 + $0x121] sm:$0xff] %vm2717, %v3790
  %3856 = vst.msk [vmem:[%s3830 + $0x129] sm:$0xff] %vm2717, %v3791
  %3857 = vst.msk [vmem:[%s3830 + $0x139] sm:$0xff] %vm2717, %v3792
  %3858 = vst.msk [vmem:[%s3830 + $0x141] sm:$0xff] %vm2717, %v3793
  %3859 = vst.msk [vmem:[%s3830 + $0x151] sm:$0xff] %vm2717, %v3794
  %3860 = vst.msk [vmem:[%s3830 + $0x159] sm:$0xff] %vm2717, %v3795
  %3861 = vst.msk [vmem:[%s3830 + $0x169] sm:$0xff] %vm2717, %v3796
  %3862 = vst.msk [vmem:[%s3830 + $0x171] sm:$0xff] %vm2717, %v3797
  %3863 = vst.msk [vmem:[%s3830 + $0x1b1] sm:$0xff] %vm2717, %v3798
  %3864 = vst.msk [vmem:[%s3830 + $0x1b9] sm:$0xff] %vm2717, %v3799
  %3865 = vst.msk [vmem:[%s3830 + $0x1c9] sm:$0xff] %vm2717, %v3800
  %3866 = vst.msk [vmem:[%s3830 + $0x1d1] sm:$0xff] %vm2717, %v3801
  %3867 = vst.msk [vmem:[%s3830 + $0x1e1] sm:$0xff] %vm2717, %v3802
  %3868 = vst.msk [vmem:[%s3830 + $0x1e9] sm:$0xff] %vm2717, %v3803
  %3869 = vst.msk [vmem:[%s3830 + $0x1f9] sm:$0xff] %vm2717, %v3804
  %3870 = vst.msk [vmem:[%s3830 + $0x201] sm:$0xff] %vm2717, %v3805
  %3871 = vst.msk [vmem:[%s3830 + $0x211] sm:$0xff] %vm2717, %v3806
  %3872 = vst.msk [vmem:[%s3830 + $0x219] sm:$0xff] %vm2717, %v3807
  %3873 = vst.msk [vmem:[%s3830 + $0x229] sm:$0xff] %vm2717, %v3808
  %3874 = vst.msk [vmem:[%s3830 + $0x231] sm:$0xff] %vm2717, %v3809
  %3875 = vst.msk [vmem:[%s3830 + $0x241] sm:$0xff] %vm2717, %v3810
  %3876 = vst.msk [vmem:[%s3830 + $0x249] sm:$0xff] %vm2717, %v3811
  %3877 = vst.msk [vmem:[%s3830 + $0x259] sm:$0xff] %vm2717, %v3812
  %3878 = vst.msk [vmem:[%s3830 + $0x261] sm:$0xff] %vm2717, %v3813
  %3879 = vst.msk [vmem:[%s3830 + $0x271] sm:$0xff] %vm2717, %v3814
  %3880 = vst.msk [vmem:[%s3830 + $0x279] sm:$0xff] %vm2717, %v3815
  %3881 = vst.msk [vmem:[%s3830 + $0x289] sm:$0xff] %vm2717, %v3816
  %3882 = vst.msk [vmem:[%s3830 + $0x291] sm:$0xff] %vm2717, %v3817
  %3883 = vst.msk [vmem:[%s3830 + $0x2a1] sm:$0xff] %vm2717, %v3818
  %3884 = vst.msk [vmem:[%s3830 + $0x2a9] sm:$0xff] %vm2717, %v3819
  %3885 = vst.msk [vmem:[%s3830 + $0x2b9] sm:$0xff] %vm2717, %v3820
  %3886 = vst.msk [vmem:[%s3830 + $0x2c1] sm:$0xff] %vm2717, %v3821
  %3887 = vst.msk [vmem:[%s3830 + $0x2d1] sm:$0xff] %vm2717, %v3822
  %3888 = vst.msk [vmem:[%s3830 + $0x2d9] sm:$0xff] %vm2717, %v3823
  %3889 = vst.msk [vmem:[%s3830 + $0x2e9] sm:$0xff] %vm2717, %v3824
  %3890 = vst.msk [vmem:[%s3830 + $0x2f1] sm:$0xff] %vm2717, %v3825
  %3891 = vst.msk [vmem:[%s3830 + $0x301] sm:$0xff] %vm2717, %v3826
  %3892 = vst.msk [vmem:[%s3830 + $0x309] sm:$0xff] %vm2717, %v3827
  %3893 = vst.msk [vmem:[%s3830 + $0x319] sm:$0xff] %vm2717, %v3828
  %3894 = vst.msk [vmem:[%s3830 + $0x321] sm:$0xff] %vm2717, %v3829
  %3895 = vst.msk [vmem:[#allocation2] sm:$0xff] %vm2717, 0.0
  %3896 = vst.msk [vmem:[#allocation2 + $0x8] sm:$0xff] %vm2717, 0.0
  %vm3897 = vcmask 58368
  %3898 = vst.msk [vmem:[#allocation2 + $0x10] sm:$0x3] %vm3897, 0.0
  %3899 = vst.msk [vmem:[#allocation2 + $0x1b0] sm:$0xff] %vm2717, 0.0
  %3900 = vst.msk [vmem:[#allocation2 + $0x1b8] sm:$0xff] %vm2717, 0.0
  %3901 = vst.msk [vmem:[#allocation2 + $0x1c0] sm:$0x3] %vm3897, 0.0
  %s3902 = scalar_lea.vmem [#allocation2], 408
  %3903 = vst.msk [vmem:[%s3902] sm:$0xff] %vm2717, 0.0
  %3904 = vst.msk [vmem:[%s3902 + $0x8] sm:$0xff] %vm2717, 0.0
  %3905 = vst.msk [vmem:[%s3902 + $0x10] sm:$0x3] %vm3897, 0.0
  %3906 = vst.msk [vmem:[%s3902 + $0x1b0] sm:$0xff] %vm2717, 0.0
  %3907 = vst.msk [vmem:[%s3902 + $0x1b8] sm:$0xff] %vm2717, 0.0
  %3908 = vst.msk [vmem:[%s3902 + $0x1c0] sm:$0x3] %vm3897, 0.0
  %vm3909 = vcmask 57344
  %3910 = vst.msk [vmem:[%s3830] sm:$0x1] %vm3909, 0.0
  %3911 = vst.msk [vmem:[%s3830 + $0x18] sm:$0x1] %vm3909, 0.0
  %3912 = vst.msk [vmem:[%s3830 + $0x30] sm:$0x1] %vm3909, 0.0
  %3913 = vst.msk [vmem:[%s3830 + $0x48] sm:$0x1] %vm3909, 0.0
  %3914 = vst.msk [vmem:[%s3830 + $0x60] sm:$0x1] %vm3909, 0.0
  %3915 = vst.msk [vmem:[%s3830 + $0x78] sm:$0x1] %vm3909, 0.0
  %3916 = vst.msk [vmem:[%s3830 + $0x90] sm:$0x1] %vm3909, 0.0
  %3917 = vst.msk [vmem:[%s3830 + $0xa8] sm:$0x1] %vm3909, 0.0
  %3918 = vst.msk [vmem:[%s3830 + $0xc0] sm:$0x1] %vm3909, 0.0
  %3919 = vst.msk [vmem:[%s3830 + $0xd8] sm:$0x1] %vm3909, 0.0
  %3920 = vst.msk [vmem:[%s3830 + $0xf0] sm:$0x1] %vm3909, 0.0
  %3921 = vst.msk [vmem:[%s3830 + $0x108] sm:$0x1] %vm3909, 0.0
  %3922 = vst.msk [vmem:[%s3830 + $0x120] sm:$0x1] %vm3909, 0.0
  %3923 = vst.msk [vmem:[%s3830 + $0x138] sm:$0x1] %vm3909, 0.0
  %3924 = vst.msk [vmem:[%s3830 + $0x150] sm:$0x1] %vm3909, 0.0
  %3925 = vst.msk [vmem:[%s3830 + $0x168] sm:$0x1] %vm3909, 0.0
  %3926 = vst.msk [vmem:[%s3830 + $0x1b0] sm:$0x1] %vm3909, 0.0
  %3927 = vst.msk [vmem:[%s3830 + $0x1c8] sm:$0x1] %vm3909, 0.0
  %3928 = vst.msk [vmem:[%s3830 + $0x1e0] sm:$0x1] %vm3909, 0.0
  %3929 = vst.msk [vmem:[%s3830 + $0x1f8] sm:$0x1] %vm3909, 0.0
  %3930 = vst.msk [vmem:[%s3830 + $0x210] sm:$0x1] %vm3909, 0.0
  %3931 = vst.msk [vmem:[%s3830 + $0x228] sm:$0x1] %vm3909, 0.0
  %3932 = vst.msk [vmem:[%s3830 + $0x240] sm:$0x1] %vm3909, 0.0
  %3933 = vst.msk [vmem:[%s3830 + $0x258] sm:$0x1] %vm3909, 0.0
  %3934 = vst.msk [vmem:[%s3830 + $0x270] sm:$0x1] %vm3909, 0.0
  %3935 = vst.msk [vmem:[%s3830 + $0x288] sm:$0x1] %vm3909, 0.0
  %3936 = vst.msk [vmem:[%s3830 + $0x2a0] sm:$0x1] %vm3909, 0.0
  %3937 = vst.msk [vmem:[%s3830 + $0x2b8] sm:$0x1] %vm3909, 0.0
  %3938 = vst.msk [vmem:[%s3830 + $0x2d0] sm:$0x1] %vm3909, 0.0
  %3939 = vst.msk [vmem:[%s3830 + $0x2e8] sm:$0x1] %vm3909, 0.0
  %3940 = vst.msk [vmem:[%s3830 + $0x300] sm:$0x1] %vm3909, 0.0
  %3941 = vst.msk [vmem:[%s3830 + $0x318] sm:$0x1] %vm3909, 0.0
  %3942 = vst.msk [vmem:[%s3830 + $0x11] sm:$0x1] %vm3909, 0.0
  %3943 = vst.msk [vmem:[%s3830 + $0x29] sm:$0x1] %vm3909, 0.0
  %3944 = vst.msk [vmem:[%s3830 + $0x41] sm:$0x1] %vm3909, 0.0
  %3945 = vst.msk [vmem:[%s3830 + $0x59] sm:$0x1] %vm3909, 0.0
  %3946 = vst.msk [vmem:[%s3830 + $0x71] sm:$0x1] %vm3909, 0.0
  %3947 = vst.msk [vmem:[%s3830 + $0x89] sm:$0x1] %vm3909, 0.0
  %3948 = vst.msk [vmem:[%s3830 + $0xa1] sm:$0x1] %vm3909, 0.0
  %3949 = vst.msk [vmem:[%s3830 + $0xb9] sm:$0x1] %vm3909, 0.0
  %3950 = vst.msk [vmem:[%s3830 + $0xd1] sm:$0x1] %vm3909, 0.0
  %3951 = vst.msk [vmem:[%s3830 + $0xe9] sm:$0x1] %vm3909, 0.0
  %3952 = vst.msk [vmem:[%s3830 + $0x101] sm:$0x1] %vm3909, 0.0
  %3953 = vst.msk [vmem:[%s3830 + $0x119] sm:$0x1] %vm3909, 0.0
  %3954 = vst.msk [vmem:[%s3830 + $0x131] sm:$0x1] %vm3909, 0.0
  %3955 = vst.msk [vmem:[%s3830 + $0x149] sm:$0x1] %vm3909, 0.0
  %3956 = vst.msk [vmem:[%s3830 + $0x161] sm:$0x1] %vm3909, 0.0
  %3957 = vst.msk [vmem:[%s3830 + $0x179] sm:$0x1] %vm3909, 0.0
  %3958 = vst.msk [vmem:[%s3830 + $0x1c1] sm:$0x1] %vm3909, 0.0
  %3959 = vst.msk [vmem:[%s3830 + $0x1d9] sm:$0x1] %vm3909, 0.0
  %3960 = vst.msk [vmem:[%s3830 + $0x1f1] sm:$0x1] %vm3909, 0.0
  %3961 = vst.msk [vmem:[%s3830 + $0x209] sm:$0x1] %vm3909, 0.0
  %3962 = vst.msk [vmem:[%s3830 + $0x221] sm:$0x1] %vm3909, 0.0
  %3963 = vst.msk [vmem:[%s3830 + $0x239] sm:$0x1] %vm3909, 0.0
  %3964 = vst.msk [vmem:[%s3830 + $0x251] sm:$0x1] %vm3909, 0.0
  %3965 = vst.msk [vmem:[%s3830 + $0x269] sm:$0x1] %vm3909, 0.0
  %3966 = vst.msk [vmem:[%s3830 + $0x281] sm:$0x1] %vm3909, 0.0
  %3967 = vst.msk [vmem:[%s3830 + $0x299] sm:$0x1] %vm3909, 0.0
  %3968 = vst.msk [vmem:[%s3830 + $0x2b1] sm:$0x1] %vm3909, 0.0
  %3969 = vst.msk [vmem:[%s3830 + $0x2c9] sm:$0x1] %vm3909, 0.0
  %3970 = vst.msk [vmem:[%s3830 + $0x2e1] sm:$0x1] %vm3909, 0.0
  %3971 = vst.msk [vmem:[%s3830 + $0x2f9] sm:$0x1] %vm3909, 0.0
  %3972 = vst.msk [vmem:[%s3830 + $0x311] sm:$0x1] %vm3909, 0.0
  %3973 = vst.msk [vmem:[%s3830 + $0x329] sm:$0x1] %vm3909, 0.0
  %v3974 = vld [vmem:[#allocation2] sm:$0xff]
  %v3975 = vld [vmem:[#allocation2 + $0x8] sm:$0xff]
  %v3976 = vld [vmem:[#allocation2 + $0x18] sm:$0xff]
  %v3977 = vld [vmem:[#allocation2 + $0x20] sm:$0xff]
  %v3978 = vld [vmem:[#allocation2 + $0x30] sm:$0xff]
  %v3979 = vld [vmem:[#allocation2 + $0x38] sm:$0xff]
  %v3980 = vld [vmem:[#allocation2 + $0x48] sm:$0xff]
  %v3981 = vld [vmem:[#allocation2 + $0x50] sm:$0xff]
  %v3982 = vld [vmem:[#allocation2 + $0x60] sm:$0xff]
  %v3983 = vld [vmem:[#allocation2 + $0x68] sm:$0xff]
  %v3984 = vld [vmem:[#allocation2 + $0x78] sm:$0xff]
  %v3985 = vld [vmem:[#allocation2 + $0x80] sm:$0xff]
  %v3986 = vld [vmem:[#allocation2 + $0x90] sm:$0xff]
  %v3987 = vld [vmem:[#allocation2 + $0x98] sm:$0xff]
  %v3988 = vld [vmem:[#allocation2 + $0xa8] sm:$0xff]
  %v3989 = vld [vmem:[#allocation2 + $0xb0] sm:$0xff]
  %v3990 = vld [vmem:[#allocation2 + $0xc0] sm:$0xff]
  %v3991 = vld [vmem:[#allocation2 + $0xc8] sm:$0xff]
  %v3992 = vld [vmem:[#allocation2 + $0xd8] sm:$0xff]
  %v3993 = vld [vmem:[#allocation2 + $0xe0] sm:$0xff]
  %v3994 = vld [vmem:[#allocation2 + $0xf0] sm:$0xff]
  %v3995 = vld [vmem:[#allocation2 + $0xf8] sm:$0xff]
  %v3996 = vld [vmem:[#allocation2 + $0x108] sm:$0xff]
  %v3997 = vld [vmem:[#allocation2 + $0x110] sm:$0xff]
  %v3998 = vld [vmem:[#allocation2 + $0x120] sm:$0xff]
  %v3999 = vld [vmem:[#allocation2 + $0x128] sm:$0xff]
  %v4000 = vld [vmem:[#allocation2 + $0x138] sm:$0xff]
  %v4001 = vld [vmem:[#allocation2 + $0x140] sm:$0xff]
  %v4002 = vld [vmem:[#allocation2 + $0x150] sm:$0xff]
  %v4003 = vld [vmem:[#allocation2 + $0x158] sm:$0xff]
  %v4004 = vld [vmem:[#allocation2 + $0x168] sm:$0xff]
  %v4005 = vld [vmem:[#allocation2 + $0x170] sm:$0xff]
  %v4006 = vld [vmem:[#allocation2 + $0x1b0] sm:$0xff]
  %v4007 = vld [vmem:[#allocation2 + $0x1b8] sm:$0xff]
  %v4008 = vld [vmem:[#allocation2 + $0x1c8] sm:$0xff]
  %v4009 = vld [vmem:[#allocation2 + $0x1d0] sm:$0xff]
  %v4010 = vld [vmem:[#allocation2 + $0x1e0] sm:$0xff]
  %v4011 = vld [vmem:[#allocation2 + $0x1e8] sm:$0xff]
  %v4012 = vld [vmem:[#allocation2 + $0x1f8] sm:$0xff]
  %v4013 = vld [vmem:[#allocation2 + $0x200] sm:$0xff]
  %v4014 = vld [vmem:[#allocation2 + $0x210] sm:$0xff]
  %v4015 = vld [vmem:[#allocation2 + $0x218] sm:$0xff]
  %v4016 = vld [vmem:[#allocation2 + $0x228] sm:$0xff]
  %v4017 = vld [vmem:[#allocation2 + $0x230] sm:$0xff]
  %v4018 = vld [vmem:[#allocation2 + $0x240] sm:$0xff]
  %v4019 = vld [vmem:[#allocation2 + $0x248] sm:$0xff]
  %v4020 = vld [vmem:[#allocation2 + $0x258] sm:$0xff]
  %v4021 = vld [vmem:[#allocation2 + $0x260] sm:$0xff]
  %v4022 = vld [vmem:[#allocation2 + $0x270] sm:$0xff]
  %v4023 = vld [vmem:[#allocation2 + $0x278] sm:$0xff]
  %v4024 = vld [vmem:[#allocation2 + $0x288] sm:$0xff]
  %v4025 = vld [vmem:[#allocation2 + $0x290] sm:$0xff]
  %v4026 = vld [vmem:[#allocation2 + $0x2a0] sm:$0xff]
  %v4027 = vld [vmem:[#allocation2 + $0x2a8] sm:$0xff]
  %v4028 = vld [vmem:[#allocation2 + $0x2b8] sm:$0xff]
  %v4029 = vld [vmem:[#allocation2 + $0x2c0] sm:$0xff]
  %v4030 = vld [vmem:[#allocation2 + $0x2d0] sm:$0xff]
  %v4031 = vld [vmem:[#allocation2 + $0x2d8] sm:$0xff]
  %v4032 = vld [vmem:[#allocation2 + $0x2e8] sm:$0xff]
  %v4033 = vld [vmem:[#allocation2 + $0x2f0] sm:$0xff]
  %v4034 = vld [vmem:[#allocation2 + $0x300] sm:$0xff]
  %v4035 = vld [vmem:[#allocation2 + $0x308] sm:$0xff]
  %v4036 = vld [vmem:[#allocation2 + $0x318] sm:$0xff]
  %v4037 = vld [vmem:[#allocation2 + $0x320] sm:$0xff]
  %v4038 = vld [vmem:[#allocation2 + $0x1] sm:$0xff]
  %v4039 = vld [vmem:[#allocation2 + $0x9] sm:$0xff]
  %v4040 = vld [vmem:[#allocation2 + $0x19] sm:$0xff]
  %v4041 = vld [vmem:[#allocation2 + $0x21] sm:$0xff]
  %v4042 = vld [vmem:[#allocation2 + $0x31] sm:$0xff]
  %v4043 = vld [vmem:[#allocation2 + $0x39] sm:$0xff]
  %v4044 = vld [vmem:[#allocation2 + $0x49] sm:$0xff]
  %v4045 = vld [vmem:[#allocation2 + $0x51] sm:$0xff]
  %v4046 = vld [vmem:[#allocation2 + $0x61] sm:$0xff]
  %v4047 = vld [vmem:[#allocation2 + $0x69] sm:$0xff]
  %v4048 = vld [vmem:[#allocation2 + $0x79] sm:$0xff]
  %v4049 = vld [vmem:[#allocation2 + $0x81] sm:$0xff]
  %v4050 = vld [vmem:[#allocation2 + $0x91] sm:$0xff]
  %v4051 = vld [vmem:[#allocation2 + $0x99] sm:$0xff]
  %v4052 = vld [vmem:[#allocation2 + $0xa9] sm:$0xff]
  %v4053 = vld [vmem:[#allocation2 + $0xb1] sm:$0xff]
  %v4054 = vld [vmem:[#allocation2 + $0xc1] sm:$0xff]
  %v4055 = vld [vmem:[#allocation2 + $0xc9] sm:$0xff]
  %v4056 = vld [vmem:[#allocation2 + $0xd9] sm:$0xff]
  %v4057 = vld [vmem:[#allocation2 + $0xe1] sm:$0xff]
  %v4058 = vld [vmem:[#allocation2 + $0xf1] sm:$0xff]
  %v4059 = vld [vmem:[#allocation2 + $0xf9] sm:$0xff]
  %v4060 = vld [vmem:[#allocation2 + $0x109] sm:$0xff]
  %v4061 = vld [vmem:[#allocation2 + $0x111] sm:$0xff]
  %v4062 = vld [vmem:[#allocation2 + $0x121] sm:$0xff]
  %v4063 = vld [vmem:[#allocation2 + $0x129] sm:$0xff]
  %v4064 = vld [vmem:[#allocation2 + $0x139] sm:$0xff]
  %v4065 = vld [vmem:[#allocation2 + $0x141] sm:$0xff]
  %v4066 = vld [vmem:[#allocation2 + $0x151] sm:$0xff]
  %v4067 = vld [vmem:[#allocation2 + $0x159] sm:$0xff]
  %v4068 = vld [vmem:[#allocation2 + $0x169] sm:$0xff]
  %v4069 = vld [vmem:[#allocation2 + $0x171] sm:$0xff]
  %v4070 = vld [vmem:[#allocation2 + $0x1b1] sm:$0xff]
  %v4071 = vld [vmem:[#allocation2 + $0x1b9] sm:$0xff]
  %v4072 = vld [vmem:[#allocation2 + $0x1c9] sm:$0xff]
  %v4073 = vld [vmem:[#allocation2 + $0x1d1] sm:$0xff]
  %v4074 = vld [vmem:[#allocation2 + $0x1e1] sm:$0xff]
  %v4075 = vld [vmem:[#allocation2 + $0x1e9] sm:$0xff]
  %v4076 = vld [vmem:[#allocation2 + $0x1f9] sm:$0xff]
  %v4077 = vld [vmem:[#allocation2 + $0x201] sm:$0xff]
  %v4078 = vld [vmem:[#allocation2 + $0x211] sm:$0xff]
  %v4079 = vld [vmem:[#allocation2 + $0x219] sm:$0xff]
  %v4080 = vld [vmem:[#allocation2 + $0x229] sm:$0xff]
  %v4081 = vld [vmem:[#allocation2 + $0x231] sm:$0xff]
  %v4082 = vld [vmem:[#allocation2 + $0x241] sm:$0xff]
  %v4083 = vld [vmem:[#allocation2 + $0x249] sm:$0xff]
  %v4084 = vld [vmem:[#allocation2 + $0x259] sm:$0xff]
  %v4085 = vld [vmem:[#allocation2 + $0x261] sm:$0xff]
  %v4086 = vld [vmem:[#allocation2 + $0x271] sm:$0xff]
  %v4087 = vld [vmem:[#allocation2 + $0x279] sm:$0xff]
  %v4088 = vld [vmem:[#allocation2 + $0x289] sm:$0xff]
  %v4089 = vld [vmem:[#allocation2 + $0x291] sm:$0xff]
  %v4090 = vld [vmem:[#allocation2 + $0x2a1] sm:$0xff]
  %v4091 = vld [vmem:[#allocation2 + $0x2a9] sm:$0xff]
  %v4092 = vld [vmem:[#allocation2 + $0x2b9] sm:$0xff]
  %v4093 = vld [vmem:[#allocation2 + $0x2c1] sm:$0xff]
  %v4094 = vld [vmem:[#allocation2 + $0x2d1] sm:$0xff]
  %v4095 = vld [vmem:[#allocation2 + $0x2d9] sm:$0xff]
  %v4096 = vld [vmem:[#allocation2 + $0x2e9] sm:$0xff]
  %v4097 = vld [vmem:[#allocation2 + $0x2f1] sm:$0xff]
  %v4098 = vld [vmem:[#allocation2 + $0x301] sm:$0xff]
  %v4099 = vld [vmem:[#allocation2 + $0x309] sm:$0xff]
  %v4100 = vld [vmem:[#allocation2 + $0x319] sm:$0xff]
  %v4101 = vld [vmem:[#allocation2 + $0x321] sm:$0xff]
  %v4102 = vld [vmem:[#allocation2 + $0x2] sm:$0xff]
  %v4103 = vld [vmem:[#allocation2 + $0xa] sm:$0xff]
  %v4104 = vld [vmem:[#allocation2 + $0x1a] sm:$0xff]
  %v4105 = vld [vmem:[#allocation2 + $0x22] sm:$0xff]
  %v4106 = vld [vmem:[#allocation2 + $0x32] sm:$0xff]
  %v4107 = vld [vmem:[#allocation2 + $0x3a] sm:$0xff]
  %v4108 = vld [vmem:[#allocation2 + $0x4a] sm:$0xff]
  %v4109 = vld [vmem:[#allocation2 + $0x52] sm:$0xff]
  %v4110 = vld [vmem:[#allocation2 + $0x62] sm:$0xff]
  %v4111 = vld [vmem:[#allocation2 + $0x6a] sm:$0xff]
  %v4112 = vld [vmem:[#allocation2 + $0x7a] sm:$0xff]
  %v4113 = vld [vmem:[#allocation2 + $0x82] sm:$0xff]
  %v4114 = vld [vmem:[#allocation2 + $0x92] sm:$0xff]
  %v4115 = vld [vmem:[#allocation2 + $0x9a] sm:$0xff]
  %v4116 = vld [vmem:[#allocation2 + $0xaa] sm:$0xff]
  %v4117 = vld [vmem:[#allocation2 + $0xb2] sm:$0xff]
  %v4118 = vld [vmem:[#allocation2 + $0xc2] sm:$0xff]
  %v4119 = vld [vmem:[#allocation2 + $0xca] sm:$0xff]
  %v4120 = vld [vmem:[#allocation2 + $0xda] sm:$0xff]
  %v4121 = vld [vmem:[#allocation2 + $0xe2] sm:$0xff]
  %v4122 = vld [vmem:[#allocation2 + $0xf2] sm:$0xff]
  %v4123 = vld [vmem:[#allocation2 + $0xfa] sm:$0xff]
  %v4124 = vld [vmem:[#allocation2 + $0x10a] sm:$0xff]
  %v4125 = vld [vmem:[#allocation2 + $0x112] sm:$0xff]
  %v4126 = vld [vmem:[#allocation2 + $0x122] sm:$0xff]
  %v4127 = vld [vmem:[#allocation2 + $0x12a] sm:$0xff]
  %v4128 = vld [vmem:[#allocation2 + $0x13a] sm:$0xff]
  %v4129 = vld [vmem:[#allocation2 + $0x142] sm:$0xff]
  %v4130 = vld [vmem:[#allocation2 + $0x152] sm:$0xff]
  %v4131 = vld [vmem:[#allocation2 + $0x15a] sm:$0xff]
  %v4132 = vld [vmem:[#allocation2 + $0x16a] sm:$0xff]
  %v4133 = vld [vmem:[#allocation2 + $0x172] sm:$0xff]
  %v4134 = vld [vmem:[#allocation2 + $0x1b2] sm:$0xff]
  %v4135 = vld [vmem:[#allocation2 + $0x1ba] sm:$0xff]
  %v4136 = vld [vmem:[#allocation2 + $0x1ca] sm:$0xff]
  %v4137 = vld [vmem:[#allocation2 + $0x1d2] sm:$0xff]
  %v4138 = vld [vmem:[#allocation2 + $0x1e2] sm:$0xff]
  %v4139 = vld [vmem:[#allocation2 + $0x1ea] sm:$0xff]
  %v4140 = vld [vmem:[#allocation2 + $0x1fa] sm:$0xff]
  %v4141 = vld [vmem:[#allocation2 + $0x202] sm:$0xff]
  %v4142 = vld [vmem:[#allocation2 + $0x212] sm:$0xff]
  %v4143 = vld [vmem:[#allocation2 + $0x21a] sm:$0xff]
  %v4144 = vld [vmem:[#allocation2 + $0x22a] sm:$0xff]
  %v4145 = vld [vmem:[#allocation2 + $0x232] sm:$0xff]
  %v4146 = vld [vmem:[#allocation2 + $0x242] sm:$0xff]
  %v4147 = vld [vmem:[#allocation2 + $0x24a] sm:$0xff]
  %v4148 = vld [vmem:[#allocation2 + $0x25a] sm:$0xff]
  %v4149 = vld [vmem:[#allocation2 + $0x262] sm:$0xff]
  %v4150 = vld [vmem:[#allocation2 + $0x272] sm:$0xff]
  %v4151 = vld [vmem:[#allocation2 + $0x27a] sm:$0xff]
  %v4152 = vld [vmem:[#allocation2 + $0x28a] sm:$0xff]
  %v4153 = vld [vmem:[#allocation2 + $0x292] sm:$0xff]
  %v4154 = vld [vmem:[#allocation2 + $0x2a2] sm:$0xff]
  %v4155 = vld [vmem:[#allocation2 + $0x2aa] sm:$0xff]
  %v4156 = vld [vmem:[#allocation2 + $0x2ba] sm:$0xff]
  %v4157 = vld [vmem:[#allocation2 + $0x2c2] sm:$0xff]
  %v4158 = vld [vmem:[#allocation2 + $0x2d2] sm:$0xff]
  %v4159 = vld [vmem:[#allocation2 + $0x2da] sm:$0xff]
  %v4160 = vld [vmem:[#allocation2 + $0x2ea] sm:$0xff]
  %v4161 = vld [vmem:[#allocation2 + $0x2f2] sm:$0xff]
  %v4162 = vld [vmem:[#allocation2 + $0x302] sm:$0xff]
  %v4163 = vld [vmem:[#allocation2 + $0x30a] sm:$0xff]
  %v4164 = vld [vmem:[#allocation2 + $0x31a] sm:$0xff]
  %v4165 = vld [vmem:[#allocation2 + $0x322] sm:$0xff]
  %v4166 = vld [vmem:[%s3830] sm:$0xff]
  %v4167 = vld [vmem:[%s3830 + $0x8] sm:$0xff]
  %v4168 = vld [vmem:[%s3830 + $0x18] sm:$0xff]
  %v4169 = vld [vmem:[%s3830 + $0x20] sm:$0xff]
  %v4170 = vld [vmem:[%s3830 + $0x30] sm:$0xff]
  %v4171 = vld [vmem:[%s3830 + $0x38] sm:$0xff]
  %v4172 = vld [vmem:[%s3830 + $0x48] sm:$0xff]
  %v4173 = vld [vmem:[%s3830 + $0x50] sm:$0xff]
  %v4174 = vld [vmem:[%s3830 + $0x60] sm:$0xff]
  %v4175 = vld [vmem:[%s3830 + $0x68] sm:$0xff]
  %v4176 = vld [vmem:[%s3830 + $0x78] sm:$0xff]
  %v4177 = vld [vmem:[%s3830 + $0x80] sm:$0xff]
  %v4178 = vld [vmem:[%s3830 + $0x90] sm:$0xff]
  %v4179 = vld [vmem:[%s3830 + $0x98] sm:$0xff]
  %v4180 = vld [vmem:[%s3830 + $0xa8] sm:$0xff]
  %v4181 = vld [vmem:[%s3830 + $0xb0] sm:$0xff]
  %v4182 = vld [vmem:[%s3830 + $0xc0] sm:$0xff]
  %v4183 = vld [vmem:[%s3830 + $0xc8] sm:$0xff]
  %v4184 = vld [vmem:[%s3830 + $0xd8] sm:$0xff]
  %v4185 = vld [vmem:[%s3830 + $0xe0] sm:$0xff]
  %v4186 = vld [vmem:[%s3830 + $0xf0] sm:$0xff]
  %v4187 = vld [vmem:[%s3830 + $0xf8] sm:$0xff]
  %v4188 = vld [vmem:[%s3830 + $0x108] sm:$0xff]
  %v4189 = vld [vmem:[%s3830 + $0x110] sm:$0xff]
  %v4190 = vld [vmem:[%s3830 + $0x120] sm:$0xff]
  %v4191 = vld [vmem:[%s3830 + $0x128] sm:$0xff]
  %v4192 = vld [vmem:[%s3830 + $0x138] sm:$0xff]
  %v4193 = vld [vmem:[%s3830 + $0x140] sm:$0xff]
  %v4194 = vld [vmem:[%s3830 + $0x150] sm:$0xff]
  %v4195 = vld [vmem:[%s3830 + $0x158] sm:$0xff]
  %v4196 = vld [vmem:[%s3830 + $0x168] sm:$0xff]
  %v4197 = vld [vmem:[%s3830 + $0x170] sm:$0xff]
  %v4198 = vld [vmem:[%s3830 + $0x1b0] sm:$0xff]
  %v4199 = vld [vmem:[%s3830 + $0x1b8] sm:$0xff]
  %v4200 = vld [vmem:[%s3830 + $0x1c8] sm:$0xff]
  %v4201 = vld [vmem:[%s3830 + $0x1d0] sm:$0xff]
  %v4202 = vld [vmem:[%s3830 + $0x1e0] sm:$0xff]
  %v4203 = vld [vmem:[%s3830 + $0x1e8] sm:$0xff]
  %v4204 = vld [vmem:[%s3830 + $0x1f8] sm:$0xff]
  %v4205 = vld [vmem:[%s3830 + $0x200] sm:$0xff]
  %v4206 = vld [vmem:[%s3830 + $0x210] sm:$0xff]
  %v4207 = vld [vmem:[%s3830 + $0x218] sm:$0xff]
  %v4208 = vld [vmem:[%s3830 + $0x228] sm:$0xff]
  %v4209 = vld [vmem:[%s3830 + $0x230] sm:$0xff]
  %v4210 = vld [vmem:[%s3830 + $0x240] sm:$0xff]
  %v4211 = vld [vmem:[%s3830 + $0x248] sm:$0xff]
  %v4212 = vld [vmem:[%s3830 + $0x258] sm:$0xff]
  %v4213 = vld [vmem:[%s3830 + $0x260] sm:$0xff]
  %v4214 = vld [vmem:[%s3830 + $0x270] sm:$0xff]
  %v4215 = vld [vmem:[%s3830 + $0x278] sm:$0xff]
  %v4216 = vld [vmem:[%s3830 + $0x288] sm:$0xff]
  %v4217 = vld [vmem:[%s3830 + $0x290] sm:$0xff]
  %v4218 = vld [vmem:[%s3830 + $0x2a0] sm:$0xff]
  %v4219 = vld [vmem:[%s3830 + $0x2a8] sm:$0xff]
  %v4220 = vld [vmem:[%s3830 + $0x2b8] sm:$0xff]
  %v4221 = vld [vmem:[%s3830 + $0x2c0] sm:$0xff]
  %v4222 = vld [vmem:[%s3830 + $0x2d0] sm:$0xff]
  %v4223 = vld [vmem:[%s3830 + $0x2d8] sm:$0xff]
  %v4224 = vld [vmem:[%s3830 + $0x2e8] sm:$0xff]
  %v4225 = vld [vmem:[%s3830 + $0x2f0] sm:$0xff]
  %v4226 = vld [vmem:[%s3830 + $0x300] sm:$0xff]
  %v4227 = vld [vmem:[%s3830 + $0x308] sm:$0xff]
  %v4228 = vld [vmem:[%s3830 + $0x318] sm:$0xff]
  %v4229 = vld [vmem:[%s3830 + $0x320] sm:$0xff]
  %v4230 = vld [vmem:[%s3830 + $0x1] sm:$0xff]
  %v4231 = vld [vmem:[%s3830 + $0x9] sm:$0xff]
  %v4232 = vld [vmem:[%s3830 + $0x19] sm:$0xff]
  %v4233 = vld [vmem:[%s3830 + $0x21] sm:$0xff]
  %v4234 = vld [vmem:[%s3830 + $0x31] sm:$0xff]
  %v4235 = vld [vmem:[%s3830 + $0x39] sm:$0xff]
  %v4236 = vld [vmem:[%s3830 + $0x49] sm:$0xff]
  %v4237 = vld [vmem:[%s3830 + $0x51] sm:$0xff]
  %v4238 = vld [vmem:[%s3830 + $0x61] sm:$0xff]
  %v4239 = vld [vmem:[%s3830 + $0x69] sm:$0xff]
  %v4240 = vld [vmem:[%s3830 + $0x79] sm:$0xff]
  %v4241 = vld [vmem:[%s3830 + $0x81] sm:$0xff]
  %v4242 = vld [vmem:[%s3830 + $0x91] sm:$0xff]
  %v4243 = vld [vmem:[%s3830 + $0x99] sm:$0xff]
  %v4244 = vld [vmem:[%s3830 + $0xa9] sm:$0xff]
  %v4245 = vld [vmem:[%s3830 + $0xb1] sm:$0xff]
  %v4246 = vld [vmem:[%s3830 + $0xc1] sm:$0xff]
  %v4247 = vld [vmem:[%s3830 + $0xc9] sm:$0xff]
  %v4248 = vld [vmem:[%s3830 + $0xd9] sm:$0xff]
  %v4249 = vld [vmem:[%s3830 + $0xe1] sm:$0xff]
  %v4250 = vld [vmem:[%s3830 + $0xf1] sm:$0xff]
  %v4251 = vld [vmem:[%s3830 + $0xf9] sm:$0xff]
  %v4252 = vld [vmem:[%s3830 + $0x109] sm:$0xff]
  %v4253 = vld [vmem:[%s3830 + $0x111] sm:$0xff]
  %v4254 = vld [vmem:[%s3830 + $0x121] sm:$0xff]
  %v4255 = vld [vmem:[%s3830 + $0x129] sm:$0xff]
  %v4256 = vld [vmem:[%s3830 + $0x139] sm:$0xff]
  %v4257 = vld [vmem:[%s3830 + $0x141] sm:$0xff]
  %v4258 = vld [vmem:[%s3830 + $0x151] sm:$0xff]
  %v4259 = vld [vmem:[%s3830 + $0x159] sm:$0xff]
  %v4260 = vld [vmem:[%s3830 + $0x169] sm:$0xff]
  %v4261 = vld [vmem:[%s3830 + $0x171] sm:$0xff]
  %v4262 = vld [vmem:[%s3830 + $0x1b1] sm:$0xff]
  %v4263 = vld [vmem:[%s3830 + $0x1b9] sm:$0xff]
  %v4264 = vld [vmem:[%s3830 + $0x1c9] sm:$0xff]
  %v4265 = vld [vmem:[%s3830 + $0x1d1] sm:$0xff]
  %v4266 = vld [vmem:[%s3830 + $0x1e1] sm:$0xff]
  %v4267 = vld [vmem:[%s3830 + $0x1e9] sm:$0xff]
  %v4268 = vld [vmem:[%s3830 + $0x1f9] sm:$0xff]
  %v4269 = vld [vmem:[%s3830 + $0x201] sm:$0xff]
  %v4270 = vld [vmem:[%s3830 + $0x211] sm:$0xff]
  %v4271 = vld [vmem:[%s3830 + $0x219] sm:$0xff]
  %v4272 = vld [vmem:[%s3830 + $0x229] sm:$0xff]
  %v4273 = vld [vmem:[%s3830 + $0x231] sm:$0xff]
  %v4274 = vld [vmem:[%s3830 + $0x241] sm:$0xff]
  %v4275 = vld [vmem:[%s3830 + $0x249] sm:$0xff]
  %v4276 = vld [vmem:[%s3830 + $0x259] sm:$0xff]
  %v4277 = vld [vmem:[%s3830 + $0x261] sm:$0xff]
  %v4278 = vld [vmem:[%s3830 + $0x271] sm:$0xff]
  %v4279 = vld [vmem:[%s3830 + $0x279] sm:$0xff]
  %v4280 = vld [vmem:[%s3830 + $0x289] sm:$0xff]
  %v4281 = vld [vmem:[%s3830 + $0x291] sm:$0xff]
  %v4282 = vld [vmem:[%s3830 + $0x2a1] sm:$0xff]
  %v4283 = vld [vmem:[%s3830 + $0x2a9] sm:$0xff]
  %v4284 = vld [vmem:[%s3830 + $0x2b9] sm:$0xff]
  %v4285 = vld [vmem:[%s3830 + $0x2c1] sm:$0xff]
  %v4286 = vld [vmem:[%s3830 + $0x2d1] sm:$0xff]
  %v4287 = vld [vmem:[%s3830 + $0x2d9] sm:$0xff]
  %v4288 = vld [vmem:[%s3830 + $0x2e9] sm:$0xff]
  %v4289 = vld [vmem:[%s3830 + $0x2f1] sm:$0xff]
  %v4290 = vld [vmem:[%s3830 + $0x301] sm:$0xff]
  %v4291 = vld [vmem:[%s3830 + $0x309] sm:$0xff]
  %v4292 = vld [vmem:[%s3830 + $0x319] sm:$0xff]
  %v4293 = vld [vmem:[%s3830 + $0x321] sm:$0xff]
  %v4294 = vld [vmem:[%s3830 + $0x2] sm:$0xff]
  %v4295 = vld [vmem:[%s3830 + $0xa] sm:$0xff]
  %v4296 = vld [vmem:[%s3830 + $0x1a] sm:$0xff]
  %v4297 = vld [vmem:[%s3830 + $0x22] sm:$0xff]
  %v4298 = vld [vmem:[%s3830 + $0x32] sm:$0xff]
  %v4299 = vld [vmem:[%s3830 + $0x3a] sm:$0xff]
  %v4300 = vld [vmem:[%s3830 + $0x4a] sm:$0xff]
  %v4301 = vld [vmem:[%s3830 + $0x52] sm:$0xff]
  %v4302 = vld [vmem:[%s3830 + $0x62] sm:$0xff]
  %v4303 = vld [vmem:[%s3830 + $0x6a] sm:$0xff]
  %v4304 = vld [vmem:[%s3830 + $0x7a] sm:$0xff]
  %v4305 = vld [vmem:[%s3830 + $0x82] sm:$0xff]
  %v4306 = vld [vmem:[%s3830 + $0x92] sm:$0xff]
  %v4307 = vld [vmem:[%s3830 + $0x9a] sm:$0xff]
  %v4308 = vld [vmem:[%s3830 + $0xaa] sm:$0xff]
  %v4309 = vld [vmem:[%s3830 + $0xb2] sm:$0xff]
  %v4310 = vld [vmem:[%s3830 + $0xc2] sm:$0xff]
  %v4311 = vld [vmem:[%s3830 + $0xca] sm:$0xff]
  %v4312 = vld [vmem:[%s3830 + $0xda] sm:$0xff]
  %v4313 = vld [vmem:[%s3830 + $0xe2] sm:$0xff]
  %v4314 = vld [vmem:[%s3830 + $0xf2] sm:$0xff]
  %v4315 = vld [vmem:[%s3830 + $0xfa] sm:$0xff]
  %v4316 = vld [vmem:[%s3830 + $0x10a] sm:$0xff]
  %v4317 = vld [vmem:[%s3830 + $0x112] sm:$0xff]
  %v4318 = vld [vmem:[%s3830 + $0x122] sm:$0xff]
  %v4319 = vld [vmem:[%s3830 + $0x12a] sm:$0xff]
  %v4320 = vld [vmem:[%s3830 + $0x13a] sm:$0xff]
  %v4321 = vld [vmem:[%s3830 + $0x142] sm:$0xff]
  %v4322 = vld [vmem:[%s3830 + $0x152] sm:$0xff]
  %v4323 = vld [vmem:[%s3830 + $0x15a] sm:$0xff]
  %v4324 = vld [vmem:[%s3830 + $0x16a] sm:$0xff]
  %v4325 = vld [vmem:[%s3830 + $0x172] sm:$0xff]
  %v4326 = vld [vmem:[%s3830 + $0x1b2] sm:$0xff]
  %v4327 = vld [vmem:[%s3830 + $0x1ba] sm:$0xff]
  %v4328 = vld [vmem:[%s3830 + $0x1ca] sm:$0xff]
  %v4329 = vld [vmem:[%s3830 + $0x1d2] sm:$0xff]
  %v4330 = vld [vmem:[%s3830 + $0x1e2] sm:$0xff]
  %v4331 = vld [vmem:[%s3830 + $0x1ea] sm:$0xff]
  %v4332 = vld [vmem:[%s3830 + $0x1fa] sm:$0xff]
  %v4333 = vld [vmem:[%s3830 + $0x202] sm:$0xff]
  %v4334 = vld [vmem:[%s3830 + $0x212] sm:$0xff]
  %v4335 = vld [vmem:[%s3830 + $0x21a] sm:$0xff]
  %v4336 = vld [vmem:[%s3830 + $0x22a] sm:$0xff]
  %v4337 = vld [vmem:[%s3830 + $0x232] sm:$0xff]
  %v4338 = vld [vmem:[%s3830 + $0x242] sm:$0xff]
  %v4339 = vld [vmem:[%s3830 + $0x24a] sm:$0xff]
  %v4340 = vld [vmem:[%s3830 + $0x25a] sm:$0xff]
  %v4341 = vld [vmem:[%s3830 + $0x262] sm:$0xff]
  %v4342 = vld [vmem:[%s3830 + $0x272] sm:$0xff]
  %v4343 = vld [vmem:[%s3830 + $0x27a] sm:$0xff]
  %v4344 = vld [vmem:[%s3830 + $0x28a] sm:$0xff]
  %v4345 = vld [vmem:[%s3830 + $0x292] sm:$0xff]
  %v4346 = vld [vmem:[%s3830 + $0x2a2] sm:$0xff]
  %v4347 = vld [vmem:[%s3830 + $0x2aa] sm:$0xff]
  %v4348 = vld [vmem:[%s3830 + $0x2ba] sm:$0xff]
  %v4349 = vld [vmem:[%s3830 + $0x2c2] sm:$0xff]
  %v4350 = vld [vmem:[%s3830 + $0x2d2] sm:$0xff]
  %v4351 = vld [vmem:[%s3830 + $0x2da] sm:$0xff]
  %v4352 = vld [vmem:[%s3830 + $0x2ea] sm:$0xff]
  %v4353 = vld [vmem:[%s3830 + $0x2f2] sm:$0xff]
  %v4354 = vld [vmem:[%s3830 + $0x302] sm:$0xff]
  %v4355 = vld [vmem:[%s3830 + $0x30a] sm:$0xff]
  %v4356 = vld [vmem:[%s3830 + $0x31a] sm:$0xff]
  %v4357 = vld [vmem:[%s3830 + $0x322] sm:$0xff]
  %s4358 = scalar_lea.vmem [#allocation2], 48
  %v4359 = vld [vmem:[%s4358] sm:$0xff]
  %v4360 = vld [vmem:[%s4358 + $0x8] sm:$0xff]
  %v4361 = vld [vmem:[%s4358 + $0x18] sm:$0xff]
  %v4362 = vld [vmem:[%s4358 + $0x20] sm:$0xff]
  %v4363 = vld [vmem:[%s4358 + $0x30] sm:$0xff]
  %v4364 = vld [vmem:[%s4358 + $0x38] sm:$0xff]
  %v4365 = vld [vmem:[%s4358 + $0x48] sm:$0xff]
  %v4366 = vld [vmem:[%s4358 + $0x50] sm:$0xff]
  %v4367 = vld [vmem:[%s4358 + $0x60] sm:$0xff]
  %v4368 = vld [vmem:[%s4358 + $0x68] sm:$0xff]
  %v4369 = vld [vmem:[%s4358 + $0x78] sm:$0xff]
  %v4370 = vld [vmem:[%s4358 + $0x80] sm:$0xff]
  %v4371 = vld [vmem:[%s4358 + $0x90] sm:$0xff]
  %v4372 = vld [vmem:[%s4358 + $0x98] sm:$0xff]
  %v4373 = vld [vmem:[%s4358 + $0xa8] sm:$0xff]
  %v4374 = vld [vmem:[%s4358 + $0xb0] sm:$0xff]
  %v4375 = vld [vmem:[%s4358 + $0xc0] sm:$0xff]
  %v4376 = vld [vmem:[%s4358 + $0xc8] sm:$0xff]
  %v4377 = vld [vmem:[%s4358 + $0xd8] sm:$0xff]
  %v4378 = vld [vmem:[%s4358 + $0xe0] sm:$0xff]
  %v4379 = vld [vmem:[%s4358 + $0xf0] sm:$0xff]
  %v4380 = vld [vmem:[%s4358 + $0xf8] sm:$0xff]
  %v4381 = vld [vmem:[%s4358 + $0x108] sm:$0xff]
  %v4382 = vld [vmem:[%s4358 + $0x110] sm:$0xff]
  %v4383 = vld [vmem:[%s4358 + $0x120] sm:$0xff]
  %v4384 = vld [vmem:[%s4358 + $0x128] sm:$0xff]
  %v4385 = vld [vmem:[%s4358 + $0x138] sm:$0xff]
  %v4386 = vld [vmem:[%s4358 + $0x140] sm:$0xff]
  %v4387 = vld [vmem:[%s4358 + $0x150] sm:$0xff]
  %v4388 = vld [vmem:[%s4358 + $0x158] sm:$0xff]
  %v4389 = vld [vmem:[%s4358 + $0x168] sm:$0xff]
  %v4390 = vld [vmem:[%s4358 + $0x170] sm:$0xff]
  %v4391 = vld [vmem:[%s4358 + $0x1b0] sm:$0xff]
  %v4392 = vld [vmem:[%s4358 + $0x1b8] sm:$0xff]
  %v4393 = vld [vmem:[%s4358 + $0x1c8] sm:$0xff]
  %v4394 = vld [vmem:[%s4358 + $0x1d0] sm:$0xff]
  %v4395 = vld [vmem:[%s4358 + $0x1e0] sm:$0xff]
  %v4396 = vld [vmem:[%s4358 + $0x1e8] sm:$0xff]
  %v4397 = vld [vmem:[%s4358 + $0x1f8] sm:$0xff]
  %v4398 = vld [vmem:[%s4358 + $0x200] sm:$0xff]
  %v4399 = vld [vmem:[%s4358 + $0x210] sm:$0xff]
  %v4400 = vld [vmem:[%s4358 + $0x218] sm:$0xff]
  %v4401 = vld [vmem:[%s4358 + $0x228] sm:$0xff]
  %v4402 = vld [vmem:[%s4358 + $0x230] sm:$0xff]
  %v4403 = vld [vmem:[%s4358 + $0x240] sm:$0xff]
  %v4404 = vld [vmem:[%s4358 + $0x248] sm:$0xff]
  %v4405 = vld [vmem:[%s4358 + $0x258] sm:$0xff]
  %v4406 = vld [vmem:[%s4358 + $0x260] sm:$0xff]
  %v4407 = vld [vmem:[%s4358 + $0x270] sm:$0xff]
  %v4408 = vld [vmem:[%s4358 + $0x278] sm:$0xff]
  %v4409 = vld [vmem:[%s4358 + $0x288] sm:$0xff]
  %v4410 = vld [vmem:[%s4358 + $0x290] sm:$0xff]
  %v4411 = vld [vmem:[%s4358 + $0x2a0] sm:$0xff]
  %v4412 = vld [vmem:[%s4358 + $0x2a8] sm:$0xff]
  %v4413 = vld [vmem:[%s4358 + $0x2b8] sm:$0xff]
  %v4414 = vld [vmem:[%s4358 + $0x2c0] sm:$0xff]
  %v4415 = vld [vmem:[%s4358 + $0x2d0] sm:$0xff]
  %v4416 = vld [vmem:[%s4358 + $0x2d8] sm:$0xff]
  %v4417 = vld [vmem:[%s4358 + $0x2e8] sm:$0xff]
  %v4418 = vld [vmem:[%s4358 + $0x2f0] sm:$0xff]
  %v4419 = vld [vmem:[%s4358 + $0x300] sm:$0xff]
  %v4420 = vld [vmem:[%s4358 + $0x308] sm:$0xff]
  %v4421 = vld [vmem:[%s4358 + $0x318] sm:$0xff]
  %v4422 = vld [vmem:[%s4358 + $0x320] sm:$0xff]
  %v4423 = vld [vmem:[%s4358 + $0x1] sm:$0xff]
  %v4424 = vld [vmem:[%s4358 + $0x9] sm:$0xff]
  %v4425 = vld [vmem:[%s4358 + $0x19] sm:$0xff]
  %v4426 = vld [vmem:[%s4358 + $0x21] sm:$0xff]
  %v4427 = vld [vmem:[%s4358 + $0x31] sm:$0xff]
  %v4428 = vld [vmem:[%s4358 + $0x39] sm:$0xff]
  %v4429 = vld [vmem:[%s4358 + $0x49] sm:$0xff]
  %v4430 = vld [vmem:[%s4358 + $0x51] sm:$0xff]
  %v4431 = vld [vmem:[%s4358 + $0x61] sm:$0xff]
  %v4432 = vld [vmem:[%s4358 + $0x69] sm:$0xff]
  %v4433 = vld [vmem:[%s4358 + $0x79] sm:$0xff]
  %v4434 = vld [vmem:[%s4358 + $0x81] sm:$0xff]
  %v4435 = vld [vmem:[%s4358 + $0x91] sm:$0xff]
  %v4436 = vld [vmem:[%s4358 + $0x99] sm:$0xff]
  %v4437 = vld [vmem:[%s4358 + $0xa9] sm:$0xff]
  %v4438 = vld [vmem:[%s4358 + $0xb1] sm:$0xff]
  %v4439 = vld [vmem:[%s4358 + $0xc1] sm:$0xff]
  %v4440 = vld [vmem:[%s4358 + $0xc9] sm:$0xff]
  %v4441 = vld [vmem:[%s4358 + $0xd9] sm:$0xff]
  %v4442 = vld [vmem:[%s4358 + $0xe1] sm:$0xff]
  %v4443 = vld [vmem:[%s4358 + $0xf1] sm:$0xff]
  %v4444 = vld [vmem:[%s4358 + $0xf9] sm:$0xff]
  %v4445 = vld [vmem:[%s4358 + $0x109] sm:$0xff]
  %v4446 = vld [vmem:[%s4358 + $0x111] sm:$0xff]
  %v4447 = vld [vmem:[%s4358 + $0x121] sm:$0xff]
  %v4448 = vld [vmem:[%s4358 + $0x129] sm:$0xff]
  %v4449 = vld [vmem:[%s4358 + $0x139] sm:$0xff]
  %v4450 = vld [vmem:[%s4358 + $0x141] sm:$0xff]
  %v4451 = vld [vmem:[%s4358 + $0x151] sm:$0xff]
  %v4452 = vld [vmem:[%s4358 + $0x159] sm:$0xff]
  %v4453 = vld [vmem:[%s4358 + $0x169] sm:$0xff]
  %v4454 = vld [vmem:[%s4358 + $0x171] sm:$0xff]
  %v4455 = vld [vmem:[%s4358 + $0x1b1] sm:$0xff]
  %v4456 = vld [vmem:[%s4358 + $0x1b9] sm:$0xff]
  %v4457 = vld [vmem:[%s4358 + $0x1c9] sm:$0xff]
  %v4458 = vld [vmem:[%s4358 + $0x1d1] sm:$0xff]
  %v4459 = vld [vmem:[%s4358 + $0x1e1] sm:$0xff]
  %v4460 = vld [vmem:[%s4358 + $0x1e9] sm:$0xff]
  %v4461 = vld [vmem:[%s4358 + $0x1f9] sm:$0xff]
  %v4462 = vld [vmem:[%s4358 + $0x201] sm:$0xff]
  %v4463 = vld [vmem:[%s4358 + $0x211] sm:$0xff]
  %v4464 = vld [vmem:[%s4358 + $0x219] sm:$0xff]
  %v4465 = vld [vmem:[%s4358 + $0x229] sm:$0xff]
  %v4466 = vld [vmem:[%s4358 + $0x231] sm:$0xff]
  %v4467 = vld [vmem:[%s4358 + $0x241] sm:$0xff]
  %v4468 = vld [vmem:[%s4358 + $0x249] sm:$0xff]
  %v4469 = vld [vmem:[%s4358 + $0x259] sm:$0xff]
  %v4470 = vld [vmem:[%s4358 + $0x261] sm:$0xff]
  %v4471 = vld [vmem:[%s4358 + $0x271] sm:$0xff]
  %v4472 = vld [vmem:[%s4358 + $0x279] sm:$0xff]
  %v4473 = vld [vmem:[%s4358 + $0x289] sm:$0xff]
  %v4474 = vld [vmem:[%s4358 + $0x291] sm:$0xff]
  %v4475 = vld [vmem:[%s4358 + $0x2a1] sm:$0xff]
  %v4476 = vld [vmem:[%s4358 + $0x2a9] sm:$0xff]
  %v4477 = vld [vmem:[%s4358 + $0x2b9] sm:$0xff]
  %v4478 = vld [vmem:[%s4358 + $0x2c1] sm:$0xff]
  %v4479 = vld [vmem:[%s4358 + $0x2d1] sm:$0xff]
  %v4480 = vld [vmem:[%s4358 + $0x2d9] sm:$0xff]
  %v4481 = vld [vmem:[%s4358 + $0x2e9] sm:$0xff]
  %v4482 = vld [vmem:[%s4358 + $0x2f1] sm:$0xff]
  %v4483 = vld [vmem:[%s4358 + $0x301] sm:$0xff]
  %v4484 = vld [vmem:[%s4358 + $0x309] sm:$0xff]
  %v4485 = vld [vmem:[%s4358 + $0x319] sm:$0xff]
  %v4486 = vld [vmem:[%s4358 + $0x321] sm:$0xff]
  %v4487 = vld [vmem:[%s4358 + $0x2] sm:$0xff]
  %v4488 = vld [vmem:[%s4358 + $0xa] sm:$0xff]
  %v4489 = vld [vmem:[%s4358 + $0x1a] sm:$0xff]
  %v4490 = vld [vmem:[%s4358 + $0x22] sm:$0xff]
  %v4491 = vld [vmem:[%s4358 + $0x32] sm:$0xff]
  %v4492 = vld [vmem:[%s4358 + $0x3a] sm:$0xff]
  %v4493 = vld [vmem:[%s4358 + $0x4a] sm:$0xff]
  %v4494 = vld [vmem:[%s4358 + $0x52] sm:$0xff]
  %v4495 = vld [vmem:[%s4358 + $0x62] sm:$0xff]
  %v4496 = vld [vmem:[%s4358 + $0x6a] sm:$0xff]
  %v4497 = vld [vmem:[%s4358 + $0x7a] sm:$0xff]
  %v4498 = vld [vmem:[%s4358 + $0x82] sm:$0xff]
  %v4499 = vld [vmem:[%s4358 + $0x92] sm:$0xff]
  %v4500 = vld [vmem:[%s4358 + $0x9a] sm:$0xff]
  %v4501 = vld [vmem:[%s4358 + $0xaa] sm:$0xff]
  %v4502 = vld [vmem:[%s4358 + $0xb2] sm:$0xff]
  %v4503 = vld [vmem:[%s4358 + $0xc2] sm:$0xff]
  %v4504 = vld [vmem:[%s4358 + $0xca] sm:$0xff]
  %v4505 = vld [vmem:[%s4358 + $0xda] sm:$0xff]
  %v4506 = vld [vmem:[%s4358 + $0xe2] sm:$0xff]
  %v4507 = vld [vmem:[%s4358 + $0xf2] sm:$0xff]
  %v4508 = vld [vmem:[%s4358 + $0xfa] sm:$0xff]
  %v4509 = vld [vmem:[%s4358 + $0x10a] sm:$0xff]
  %v4510 = vld [vmem:[%s4358 + $0x112] sm:$0xff]
  %v4511 = vld [vmem:[%s4358 + $0x122] sm:$0xff]
  %v4512 = vld [vmem:[%s4358 + $0x12a] sm:$0xff]
  %v4513 = vld [vmem:[%s4358 + $0x13a] sm:$0xff]
  %v4514 = vld [vmem:[%s4358 + $0x142] sm:$0xff]
  %v4515 = vld [vmem:[%s4358 + $0x152] sm:$0xff]
  %v4516 = vld [vmem:[%s4358 + $0x15a] sm:$0xff]
  %v4517 = vld [vmem:[%s4358 + $0x16a] sm:$0xff]
  %v4518 = vld [vmem:[%s4358 + $0x172] sm:$0xff]
  %v4519 = vld [vmem:[%s4358 + $0x1b2] sm:$0xff]
  %v4520 = vld [vmem:[%s4358 + $0x1ba] sm:$0xff]
  %v4521 = vld [vmem:[%s4358 + $0x1ca] sm:$0xff]
  %v4522 = vld [vmem:[%s4358 + $0x1d2] sm:$0xff]
  %v4523 = vld [vmem:[%s4358 + $0x1e2] sm:$0xff]
  %v4524 = vld [vmem:[%s4358 + $0x1ea] sm:$0xff]
  %v4525 = vld [vmem:[%s4358 + $0x1fa] sm:$0xff]
  %v4526 = vld [vmem:[%s4358 + $0x202] sm:$0xff]
  %v4527 = vld [vmem:[%s4358 + $0x212] sm:$0xff]
  %v4528 = vld [vmem:[%s4358 + $0x21a] sm:$0xff]
  %v4529 = vld [vmem:[%s4358 + $0x22a] sm:$0xff]
  %v4530 = vld [vmem:[%s4358 + $0x232] sm:$0xff]
  %v4531 = vld [vmem:[%s4358 + $0x242] sm:$0xff]
  %v4532 = vld [vmem:[%s4358 + $0x24a] sm:$0xff]
  %v4533 = vld [vmem:[%s4358 + $0x25a] sm:$0xff]
  %v4534 = vld [vmem:[%s4358 + $0x262] sm:$0xff]
  %v4535 = vld [vmem:[%s4358 + $0x272] sm:$0xff]
  %v4536 = vld [vmem:[%s4358 + $0x27a] sm:$0xff]
  %v4537 = vld [vmem:[%s4358 + $0x28a] sm:$0xff]
  %v4538 = vld [vmem:[%s4358 + $0x292] sm:$0xff]
  %v4539 = vld [vmem:[%s4358 + $0x2a2] sm:$0xff]
  %v4540 = vld [vmem:[%s4358 + $0x2aa] sm:$0xff]
  %v4541 = vld [vmem:[%s4358 + $0x2ba] sm:$0xff]
  %v4542 = vld [vmem:[%s4358 + $0x2c2] sm:$0xff]
  %v4543 = vld [vmem:[%s4358 + $0x2d2] sm:$0xff]
  %v4544 = vld [vmem:[%s4358 + $0x2da] sm:$0xff]
  %v4545 = vld [vmem:[%s4358 + $0x2ea] sm:$0xff]
  %v4546 = vld [vmem:[%s4358 + $0x2f2] sm:$0xff]
  %v4547 = vld [vmem:[%s4358 + $0x302] sm:$0xff]
  %v4548 = vld [vmem:[%s4358 + $0x30a] sm:$0xff]
  %v4549 = vld [vmem:[%s4358 + $0x31a] sm:$0xff]
  %v4550 = vld [vmem:[%s4358 + $0x322] sm:$0xff]
  %4615 = vrot.lane.b32.xlu0 %v4038, 8
  %v4616 = vpop.permute.xlu0 %4615
  %4617 = vrot.lane.b32.xlu0 %v4039, 8
  %v4618 = vpop.permute.xlu0 %4617
  %4619 = vrot.lane.b32.xlu0 %v4040, 8
  %v4620 = vpop.permute.xlu0 %4619
  %4621 = vrot.lane.b32.xlu0 %v4041, 8
  %v4622 = vpop.permute.xlu0 %4621
  %4623 = vrot.lane.b32.xlu0 %v4042, 8
  %v4624 = vpop.permute.xlu0 %4623
  %4625 = vrot.lane.b32.xlu0 %v4043, 8
  %v4626 = vpop.permute.xlu0 %4625
  %4627 = vrot.lane.b32.xlu0 %v4044, 8
  %v4628 = vpop.permute.xlu0 %4627
  %4629 = vrot.lane.b32.xlu0 %v4045, 8
  %v4630 = vpop.permute.xlu0 %4629
  %4631 = vrot.lane.b32.xlu0 %v4046, 8
  %v4632 = vpop.permute.xlu0 %4631
  %4633 = vrot.lane.b32.xlu0 %v4047, 8
  %v4634 = vpop.permute.xlu0 %4633
  %4635 = vrot.lane.b32.xlu0 %v4048, 8
  %v4636 = vpop.permute.xlu0 %4635
  %4637 = vrot.lane.b32.xlu0 %v4049, 8
  %v4638 = vpop.permute.xlu0 %4637
  %4639 = vrot.lane.b32.xlu0 %v4050, 8
  %v4640 = vpop.permute.xlu0 %4639
  %4641 = vrot.lane.b32.xlu0 %v4051, 8
  %v4642 = vpop.permute.xlu0 %4641
  %4643 = vrot.lane.b32.xlu0 %v4052, 8
  %v4644 = vpop.permute.xlu0 %4643
  %4645 = vrot.lane.b32.xlu0 %v4053, 8
  %v4646 = vpop.permute.xlu0 %4645
  %4647 = vrot.lane.b32.xlu0 %v4054, 8
  %v4648 = vpop.permute.xlu0 %4647
  %4649 = vrot.lane.b32.xlu0 %v4055, 8
  %v4650 = vpop.permute.xlu0 %4649
  %4651 = vrot.lane.b32.xlu0 %v4056, 8
  %v4652 = vpop.permute.xlu0 %4651
  %4653 = vrot.lane.b32.xlu0 %v4057, 8
  %v4654 = vpop.permute.xlu0 %4653
  %4655 = vrot.lane.b32.xlu0 %v4058, 8
  %v4656 = vpop.permute.xlu0 %4655
  %4657 = vrot.lane.b32.xlu0 %v4059, 8
  %v4658 = vpop.permute.xlu0 %4657
  %4659 = vrot.lane.b32.xlu0 %v4060, 8
  %v4660 = vpop.permute.xlu0 %4659
  %4661 = vrot.lane.b32.xlu0 %v4061, 8
  %v4662 = vpop.permute.xlu0 %4661
  %4663 = vrot.lane.b32.xlu0 %v4062, 8
  %v4664 = vpop.permute.xlu0 %4663
  %4665 = vrot.lane.b32.xlu0 %v4063, 8
  %v4666 = vpop.permute.xlu0 %4665
  %4667 = vrot.lane.b32.xlu0 %v4064, 8
  %v4668 = vpop.permute.xlu0 %4667
  %4669 = vrot.lane.b32.xlu0 %v4065, 8
  %v4670 = vpop.permute.xlu0 %4669
  %4671 = vrot.lane.b32.xlu0 %v4066, 8
  %v4672 = vpop.permute.xlu0 %4671
  %4673 = vrot.lane.b32.xlu0 %v4067, 8
  %v4674 = vpop.permute.xlu0 %4673
  %4675 = vrot.lane.b32.xlu0 %v4068, 8
  %v4676 = vpop.permute.xlu0 %4675
  %4677 = vrot.lane.b32.xlu0 %v4069, 8
  %v4678 = vpop.permute.xlu0 %4677
  %4679 = vrot.lane.b32.xlu0 %v4070, 8
  %v4680 = vpop.permute.xlu0 %4679
  %4681 = vrot.lane.b32.xlu0 %v4071, 8
  %v4682 = vpop.permute.xlu0 %4681
  %4683 = vrot.lane.b32.xlu0 %v4072, 8
  %v4684 = vpop.permute.xlu0 %4683
  %4685 = vrot.lane.b32.xlu0 %v4073, 8
  %v4686 = vpop.permute.xlu0 %4685
  %4687 = vrot.lane.b32.xlu0 %v4074, 8
  %v4688 = vpop.permute.xlu0 %4687
  %4689 = vrot.lane.b32.xlu0 %v4075, 8
  %v4690 = vpop.permute.xlu0 %4689
  %4691 = vrot.lane.b32.xlu0 %v4076, 8
  %v4692 = vpop.permute.xlu0 %4691
  %4693 = vrot.lane.b32.xlu0 %v4077, 8
  %v4694 = vpop.permute.xlu0 %4693
  %4695 = vrot.lane.b32.xlu0 %v4078, 8
  %v4696 = vpop.permute.xlu0 %4695
  %4697 = vrot.lane.b32.xlu0 %v4079, 8
  %v4698 = vpop.permute.xlu0 %4697
  %4699 = vrot.lane.b32.xlu0 %v4080, 8
  %v4700 = vpop.permute.xlu0 %4699
  %4701 = vrot.lane.b32.xlu0 %v4081, 8
  %v4702 = vpop.permute.xlu0 %4701
  %4703 = vrot.lane.b32.xlu0 %v4082, 8
  %v4704 = vpop.permute.xlu0 %4703
  %4705 = vrot.lane.b32.xlu0 %v4083, 8
  %v4706 = vpop.permute.xlu0 %4705
  %4707 = vrot.lane.b32.xlu0 %v4084, 8
  %v4708 = vpop.permute.xlu0 %4707
  %4709 = vrot.lane.b32.xlu0 %v4085, 8
  %v4710 = vpop.permute.xlu0 %4709
  %4711 = vrot.lane.b32.xlu0 %v4086, 8
  %v4712 = vpop.permute.xlu0 %4711
  %4713 = vrot.lane.b32.xlu0 %v4087, 8
  %v4714 = vpop.permute.xlu0 %4713
  %4715 = vrot.lane.b32.xlu0 %v4088, 8
  %v4716 = vpop.permute.xlu0 %4715
  %4717 = vrot.lane.b32.xlu0 %v4089, 8
  %v4718 = vpop.permute.xlu0 %4717
  %4719 = vrot.lane.b32.xlu0 %v4090, 8
  %v4720 = vpop.permute.xlu0 %4719
  %4721 = vrot.lane.b32.xlu0 %v4091, 8
  %v4722 = vpop.permute.xlu0 %4721
  %4723 = vrot.lane.b32.xlu0 %v4092, 8
  %v4724 = vpop.permute.xlu0 %4723
  %4725 = vrot.lane.b32.xlu0 %v4093, 8
  %v4726 = vpop.permute.xlu0 %4725
  %4727 = vrot.lane.b32.xlu0 %v4094, 8
  %v4728 = vpop.permute.xlu0 %4727
  %4729 = vrot.lane.b32.xlu0 %v4095, 8
  %v4730 = vpop.permute.xlu0 %4729
  %4731 = vrot.lane.b32.xlu0 %v4096, 8
  %v4732 = vpop.permute.xlu0 %4731
  %4733 = vrot.lane.b32.xlu0 %v4097, 8
  %v4734 = vpop.permute.xlu0 %4733
  %4735 = vrot.lane.b32.xlu0 %v4098, 8
  %v4736 = vpop.permute.xlu0 %4735
  %4737 = vrot.lane.b32.xlu0 %v4099, 8
  %v4738 = vpop.permute.xlu0 %4737
  %4739 = vrot.lane.b32.xlu0 %v4100, 8
  %v4740 = vpop.permute.xlu0 %4739
  %4741 = vrot.lane.b32.xlu0 %v4101, 8
  %v4742 = vpop.permute.xlu0 %4741
  %4871 = vrot.lane.b32.xlu0 %v4102, 16
  %v4872 = vpop.permute.xlu0 %4871
  %4873 = vrot.lane.b32.xlu0 %v4103, 16
  %v4874 = vpop.permute.xlu0 %4873
  %4875 = vrot.lane.b32.xlu0 %v4104, 16
  %v4876 = vpop.permute.xlu0 %4875
  %4877 = vrot.lane.b32.xlu0 %v4105, 16
  %v4878 = vpop.permute.xlu0 %4877
  %4879 = vrot.lane.b32.xlu0 %v4106, 16
  %v4880 = vpop.permute.xlu0 %4879
  %4881 = vrot.lane.b32.xlu0 %v4107, 16
  %v4882 = vpop.permute.xlu0 %4881
  %4883 = vrot.lane.b32.xlu0 %v4108, 16
  %v4884 = vpop.permute.xlu0 %4883
  %4885 = vrot.lane.b32.xlu0 %v4109, 16
  %v4886 = vpop.permute.xlu0 %4885
  %4887 = vrot.lane.b32.xlu0 %v4110, 16
  %v4888 = vpop.permute.xlu0 %4887
  %4889 = vrot.lane.b32.xlu0 %v4111, 16
  %v4890 = vpop.permute.xlu0 %4889
  %4891 = vrot.lane.b32.xlu0 %v4112, 16
  %v4892 = vpop.permute.xlu0 %4891
  %4893 = vrot.lane.b32.xlu0 %v4113, 16
  %v4894 = vpop.permute.xlu0 %4893
  %4895 = vrot.lane.b32.xlu0 %v4114, 16
  %v4896 = vpop.permute.xlu0 %4895
  %4897 = vrot.lane.b32.xlu0 %v4115, 16
  %v4898 = vpop.permute.xlu0 %4897
  %4899 = vrot.lane.b32.xlu0 %v4116, 16
  %v4900 = vpop.permute.xlu0 %4899
  %4901 = vrot.lane.b32.xlu0 %v4117, 16
  %v4902 = vpop.permute.xlu0 %4901
  %4903 = vrot.lane.b32.xlu0 %v4118, 16
  %v4904 = vpop.permute.xlu0 %4903
  %4905 = vrot.lane.b32.xlu0 %v4119, 16
  %v4906 = vpop.permute.xlu0 %4905
  %4907 = vrot.lane.b32.xlu0 %v4120, 16
  %v4908 = vpop.permute.xlu0 %4907
  %4909 = vrot.lane.b32.xlu0 %v4121, 16
  %v4910 = vpop.permute.xlu0 %4909
  %4911 = vrot.lane.b32.xlu0 %v4122, 16
  %v4912 = vpop.permute.xlu0 %4911
  %4913 = vrot.lane.b32.xlu0 %v4123, 16
  %v4914 = vpop.permute.xlu0 %4913
  %4915 = vrot.lane.b32.xlu0 %v4124, 16
  %v4916 = vpop.permute.xlu0 %4915
  %4917 = vrot.lane.b32.xlu0 %v4125, 16
  %v4918 = vpop.permute.xlu0 %4917
  %4919 = vrot.lane.b32.xlu0 %v4126, 16
  %v4920 = vpop.permute.xlu0 %4919
  %4921 = vrot.lane.b32.xlu0 %v4127, 16
  %v4922 = vpop.permute.xlu0 %4921
  %4923 = vrot.lane.b32.xlu0 %v4128, 16
  %v4924 = vpop.permute.xlu0 %4923
  %4925 = vrot.lane.b32.xlu0 %v4129, 16
  %v4926 = vpop.permute.xlu0 %4925
  %4927 = vrot.lane.b32.xlu0 %v4130, 16
  %v4928 = vpop.permute.xlu0 %4927
  %4929 = vrot.lane.b32.xlu0 %v4131, 16
  %v4930 = vpop.permute.xlu0 %4929
  %4931 = vrot.lane.b32.xlu0 %v4132, 16
  %v4932 = vpop.permute.xlu0 %4931
  %4933 = vrot.lane.b32.xlu0 %v4133, 16
  %v4934 = vpop.permute.xlu0 %4933
  %4935 = vrot.lane.b32.xlu0 %v4134, 16
  %v4936 = vpop.permute.xlu0 %4935
  %4937 = vrot.lane.b32.xlu0 %v4135, 16
  %v4938 = vpop.permute.xlu0 %4937
  %4939 = vrot.lane.b32.xlu0 %v4136, 16
  %v4940 = vpop.permute.xlu0 %4939
  %4941 = vrot.lane.b32.xlu0 %v4137, 16
  %v4942 = vpop.permute.xlu0 %4941
  %4943 = vrot.lane.b32.xlu0 %v4138, 16
  %v4944 = vpop.permute.xlu0 %4943
  %4945 = vrot.lane.b32.xlu0 %v4139, 16
  %v4946 = vpop.permute.xlu0 %4945
  %4947 = vrot.lane.b32.xlu0 %v4140, 16
  %v4948 = vpop.permute.xlu0 %4947
  %4949 = vrot.lane.b32.xlu0 %v4141, 16
  %v4950 = vpop.permute.xlu0 %4949
  %4951 = vrot.lane.b32.xlu0 %v4142, 16
  %v4952 = vpop.permute.xlu0 %4951
  %4953 = vrot.lane.b32.xlu0 %v4143, 16
  %v4954 = vpop.permute.xlu0 %4953
  %4955 = vrot.lane.b32.xlu0 %v4144, 16
  %v4956 = vpop.permute.xlu0 %4955
  %4957 = vrot.lane.b32.xlu0 %v4145, 16
  %v4958 = vpop.permute.xlu0 %4957
  %4959 = vrot.lane.b32.xlu0 %v4146, 16
  %v4960 = vpop.permute.xlu0 %4959
  %4961 = vrot.lane.b32.xlu0 %v4147, 16
  %v4962 = vpop.permute.xlu0 %4961
  %4963 = vrot.lane.b32.xlu0 %v4148, 16
  %v4964 = vpop.permute.xlu0 %4963
  %4965 = vrot.lane.b32.xlu0 %v4149, 16
  %v4966 = vpop.permute.xlu0 %4965
  %4967 = vrot.lane.b32.xlu0 %v4150, 16
  %v4968 = vpop.permute.xlu0 %4967
  %4969 = vrot.lane.b32.xlu0 %v4151, 16
  %v4970 = vpop.permute.xlu0 %4969
  %4971 = vrot.lane.b32.xlu0 %v4152, 16
  %v4972 = vpop.permute.xlu0 %4971
  %4973 = vrot.lane.b32.xlu0 %v4153, 16
  %v4974 = vpop.permute.xlu0 %4973
  %4975 = vrot.lane.b32.xlu0 %v4154, 16
  %v4976 = vpop.permute.xlu0 %4975
  %4977 = vrot.lane.b32.xlu0 %v4155, 16
  %v4978 = vpop.permute.xlu0 %4977
  %4979 = vrot.lane.b32.xlu0 %v4156, 16
  %v4980 = vpop.permute.xlu0 %4979
  %4981 = vrot.lane.b32.xlu0 %v4157, 16
  %v4982 = vpop.permute.xlu0 %4981
  %4983 = vrot.lane.b32.xlu0 %v4158, 16
  %v4984 = vpop.permute.xlu0 %4983
  %4985 = vrot.lane.b32.xlu0 %v4159, 16
  %v4986 = vpop.permute.xlu0 %4985
  %4987 = vrot.lane.b32.xlu0 %v4160, 16
  %v4988 = vpop.permute.xlu0 %4987
  %4989 = vrot.lane.b32.xlu0 %v4161, 16
  %v4990 = vpop.permute.xlu0 %4989
  %4991 = vrot.lane.b32.xlu0 %v4162, 16
  %v4992 = vpop.permute.xlu0 %4991
  %4993 = vrot.lane.b32.xlu0 %v4163, 16
  %v4994 = vpop.permute.xlu0 %4993
  %4995 = vrot.lane.b32.xlu0 %v4164, 16
  %v4996 = vpop.permute.xlu0 %4995
  %4997 = vrot.lane.b32.xlu0 %v4165, 16
  %v4998 = vpop.permute.xlu0 %4997
  %5127 = vrot.lane.b32.xlu0 %v4166, 24
  %v5128 = vpop.permute.xlu0 %5127
  %5129 = vrot.lane.b32.xlu0 %v4167, 24
  %v5130 = vpop.permute.xlu0 %5129
  %5131 = vrot.lane.b32.xlu0 %v4168, 24
  %v5132 = vpop.permute.xlu0 %5131
  %5133 = vrot.lane.b32.xlu0 %v4169, 24
  %v5134 = vpop.permute.xlu0 %5133
  %5135 = vrot.lane.b32.xlu0 %v4170, 24
  %v5136 = vpop.permute.xlu0 %5135
  %5137 = vrot.lane.b32.xlu0 %v4171, 24
  %v5138 = vpop.permute.xlu0 %5137
  %5139 = vrot.lane.b32.xlu0 %v4172, 24
  %v5140 = vpop.permute.xlu0 %5139
  %5141 = vrot.lane.b32.xlu0 %v4173, 24
  %v5142 = vpop.permute.xlu0 %5141
  %5143 = vrot.lane.b32.xlu0 %v4174, 24
  %v5144 = vpop.permute.xlu0 %5143
  %5145 = vrot.lane.b32.xlu0 %v4175, 24
  %v5146 = vpop.permute.xlu0 %5145
  %5147 = vrot.lane.b32.xlu0 %v4176, 24
  %v5148 = vpop.permute.xlu0 %5147
  %5149 = vrot.lane.b32.xlu0 %v4177, 24
  %v5150 = vpop.permute.xlu0 %5149
  %5151 = vrot.lane.b32.xlu0 %v4178, 24
  %v5152 = vpop.permute.xlu0 %5151
  %5153 = vrot.lane.b32.xlu0 %v4179, 24
  %v5154 = vpop.permute.xlu0 %5153
  %5155 = vrot.lane.b32.xlu0 %v4180, 24
  %v5156 = vpop.permute.xlu0 %5155
  %5157 = vrot.lane.b32.xlu0 %v4181, 24
  %v5158 = vpop.permute.xlu0 %5157
  %5159 = vrot.lane.b32.xlu0 %v4182, 24
  %v5160 = vpop.permute.xlu0 %5159
  %5161 = vrot.lane.b32.xlu0 %v4183, 24
  %v5162 = vpop.permute.xlu0 %5161
  %5163 = vrot.lane.b32.xlu0 %v4184, 24
  %v5164 = vpop.permute.xlu0 %5163
  %5165 = vrot.lane.b32.xlu0 %v4185, 24
  %v5166 = vpop.permute.xlu0 %5165
  %5167 = vrot.lane.b32.xlu0 %v4186, 24
  %v5168 = vpop.permute.xlu0 %5167
  %5169 = vrot.lane.b32.xlu0 %v4187, 24
  %v5170 = vpop.permute.xlu0 %5169
  %5171 = vrot.lane.b32.xlu0 %v4188, 24
  %v5172 = vpop.permute.xlu0 %5171
  %5173 = vrot.lane.b32.xlu0 %v4189, 24
  %v5174 = vpop.permute.xlu0 %5173
  %5175 = vrot.lane.b32.xlu0 %v4190, 24
  %v5176 = vpop.permute.xlu0 %5175
  %5177 = vrot.lane.b32.xlu0 %v4191, 24
  %v5178 = vpop.permute.xlu0 %5177
  %5179 = vrot.lane.b32.xlu0 %v4192, 24
  %v5180 = vpop.permute.xlu0 %5179
  %5181 = vrot.lane.b32.xlu0 %v4193, 24
  %v5182 = vpop.permute.xlu0 %5181
  %5183 = vrot.lane.b32.xlu0 %v4194, 24
  %v5184 = vpop.permute.xlu0 %5183
  %5185 = vrot.lane.b32.xlu0 %v4195, 24
  %v5186 = vpop.permute.xlu0 %5185
  %5187 = vrot.lane.b32.xlu0 %v4196, 24
  %v5188 = vpop.permute.xlu0 %5187
  %5189 = vrot.lane.b32.xlu0 %v4197, 24
  %v5190 = vpop.permute.xlu0 %5189
  %5191 = vrot.lane.b32.xlu0 %v4198, 24
  %v5192 = vpop.permute.xlu0 %5191
  %5193 = vrot.lane.b32.xlu0 %v4199, 24
  %v5194 = vpop.permute.xlu0 %5193
  %5195 = vrot.lane.b32.xlu0 %v4200, 24
  %v5196 = vpop.permute.xlu0 %5195
  %5197 = vrot.lane.b32.xlu0 %v4201, 24
  %v5198 = vpop.permute.xlu0 %5197
  %5199 = vrot.lane.b32.xlu0 %v4202, 24
  %v5200 = vpop.permute.xlu0 %5199
  %5201 = vrot.lane.b32.xlu0 %v4203, 24
  %v5202 = vpop.permute.xlu0 %5201
  %5203 = vrot.lane.b32.xlu0 %v4204, 24
  %v5204 = vpop.permute.xlu0 %5203
  %5205 = vrot.lane.b32.xlu0 %v4205, 24
  %v5206 = vpop.permute.xlu0 %5205
  %5207 = vrot.lane.b32.xlu0 %v4206, 24
  %v5208 = vpop.permute.xlu0 %5207
  %5209 = vrot.lane.b32.xlu0 %v4207, 24
  %v5210 = vpop.permute.xlu0 %5209
  %5211 = vrot.lane.b32.xlu0 %v4208, 24
  %v5212 = vpop.permute.xlu0 %5211
  %5213 = vrot.lane.b32.xlu0 %v4209, 24
  %v5214 = vpop.permute.xlu0 %5213
  %5215 = vrot.lane.b32.xlu0 %v4210, 24
  %v5216 = vpop.permute.xlu0 %5215
  %5217 = vrot.lane.b32.xlu0 %v4211, 24
  %v5218 = vpop.permute.xlu0 %5217
  %5219 = vrot.lane.b32.xlu0 %v4212, 24
  %v5220 = vpop.permute.xlu0 %5219
  %5221 = vrot.lane.b32.xlu0 %v4213, 24
  %v5222 = vpop.permute.xlu0 %5221
  %5223 = vrot.lane.b32.xlu0 %v4214, 24
  %v5224 = vpop.permute.xlu0 %5223
  %5225 = vrot.lane.b32.xlu0 %v4215, 24
  %v5226 = vpop.permute.xlu0 %5225
  %5227 = vrot.lane.b32.xlu0 %v4216, 24
  %v5228 = vpop.permute.xlu0 %5227
  %5229 = vrot.lane.b32.xlu0 %v4217, 24
  %v5230 = vpop.permute.xlu0 %5229
  %5231 = vrot.lane.b32.xlu0 %v4218, 24
  %v5232 = vpop.permute.xlu0 %5231
  %5233 = vrot.lane.b32.xlu0 %v4219, 24
  %v5234 = vpop.permute.xlu0 %5233
  %5235 = vrot.lane.b32.xlu0 %v4220, 24
  %v5236 = vpop.permute.xlu0 %5235
  %5237 = vrot.lane.b32.xlu0 %v4221, 24
  %v5238 = vpop.permute.xlu0 %5237
  %5239 = vrot.lane.b32.xlu0 %v4222, 24
  %v5240 = vpop.permute.xlu0 %5239
  %5241 = vrot.lane.b32.xlu0 %v4223, 24
  %v5242 = vpop.permute.xlu0 %5241
  %5243 = vrot.lane.b32.xlu0 %v4224, 24
  %v5244 = vpop.permute.xlu0 %5243
  %5245 = vrot.lane.b32.xlu0 %v4225, 24
  %v5246 = vpop.permute.xlu0 %5245
  %5247 = vrot.lane.b32.xlu0 %v4226, 24
  %v5248 = vpop.permute.xlu0 %5247
  %5249 = vrot.lane.b32.xlu0 %v4227, 24
  %v5250 = vpop.permute.xlu0 %5249
  %5251 = vrot.lane.b32.xlu0 %v4228, 24
  %v5252 = vpop.permute.xlu0 %5251
  %5253 = vrot.lane.b32.xlu0 %v4229, 24
  %v5254 = vpop.permute.xlu0 %5253
  %5383 = vrot.lane.b32.xlu0 %v4230, 32
  %v5384 = vpop.permute.xlu0 %5383
  %5385 = vrot.lane.b32.xlu0 %v4231, 32
  %v5386 = vpop.permute.xlu0 %5385
  %5387 = vrot.lane.b32.xlu0 %v4232, 32
  %v5388 = vpop.permute.xlu0 %5387
  %5389 = vrot.lane.b32.xlu0 %v4233, 32
  %v5390 = vpop.permute.xlu0 %5389
  %5391 = vrot.lane.b32.xlu0 %v4234, 32
  %v5392 = vpop.permute.xlu0 %5391
  %5393 = vrot.lane.b32.xlu0 %v4235, 32
  %v5394 = vpop.permute.xlu0 %5393
  %5395 = vrot.lane.b32.xlu0 %v4236, 32
  %v5396 = vpop.permute.xlu0 %5395
  %5397 = vrot.lane.b32.xlu0 %v4237, 32
  %v5398 = vpop.permute.xlu0 %5397
  %5399 = vrot.lane.b32.xlu0 %v4238, 32
  %v5400 = vpop.permute.xlu0 %5399
  %5401 = vrot.lane.b32.xlu0 %v4239, 32
  %v5402 = vpop.permute.xlu0 %5401
  %5403 = vrot.lane.b32.xlu0 %v4240, 32
  %v5404 = vpop.permute.xlu0 %5403
  %5405 = vrot.lane.b32.xlu0 %v4241, 32
  %v5406 = vpop.permute.xlu0 %5405
  %5407 = vrot.lane.b32.xlu0 %v4242, 32
  %v5408 = vpop.permute.xlu0 %5407
  %5409 = vrot.lane.b32.xlu0 %v4243, 32
  %v5410 = vpop.permute.xlu0 %5409
  %5411 = vrot.lane.b32.xlu0 %v4244, 32
  %v5412 = vpop.permute.xlu0 %5411
  %5413 = vrot.lane.b32.xlu0 %v4245, 32
  %v5414 = vpop.permute.xlu0 %5413
  %5415 = vrot.lane.b32.xlu0 %v4246, 32
  %v5416 = vpop.permute.xlu0 %5415
  %5417 = vrot.lane.b32.xlu0 %v4247, 32
  %v5418 = vpop.permute.xlu0 %5417
  %5419 = vrot.lane.b32.xlu0 %v4248, 32
  %v5420 = vpop.permute.xlu0 %5419
  %5421 = vrot.lane.b32.xlu0 %v4249, 32
  %v5422 = vpop.permute.xlu0 %5421
  %5423 = vrot.lane.b32.xlu0 %v4250, 32
  %v5424 = vpop.permute.xlu0 %5423
  %5425 = vrot.lane.b32.xlu0 %v4251, 32
  %v5426 = vpop.permute.xlu0 %5425
  %5427 = vrot.lane.b32.xlu0 %v4252, 32
  %v5428 = vpop.permute.xlu0 %5427
  %5429 = vrot.lane.b32.xlu0 %v4253, 32
  %v5430 = vpop.permute.xlu0 %5429
  %5431 = vrot.lane.b32.xlu0 %v4254, 32
  %v5432 = vpop.permute.xlu0 %5431
  %5433 = vrot.lane.b32.xlu0 %v4255, 32
  %v5434 = vpop.permute.xlu0 %5433
  %5435 = vrot.lane.b32.xlu0 %v4256, 32
  %v5436 = vpop.permute.xlu0 %5435
  %5437 = vrot.lane.b32.xlu0 %v4257, 32
  %v5438 = vpop.permute.xlu0 %5437
  %5439 = vrot.lane.b32.xlu0 %v4258, 32
  %v5440 = vpop.permute.xlu0 %5439
  %5441 = vrot.lane.b32.xlu0 %v4259, 32
  %v5442 = vpop.permute.xlu0 %5441
  %5443 = vrot.lane.b32.xlu0 %v4260, 32
  %v5444 = vpop.permute.xlu0 %5443
  %5445 = vrot.lane.b32.xlu0 %v4261, 32
  %v5446 = vpop.permute.xlu0 %5445
  %5447 = vrot.lane.b32.xlu0 %v4262, 32
  %v5448 = vpop.permute.xlu0 %5447
  %5449 = vrot.lane.b32.xlu0 %v4263, 32
  %v5450 = vpop.permute.xlu0 %5449
  %5451 = vrot.lane.b32.xlu0 %v4264, 32
  %v5452 = vpop.permute.xlu0 %5451
  %5453 = vrot.lane.b32.xlu0 %v4265, 32
  %v5454 = vpop.permute.xlu0 %5453
  %5455 = vrot.lane.b32.xlu0 %v4266, 32
  %v5456 = vpop.permute.xlu0 %5455
  %5457 = vrot.lane.b32.xlu0 %v4267, 32
  %v5458 = vpop.permute.xlu0 %5457
  %5459 = vrot.lane.b32.xlu0 %v4268, 32
  %v5460 = vpop.permute.xlu0 %5459
  %5461 = vrot.lane.b32.xlu0 %v4269, 32
  %v5462 = vpop.permute.xlu0 %5461
  %5463 = vrot.lane.b32.xlu0 %v4270, 32
  %v5464 = vpop.permute.xlu0 %5463
  %5465 = vrot.lane.b32.xlu0 %v4271, 32
  %v5466 = vpop.permute.xlu0 %5465
  %5467 = vrot.lane.b32.xlu0 %v4272, 32
  %v5468 = vpop.permute.xlu0 %5467
  %5469 = vrot.lane.b32.xlu0 %v4273, 32
  %v5470 = vpop.permute.xlu0 %5469
  %5471 = vrot.lane.b32.xlu0 %v4274, 32
  %v5472 = vpop.permute.xlu0 %5471
  %5473 = vrot.lane.b32.xlu0 %v4275, 32
  %v5474 = vpop.permute.xlu0 %5473
  %5475 = vrot.lane.b32.xlu0 %v4276, 32
  %v5476 = vpop.permute.xlu0 %5475
  %5477 = vrot.lane.b32.xlu0 %v4277, 32
  %v5478 = vpop.permute.xlu0 %5477
  %5479 = vrot.lane.b32.xlu0 %v4278, 32
  %v5480 = vpop.permute.xlu0 %5479
  %5481 = vrot.lane.b32.xlu0 %v4279, 32
  %v5482 = vpop.permute.xlu0 %5481
  %5483 = vrot.lane.b32.xlu0 %v4280, 32
  %v5484 = vpop.permute.xlu0 %5483
  %5485 = vrot.lane.b32.xlu0 %v4281, 32
  %v5486 = vpop.permute.xlu0 %5485
  %5487 = vrot.lane.b32.xlu0 %v4282, 32
  %v5488 = vpop.permute.xlu0 %5487
  %5489 = vrot.lane.b32.xlu0 %v4283, 32
  %v5490 = vpop.permute.xlu0 %5489
  %5491 = vrot.lane.b32.xlu0 %v4284, 32
  %v5492 = vpop.permute.xlu0 %5491
  %5493 = vrot.lane.b32.xlu0 %v4285, 32
  %v5494 = vpop.permute.xlu0 %5493
  %5495 = vrot.lane.b32.xlu0 %v4286, 32
  %v5496 = vpop.permute.xlu0 %5495
  %5497 = vrot.lane.b32.xlu0 %v4287, 32
  %v5498 = vpop.permute.xlu0 %5497
  %5499 = vrot.lane.b32.xlu0 %v4288, 32
  %v5500 = vpop.permute.xlu0 %5499
  %5501 = vrot.lane.b32.xlu0 %v4289, 32
  %v5502 = vpop.permute.xlu0 %5501
  %5503 = vrot.lane.b32.xlu0 %v4290, 32
  %v5504 = vpop.permute.xlu0 %5503
  %5505 = vrot.lane.b32.xlu0 %v4291, 32
  %v5506 = vpop.permute.xlu0 %5505
  %5507 = vrot.lane.b32.xlu0 %v4292, 32
  %v5508 = vpop.permute.xlu0 %5507
  %5509 = vrot.lane.b32.xlu0 %v4293, 32
  %v5510 = vpop.permute.xlu0 %5509
  %5639 = vrot.lane.b32.xlu0 %v4294, 40
  %v5640 = vpop.permute.xlu0 %5639
  %5641 = vrot.lane.b32.xlu0 %v4295, 40
  %v5642 = vpop.permute.xlu0 %5641
  %5643 = vrot.lane.b32.xlu0 %v4296, 40
  %v5644 = vpop.permute.xlu0 %5643
  %5645 = vrot.lane.b32.xlu0 %v4297, 40
  %v5646 = vpop.permute.xlu0 %5645
  %5647 = vrot.lane.b32.xlu0 %v4298, 40
  %v5648 = vpop.permute.xlu0 %5647
  %5649 = vrot.lane.b32.xlu0 %v4299, 40
  %v5650 = vpop.permute.xlu0 %5649
  %5651 = vrot.lane.b32.xlu0 %v4300, 40
  %v5652 = vpop.permute.xlu0 %5651
  %5653 = vrot.lane.b32.xlu0 %v4301, 40
  %v5654 = vpop.permute.xlu0 %5653
  %5655 = vrot.lane.b32.xlu0 %v4302, 40
  %v5656 = vpop.permute.xlu0 %5655
  %5657 = vrot.lane.b32.xlu0 %v4303, 40
  %v5658 = vpop.permute.xlu0 %5657
  %5659 = vrot.lane.b32.xlu0 %v4304, 40
  %v5660 = vpop.permute.xlu0 %5659
  %5661 = vrot.lane.b32.xlu0 %v4305, 40
  %v5662 = vpop.permute.xlu0 %5661
  %5663 = vrot.lane.b32.xlu0 %v4306, 40
  %v5664 = vpop.permute.xlu0 %5663
  %5665 = vrot.lane.b32.xlu0 %v4307, 40
  %v5666 = vpop.permute.xlu0 %5665
  %5667 = vrot.lane.b32.xlu0 %v4308, 40
  %v5668 = vpop.permute.xlu0 %5667
  %5669 = vrot.lane.b32.xlu0 %v4309, 40
  %v5670 = vpop.permute.xlu0 %5669
  %5671 = vrot.lane.b32.xlu0 %v4310, 40
  %v5672 = vpop.permute.xlu0 %5671
  %5673 = vrot.lane.b32.xlu0 %v4311, 40
  %v5674 = vpop.permute.xlu0 %5673
  %5675 = vrot.lane.b32.xlu0 %v4312, 40
  %v5676 = vpop.permute.xlu0 %5675
  %5677 = vrot.lane.b32.xlu0 %v4313, 40
  %v5678 = vpop.permute.xlu0 %5677
  %5679 = vrot.lane.b32.xlu0 %v4314, 40
  %v5680 = vpop.permute.xlu0 %5679
  %5681 = vrot.lane.b32.xlu0 %v4315, 40
  %v5682 = vpop.permute.xlu0 %5681
  %5683 = vrot.lane.b32.xlu0 %v4316, 40
  %v5684 = vpop.permute.xlu0 %5683
  %5685 = vrot.lane.b32.xlu0 %v4317, 40
  %v5686 = vpop.permute.xlu0 %5685
  %5687 = vrot.lane.b32.xlu0 %v4318, 40
  %v5688 = vpop.permute.xlu0 %5687
  %5689 = vrot.lane.b32.xlu0 %v4319, 40
  %v5690 = vpop.permute.xlu0 %5689
  %5691 = vrot.lane.b32.xlu0 %v4320, 40
  %v5692 = vpop.permute.xlu0 %5691
  %5693 = vrot.lane.b32.xlu0 %v4321, 40
  %v5694 = vpop.permute.xlu0 %5693
  %5695 = vrot.lane.b32.xlu0 %v4322, 40
  %v5696 = vpop.permute.xlu0 %5695
  %5697 = vrot.lane.b32.xlu0 %v4323, 40
  %v5698 = vpop.permute.xlu0 %5697
  %5699 = vrot.lane.b32.xlu0 %v4324, 40
  %v5700 = vpop.permute.xlu0 %5699
  %5701 = vrot.lane.b32.xlu0 %v4325, 40
  %v5702 = vpop.permute.xlu0 %5701
  %5703 = vrot.lane.b32.xlu0 %v4326, 40
  %v5704 = vpop.permute.xlu0 %5703
  %5705 = vrot.lane.b32.xlu0 %v4327, 40
  %v5706 = vpop.permute.xlu0 %5705
  %5707 = vrot.lane.b32.xlu0 %v4328, 40
  %v5708 = vpop.permute.xlu0 %5707
  %5709 = vrot.lane.b32.xlu0 %v4329, 40
  %v5710 = vpop.permute.xlu0 %5709
  %5711 = vrot.lane.b32.xlu0 %v4330, 40
  %v5712 = vpop.permute.xlu0 %5711
  %5713 = vrot.lane.b32.xlu0 %v4331, 40
  %v5714 = vpop.permute.xlu0 %5713
  %5715 = vrot.lane.b32.xlu0 %v4332, 40
  %v5716 = vpop.permute.xlu0 %5715
  %5717 = vrot.lane.b32.xlu0 %v4333, 40
  %v5718 = vpop.permute.xlu0 %5717
  %5719 = vrot.lane.b32.xlu0 %v4334, 40
  %v5720 = vpop.permute.xlu0 %5719
  %5721 = vrot.lane.b32.xlu0 %v4335, 40
  %v5722 = vpop.permute.xlu0 %5721
  %5723 = vrot.lane.b32.xlu0 %v4336, 40
  %v5724 = vpop.permute.xlu0 %5723
  %5725 = vrot.lane.b32.xlu0 %v4337, 40
  %v5726 = vpop.permute.xlu0 %5725
  %5727 = vrot.lane.b32.xlu0 %v4338, 40
  %v5728 = vpop.permute.xlu0 %5727
  %5729 = vrot.lane.b32.xlu0 %v4339, 40
  %v5730 = vpop.permute.xlu0 %5729
  %5731 = vrot.lane.b32.xlu0 %v4340, 40
  %v5732 = vpop.permute.xlu0 %5731
  %5733 = vrot.lane.b32.xlu0 %v4341, 40
  %v5734 = vpop.permute.xlu0 %5733
  %5735 = vrot.lane.b32.xlu0 %v4342, 40
  %v5736 = vpop.permute.xlu0 %5735
  %5737 = vrot.lane.b32.xlu0 %v4343, 40
  %v5738 = vpop.permute.xlu0 %5737
  %5739 = vrot.lane.b32.xlu0 %v4344, 40
  %v5740 = vpop.permute.xlu0 %5739
  %5741 = vrot.lane.b32.xlu0 %v4345, 40
  %v5742 = vpop.permute.xlu0 %5741
  %5743 = vrot.lane.b32.xlu0 %v4346, 40
  %v5744 = vpop.permute.xlu0 %5743
  %5745 = vrot.lane.b32.xlu0 %v4347, 40
  %v5746 = vpop.permute.xlu0 %5745
  %5747 = vrot.lane.b32.xlu0 %v4348, 40
  %v5748 = vpop.permute.xlu0 %5747
  %5749 = vrot.lane.b32.xlu0 %v4349, 40
  %v5750 = vpop.permute.xlu0 %5749
  %5751 = vrot.lane.b32.xlu0 %v4350, 40
  %v5752 = vpop.permute.xlu0 %5751
  %5753 = vrot.lane.b32.xlu0 %v4351, 40
  %v5754 = vpop.permute.xlu0 %5753
  %5755 = vrot.lane.b32.xlu0 %v4352, 40
  %v5756 = vpop.permute.xlu0 %5755
  %5757 = vrot.lane.b32.xlu0 %v4353, 40
  %v5758 = vpop.permute.xlu0 %5757
  %5759 = vrot.lane.b32.xlu0 %v4354, 40
  %v5760 = vpop.permute.xlu0 %5759
  %5761 = vrot.lane.b32.xlu0 %v4355, 40
  %v5762 = vpop.permute.xlu0 %5761
  %5763 = vrot.lane.b32.xlu0 %v4356, 40
  %v5764 = vpop.permute.xlu0 %5763
  %5765 = vrot.lane.b32.xlu0 %v4357, 40
  %v5766 = vpop.permute.xlu0 %5765
  %5895 = vrot.lane.b32.xlu0 %v4359, 48
  %v5896 = vpop.permute.xlu0 %5895
  %5897 = vrot.lane.b32.xlu0 %v4360, 48
  %v5898 = vpop.permute.xlu0 %5897
  %5899 = vrot.lane.b32.xlu0 %v4361, 48
  %v5900 = vpop.permute.xlu0 %5899
  %5901 = vrot.lane.b32.xlu0 %v4362, 48
  %v5902 = vpop.permute.xlu0 %5901
  %5903 = vrot.lane.b32.xlu0 %v4363, 48
  %v5904 = vpop.permute.xlu0 %5903
  %5905 = vrot.lane.b32.xlu0 %v4364, 48
  %v5906 = vpop.permute.xlu0 %5905
  %5907 = vrot.lane.b32.xlu0 %v4365, 48
  %v5908 = vpop.permute.xlu0 %5907
  %5909 = vrot.lane.b32.xlu0 %v4366, 48
  %v5910 = vpop.permute.xlu0 %5909
  %5911 = vrot.lane.b32.xlu0 %v4367, 48
  %v5912 = vpop.permute.xlu0 %5911
  %5913 = vrot.lane.b32.xlu0 %v4368, 48
  %v5914 = vpop.permute.xlu0 %5913
  %5915 = vrot.lane.b32.xlu0 %v4369, 48
  %v5916 = vpop.permute.xlu0 %5915
  %5917 = vrot.lane.b32.xlu0 %v4370, 48
  %v5918 = vpop.permute.xlu0 %5917
  %5919 = vrot.lane.b32.xlu0 %v4371, 48
  %v5920 = vpop.permute.xlu0 %5919
  %5921 = vrot.lane.b32.xlu0 %v4372, 48
  %v5922 = vpop.permute.xlu0 %5921
  %5923 = vrot.lane.b32.xlu0 %v4373, 48
  %v5924 = vpop.permute.xlu0 %5923
  %5925 = vrot.lane.b32.xlu0 %v4374, 48
  %v5926 = vpop.permute.xlu0 %5925
  %5927 = vrot.lane.b32.xlu0 %v4375, 48
  %v5928 = vpop.permute.xlu0 %5927
  %5929 = vrot.lane.b32.xlu0 %v4376, 48
  %v5930 = vpop.permute.xlu0 %5929
  %5931 = vrot.lane.b32.xlu0 %v4377, 48
  %v5932 = vpop.permute.xlu0 %5931
  %5933 = vrot.lane.b32.xlu0 %v4378, 48
  %v5934 = vpop.permute.xlu0 %5933
  %5935 = vrot.lane.b32.xlu0 %v4379, 48
  %v5936 = vpop.permute.xlu0 %5935
  %5937 = vrot.lane.b32.xlu0 %v4380, 48
  %v5938 = vpop.permute.xlu0 %5937
  %5939 = vrot.lane.b32.xlu0 %v4381, 48
  %v5940 = vpop.permute.xlu0 %5939
  %5941 = vrot.lane.b32.xlu0 %v4382, 48
  %v5942 = vpop.permute.xlu0 %5941
  %5943 = vrot.lane.b32.xlu0 %v4383, 48
  %v5944 = vpop.permute.xlu0 %5943
  %5945 = vrot.lane.b32.xlu0 %v4384, 48
  %v5946 = vpop.permute.xlu0 %5945
  %5947 = vrot.lane.b32.xlu0 %v4385, 48
  %v5948 = vpop.permute.xlu0 %5947
  %5949 = vrot.lane.b32.xlu0 %v4386, 48
  %v5950 = vpop.permute.xlu0 %5949
  %5951 = vrot.lane.b32.xlu0 %v4387, 48
  %v5952 = vpop.permute.xlu0 %5951
  %5953 = vrot.lane.b32.xlu0 %v4388, 48
  %v5954 = vpop.permute.xlu0 %5953
  %5955 = vrot.lane.b32.xlu0 %v4389, 48
  %v5956 = vpop.permute.xlu0 %5955
  %5957 = vrot.lane.b32.xlu0 %v4390, 48
  %v5958 = vpop.permute.xlu0 %5957
  %5959 = vrot.lane.b32.xlu0 %v4391, 48
  %v5960 = vpop.permute.xlu0 %5959
  %5961 = vrot.lane.b32.xlu0 %v4392, 48
  %v5962 = vpop.permute.xlu0 %5961
  %5963 = vrot.lane.b32.xlu0 %v4393, 48
  %v5964 = vpop.permute.xlu0 %5963
  %5965 = vrot.lane.b32.xlu0 %v4394, 48
  %v5966 = vpop.permute.xlu0 %5965
  %5967 = vrot.lane.b32.xlu0 %v4395, 48
  %v5968 = vpop.permute.xlu0 %5967
  %5969 = vrot.lane.b32.xlu0 %v4396, 48
  %v5970 = vpop.permute.xlu0 %5969
  %5971 = vrot.lane.b32.xlu0 %v4397, 48
  %v5972 = vpop.permute.xlu0 %5971
  %5973 = vrot.lane.b32.xlu0 %v4398, 48
  %v5974 = vpop.permute.xlu0 %5973
  %5975 = vrot.lane.b32.xlu0 %v4399, 48
  %v5976 = vpop.permute.xlu0 %5975
  %5977 = vrot.lane.b32.xlu0 %v4400, 48
  %v5978 = vpop.permute.xlu0 %5977
  %5979 = vrot.lane.b32.xlu0 %v4401, 48
  %v5980 = vpop.permute.xlu0 %5979
  %5981 = vrot.lane.b32.xlu0 %v4402, 48
  %v5982 = vpop.permute.xlu0 %5981
  %5983 = vrot.lane.b32.xlu0 %v4403, 48
  %v5984 = vpop.permute.xlu0 %5983
  %5985 = vrot.lane.b32.xlu0 %v4404, 48
  %v5986 = vpop.permute.xlu0 %5985
  %5987 = vrot.lane.b32.xlu0 %v4405, 48
  %v5988 = vpop.permute.xlu0 %5987
  %5989 = vrot.lane.b32.xlu0 %v4406, 48
  %v5990 = vpop.permute.xlu0 %5989
  %5991 = vrot.lane.b32.xlu0 %v4407, 48
  %v5992 = vpop.permute.xlu0 %5991
  %5993 = vrot.lane.b32.xlu0 %v4408, 48
  %v5994 = vpop.permute.xlu0 %5993
  %5995 = vrot.lane.b32.xlu0 %v4409, 48
  %v5996 = vpop.permute.xlu0 %5995
  %5997 = vrot.lane.b32.xlu0 %v4410, 48
  %v5998 = vpop.permute.xlu0 %5997
  %5999 = vrot.lane.b32.xlu0 %v4411, 48
  %v6000 = vpop.permute.xlu0 %5999
  %6001 = vrot.lane.b32.xlu0 %v4412, 48
  %v6002 = vpop.permute.xlu0 %6001
  %6003 = vrot.lane.b32.xlu0 %v4413, 48
  %v6004 = vpop.permute.xlu0 %6003
  %6005 = vrot.lane.b32.xlu0 %v4414, 48
  %v6006 = vpop.permute.xlu0 %6005
  %6007 = vrot.lane.b32.xlu0 %v4415, 48
  %v6008 = vpop.permute.xlu0 %6007
  %6009 = vrot.lane.b32.xlu0 %v4416, 48
  %v6010 = vpop.permute.xlu0 %6009
  %6011 = vrot.lane.b32.xlu0 %v4417, 48
  %v6012 = vpop.permute.xlu0 %6011
  %6013 = vrot.lane.b32.xlu0 %v4418, 48
  %v6014 = vpop.permute.xlu0 %6013
  %6015 = vrot.lane.b32.xlu0 %v4419, 48
  %v6016 = vpop.permute.xlu0 %6015
  %6017 = vrot.lane.b32.xlu0 %v4420, 48
  %v6018 = vpop.permute.xlu0 %6017
  %6019 = vrot.lane.b32.xlu0 %v4421, 48
  %v6020 = vpop.permute.xlu0 %6019
  %6021 = vrot.lane.b32.xlu0 %v4422, 48
  %v6022 = vpop.permute.xlu0 %6021
  %6151 = vrot.lane.b32.xlu0 %v4423, 56
  %v6152 = vpop.permute.xlu0 %6151
  %6153 = vrot.lane.b32.xlu0 %v4424, 56
  %v6154 = vpop.permute.xlu0 %6153
  %6155 = vrot.lane.b32.xlu0 %v4425, 56
  %v6156 = vpop.permute.xlu0 %6155
  %6157 = vrot.lane.b32.xlu0 %v4426, 56
  %v6158 = vpop.permute.xlu0 %6157
  %6159 = vrot.lane.b32.xlu0 %v4427, 56
  %v6160 = vpop.permute.xlu0 %6159
  %6161 = vrot.lane.b32.xlu0 %v4428, 56
  %v6162 = vpop.permute.xlu0 %6161
  %6163 = vrot.lane.b32.xlu0 %v4429, 56
  %v6164 = vpop.permute.xlu0 %6163
  %6165 = vrot.lane.b32.xlu0 %v4430, 56
  %v6166 = vpop.permute.xlu0 %6165
  %6167 = vrot.lane.b32.xlu0 %v4431, 56
  %v6168 = vpop.permute.xlu0 %6167
  %6169 = vrot.lane.b32.xlu0 %v4432, 56
  %v6170 = vpop.permute.xlu0 %6169
  %6171 = vrot.lane.b32.xlu0 %v4433, 56
  %v6172 = vpop.permute.xlu0 %6171
  %6173 = vrot.lane.b32.xlu0 %v4434, 56
  %v6174 = vpop.permute.xlu0 %6173
  %6175 = vrot.lane.b32.xlu0 %v4435, 56
  %v6176 = vpop.permute.xlu0 %6175
  %6177 = vrot.lane.b32.xlu0 %v4436, 56
  %v6178 = vpop.permute.xlu0 %6177
  %6179 = vrot.lane.b32.xlu0 %v4437, 56
  %v6180 = vpop.permute.xlu0 %6179
  %6181 = vrot.lane.b32.xlu0 %v4438, 56
  %v6182 = vpop.permute.xlu0 %6181
  %6183 = vrot.lane.b32.xlu0 %v4439, 56
  %v6184 = vpop.permute.xlu0 %6183
  %6185 = vrot.lane.b32.xlu0 %v4440, 56
  %v6186 = vpop.permute.xlu0 %6185
  %6187 = vrot.lane.b32.xlu0 %v4441, 56
  %v6188 = vpop.permute.xlu0 %6187
  %6189 = vrot.lane.b32.xlu0 %v4442, 56
  %v6190 = vpop.permute.xlu0 %6189
  %6191 = vrot.lane.b32.xlu0 %v4443, 56
  %v6192 = vpop.permute.xlu0 %6191
  %6193 = vrot.lane.b32.xlu0 %v4444, 56
  %v6194 = vpop.permute.xlu0 %6193
  %6195 = vrot.lane.b32.xlu0 %v4445, 56
  %v6196 = vpop.permute.xlu0 %6195
  %6197 = vrot.lane.b32.xlu0 %v4446, 56
  %v6198 = vpop.permute.xlu0 %6197
  %6199 = vrot.lane.b32.xlu0 %v4447, 56
  %v6200 = vpop.permute.xlu0 %6199
  %6201 = vrot.lane.b32.xlu0 %v4448, 56
  %v6202 = vpop.permute.xlu0 %6201
  %6203 = vrot.lane.b32.xlu0 %v4449, 56
  %v6204 = vpop.permute.xlu0 %6203
  %6205 = vrot.lane.b32.xlu0 %v4450, 56
  %v6206 = vpop.permute.xlu0 %6205
  %6207 = vrot.lane.b32.xlu0 %v4451, 56
  %v6208 = vpop.permute.xlu0 %6207
  %6209 = vrot.lane.b32.xlu0 %v4452, 56
  %v6210 = vpop.permute.xlu0 %6209
  %6211 = vrot.lane.b32.xlu0 %v4453, 56
  %v6212 = vpop.permute.xlu0 %6211
  %6213 = vrot.lane.b32.xlu0 %v4454, 56
  %v6214 = vpop.permute.xlu0 %6213
  %6215 = vrot.lane.b32.xlu0 %v4455, 56
  %v6216 = vpop.permute.xlu0 %6215
  %6217 = vrot.lane.b32.xlu0 %v4456, 56
  %v6218 = vpop.permute.xlu0 %6217
  %6219 = vrot.lane.b32.xlu0 %v4457, 56
  %v6220 = vpop.permute.xlu0 %6219
  %6221 = vrot.lane.b32.xlu0 %v4458, 56
  %v6222 = vpop.permute.xlu0 %6221
  %6223 = vrot.lane.b32.xlu0 %v4459, 56
  %v6224 = vpop.permute.xlu0 %6223
  %6225 = vrot.lane.b32.xlu0 %v4460, 56
  %v6226 = vpop.permute.xlu0 %6225
  %6227 = vrot.lane.b32.xlu0 %v4461, 56
  %v6228 = vpop.permute.xlu0 %6227
  %6229 = vrot.lane.b32.xlu0 %v4462, 56
  %v6230 = vpop.permute.xlu0 %6229
  %6231 = vrot.lane.b32.xlu0 %v4463, 56
  %v6232 = vpop.permute.xlu0 %6231
  %6233 = vrot.lane.b32.xlu0 %v4464, 56
  %v6234 = vpop.permute.xlu0 %6233
  %6235 = vrot.lane.b32.xlu0 %v4465, 56
  %v6236 = vpop.permute.xlu0 %6235
  %6237 = vrot.lane.b32.xlu0 %v4466, 56
  %v6238 = vpop.permute.xlu0 %6237
  %6239 = vrot.lane.b32.xlu0 %v4467, 56
  %v6240 = vpop.permute.xlu0 %6239
  %6241 = vrot.lane.b32.xlu0 %v4468, 56
  %v6242 = vpop.permute.xlu0 %6241
  %6243 = vrot.lane.b32.xlu0 %v4469, 56
  %v6244 = vpop.permute.xlu0 %6243
  %6245 = vrot.lane.b32.xlu0 %v4470, 56
  %v6246 = vpop.permute.xlu0 %6245
  %6247 = vrot.lane.b32.xlu0 %v4471, 56
  %v6248 = vpop.permute.xlu0 %6247
  %6249 = vrot.lane.b32.xlu0 %v4472, 56
  %v6250 = vpop.permute.xlu0 %6249
  %6251 = vrot.lane.b32.xlu0 %v4473, 56
  %v6252 = vpop.permute.xlu0 %6251
  %6253 = vrot.lane.b32.xlu0 %v4474, 56
  %v6254 = vpop.permute.xlu0 %6253
  %6255 = vrot.lane.b32.xlu0 %v4475, 56
  %v6256 = vpop.permute.xlu0 %6255
  %6257 = vrot.lane.b32.xlu0 %v4476, 56
  %v6258 = vpop.permute.xlu0 %6257
  %6259 = vrot.lane.b32.xlu0 %v4477, 56
  %v6260 = vpop.permute.xlu0 %6259
  %6261 = vrot.lane.b32.xlu0 %v4478, 56
  %v6262 = vpop.permute.xlu0 %6261
  %6263 = vrot.lane.b32.xlu0 %v4479, 56
  %v6264 = vpop.permute.xlu0 %6263
  %6265 = vrot.lane.b32.xlu0 %v4480, 56
  %v6266 = vpop.permute.xlu0 %6265
  %6267 = vrot.lane.b32.xlu0 %v4481, 56
  %v6268 = vpop.permute.xlu0 %6267
  %6269 = vrot.lane.b32.xlu0 %v4482, 56
  %v6270 = vpop.permute.xlu0 %6269
  %6271 = vrot.lane.b32.xlu0 %v4483, 56
  %v6272 = vpop.permute.xlu0 %6271
  %6273 = vrot.lane.b32.xlu0 %v4484, 56
  %v6274 = vpop.permute.xlu0 %6273
  %6275 = vrot.lane.b32.xlu0 %v4485, 56
  %v6276 = vpop.permute.xlu0 %6275
  %6277 = vrot.lane.b32.xlu0 %v4486, 56
  %v6278 = vpop.permute.xlu0 %6277
  %6407 = vrot.lane.b32.xlu0 %v4487, 64
  %v6408 = vpop.permute.xlu0 %6407
  %6409 = vrot.lane.b32.xlu0 %v4488, 64
  %v6410 = vpop.permute.xlu0 %6409
  %6411 = vrot.lane.b32.xlu0 %v4489, 64
  %v6412 = vpop.permute.xlu0 %6411
  %6413 = vrot.lane.b32.xlu0 %v4490, 64
  %v6414 = vpop.permute.xlu0 %6413
  %6415 = vrot.lane.b32.xlu0 %v4491, 64
  %v6416 = vpop.permute.xlu0 %6415
  %6417 = vrot.lane.b32.xlu0 %v4492, 64
  %v6418 = vpop.permute.xlu0 %6417
  %6419 = vrot.lane.b32.xlu0 %v4493, 64
  %v6420 = vpop.permute.xlu0 %6419
  %6421 = vrot.lane.b32.xlu0 %v4494, 64
  %v6422 = vpop.permute.xlu0 %6421
  %6423 = vrot.lane.b32.xlu0 %v4495, 64
  %v6424 = vpop.permute.xlu0 %6423
  %6425 = vrot.lane.b32.xlu0 %v4496, 64
  %v6426 = vpop.permute.xlu0 %6425
  %6427 = vrot.lane.b32.xlu0 %v4497, 64
  %v6428 = vpop.permute.xlu0 %6427
  %6429 = vrot.lane.b32.xlu0 %v4498, 64
  %v6430 = vpop.permute.xlu0 %6429
  %6431 = vrot.lane.b32.xlu0 %v4499, 64
  %v6432 = vpop.permute.xlu0 %6431
  %6433 = vrot.lane.b32.xlu0 %v4500, 64
  %v6434 = vpop.permute.xlu0 %6433
  %6435 = vrot.lane.b32.xlu0 %v4501, 64
  %v6436 = vpop.permute.xlu0 %6435
  %6437 = vrot.lane.b32.xlu0 %v4502, 64
  %v6438 = vpop.permute.xlu0 %6437
  %6439 = vrot.lane.b32.xlu0 %v4503, 64
  %v6440 = vpop.permute.xlu0 %6439
  %6441 = vrot.lane.b32.xlu0 %v4504, 64
  %v6442 = vpop.permute.xlu0 %6441
  %6443 = vrot.lane.b32.xlu0 %v4505, 64
  %v6444 = vpop.permute.xlu0 %6443
  %6445 = vrot.lane.b32.xlu0 %v4506, 64
  %v6446 = vpop.permute.xlu0 %6445
  %6447 = vrot.lane.b32.xlu0 %v4507, 64
  %v6448 = vpop.permute.xlu0 %6447
  %6449 = vrot.lane.b32.xlu0 %v4508, 64
  %v6450 = vpop.permute.xlu0 %6449
  %6451 = vrot.lane.b32.xlu0 %v4509, 64
  %v6452 = vpop.permute.xlu0 %6451
  %6453 = vrot.lane.b32.xlu0 %v4510, 64
  %v6454 = vpop.permute.xlu0 %6453
  %6455 = vrot.lane.b32.xlu0 %v4511, 64
  %v6456 = vpop.permute.xlu0 %6455
  %6457 = vrot.lane.b32.xlu0 %v4512, 64
  %v6458 = vpop.permute.xlu0 %6457
  %6459 = vrot.lane.b32.xlu0 %v4513, 64
  %v6460 = vpop.permute.xlu0 %6459
  %6461 = vrot.lane.b32.xlu0 %v4514, 64
  %v6462 = vpop.permute.xlu0 %6461
  %6463 = vrot.lane.b32.xlu0 %v4515, 64
  %v6464 = vpop.permute.xlu0 %6463
  %6465 = vrot.lane.b32.xlu0 %v4516, 64
  %v6466 = vpop.permute.xlu0 %6465
  %6467 = vrot.lane.b32.xlu0 %v4517, 64
  %v6468 = vpop.permute.xlu0 %6467
  %6469 = vrot.lane.b32.xlu0 %v4518, 64
  %v6470 = vpop.permute.xlu0 %6469
  %6471 = vrot.lane.b32.xlu0 %v4519, 64
  %v6472 = vpop.permute.xlu0 %6471
  %6473 = vrot.lane.b32.xlu0 %v4520, 64
  %v6474 = vpop.permute.xlu0 %6473
  %6475 = vrot.lane.b32.xlu0 %v4521, 64
  %v6476 = vpop.permute.xlu0 %6475
  %6477 = vrot.lane.b32.xlu0 %v4522, 64
  %v6478 = vpop.permute.xlu0 %6477
  %6479 = vrot.lane.b32.xlu0 %v4523, 64
  %v6480 = vpop.permute.xlu0 %6479
  %6481 = vrot.lane.b32.xlu0 %v4524, 64
  %v6482 = vpop.permute.xlu0 %6481
  %6483 = vrot.lane.b32.xlu0 %v4525, 64
  %v6484 = vpop.permute.xlu0 %6483
  %6485 = vrot.lane.b32.xlu0 %v4526, 64
  %v6486 = vpop.permute.xlu0 %6485
  %6487 = vrot.lane.b32.xlu0 %v4527, 64
  %v6488 = vpop.permute.xlu0 %6487
  %6489 = vrot.lane.b32.xlu0 %v4528, 64
  %v6490 = vpop.permute.xlu0 %6489
  %6491 = vrot.lane.b32.xlu0 %v4529, 64
  %v6492 = vpop.permute.xlu0 %6491
  %6493 = vrot.lane.b32.xlu0 %v4530, 64
  %v6494 = vpop.permute.xlu0 %6493
  %6495 = vrot.lane.b32.xlu0 %v4531, 64
  %v6496 = vpop.permute.xlu0 %6495
  %6497 = vrot.lane.b32.xlu0 %v4532, 64
  %v6498 = vpop.permute.xlu0 %6497
  %6499 = vrot.lane.b32.xlu0 %v4533, 64
  %v6500 = vpop.permute.xlu0 %6499
  %6501 = vrot.lane.b32.xlu0 %v4534, 64
  %v6502 = vpop.permute.xlu0 %6501
  %6503 = vrot.lane.b32.xlu0 %v4535, 64
  %v6504 = vpop.permute.xlu0 %6503
  %6505 = vrot.lane.b32.xlu0 %v4536, 64
  %v6506 = vpop.permute.xlu0 %6505
  %6507 = vrot.lane.b32.xlu0 %v4537, 64
  %v6508 = vpop.permute.xlu0 %6507
  %6509 = vrot.lane.b32.xlu0 %v4538, 64
  %v6510 = vpop.permute.xlu0 %6509
  %6511 = vrot.lane.b32.xlu0 %v4539, 64
  %v6512 = vpop.permute.xlu0 %6511
  %6513 = vrot.lane.b32.xlu0 %v4540, 64
  %v6514 = vpop.permute.xlu0 %6513
  %6515 = vrot.lane.b32.xlu0 %v4541, 64
  %v6516 = vpop.permute.xlu0 %6515
  %6517 = vrot.lane.b32.xlu0 %v4542, 64
  %v6518 = vpop.permute.xlu0 %6517
  %6519 = vrot.lane.b32.xlu0 %v4543, 64
  %v6520 = vpop.permute.xlu0 %6519
  %6521 = vrot.lane.b32.xlu0 %v4544, 64
  %v6522 = vpop.permute.xlu0 %6521
  %6523 = vrot.lane.b32.xlu0 %v4545, 64
  %v6524 = vpop.permute.xlu0 %6523
  %6525 = vrot.lane.b32.xlu0 %v4546, 64
  %v6526 = vpop.permute.xlu0 %6525
  %6527 = vrot.lane.b32.xlu0 %v4547, 64
  %v6528 = vpop.permute.xlu0 %6527
  %6529 = vrot.lane.b32.xlu0 %v4548, 64
  %v6530 = vpop.permute.xlu0 %6529
  %6531 = vrot.lane.b32.xlu0 %v4549, 64
  %v6532 = vpop.permute.xlu0 %6531
  %6533 = vrot.lane.b32.xlu0 %v4550, 64
  %v6534 = vpop.permute.xlu0 %6533
  %v6599 = vsel %vm2717, %v3974, %v4616
  %v6600 = vsel %vm2717, %v3975, %v4618
  %v6601 = vsel %vm2717, %v3976, %v4620
  %v6602 = vsel %vm2717, %v3977, %v4622
  %v6603 = vsel %vm2717, %v3978, %v4624
  %v6604 = vsel %vm2717, %v3979, %v4626
  %v6605 = vsel %vm2717, %v3980, %v4628
  %v6606 = vsel %vm2717, %v3981, %v4630
  %v6607 = vsel %vm2717, %v3982, %v4632
  %v6608 = vsel %vm2717, %v3983, %v4634
  %v6609 = vsel %vm2717, %v3984, %v4636
  %v6610 = vsel %vm2717, %v3985, %v4638
  %v6611 = vsel %vm2717, %v3986, %v4640
  %v6612 = vsel %vm2717, %v3987, %v4642
  %v6613 = vsel %vm2717, %v3988, %v4644
  %v6614 = vsel %vm2717, %v3989, %v4646
  %v6615 = vsel %vm2717, %v3990, %v4648
  %v6616 = vsel %vm2717, %v3991, %v4650
  %v6617 = vsel %vm2717, %v3992, %v4652
  %v6618 = vsel %vm2717, %v3993, %v4654
  %v6619 = vsel %vm2717, %v3994, %v4656
  %v6620 = vsel %vm2717, %v3995, %v4658
  %v6621 = vsel %vm2717, %v3996, %v4660
  %v6622 = vsel %vm2717, %v3997, %v4662
  %v6623 = vsel %vm2717, %v3998, %v4664
  %v6624 = vsel %vm2717, %v3999, %v4666
  %v6625 = vsel %vm2717, %v4000, %v4668
  %v6626 = vsel %vm2717, %v4001, %v4670
  %v6627 = vsel %vm2717, %v4002, %v4672
  %v6628 = vsel %vm2717, %v4003, %v4674
  %v6629 = vsel %vm2717, %v4004, %v4676
  %v6630 = vsel %vm2717, %v4005, %v4678
  %v6631 = vsel %vm2717, %v4006, %v4680
  %v6632 = vsel %vm2717, %v4007, %v4682
  %v6633 = vsel %vm2717, %v4008, %v4684
  %v6634 = vsel %vm2717, %v4009, %v4686
  %v6635 = vsel %vm2717, %v4010, %v4688
  %v6636 = vsel %vm2717, %v4011, %v4690
  %v6637 = vsel %vm2717, %v4012, %v4692
  %v6638 = vsel %vm2717, %v4013, %v4694
  %v6639 = vsel %vm2717, %v4014, %v4696
  %v6640 = vsel %vm2717, %v4015, %v4698
  %v6641 = vsel %vm2717, %v4016, %v4700
  %v6642 = vsel %vm2717, %v4017, %v4702
  %v6643 = vsel %vm2717, %v4018, %v4704
  %v6644 = vsel %vm2717, %v4019, %v4706
  %v6645 = vsel %vm2717, %v4020, %v4708
  %v6646 = vsel %vm2717, %v4021, %v4710
  %v6647 = vsel %vm2717, %v4022, %v4712
  %v6648 = vsel %vm2717, %v4023, %v4714
  %v6649 = vsel %vm2717, %v4024, %v4716
  %v6650 = vsel %vm2717, %v4025, %v4718
  %v6651 = vsel %vm2717, %v4026, %v4720
  %v6652 = vsel %vm2717, %v4027, %v4722
  %v6653 = vsel %vm2717, %v4028, %v4724
  %v6654 = vsel %vm2717, %v4029, %v4726
  %v6655 = vsel %vm2717, %v4030, %v4728
  %v6656 = vsel %vm2717, %v4031, %v4730
  %v6657 = vsel %vm2717, %v4032, %v4732
  %v6658 = vsel %vm2717, %v4033, %v4734
  %v6659 = vsel %vm2717, %v4034, %v4736
  %v6660 = vsel %vm2717, %v4035, %v4738
  %v6661 = vsel %vm2717, %v4036, %v4740
  %v6662 = vsel %vm2717, %v4037, %v4742
  %v6663 = vsel %vm2847, %v6599, %v4872
  %v6664 = vsel %vm2847, %v6600, %v4874
  %v6665 = vsel %vm2847, %v6601, %v4876
  %v6666 = vsel %vm2847, %v6602, %v4878
  %v6667 = vsel %vm2847, %v6603, %v4880
  %v6668 = vsel %vm2847, %v6604, %v4882
  %v6669 = vsel %vm2847, %v6605, %v4884
  %v6670 = vsel %vm2847, %v6606, %v4886
  %v6671 = vsel %vm2847, %v6607, %v4888
  %v6672 = vsel %vm2847, %v6608, %v4890
  %v6673 = vsel %vm2847, %v6609, %v4892
  %v6674 = vsel %vm2847, %v6610, %v4894
  %v6675 = vsel %vm2847, %v6611, %v4896
  %v6676 = vsel %vm2847, %v6612, %v4898
  %v6677 = vsel %vm2847, %v6613, %v4900
  %v6678 = vsel %vm2847, %v6614, %v4902
  %v6679 = vsel %vm2847, %v6615, %v4904
  %v6680 = vsel %vm2847, %v6616, %v4906
  %v6681 = vsel %vm2847, %v6617, %v4908
  %v6682 = vsel %vm2847, %v6618, %v4910
  %v6683 = vsel %vm2847, %v6619, %v4912
  %v6684 = vsel %vm2847, %v6620, %v4914
  %v6685 = vsel %vm2847, %v6621, %v4916
  %v6686 = vsel %vm2847, %v6622, %v4918
  %v6687 = vsel %vm2847, %v6623, %v4920
  %v6688 = vsel %vm2847, %v6624, %v4922
  %v6689 = vsel %vm2847, %v6625, %v4924
  %v6690 = vsel %vm2847, %v6626, %v4926
  %v6691 = vsel %vm2847, %v6627, %v4928
  %v6692 = vsel %vm2847, %v6628, %v4930
  %v6693 = vsel %vm2847, %v6629, %v4932
  %v6694 = vsel %vm2847, %v6630, %v4934
  %v6695 = vsel %vm2847, %v6631, %v4936
  %v6696 = vsel %vm2847, %v6632, %v4938
  %v6697 = vsel %vm2847, %v6633, %v4940
  %v6698 = vsel %vm2847, %v6634, %v4942
  %v6699 = vsel %vm2847, %v6635, %v4944
  %v6700 = vsel %vm2847, %v6636, %v4946
  %v6701 = vsel %vm2847, %v6637, %v4948
  %v6702 = vsel %vm2847, %v6638, %v4950
  %v6703 = vsel %vm2847, %v6639, %v4952
  %v6704 = vsel %vm2847, %v6640, %v4954
  %v6705 = vsel %vm2847, %v6641, %v4956
  %v6706 = vsel %vm2847, %v6642, %v4958
  %v6707 = vsel %vm2847, %v6643, %v4960
  %v6708 = vsel %vm2847, %v6644, %v4962
  %v6709 = vsel %vm2847, %v6645, %v4964
  %v6710 = vsel %vm2847, %v6646, %v4966
  %v6711 = vsel %vm2847, %v6647, %v4968
  %v6712 = vsel %vm2847, %v6648, %v4970
  %v6713 = vsel %vm2847, %v6649, %v4972
  %v6714 = vsel %vm2847, %v6650, %v4974
  %v6715 = vsel %vm2847, %v6651, %v4976
  %v6716 = vsel %vm2847, %v6652, %v4978
  %v6717 = vsel %vm2847, %v6653, %v4980
  %v6718 = vsel %vm2847, %v6654, %v4982
  %v6719 = vsel %vm2847, %v6655, %v4984
  %v6720 = vsel %vm2847, %v6656, %v4986
  %v6721 = vsel %vm2847, %v6657, %v4988
  %v6722 = vsel %vm2847, %v6658, %v4990
  %v6723 = vsel %vm2847, %v6659, %v4992
  %v6724 = vsel %vm2847, %v6660, %v4994
  %v6725 = vsel %vm2847, %v6661, %v4996
  %v6726 = vsel %vm2847, %v6662, %v4998
  %v6727 = vsel %vm2977, %v6663, %v5128
  %v6728 = vsel %vm2977, %v6664, %v5130
  %v6729 = vsel %vm2977, %v6665, %v5132
  %v6730 = vsel %vm2977, %v6666, %v5134
  %v6731 = vsel %vm2977, %v6667, %v5136
  %v6732 = vsel %vm2977, %v6668, %v5138
  %v6733 = vsel %vm2977, %v6669, %v5140
  %v6734 = vsel %vm2977, %v6670, %v5142
  %v6735 = vsel %vm2977, %v6671, %v5144
  %v6736 = vsel %vm2977, %v6672, %v5146
  %v6737 = vsel %vm2977, %v6673, %v5148
  %v6738 = vsel %vm2977, %v6674, %v5150
  %v6739 = vsel %vm2977, %v6675, %v5152
  %v6740 = vsel %vm2977, %v6676, %v5154
  %v6741 = vsel %vm2977, %v6677, %v5156
  %v6742 = vsel %vm2977, %v6678, %v5158
  %v6743 = vsel %vm2977, %v6679, %v5160
  %v6744 = vsel %vm2977, %v6680, %v5162
  %v6745 = vsel %vm2977, %v6681, %v5164
  %v6746 = vsel %vm2977, %v6682, %v5166
  %v6747 = vsel %vm2977, %v6683, %v5168
  %v6748 = vsel %vm2977, %v6684, %v5170
  %v6749 = vsel %vm2977, %v6685, %v5172
  %v6750 = vsel %vm2977, %v6686, %v5174
  %v6751 = vsel %vm2977, %v6687, %v5176
  %v6752 = vsel %vm2977, %v6688, %v5178
  %v6753 = vsel %vm2977, %v6689, %v5180
  %v6754 = vsel %vm2977, %v6690, %v5182
  %v6755 = vsel %vm2977, %v6691, %v5184
  %v6756 = vsel %vm2977, %v6692, %v5186
  %v6757 = vsel %vm2977, %v6693, %v5188
  %v6758 = vsel %vm2977, %v6694, %v5190
  %v6759 = vsel %vm2977, %v6695, %v5192
  %v6760 = vsel %vm2977, %v6696, %v5194
  %v6761 = vsel %vm2977, %v6697, %v5196
  %v6762 = vsel %vm2977, %v6698, %v5198
  %v6763 = vsel %vm2977, %v6699, %v5200
  %v6764 = vsel %vm2977, %v6700, %v5202
  %v6765 = vsel %vm2977, %v6701, %v5204
  %v6766 = vsel %vm2977, %v6702, %v5206
  %v6767 = vsel %vm2977, %v6703, %v5208
  %v6768 = vsel %vm2977, %v6704, %v5210
  %v6769 = vsel %vm2977, %v6705, %v5212
  %v6770 = vsel %vm2977, %v6706, %v5214
  %v6771 = vsel %vm2977, %v6707, %v5216
  %v6772 = vsel %vm2977, %v6708, %v5218
  %v6773 = vsel %vm2977, %v6709, %v5220
  %v6774 = vsel %vm2977, %v6710, %v5222
  %v6775 = vsel %vm2977, %v6711, %v5224
  %v6776 = vsel %vm2977, %v6712, %v5226
  %v6777 = vsel %vm2977, %v6713, %v5228
  %v6778 = vsel %vm2977, %v6714, %v5230
  %v6779 = vsel %vm2977, %v6715, %v5232
  %v6780 = vsel %vm2977, %v6716, %v5234
  %v6781 = vsel %vm2977, %v6717, %v5236
  %v6782 = vsel %vm2977, %v6718, %v5238
  %v6783 = vsel %vm2977, %v6719, %v5240
  %v6784 = vsel %vm2977, %v6720, %v5242
  %v6785 = vsel %vm2977, %v6721, %v5244
  %v6786 = vsel %vm2977, %v6722, %v5246
  %v6787 = vsel %vm2977, %v6723, %v5248
  %v6788 = vsel %vm2977, %v6724, %v5250
  %v6789 = vsel %vm2977, %v6725, %v5252
  %v6790 = vsel %vm2977, %v6726, %v5254
  %v6791 = vsel %vm3107, %v6727, %v5384
  %v6792 = vsel %vm3107, %v6728, %v5386
  %v6793 = vsel %vm3107, %v6729, %v5388
  %v6794 = vsel %vm3107, %v6730, %v5390
  %v6795 = vsel %vm3107, %v6731, %v5392
  %v6796 = vsel %vm3107, %v6732, %v5394
  %v6797 = vsel %vm3107, %v6733, %v5396
  %v6798 = vsel %vm3107, %v6734, %v5398
  %v6799 = vsel %vm3107, %v6735, %v5400
  %v6800 = vsel %vm3107, %v6736, %v5402
  %v6801 = vsel %vm3107, %v6737, %v5404
  %v6802 = vsel %vm3107, %v6738, %v5406
  %v6803 = vsel %vm3107, %v6739, %v5408
  %v6804 = vsel %vm3107, %v6740, %v5410
  %v6805 = vsel %vm3107, %v6741, %v5412
  %v6806 = vsel %vm3107, %v6742, %v5414
  %v6807 = vsel %vm3107, %v6743, %v5416
  %v6808 = vsel %vm3107, %v6744, %v5418
  %v6809 = vsel %vm3107, %v6745, %v5420
  %v6810 = vsel %vm3107, %v6746, %v5422
  %v6811 = vsel %vm3107, %v6747, %v5424
  %v6812 = vsel %vm3107, %v6748, %v5426
  %v6813 = vsel %vm3107, %v6749, %v5428
  %v6814 = vsel %vm3107, %v6750, %v5430
  %v6815 = vsel %vm3107, %v6751, %v5432
  %v6816 = vsel %vm3107, %v6752, %v5434
  %v6817 = vsel %vm3107, %v6753, %v5436
  %v6818 = vsel %vm3107, %v6754, %v5438
  %v6819 = vsel %vm3107, %v6755, %v5440
  %v6820 = vsel %vm3107, %v6756, %v5442
  %v6821 = vsel %vm3107, %v6757, %v5444
  %v6822 = vsel %vm3107, %v6758, %v5446
  %v6823 = vsel %vm3107, %v6759, %v5448
  %v6824 = vsel %vm3107, %v6760, %v5450
  %v6825 = vsel %vm3107, %v6761, %v5452
  %v6826 = vsel %vm3107, %v6762, %v5454
  %v6827 = vsel %vm3107, %v6763, %v5456
  %v6828 = vsel %vm3107, %v6764, %v5458
  %v6829 = vsel %vm3107, %v6765, %v5460
  %v6830 = vsel %vm3107, %v6766, %v5462
  %v6831 = vsel %vm3107, %v6767, %v5464
  %v6832 = vsel %vm3107, %v6768, %v5466
  %v6833 = vsel %vm3107, %v6769, %v5468
  %v6834 = vsel %vm3107, %v6770, %v5470
  %v6835 = vsel %vm3107, %v6771, %v5472
  %v6836 = vsel %vm3107, %v6772, %v5474
  %v6837 = vsel %vm3107, %v6773, %v5476
  %v6838 = vsel %vm3107, %v6774, %v5478
  %v6839 = vsel %vm3107, %v6775, %v5480
  %v6840 = vsel %vm3107, %v6776, %v5482
  %v6841 = vsel %vm3107, %v6777, %v5484
  %v6842 = vsel %vm3107, %v6778, %v5486
  %v6843 = vsel %vm3107, %v6779, %v5488
  %v6844 = vsel %vm3107, %v6780, %v5490
  %v6845 = vsel %vm3107, %v6781, %v5492
  %v6846 = vsel %vm3107, %v6782, %v5494
  %v6847 = vsel %vm3107, %v6783, %v5496
  %v6848 = vsel %vm3107, %v6784, %v5498
  %v6849 = vsel %vm3107, %v6785, %v5500
  %v6850 = vsel %vm3107, %v6786, %v5502
  %v6851 = vsel %vm3107, %v6787, %v5504
  %v6852 = vsel %vm3107, %v6788, %v5506
  %v6853 = vsel %vm3107, %v6789, %v5508
  %v6854 = vsel %vm3107, %v6790, %v5510
  %vm6855 = vcmask 326656
  %v6856 = vsel %vm6855, %v6791, %v5640
  %v6857 = vsel %vm6855, %v6792, %v5642
  %v6858 = vsel %vm6855, %v6793, %v5644
  %v6859 = vsel %vm6855, %v6794, %v5646
  %v6860 = vsel %vm6855, %v6795, %v5648
  %v6861 = vsel %vm6855, %v6796, %v5650
  %v6862 = vsel %vm6855, %v6797, %v5652
  %v6863 = vsel %vm6855, %v6798, %v5654
  %v6864 = vsel %vm6855, %v6799, %v5656
  %v6865 = vsel %vm6855, %v6800, %v5658
  %v6866 = vsel %vm6855, %v6801, %v5660
  %v6867 = vsel %vm6855, %v6802, %v5662
  %v6868 = vsel %vm6855, %v6803, %v5664
  %v6869 = vsel %vm6855, %v6804, %v5666
  %v6870 = vsel %vm6855, %v6805, %v5668
  %v6871 = vsel %vm6855, %v6806, %v5670
  %v6872 = vsel %vm6855, %v6807, %v5672
  %v6873 = vsel %vm6855, %v6808, %v5674
  %v6874 = vsel %vm6855, %v6809, %v5676
  %v6875 = vsel %vm6855, %v6810, %v5678
  %v6876 = vsel %vm6855, %v6811, %v5680
  %v6877 = vsel %vm6855, %v6812, %v5682
  %v6878 = vsel %vm6855, %v6813, %v5684
  %v6879 = vsel %vm6855, %v6814, %v5686
  %v6880 = vsel %vm6855, %v6815, %v5688
  %v6881 = vsel %vm6855, %v6816, %v5690
  %v6882 = vsel %vm6855, %v6817, %v5692
  %v6883 = vsel %vm6855, %v6818, %v5694
  %v6884 = vsel %vm6855, %v6819, %v5696
  %v6885 = vsel %vm6855, %v6820, %v5698
  %v6886 = vsel %vm6855, %v6821, %v5700
  %v6887 = vsel %vm6855, %v6822, %v5702
  %v6888 = vsel %vm6855, %v6823, %v5704
  %v6889 = vsel %vm6855, %v6824, %v5706
  %v6890 = vsel %vm6855, %v6825, %v5708
  %v6891 = vsel %vm6855, %v6826, %v5710
  %v6892 = vsel %vm6855, %v6827, %v5712
  %v6893 = vsel %vm6855, %v6828, %v5714
  %v6894 = vsel %vm6855, %v6829, %v5716
  %v6895 = vsel %vm6855, %v6830, %v5718
  %v6896 = vsel %vm6855, %v6831, %v5720
  %v6897 = vsel %vm6855, %v6832, %v5722
  %v6898 = vsel %vm6855, %v6833, %v5724
  %v6899 = vsel %vm6855, %v6834, %v5726
  %v6900 = vsel %vm6855, %v6835, %v5728
  %v6901 = vsel %vm6855, %v6836, %v5730
  %v6902 = vsel %vm6855, %v6837, %v5732
  %v6903 = vsel %vm6855, %v6838, %v5734
  %v6904 = vsel %vm6855, %v6839, %v5736
  %v6905 = vsel %vm6855, %v6840, %v5738
  %v6906 = vsel %vm6855, %v6841, %v5740
  %v6907 = vsel %vm6855, %v6842, %v5742
  %v6908 = vsel %vm6855, %v6843, %v5744
  %v6909 = vsel %vm6855, %v6844, %v5746
  %v6910 = vsel %vm6855, %v6845, %v5748
  %v6911 = vsel %vm6855, %v6846, %v5750
  %v6912 = vsel %vm6855, %v6847, %v5752
  %v6913 = vsel %vm6855, %v6848, %v5754
  %v6914 = vsel %vm6855, %v6849, %v5756
  %v6915 = vsel %vm6855, %v6850, %v5758
  %v6916 = vsel %vm6855, %v6851, %v5760
  %v6917 = vsel %vm6855, %v6852, %v5762
  %v6918 = vsel %vm6855, %v6853, %v5764
  %v6919 = vsel %vm6855, %v6854, %v5766
  %vm6920 = vcmask 392192
  %v6921 = vsel %vm6920, %v6856, %v5896
  %v6922 = vsel %vm6920, %v6857, %v5898
  %v6923 = vsel %vm6920, %v6858, %v5900
  %v6924 = vsel %vm6920, %v6859, %v5902
  %v6925 = vsel %vm6920, %v6860, %v5904
  %v6926 = vsel %vm6920, %v6861, %v5906
  %v6927 = vsel %vm6920, %v6862, %v5908
  %v6928 = vsel %vm6920, %v6863, %v5910
  %v6929 = vsel %vm6920, %v6864, %v5912
  %v6930 = vsel %vm6920, %v6865, %v5914
  %v6931 = vsel %vm6920, %v6866, %v5916
  %v6932 = vsel %vm6920, %v6867, %v5918
  %v6933 = vsel %vm6920, %v6868, %v5920
  %v6934 = vsel %vm6920, %v6869, %v5922
  %v6935 = vsel %vm6920, %v6870, %v5924
  %v6936 = vsel %vm6920, %v6871, %v5926
  %v6937 = vsel %vm6920, %v6872, %v5928
  %v6938 = vsel %vm6920, %v6873, %v5930
  %v6939 = vsel %vm6920, %v6874, %v5932
  %v6940 = vsel %vm6920, %v6875, %v5934
  %v6941 = vsel %vm6920, %v6876, %v5936
  %v6942 = vsel %vm6920, %v6877, %v5938
  %v6943 = vsel %vm6920, %v6878, %v5940
  %v6944 = vsel %vm6920, %v6879, %v5942
  %v6945 = vsel %vm6920, %v6880, %v5944
  %v6946 = vsel %vm6920, %v6881, %v5946
  %v6947 = vsel %vm6920, %v6882, %v5948
  %v6948 = vsel %vm6920, %v6883, %v5950
  %v6949 = vsel %vm6920, %v6884, %v5952
  %v6950 = vsel %vm6920, %v6885, %v5954
  %v6951 = vsel %vm6920, %v6886, %v5956
  %v6952 = vsel %vm6920, %v6887, %v5958
  %v6953 = vsel %vm6920, %v6888, %v5960
  %v6954 = vsel %vm6920, %v6889, %v5962
  %v6955 = vsel %vm6920, %v6890, %v5964
  %v6956 = vsel %vm6920, %v6891, %v5966
  %v6957 = vsel %vm6920, %v6892, %v5968
  %v6958 = vsel %vm6920, %v6893, %v5970
  %v6959 = vsel %vm6920, %v6894, %v5972
  %v6960 = vsel %vm6920, %v6895, %v5974
  %v6961 = vsel %vm6920, %v6896, %v5976
  %v6962 = vsel %vm6920, %v6897, %v5978
  %v6963 = vsel %vm6920, %v6898, %v5980
  %v6964 = vsel %vm6920, %v6899, %v5982
  %v6965 = vsel %vm6920, %v6900, %v5984
  %v6966 = vsel %vm6920, %v6901, %v5986
  %v6967 = vsel %vm6920, %v6902, %v5988
  %v6968 = vsel %vm6920, %v6903, %v5990
  %v6969 = vsel %vm6920, %v6904, %v5992
  %v6970 = vsel %vm6920, %v6905, %v5994
  %v6971 = vsel %vm6920, %v6906, %v5996
  %v6972 = vsel %vm6920, %v6907, %v5998
  %v6973 = vsel %vm6920, %v6908, %v6000
  %v6974 = vsel %vm6920, %v6909, %v6002
  %v6975 = vsel %vm6920, %v6910, %v6004
  %v6976 = vsel %vm6920, %v6911, %v6006
  %v6977 = vsel %vm6920, %v6912, %v6008
  %v6978 = vsel %vm6920, %v6913, %v6010
  %v6979 = vsel %vm6920, %v6914, %v6012
  %v6980 = vsel %vm6920, %v6915, %v6014
  %v6981 = vsel %vm6920, %v6916, %v6016
  %v6982 = vsel %vm6920, %v6917, %v6018
  %v6983 = vsel %vm6920, %v6918, %v6020
  %v6984 = vsel %vm6920, %v6919, %v6022
  %vm6985 = vcmask 457728
  %v6986 = vsel %vm6985, %v6921, %v6152
  %v6987 = vsel %vm6985, %v6922, %v6154
  %v6988 = vsel %vm6985, %v6923, %v6156
  %v6989 = vsel %vm6985, %v6924, %v6158
  %v6990 = vsel %vm6985, %v6925, %v6160
  %v6991 = vsel %vm6985, %v6926, %v6162
  %v6992 = vsel %vm6985, %v6927, %v6164
  %v6993 = vsel %vm6985, %v6928, %v6166
  %v6994 = vsel %vm6985, %v6929, %v6168
  %v6995 = vsel %vm6985, %v6930, %v6170
  %v6996 = vsel %vm6985, %v6931, %v6172
  %v6997 = vsel %vm6985, %v6932, %v6174
  %v6998 = vsel %vm6985, %v6933, %v6176
  %v6999 = vsel %vm6985, %v6934, %v6178
  %v7000 = vsel %vm6985, %v6935, %v6180
  %v7001 = vsel %vm6985, %v6936, %v6182
  %v7002 = vsel %vm6985, %v6937, %v6184
  %v7003 = vsel %vm6985, %v6938, %v6186
  %v7004 = vsel %vm6985, %v6939, %v6188
  %v7005 = vsel %vm6985, %v6940, %v6190
  %v7006 = vsel %vm6985, %v6941, %v6192
  %v7007 = vsel %vm6985, %v6942, %v6194
  %v7008 = vsel %vm6985, %v6943, %v6196
  %v7009 = vsel %vm6985, %v6944, %v6198
  %v7010 = vsel %vm6985, %v6945, %v6200
  %v7011 = vsel %vm6985, %v6946, %v6202
  %v7012 = vsel %vm6985, %v6947, %v6204
  %v7013 = vsel %vm6985, %v6948, %v6206
  %v7014 = vsel %vm6985, %v6949, %v6208
  %v7015 = vsel %vm6985, %v6950, %v6210
  %v7016 = vsel %vm6985, %v6951, %v6212
  %v7017 = vsel %vm6985, %v6952, %v6214
  %v7018 = vsel %vm6985, %v6953, %v6216
  %v7019 = vsel %vm6985, %v6954, %v6218
  %v7020 = vsel %vm6985, %v6955, %v6220
  %v7021 = vsel %vm6985, %v6956, %v6222
  %v7022 = vsel %vm6985, %v6957, %v6224
  %v7023 = vsel %vm6985, %v6958, %v6226
  %v7024 = vsel %vm6985, %v6959, %v6228
  %v7025 = vsel %vm6985, %v6960, %v6230
  %v7026 = vsel %vm6985, %v6961, %v6232
  %v7027 = vsel %vm6985, %v6962, %v6234
  %v7028 = vsel %vm6985, %v6963, %v6236
  %v7029 = vsel %vm6985, %v6964, %v6238
  %v7030 = vsel %vm6985, %v6965, %v6240
  %v7031 = vsel %vm6985, %v6966, %v6242
  %v7032 = vsel %vm6985, %v6967, %v6244
  %v7033 = vsel %vm6985, %v6968, %v6246
  %v7034 = vsel %vm6985, %v6969, %v6248
  %v7035 = vsel %vm6985, %v6970, %v6250
  %v7036 = vsel %vm6985, %v6971, %v6252
  %v7037 = vsel %vm6985, %v6972, %v6254
  %v7038 = vsel %vm6985, %v6973, %v6256
  %v7039 = vsel %vm6985, %v6974, %v6258
  %v7040 = vsel %vm6985, %v6975, %v6260
  %v7041 = vsel %vm6985, %v6976, %v6262
  %v7042 = vsel %vm6985, %v6977, %v6264
  %v7043 = vsel %vm6985, %v6978, %v6266
  %v7044 = vsel %vm6985, %v6979, %v6268
  %v7045 = vsel %vm6985, %v6980, %v6270
  %v7046 = vsel %vm6985, %v6981, %v6272
  %v7047 = vsel %vm6985, %v6982, %v6274
  %v7048 = vsel %vm6985, %v6983, %v6276
  %v7049 = vsel %vm6985, %v6984, %v6278
  %vm7050 = vcmask 523264
  %v7051 = vsel %vm7050, %v6986, %v6408
  %v7052 = vsel %vm7050, %v6987, %v6410
  %v7053 = vsel %vm7050, %v6988, %v6412
  %v7054 = vsel %vm7050, %v6989, %v6414
  %v7055 = vsel %vm7050, %v6990, %v6416
  %v7056 = vsel %vm7050, %v6991, %v6418
  %v7057 = vsel %vm7050, %v6992, %v6420
  %v7058 = vsel %vm7050, %v6993, %v6422
  %v7059 = vsel %vm7050, %v6994, %v6424
  %v7060 = vsel %vm7050, %v6995, %v6426
  %v7061 = vsel %vm7050, %v6996, %v6428
  %v7062 = vsel %vm7050, %v6997, %v6430
  %v7063 = vsel %vm7050, %v6998, %v6432
  %v7064 = vsel %vm7050, %v6999, %v6434
  %v7065 = vsel %vm7050, %v7000, %v6436
  %v7066 = vsel %vm7050, %v7001, %v6438
  %v7067 = vsel %vm7050, %v7002, %v6440
  %v7068 = vsel %vm7050, %v7003, %v6442
  %v7069 = vsel %vm7050, %v7004, %v6444
  %v7070 = vsel %vm7050, %v7005, %v6446
  %v7071 = vsel %vm7050, %v7006, %v6448
  %v7072 = vsel %vm7050, %v7007, %v6450
  %v7073 = vsel %vm7050, %v7008, %v6452
  %v7074 = vsel %vm7050, %v7009, %v6454
  %v7075 = vsel %vm7050, %v7010, %v6456
  %v7076 = vsel %vm7050, %v7011, %v6458
  %v7077 = vsel %vm7050, %v7012, %v6460
  %v7078 = vsel %vm7050, %v7013, %v6462
  %v7079 = vsel %vm7050, %v7014, %v6464
  %v7080 = vsel %vm7050, %v7015, %v6466
  %v7081 = vsel %vm7050, %v7016, %v6468
  %v7082 = vsel %vm7050, %v7017, %v6470
  %v7083 = vsel %vm7050, %v7018, %v6472
  %v7084 = vsel %vm7050, %v7019, %v6474
  %v7085 = vsel %vm7050, %v7020, %v6476
  %v7086 = vsel %vm7050, %v7021, %v6478
  %v7087 = vsel %vm7050, %v7022, %v6480
  %v7088 = vsel %vm7050, %v7023, %v6482
  %v7089 = vsel %vm7050, %v7024, %v6484
  %v7090 = vsel %vm7050, %v7025, %v6486
  %v7091 = vsel %vm7050, %v7026, %v6488
  %v7092 = vsel %vm7050, %v7027, %v6490
  %v7093 = vsel %vm7050, %v7028, %v6492
  %v7094 = vsel %vm7050, %v7029, %v6494
  %v7095 = vsel %vm7050, %v7030, %v6496
  %v7096 = vsel %vm7050, %v7031, %v6498
  %v7097 = vsel %vm7050, %v7032, %v6500
  %v7098 = vsel %vm7050, %v7033, %v6502
  %v7099 = vsel %vm7050, %v7034, %v6504
  %v7100 = vsel %vm7050, %v7035, %v6506
  %v7101 = vsel %vm7050, %v7036, %v6508
  %v7102 = vsel %vm7050, %v7037, %v6510
  %v7103 = vsel %vm7050, %v7038, %v6512
  %v7104 = vsel %vm7050, %v7039, %v6514
  %v7105 = vsel %vm7050, %v7040, %v6516
  %v7106 = vsel %vm7050, %v7041, %v6518
  %v7107 = vsel %vm7050, %v7042, %v6520
  %v7108 = vsel %vm7050, %v7043, %v6522
  %v7109 = vsel %vm7050, %v7044, %v6524
  %v7110 = vsel %vm7050, %v7045, %v6526
  %v7111 = vsel %vm7050, %v7046, %v6528
  %v7112 = vsel %vm7050, %v7047, %v6530
  %v7113 = vsel %vm7050, %v7048, %v6532
  %v7114 = vsel %vm7050, %v7049, %v6534
  %v7115 = vld [vmem:[%s3] sm:$0xff]
  %v7116 = vld [vmem:[%s3 + $0x8] sm:$0xff]
  %v7117 = vld [vmem:[%s3 + $0x10] sm:$0xff]
  %v7118 = vld [vmem:[%s3 + $0x18] sm:$0xff]
  %v7119 = vld [vmem:[%s3 + $0x20] sm:$0xff]
  %v7120 = vld [vmem:[%s3 + $0x28] sm:$0xff]
  %v7121 = vld [vmem:[%s3 + $0x30] sm:$0xff]
  %v7122 = vld [vmem:[%s3 + $0x38] sm:$0xff]
  %v7123 = vld [vmem:[%s3 + $0x40] sm:$0xff]
  %v7124 = vld [vmem:[%s4] sm:$0x1]
  %v7126 = vlaneseq
  %v7127 = vshrl.u32 %v7126, 7
  %v7128 = vsub.s32 0, %v7127
  %v7129 = vrot.slane %v7124, %v7128
  %vm7131 = vcmask 588800
  %v7133 = vsel %vm7131, %v7051, 0
  %v7136 = vsel %vm7131, %v7052, 0
  %v7139 = vsel %vm7131, %v7053, 0
  %v7142 = vsel %vm7131, %v7054, 0
  %v7145 = vsel %vm7131, %v7055, 0
  %v7148 = vsel %vm7131, %v7056, 0
  %v7151 = vsel %vm7131, %v7057, 0
  %v7154 = vsel %vm7131, %v7058, 0
  %v7157 = vsel %vm7131, %v7059, 0
  %v7160 = vsel %vm7131, %v7060, 0
  %v7163 = vsel %vm7131, %v7061, 0
  %v7166 = vsel %vm7131, %v7062, 0
  %v7169 = vsel %vm7131, %v7063, 0
  %v7172 = vsel %vm7131, %v7064, 0
  %v7175 = vsel %vm7131, %v7065, 0
  %v7178 = vsel %vm7131, %v7066, 0
  %v7181 = vsel %vm7131, %v7067, 0
  %v7184 = vsel %vm7131, %v7068, 0
  %v7187 = vsel %vm7131, %v7069, 0
  %v7190 = vsel %vm7131, %v7070, 0
  %v7193 = vsel %vm7131, %v7071, 0
  %v7196 = vsel %vm7131, %v7072, 0
  %v7199 = vsel %vm7131, %v7073, 0
  %v7202 = vsel %vm7131, %v7074, 0
  %v7205 = vsel %vm7131, %v7075, 0
  %v7208 = vsel %vm7131, %v7076, 0
  %v7211 = vsel %vm7131, %v7077, 0
  %v7214 = vsel %vm7131, %v7078, 0
  %v7217 = vsel %vm7131, %v7079, 0
  %v7220 = vsel %vm7131, %v7080, 0
  %v7223 = vsel %vm7131, %v7081, 0
  %v7226 = vsel %vm7131, %v7082, 0
  %v7229 = vsel %vm7131, %v7083, 0
  %v7232 = vsel %vm7131, %v7084, 0
  %v7235 = vsel %vm7131, %v7085, 0
  %v7238 = vsel %vm7131, %v7086, 0
  %v7241 = vsel %vm7131, %v7087, 0
  %v7244 = vsel %vm7131, %v7088, 0
  %v7247 = vsel %vm7131, %v7089, 0
  %v7250 = vsel %vm7131, %v7090, 0
  %v7253 = vsel %vm7131, %v7091, 0
  %v7256 = vsel %vm7131, %v7092, 0
  %v7259 = vsel %vm7131, %v7093, 0
  %v7262 = vsel %vm7131, %v7094, 0
  %v7265 = vsel %vm7131, %v7095, 0
  %v7268 = vsel %vm7131, %v7096, 0
  %v7271 = vsel %vm7131, %v7097, 0
  %v7274 = vsel %vm7131, %v7098, 0
  %v7277 = vsel %vm7131, %v7099, 0
  %v7280 = vsel %vm7131, %v7100, 0
  %v7283 = vsel %vm7131, %v7101, 0
  %v7286 = vsel %vm7131, %v7102, 0
  %v7289 = vsel %vm7131, %v7103, 0
  %v7292 = vsel %vm7131, %v7104, 0
  %v7295 = vsel %vm7131, %v7105, 0
  %v7298 = vsel %vm7131, %v7106, 0
  %v7301 = vsel %vm7131, %v7107, 0
  %v7304 = vsel %vm7131, %v7108, 0
  %v7307 = vsel %vm7131, %v7109, 0
  %v7310 = vsel %vm7131, %v7110, 0
  %v7313 = vsel %vm7131, %v7111, 0
  %v7316 = vsel %vm7131, %v7112, 0
  %v7319 = vsel %vm7131, %v7113, 0
  %v7322 = vsel %vm7131, %v7114, 0
  %7324 = vmatprep.subr.mxu0 0.0
  %7325 = vmatpush1.msra.mxu0 0.0
  %7326 = vmatprep.subr.mxu0 0.0
  %7327 = vmatpush1.msra.mxu0 0.0
  %7328 = vmatprep.subr.mxu0 0.0
  %7329 = vmatpush1.msra.mxu0 0.0
  %7330 = vmatprep.subr.mxu0 0.0
  %7331 = vmatpush1.msra.mxu0 0.0
  %7332 = vmatprep.subr.mxu0 0.0
  %7333 = vmatpush1.msra.mxu0 0.0
  %7334 = vmatprep.subr.mxu0 0.0
  %7335 = vmatpush1.msra.mxu0 0.0
  %7336 = vmatprep.subr.mxu0 0.0
  %7337 = vmatpush1.msra.mxu0 0.0
  %7338 = vmatprep.subr.mxu0 0.0
  %7339 = vmatpush1.msra.mxu0 %v7123
  %7340 = vmatprep.subr.mxu0 0.0
  %7341 = vmatpush1.msra.mxu0 %v7122
  %7342 = vmatprep.subr.mxu0 0.0
  %7343 = vmatpush1.msra.mxu0 %v7121
  %7344 = vmatprep.subr.mxu0 0.0
  %7345 = vmatpush1.msra.mxu0 %v7120
  %7346 = vmatprep.subr.mxu0 0.0
  %7347 = vmatpush1.msra.mxu0 %v7119
  %7348 = vmatprep.subr.mxu0 0.0
  %7349 = vmatpush1.msra.mxu0 %v7118
  %7350 = vmatprep.subr.mxu0 0.0
  %7351 = vmatpush1.msra.mxu0 %v7117
  %7352 = vmatprep.subr.mxu0 0.0
  %7353 = vmatpush1.msra.mxu0 %v7116
  %7354 = vmatprep.subr.mxu0 0.0
  %7355 = vmatpush1.msra.mxu0 %v7115
  %7356 = vmatprep.subr.mxu0 0.0
  %7357 = vmatpush2.msra.mxu0 0.0
  %7358 = vmatprep.subr.mxu0 0.0
  %7359 = vmatpush2.msra.mxu0 0.0
  %7360 = vmatprep.subr.mxu0 0.0
  %7361 = vmatpush2.msra.mxu0 0.0
  %7362 = vmatprep.subr.mxu0 0.0
  %7363 = vmatpush2.msra.mxu0 0.0
  %7364 = vmatprep.subr.mxu0 0.0
  %7365 = vmatpush2.msra.mxu0 0.0
  %7366 = vmatprep.subr.mxu0 0.0
  %7367 = vmatpush2.msra.mxu0 0.0
  %7368 = vmatprep.subr.mxu0 0.0
  %7369 = vmatpush2.msra.mxu0 0.0
  %7370 = vmatprep.subr.mxu0 0.0
  %7371 = vmatpush2.msra.mxu0 0.0
  %7372 = vmatprep.subr.mxu0 0.0
  %7373 = vmatpush2.msra.mxu0 0.0
  %7374 = vmatprep.subr.mxu0 0.0
  %7375 = vmatpush2.msra.mxu0 0.0
  %7376 = vmatprep.subr.mxu0 0.0
  %7377 = vmatpush2.msra.mxu0 0.0
  %7378 = vmatprep.subr.mxu0 0.0
  %7379 = vmatpush2.msra.mxu0 0.0
  %7380 = vmatprep.subr.mxu0 0.0
  %7381 = vmatpush2.msra.mxu0 0.0
  %7382 = vmatprep.subr.mxu0 0.0
  %7383 = vmatpush2.msra.mxu0 0.0
  %7384 = vmatprep.subr.mxu0 0.0
  %7385 = vmatpush2.msra.mxu0 0.0
  %7386 = vmatprep.subr.mxu0 0.0
  %7387 = vmatpush2.msra.mxu0 0.0
  %7388 = vmatprep.mubr.f32.mxu0 0.0
  %7389 = vmatmul.mubr.f32.gmra.mxu0 %v7133
  %v7390 = vpop.f32.mrf.mxu0
  %v7391 = vadd.f32 %v7129, %v7390
  %v7392 = vpop.f32.mrf.mxu0
  %7393 = vmatprep.mubr.f32.mxu0 0.0
  %7394 = vmatmul.mubr.f32.gmra.mxu0 %v7136
  %v7395 = vpop.f32.mrf.mxu0
  %v7396 = vadd.f32 %v7129, %v7395
  %v7397 = vpop.f32.mrf.mxu0
  %7398 = vmatprep.mubr.f32.mxu0 0.0
  %7399 = vmatmul.mubr.f32.gmra.mxu0 %v7139
  %v7400 = vpop.f32.mrf.mxu0
  %v7401 = vadd.f32 %v7129, %v7400
  %v7402 = vpop.f32.mrf.mxu0
  %7403 = vmatprep.mubr.f32.mxu0 0.0
  %7404 = vmatmul.mubr.f32.gmra.mxu0 %v7142
  %v7405 = vpop.f32.mrf.mxu0
  %v7406 = vadd.f32 %v7129, %v7405
  %v7407 = vpop.f32.mrf.mxu0
  %7408 = vmatprep.mubr.f32.mxu0 0.0
  %7409 = vmatmul.mubr.f32.gmra.mxu0 %v7145
  %v7410 = vpop.f32.mrf.mxu0
  %v7411 = vadd.f32 %v7129, %v7410
  %v7412 = vpop.f32.mrf.mxu0
  %7413 = vmatprep.mubr.f32.mxu0 0.0
  %7414 = vmatmul.mubr.f32.gmra.mxu0 %v7148
  %v7415 = vpop.f32.mrf.mxu0
  %v7416 = vadd.f32 %v7129, %v7415
  %v7417 = vpop.f32.mrf.mxu0
  %7418 = vmatprep.mubr.f32.mxu0 0.0
  %7419 = vmatmul.mubr.f32.gmra.mxu0 %v7151
  %v7420 = vpop.f32.mrf.mxu0
  %v7421 = vadd.f32 %v7129, %v7420
  %v7422 = vpop.f32.mrf.mxu0
  %7423 = vmatprep.mubr.f32.mxu0 0.0
  %7424 = vmatmul.mubr.f32.gmra.mxu0 %v7154
  %v7425 = vpop.f32.mrf.mxu0
  %v7426 = vadd.f32 %v7129, %v7425
  %v7427 = vpop.f32.mrf.mxu0
  %7428 = vmatprep.mubr.f32.mxu0 0.0
  %7429 = vmatmul.mubr.f32.gmra.mxu0 %v7157
  %v7430 = vpop.f32.mrf.mxu0
  %v7431 = vadd.f32 %v7129, %v7430
  %v7432 = vpop.f32.mrf.mxu0
  %7433 = vmatprep.mubr.f32.mxu0 0.0
  %7434 = vmatmul.mubr.f32.gmra.mxu0 %v7160
  %v7435 = vpop.f32.mrf.mxu0
  %v7436 = vadd.f32 %v7129, %v7435
  %v7437 = vpop.f32.mrf.mxu0
  %7438 = vmatprep.mubr.f32.mxu0 0.0
  %7439 = vmatmul.mubr.f32.gmra.mxu0 %v7163
  %v7440 = vpop.f32.mrf.mxu0
  %v7441 = vadd.f32 %v7129, %v7440
  %v7442 = vpop.f32.mrf.mxu0
  %7443 = vmatprep.mubr.f32.mxu0 0.0
  %7444 = vmatmul.mubr.f32.gmra.mxu0 %v7166
  %v7445 = vpop.f32.mrf.mxu0
  %v7446 = vadd.f32 %v7129, %v7445
  %v7447 = vpop.f32.mrf.mxu0
  %7448 = vmatprep.mubr.f32.mxu0 0.0
  %7449 = vmatmul.mubr.f32.gmra.mxu0 %v7169
  %v7450 = vpop.f32.mrf.mxu0
  %v7451 = vadd.f32 %v7129, %v7450
  %v7452 = vpop.f32.mrf.mxu0
  %7453 = vmatprep.mubr.f32.mxu0 0.0
  %7454 = vmatmul.mubr.f32.gmra.mxu0 %v7172
  %v7455 = vpop.f32.mrf.mxu0
  %v7456 = vadd.f32 %v7129, %v7455
  %v7457 = vpop.f32.mrf.mxu0
  %7458 = vmatprep.mubr.f32.mxu0 0.0
  %7459 = vmatmul.mubr.f32.gmra.mxu0 %v7175
  %v7460 = vpop.f32.mrf.mxu0
  %v7461 = vadd.f32 %v7129, %v7460
  %v7462 = vpop.f32.mrf.mxu0
  %7463 = vmatprep.mubr.f32.mxu0 0.0
  %7464 = vmatmul.mubr.f32.gmra.mxu0 %v7178
  %v7465 = vpop.f32.mrf.mxu0
  %v7466 = vadd.f32 %v7129, %v7465
  %v7467 = vpop.f32.mrf.mxu0
  %7468 = vmatprep.mubr.f32.mxu0 0.0
  %7469 = vmatmul.mubr.f32.gmra.mxu0 %v7181
  %v7470 = vpop.f32.mrf.mxu0
  %v7471 = vadd.f32 %v7129, %v7470
  %v7472 = vpop.f32.mrf.mxu0
  %7473 = vmatprep.mubr.f32.mxu0 0.0
  %7474 = vmatmul.mubr.f32.gmra.mxu0 %v7184
  %v7475 = vpop.f32.mrf.mxu0
  %v7476 = vadd.f32 %v7129, %v7475
  %v7477 = vpop.f32.mrf.mxu0
  %7478 = vmatprep.mubr.f32.mxu0 0.0
  %7479 = vmatmul.mubr.f32.gmra.mxu0 %v7187
  %v7480 = vpop.f32.mrf.mxu0
  %v7481 = vadd.f32 %v7129, %v7480
  %v7482 = vpop.f32.mrf.mxu0
  %7483 = vmatprep.mubr.f32.mxu0 0.0
  %7484 = vmatmul.mubr.f32.gmra.mxu0 %v7190
  %v7485 = vpop.f32.mrf.mxu0
  %v7486 = vadd.f32 %v7129, %v7485
  %v7487 = vpop.f32.mrf.mxu0
  %7488 = vmatprep.mubr.f32.mxu0 0.0
  %7489 = vmatmul.mubr.f32.gmra.mxu0 %v7193
  %v7490 = vpop.f32.mrf.mxu0
  %v7491 = vadd.f32 %v7129, %v7490
  %v7492 = vpop.f32.mrf.mxu0
  %7493 = vmatprep.mubr.f32.mxu0 0.0
  %7494 = vmatmul.mubr.f32.gmra.mxu0 %v7196
  %v7495 = vpop.f32.mrf.mxu0
  %v7496 = vadd.f32 %v7129, %v7495
  %v7497 = vpop.f32.mrf.mxu0
  %7498 = vmatprep.mubr.f32.mxu0 0.0
  %7499 = vmatmul.mubr.f32.gmra.mxu0 %v7199
  %v7500 = vpop.f32.mrf.mxu0
  %v7501 = vadd.f32 %v7129, %v7500
  %v7502 = vpop.f32.mrf.mxu0
  %7503 = vmatprep.mubr.f32.mxu0 0.0
  %7504 = vmatmul.mubr.f32.gmra.mxu0 %v7202
  %v7505 = vpop.f32.mrf.mxu0
  %v7506 = vadd.f32 %v7129, %v7505
  %v7507 = vpop.f32.mrf.mxu0
  %7508 = vmatprep.mubr.f32.mxu0 0.0
  %7509 = vmatmul.mubr.f32.gmra.mxu0 %v7205
  %v7510 = vpop.f32.mrf.mxu0
  %v7511 = vadd.f32 %v7129, %v7510
  %v7512 = vpop.f32.mrf.mxu0
  %7513 = vmatprep.mubr.f32.mxu0 0.0
  %7514 = vmatmul.mubr.f32.gmra.mxu0 %v7208
  %v7515 = vpop.f32.mrf.mxu0
  %v7516 = vadd.f32 %v7129, %v7515
  %v7517 = vpop.f32.mrf.mxu0
  %7518 = vmatprep.mubr.f32.mxu0 0.0
  %7519 = vmatmul.mubr.f32.gmra.mxu0 %v7211
  %v7520 = vpop.f32.mrf.mxu0
  %v7521 = vadd.f32 %v7129, %v7520
  %v7522 = vpop.f32.mrf.mxu0
  %7523 = vmatprep.mubr.f32.mxu0 0.0
  %7524 = vmatmul.mubr.f32.gmra.mxu0 %v7214
  %v7525 = vpop.f32.mrf.mxu0
  %v7526 = vadd.f32 %v7129, %v7525
  %v7527 = vpop.f32.mrf.mxu0
  %7528 = vmatprep.mubr.f32.mxu0 0.0
  %7529 = vmatmul.mubr.f32.gmra.mxu0 %v7217
  %v7530 = vpop.f32.mrf.mxu0
  %v7531 = vadd.f32 %v7129, %v7530
  %v7532 = vpop.f32.mrf.mxu0
  %7533 = vmatprep.mubr.f32.mxu0 0.0
  %7534 = vmatmul.mubr.f32.gmra.mxu0 %v7220
  %v7535 = vpop.f32.mrf.mxu0
  %v7536 = vadd.f32 %v7129, %v7535
  %v7537 = vpop.f32.mrf.mxu0
  %7538 = vmatprep.mubr.f32.mxu0 0.0
  %7539 = vmatmul.mubr.f32.gmra.mxu0 %v7223
  %v7540 = vpop.f32.mrf.mxu0
  %v7541 = vadd.f32 %v7129, %v7540
  %v7542 = vpop.f32.mrf.mxu0
  %7543 = vmatprep.mubr.f32.mxu0 0.0
  %7544 = vmatmul.mubr.f32.gmra.mxu0 %v7226
  %v7545 = vpop.f32.mrf.mxu0
  %v7546 = vadd.f32 %v7129, %v7545
  %v7547 = vpop.f32.mrf.mxu0
  %7548 = vmatprep.mubr.f32.mxu0 0.0
  %7549 = vmatmul.mubr.f32.gmra.mxu0 %v7229
  %v7550 = vpop.f32.mrf.mxu0
  %v7551 = vadd.f32 %v7129, %v7550
  %v7552 = vpop.f32.mrf.mxu0
  %7553 = vmatprep.mubr.f32.mxu0 0.0
  %7554 = vmatmul.mubr.f32.gmra.mxu0 %v7232
  %v7555 = vpop.f32.mrf.mxu0
  %v7556 = vadd.f32 %v7129, %v7555
  %v7557 = vpop.f32.mrf.mxu0
  %7558 = vmatprep.mubr.f32.mxu0 0.0
  %7559 = vmatmul.mubr.f32.gmra.mxu0 %v7235
  %v7560 = vpop.f32.mrf.mxu0
  %v7561 = vadd.f32 %v7129, %v7560
  %v7562 = vpop.f32.mrf.mxu0
  %7563 = vmatprep.mubr.f32.mxu0 0.0
  %7564 = vmatmul.mubr.f32.gmra.mxu0 %v7238
  %v7565 = vpop.f32.mrf.mxu0
  %v7566 = vadd.f32 %v7129, %v7565
  %v7567 = vpop.f32.mrf.mxu0
  %7568 = vmatprep.mubr.f32.mxu0 0.0
  %7569 = vmatmul.mubr.f32.gmra.mxu0 %v7241
  %v7570 = vpop.f32.mrf.mxu0
  %v7571 = vadd.f32 %v7129, %v7570
  %v7572 = vpop.f32.mrf.mxu0
  %7573 = vmatprep.mubr.f32.mxu0 0.0
  %7574 = vmatmul.mubr.f32.gmra.mxu0 %v7244
  %v7575 = vpop.f32.mrf.mxu0
  %v7576 = vadd.f32 %v7129, %v7575
  %v7577 = vpop.f32.mrf.mxu0
  %7578 = vmatprep.mubr.f32.mxu0 0.0
  %7579 = vmatmul.mubr.f32.gmra.mxu0 %v7247
  %v7580 = vpop.f32.mrf.mxu0
  %v7581 = vadd.f32 %v7129, %v7580
  %v7582 = vpop.f32.mrf.mxu0
  %7583 = vmatprep.mubr.f32.mxu0 0.0
  %7584 = vmatmul.mubr.f32.gmra.mxu0 %v7250
  %v7585 = vpop.f32.mrf.mxu0
  %v7586 = vadd.f32 %v7129, %v7585
  %v7587 = vpop.f32.mrf.mxu0
  %7588 = vmatprep.mubr.f32.mxu0 0.0
  %7589 = vmatmul.mubr.f32.gmra.mxu0 %v7253
  %v7590 = vpop.f32.mrf.mxu0
  %v7591 = vadd.f32 %v7129, %v7590
  %v7592 = vpop.f32.mrf.mxu0
  %7593 = vmatprep.mubr.f32.mxu0 0.0
  %7594 = vmatmul.mubr.f32.gmra.mxu0 %v7256
  %v7595 = vpop.f32.mrf.mxu0
  %v7596 = vadd.f32 %v7129, %v7595
  %v7597 = vpop.f32.mrf.mxu0
  %7598 = vmatprep.mubr.f32.mxu0 0.0
  %7599 = vmatmul.mubr.f32.gmra.mxu0 %v7259
  %v7600 = vpop.f32.mrf.mxu0
  %v7601 = vadd.f32 %v7129, %v7600
  %v7602 = vpop.f32.mrf.mxu0
  %7603 = vmatprep.mubr.f32.mxu0 0.0
  %7604 = vmatmul.mubr.f32.gmra.mxu0 %v7262
  %v7605 = vpop.f32.mrf.mxu0
  %v7606 = vadd.f32 %v7129, %v7605
  %v7607 = vpop.f32.mrf.mxu0
  %7608 = vmatprep.mubr.f32.mxu0 0.0
  %7609 = vmatmul.mubr.f32.gmra.mxu0 %v7265
  %v7610 = vpop.f32.mrf.mxu0
  %v7611 = vadd.f32 %v7129, %v7610
  %v7612 = vpop.f32.mrf.mxu0
  %7613 = vmatprep.mubr.f32.mxu0 0.0
  %7614 = vmatmul.mubr.f32.gmra.mxu0 %v7268
  %v7615 = vpop.f32.mrf.mxu0
  %v7616 = vadd.f32 %v7129, %v7615
  %v7617 = vpop.f32.mrf.mxu0
  %7618 = vmatprep.mubr.f32.mxu0 0.0
  %7619 = vmatmul.mubr.f32.gmra.mxu0 %v7271
  %v7620 = vpop.f32.mrf.mxu0
  %v7621 = vadd.f32 %v7129, %v7620
  %v7622 = vpop.f32.mrf.mxu0
  %7623 = vmatprep.mubr.f32.mxu0 0.0
  %7624 = vmatmul.mubr.f32.gmra.mxu0 %v7274
  %v7625 = vpop.f32.mrf.mxu0
  %v7626 = vadd.f32 %v7129, %v7625
  %v7627 = vpop.f32.mrf.mxu0
  %7628 = vmatprep.mubr.f32.mxu0 0.0
  %7629 = vmatmul.mubr.f32.gmra.mxu0 %v7277
  %v7630 = vpop.f32.mrf.mxu0
  %v7631 = vadd.f32 %v7129, %v7630
  %v7632 = vpop.f32.mrf.mxu0
  %7633 = vmatprep.mubr.f32.mxu0 0.0
  %7634 = vmatmul.mubr.f32.gmra.mxu0 %v7280
  %v7635 = vpop.f32.mrf.mxu0
  %v7636 = vadd.f32 %v7129, %v7635
  %v7637 = vpop.f32.mrf.mxu0
  %7638 = vmatprep.mubr.f32.mxu0 0.0
  %7639 = vmatmul.mubr.f32.gmra.mxu0 %v7283
  %v7640 = vpop.f32.mrf.mxu0
  %v7641 = vadd.f32 %v7129, %v7640
  %v7642 = vpop.f32.mrf.mxu0
  %7643 = vmatprep.mubr.f32.mxu0 0.0
  %7644 = vmatmul.mubr.f32.gmra.mxu0 %v7286
  %v7645 = vpop.f32.mrf.mxu0
  %v7646 = vadd.f32 %v7129, %v7645
  %v7647 = vpop.f32.mrf.mxu0
  %7648 = vmatprep.mubr.f32.mxu0 0.0
  %7649 = vmatmul.mubr.f32.gmra.mxu0 %v7289
  %v7650 = vpop.f32.mrf.mxu0
  %v7651 = vadd.f32 %v7129, %v7650
  %v7652 = vpop.f32.mrf.mxu0
  %7653 = vmatprep.mubr.f32.mxu0 0.0
  %7654 = vmatmul.mubr.f32.gmra.mxu0 %v7292
  %v7655 = vpop.f32.mrf.mxu0
  %v7656 = vadd.f32 %v7129, %v7655
  %v7657 = vpop.f32.mrf.mxu0
  %7658 = vmatprep.mubr.f32.mxu0 0.0
  %7659 = vmatmul.mubr.f32.gmra.mxu0 %v7295
  %v7660 = vpop.f32.mrf.mxu0
  %v7661 = vadd.f32 %v7129, %v7660
  %v7662 = vpop.f32.mrf.mxu0
  %7663 = vmatprep.mubr.f32.mxu0 0.0
  %7664 = vmatmul.mubr.f32.gmra.mxu0 %v7298
  %v7665 = vpop.f32.mrf.mxu0
  %v7666 = vadd.f32 %v7129, %v7665
  %v7667 = vpop.f32.mrf.mxu0
  %7668 = vmatprep.mubr.f32.mxu0 0.0
  %7669 = vmatmul.mubr.f32.gmra.mxu0 %v7301
  %v7670 = vpop.f32.mrf.mxu0
  %v7671 = vadd.f32 %v7129, %v7670
  %v7672 = vpop.f32.mrf.mxu0
  %7673 = vmatprep.mubr.f32.mxu0 0.0
  %7674 = vmatmul.mubr.f32.gmra.mxu0 %v7304
  %v7675 = vpop.f32.mrf.mxu0
  %v7676 = vadd.f32 %v7129, %v7675
  %v7677 = vpop.f32.mrf.mxu0
  %7678 = vmatprep.mubr.f32.mxu0 0.0
  %7679 = vmatmul.mubr.f32.gmra.mxu0 %v7307
  %v7680 = vpop.f32.mrf.mxu0
  %v7681 = vadd.f32 %v7129, %v7680
  %v7682 = vpop.f32.mrf.mxu0
  %7683 = vmatprep.mubr.f32.mxu0 0.0
  %7684 = vmatmul.mubr.f32.gmra.mxu0 %v7310
  %v7685 = vpop.f32.mrf.mxu0
  %v7686 = vadd.f32 %v7129, %v7685
  %v7687 = vpop.f32.mrf.mxu0
  %7688 = vmatprep.mubr.f32.mxu0 0.0
  %7689 = vmatmul.mubr.f32.gmra.mxu0 %v7313
  %v7690 = vpop.f32.mrf.mxu0
  %v7691 = vadd.f32 %v7129, %v7690
  %v7692 = vpop.f32.mrf.mxu0
  %7693 = vmatprep.mubr.f32.mxu0 0.0
  %7694 = vmatmul.mubr.f32.gmra.mxu0 %v7316
  %v7695 = vpop.f32.mrf.mxu0
  %v7696 = vadd.f32 %v7129, %v7695
  %v7697 = vpop.f32.mrf.mxu0
  %7698 = vmatprep.mubr.f32.mxu0 0.0
  %7699 = vmatmul.mubr.f32.gmra.mxu0 %v7319
  %v7700 = vpop.f32.mrf.mxu0
  %v7701 = vadd.f32 %v7129, %v7700
  %v7702 = vpop.f32.mrf.mxu0
  %7703 = vmatprep.mubr.f32.mxu0 0.0
  %7704 = vmatmul.mubr.f32.gmra.mxu0 %v7322
  %v7705 = vpop.f32.mrf.mxu0
  %v7706 = vadd.f32 %v7129, %v7705
  %v7707 = vpop.f32.mrf.mxu0
  %7708 = vdwg.mxu0
  %v7709 = vld [vmem:[%s5] sm:$0xf]
  %v7710 = vld [vmem:[%s6] sm:$0x1]
  %v7712 = vlaneseq
  %v7713 = vshrl.u32 %v7712, 7
  %v7714 = vsub.s32 0, %v7713
  %v7715 = vrot.slane %v7710, %v7714
  %v7717 = vsel %vm2652, %v283, 0
  %v7719 = vsel %vm2652, %v284, 0
  %v7721 = vsel %vm2652, %v285, 0
  %v7723 = vsel %vm2652, %v286, 0
  %v7725 = vsel %vm2652, %v287, 0
  %v7727 = vsel %vm2652, %v288, 0
  %v7729 = vsel %vm2652, %v289, 0
  %v7731 = vsel %vm2652, %v290, 0
  %v7733 = vsel %vm2652, %v291, 0
  %v7735 = vsel %vm2652, %v292, 0
  %v7737 = vsel %vm2652, %v293, 0
  %v7739 = vsel %vm2652, %v294, 0
  %v7741 = vsel %vm2652, %v295, 0
  %v7743 = vsel %vm2652, %v296, 0
  %v7745 = vsel %vm2652, %v297, 0
  %v7747 = vsel %vm2652, %v298, 0
  %v7749 = vsel %vm2652, %v299, 0
  %v7751 = vsel %vm2652, %v300, 0
  %v7753 = vsel %vm2652, %v301, 0
  %v7755 = vsel %vm2652, %v302, 0
  %v7757 = vsel %vm2652, %v303, 0
  %v7759 = vsel %vm2652, %v304, 0
  %v7761 = vsel %vm2652, %v305, 0
  %v7763 = vsel %vm2652, %v306, 0
  %v7765 = vsel %vm2652, %v307, 0
  %v7767 = vsel %vm2652, %v308, 0
  %v7769 = vsel %vm2652, %v309, 0
  %v7771 = vsel %vm2652, %v310, 0
  %v7773 = vsel %vm2652, %v311, 0
  %v7775 = vsel %vm2652, %v312, 0
  %v7777 = vsel %vm2652, %v313, 0
  %v7779 = vsel %vm2652, %v314, 0
  %v7781 = vsel %vm2652, %v315, 0
  %v7783 = vsel %vm2652, %v316, 0
  %v7785 = vsel %vm2652, %v317, 0
  %v7787 = vsel %vm2652, %v318, 0
  %v7789 = vsel %vm2652, %v319, 0
  %v7791 = vsel %vm2652, %v320, 0
  %v7793 = vsel %vm2652, %v321, 0
  %v7795 = vsel %vm2652, %v322, 0
  %v7797 = vsel %vm2652, %v323, 0
  %v7799 = vsel %vm2652, %v324, 0
  %v7801 = vsel %vm2652, %v325, 0
  %v7803 = vsel %vm2652, %v326, 0
  %v7805 = vsel %vm2652, %v327, 0
  %v7807 = vsel %vm2652, %v328, 0
  %v7809 = vsel %vm2652, %v329, 0
  %v7811 = vsel %vm2652, %v330, 0
  %v7813 = vsel %vm2652, %v331, 0
  %v7815 = vsel %vm2652, %v332, 0
  %v7817 = vsel %vm2652, %v333, 0
  %v7819 = vsel %vm2652, %v334, 0
  %v7821 = vsel %vm2652, %v335, 0
  %v7823 = vsel %vm2652, %v336, 0
  %v7825 = vsel %vm2652, %v337, 0
  %v7827 = vsel %vm2652, %v338, 0
  %v7829 = vsel %vm2652, %v339, 0
  %v7831 = vsel %vm2652, %v340, 0
  %v7833 = vsel %vm2652, %v341, 0
  %v7835 = vsel %vm2652, %v342, 0
  %v7837 = vsel %vm2652, %v343, 0
  %v7839 = vsel %vm2652, %v344, 0
  %v7841 = vsel %vm2652, %v345, 0
  %v7843 = vsel %vm2652, %v346, 0
  %v7846 = vsel %vm3377, %v7709, 0
  %7848 = vmatprep.subr.mxu0 0.0
  %7849 = vmatpush1.msra.mxu0 0.0
  %7850 = vmatprep.subr.mxu0 0.0
  %7851 = vmatpush1.msra.mxu0 0.0
  %7852 = vmatprep.subr.mxu0 0.0
  %7853 = vmatpush1.msra.mxu0 0.0
  %7854 = vmatprep.subr.mxu0 0.0
  %7855 = vmatpush1.msra.mxu0 0.0
  %7856 = vmatprep.subr.mxu0 0.0
  %7857 = vmatpush1.msra.mxu0 0.0
  %7858 = vmatprep.subr.mxu0 0.0
  %7859 = vmatpush1.msra.mxu0 0.0
  %7860 = vmatprep.subr.mxu0 0.0
  %7861 = vmatpush1.msra.mxu0 0.0
  %7862 = vmatprep.subr.mxu0 0.0
  %7863 = vmatpush1.msra.mxu0 0.0
  %7864 = vmatprep.subr.mxu0 0.0
  %7865 = vmatpush1.msra.mxu0 0.0
  %7866 = vmatprep.subr.mxu0 0.0
  %7867 = vmatpush1.msra.mxu0 0.0
  %7868 = vmatprep.subr.mxu0 0.0
  %7869 = vmatpush1.msra.mxu0 0.0
  %7870 = vmatprep.subr.mxu0 0.0
  %7871 = vmatpush1.msra.mxu0 0.0
  %7872 = vmatprep.subr.mxu0 0.0
  %7873 = vmatpush1.msra.mxu0 0.0
  %7874 = vmatprep.subr.mxu0 0.0
  %7875 = vmatpush1.msra.mxu0 0.0
  %7876 = vmatprep.subr.mxu0 0.0
  %7877 = vmatpush1.msra.mxu0 0.0
  %7878 = vmatprep.subr.mxu0 0.0
  %7879 = vmatpush1.msra.mxu0 %v7846
  %7880 = vmatprep.subr.mxu0 0.0
  %7881 = vmatpush2.msra.mxu0 0.0
  %7882 = vmatprep.subr.mxu0 0.0
  %7883 = vmatpush2.msra.mxu0 0.0
  %7884 = vmatprep.subr.mxu0 0.0
  %7885 = vmatpush2.msra.mxu0 0.0
  %7886 = vmatprep.subr.mxu0 0.0
  %7887 = vmatpush2.msra.mxu0 0.0
  %7888 = vmatprep.subr.mxu0 0.0
  %7889 = vmatpush2.msra.mxu0 0.0
  %7890 = vmatprep.subr.mxu0 0.0
  %7891 = vmatpush2.msra.mxu0 0.0
  %7892 = vmatprep.subr.mxu0 0.0
  %7893 = vmatpush2.msra.mxu0 0.0
  %7894 = vmatprep.subr.mxu0 0.0
  %7895 = vmatpush2.msra.mxu0 0.0
  %7896 = vmatprep.subr.mxu0 0.0
  %7897 = vmatpush2.msra.mxu0 0.0
  %7898 = vmatprep.subr.mxu0 0.0
  %7899 = vmatpush2.msra.mxu0 0.0
  %7900 = vmatprep.subr.mxu0 0.0
  %7901 = vmatpush2.msra.mxu0 0.0
  %7902 = vmatprep.subr.mxu0 0.0
  %7903 = vmatpush2.msra.mxu0 0.0
  %7904 = vmatprep.subr.mxu0 0.0
  %7905 = vmatpush2.msra.mxu0 0.0
  %7906 = vmatprep.subr.mxu0 0.0
  %7907 = vmatpush2.msra.mxu0 0.0
  %7908 = vmatprep.subr.mxu0 0.0
  %7909 = vmatpush2.msra.mxu0 0.0
  %7910 = vmatprep.subr.mxu0 0.0
  %7911 = vmatpush2.msra.mxu0 0.0
  %7912 = vmatprep.mubr.f32.mxu0 0.0
  %7913 = vmatmul.mubr.f32.gmra.mxu0 %v7717
  %v7914 = vpop.f32.mrf.mxu0
  %v7915 = vadd.f32 %v7715, %v7914
  %v7916 = vpop.f32.mrf.mxu0
  %7917 = vmatprep.mubr.f32.mxu0 0.0
  %7918 = vmatmul.mubr.f32.gmra.mxu0 %v7719
  %v7919 = vpop.f32.mrf.mxu0
  %v7920 = vadd.f32 %v7715, %v7919
  %v7921 = vpop.f32.mrf.mxu0
  %7922 = vmatprep.mubr.f32.mxu0 0.0
  %7923 = vmatmul.mubr.f32.gmra.mxu0 %v7721
  %v7924 = vpop.f32.mrf.mxu0
  %v7925 = vadd.f32 %v7715, %v7924
  %v7926 = vpop.f32.mrf.mxu0
  %7927 = vmatprep.mubr.f32.mxu0 0.0
  %7928 = vmatmul.mubr.f32.gmra.mxu0 %v7723
  %v7929 = vpop.f32.mrf.mxu0
  %v7930 = vadd.f32 %v7715, %v7929
  %v7931 = vpop.f32.mrf.mxu0
  %7932 = vmatprep.mubr.f32.mxu0 0.0
  %7933 = vmatmul.mubr.f32.gmra.mxu0 %v7725
  %v7934 = vpop.f32.mrf.mxu0
  %v7935 = vadd.f32 %v7715, %v7934
  %v7936 = vpop.f32.mrf.mxu0
  %7937 = vmatprep.mubr.f32.mxu0 0.0
  %7938 = vmatmul.mubr.f32.gmra.mxu0 %v7727
  %v7939 = vpop.f32.mrf.mxu0
  %v7940 = vadd.f32 %v7715, %v7939
  %v7941 = vpop.f32.mrf.mxu0
  %7942 = vmatprep.mubr.f32.mxu0 0.0
  %7943 = vmatmul.mubr.f32.gmra.mxu0 %v7729
  %v7944 = vpop.f32.mrf.mxu0
  %v7945 = vadd.f32 %v7715, %v7944
  %v7946 = vpop.f32.mrf.mxu0
  %7947 = vmatprep.mubr.f32.mxu0 0.0
  %7948 = vmatmul.mubr.f32.gmra.mxu0 %v7731
  %v7949 = vpop.f32.mrf.mxu0
  %v7950 = vadd.f32 %v7715, %v7949
  %v7951 = vpop.f32.mrf.mxu0
  %7952 = vmatprep.mubr.f32.mxu0 0.0
  %7953 = vmatmul.mubr.f32.gmra.mxu0 %v7733
  %v7954 = vpop.f32.mrf.mxu0
  %v7955 = vadd.f32 %v7715, %v7954
  %v7956 = vpop.f32.mrf.mxu0
  %7957 = vmatprep.mubr.f32.mxu0 0.0
  %7958 = vmatmul.mubr.f32.gmra.mxu0 %v7735
  %v7959 = vpop.f32.mrf.mxu0
  %v7960 = vadd.f32 %v7715, %v7959
  %v7961 = vpop.f32.mrf.mxu0
  %7962 = vmatprep.mubr.f32.mxu0 0.0
  %7963 = vmatmul.mubr.f32.gmra.mxu0 %v7737
  %v7964 = vpop.f32.mrf.mxu0
  %v7965 = vadd.f32 %v7715, %v7964
  %v7966 = vpop.f32.mrf.mxu0
  %7967 = vmatprep.mubr.f32.mxu0 0.0
  %7968 = vmatmul.mubr.f32.gmra.mxu0 %v7739
  %v7969 = vpop.f32.mrf.mxu0
  %v7970 = vadd.f32 %v7715, %v7969
  %v7971 = vpop.f32.mrf.mxu0
  %7972 = vmatprep.mubr.f32.mxu0 0.0
  %7973 = vmatmul.mubr.f32.gmra.mxu0 %v7741
  %v7974 = vpop.f32.mrf.mxu0
  %v7975 = vadd.f32 %v7715, %v7974
  %v7976 = vpop.f32.mrf.mxu0
  %7977 = vmatprep.mubr.f32.mxu0 0.0
  %7978 = vmatmul.mubr.f32.gmra.mxu0 %v7743
  %v7979 = vpop.f32.mrf.mxu0
  %v7980 = vadd.f32 %v7715, %v7979
  %v7981 = vpop.f32.mrf.mxu0
  %7982 = vmatprep.mubr.f32.mxu0 0.0
  %7983 = vmatmul.mubr.f32.gmra.mxu0 %v7745
  %v7984 = vpop.f32.mrf.mxu0
  %v7985 = vadd.f32 %v7715, %v7984
  %v7986 = vpop.f32.mrf.mxu0
  %7987 = vmatprep.mubr.f32.mxu0 0.0
  %7988 = vmatmul.mubr.f32.gmra.mxu0 %v7747
  %v7989 = vpop.f32.mrf.mxu0
  %v7990 = vadd.f32 %v7715, %v7989
  %v7991 = vpop.f32.mrf.mxu0
  %7992 = vmatprep.mubr.f32.mxu0 0.0
  %7993 = vmatmul.mubr.f32.gmra.mxu0 %v7749
  %v7994 = vpop.f32.mrf.mxu0
  %v7995 = vadd.f32 %v7715, %v7994
  %v7996 = vpop.f32.mrf.mxu0
  %7997 = vmatprep.mubr.f32.mxu0 0.0
  %7998 = vmatmul.mubr.f32.gmra.mxu0 %v7751
  %v7999 = vpop.f32.mrf.mxu0
  %v8000 = vadd.f32 %v7715, %v7999
  %v8001 = vpop.f32.mrf.mxu0
  %8002 = vmatprep.mubr.f32.mxu0 0.0
  %8003 = vmatmul.mubr.f32.gmra.mxu0 %v7753
  %v8004 = vpop.f32.mrf.mxu0
  %v8005 = vadd.f32 %v7715, %v8004
  %v8006 = vpop.f32.mrf.mxu0
  %8007 = vmatprep.mubr.f32.mxu0 0.0
  %8008 = vmatmul.mubr.f32.gmra.mxu0 %v7755
  %v8009 = vpop.f32.mrf.mxu0
  %v8010 = vadd.f32 %v7715, %v8009
  %v8011 = vpop.f32.mrf.mxu0
  %8012 = vmatprep.mubr.f32.mxu0 0.0
  %8013 = vmatmul.mubr.f32.gmra.mxu0 %v7757
  %v8014 = vpop.f32.mrf.mxu0
  %v8015 = vadd.f32 %v7715, %v8014
  %v8016 = vpop.f32.mrf.mxu0
  %8017 = vmatprep.mubr.f32.mxu0 0.0
  %8018 = vmatmul.mubr.f32.gmra.mxu0 %v7759
  %v8019 = vpop.f32.mrf.mxu0
  %v8020 = vadd.f32 %v7715, %v8019
  %v8021 = vpop.f32.mrf.mxu0
  %8022 = vmatprep.mubr.f32.mxu0 0.0
  %8023 = vmatmul.mubr.f32.gmra.mxu0 %v7761
  %v8024 = vpop.f32.mrf.mxu0
  %v8025 = vadd.f32 %v7715, %v8024
  %v8026 = vpop.f32.mrf.mxu0
  %8027 = vmatprep.mubr.f32.mxu0 0.0
  %8028 = vmatmul.mubr.f32.gmra.mxu0 %v7763
  %v8029 = vpop.f32.mrf.mxu0
  %v8030 = vadd.f32 %v7715, %v8029
  %v8031 = vpop.f32.mrf.mxu0
  %8032 = vmatprep.mubr.f32.mxu0 0.0
  %8033 = vmatmul.mubr.f32.gmra.mxu0 %v7765
  %v8034 = vpop.f32.mrf.mxu0
  %v8035 = vadd.f32 %v7715, %v8034
  %v8036 = vpop.f32.mrf.mxu0
  %8037 = vmatprep.mubr.f32.mxu0 0.0
  %8038 = vmatmul.mubr.f32.gmra.mxu0 %v7767
  %v8039 = vpop.f32.mrf.mxu0
  %v8040 = vadd.f32 %v7715, %v8039
  %v8041 = vpop.f32.mrf.mxu0
  %8042 = vmatprep.mubr.f32.mxu0 0.0
  %8043 = vmatmul.mubr.f32.gmra.mxu0 %v7769
  %v8044 = vpop.f32.mrf.mxu0
  %v8045 = vadd.f32 %v7715, %v8044
  %v8046 = vpop.f32.mrf.mxu0
  %8047 = vmatprep.mubr.f32.mxu0 0.0
  %8048 = vmatmul.mubr.f32.gmra.mxu0 %v7771
  %v8049 = vpop.f32.mrf.mxu0
  %v8050 = vadd.f32 %v7715, %v8049
  %v8051 = vpop.f32.mrf.mxu0
  %8052 = vmatprep.mubr.f32.mxu0 0.0
  %8053 = vmatmul.mubr.f32.gmra.mxu0 %v7773
  %v8054 = vpop.f32.mrf.mxu0
  %v8055 = vadd.f32 %v7715, %v8054
  %v8056 = vpop.f32.mrf.mxu0
  %8057 = vmatprep.mubr.f32.mxu0 0.0
  %8058 = vmatmul.mubr.f32.gmra.mxu0 %v7775
  %v8059 = vpop.f32.mrf.mxu0
  %v8060 = vadd.f32 %v7715, %v8059
  %v8061 = vpop.f32.mrf.mxu0
  %8062 = vmatprep.mubr.f32.mxu0 0.0
  %8063 = vmatmul.mubr.f32.gmra.mxu0 %v7777
  %v8064 = vpop.f32.mrf.mxu0
  %v8065 = vadd.f32 %v7715, %v8064
  %v8066 = vpop.f32.mrf.mxu0
  %8067 = vmatprep.mubr.f32.mxu0 0.0
  %8068 = vmatmul.mubr.f32.gmra.mxu0 %v7779
  %v8069 = vpop.f32.mrf.mxu0
  %v8070 = vadd.f32 %v7715, %v8069
  %v8071 = vpop.f32.mrf.mxu0
  %8072 = vmatprep.mubr.f32.mxu0 0.0
  %8073 = vmatmul.mubr.f32.gmra.mxu0 %v7781
  %v8074 = vpop.f32.mrf.mxu0
  %v8075 = vadd.f32 %v7715, %v8074
  %v8076 = vpop.f32.mrf.mxu0
  %8077 = vmatprep.mubr.f32.mxu0 0.0
  %8078 = vmatmul.mubr.f32.gmra.mxu0 %v7783
  %v8079 = vpop.f32.mrf.mxu0
  %v8080 = vadd.f32 %v7715, %v8079
  %v8081 = vpop.f32.mrf.mxu0
  %8082 = vmatprep.mubr.f32.mxu0 0.0
  %8083 = vmatmul.mubr.f32.gmra.mxu0 %v7785
  %v8084 = vpop.f32.mrf.mxu0
  %v8085 = vadd.f32 %v7715, %v8084
  %v8086 = vpop.f32.mrf.mxu0
  %8087 = vmatprep.mubr.f32.mxu0 0.0
  %8088 = vmatmul.mubr.f32.gmra.mxu0 %v7787
  %v8089 = vpop.f32.mrf.mxu0
  %v8090 = vadd.f32 %v7715, %v8089
  %v8091 = vpop.f32.mrf.mxu0
  %8092 = vmatprep.mubr.f32.mxu0 0.0
  %8093 = vmatmul.mubr.f32.gmra.mxu0 %v7789
  %v8094 = vpop.f32.mrf.mxu0
  %v8095 = vadd.f32 %v7715, %v8094
  %v8096 = vpop.f32.mrf.mxu0
  %8097 = vmatprep.mubr.f32.mxu0 0.0
  %8098 = vmatmul.mubr.f32.gmra.mxu0 %v7791
  %v8099 = vpop.f32.mrf.mxu0
  %v8100 = vadd.f32 %v7715, %v8099
  %v8101 = vpop.f32.mrf.mxu0
  %8102 = vmatprep.mubr.f32.mxu0 0.0
  %8103 = vmatmul.mubr.f32.gmra.mxu0 %v7793
  %v8104 = vpop.f32.mrf.mxu0
  %v8105 = vadd.f32 %v7715, %v8104
  %v8106 = vpop.f32.mrf.mxu0
  %8107 = vmatprep.mubr.f32.mxu0 0.0
  %8108 = vmatmul.mubr.f32.gmra.mxu0 %v7795
  %v8109 = vpop.f32.mrf.mxu0
  %v8110 = vadd.f32 %v7715, %v8109
  %v8111 = vpop.f32.mrf.mxu0
  %8112 = vmatprep.mubr.f32.mxu0 0.0
  %8113 = vmatmul.mubr.f32.gmra.mxu0 %v7797
  %v8114 = vpop.f32.mrf.mxu0
  %v8115 = vadd.f32 %v7715, %v8114
  %v8116 = vpop.f32.mrf.mxu0
  %8117 = vmatprep.mubr.f32.mxu0 0.0
  %8118 = vmatmul.mubr.f32.gmra.mxu0 %v7799
  %v8119 = vpop.f32.mrf.mxu0
  %v8120 = vadd.f32 %v7715, %v8119
  %v8121 = vpop.f32.mrf.mxu0
  %8122 = vmatprep.mubr.f32.mxu0 0.0
  %8123 = vmatmul.mubr.f32.gmra.mxu0 %v7801
  %v8124 = vpop.f32.mrf.mxu0
  %v8125 = vadd.f32 %v7715, %v8124
  %v8126 = vpop.f32.mrf.mxu0
  %8127 = vmatprep.mubr.f32.mxu0 0.0
  %8128 = vmatmul.mubr.f32.gmra.mxu0 %v7803
  %v8129 = vpop.f32.mrf.mxu0
  %v8130 = vadd.f32 %v7715, %v8129
  %v8131 = vpop.f32.mrf.mxu0
  %8132 = vmatprep.mubr.f32.mxu0 0.0
  %8133 = vmatmul.mubr.f32.gmra.mxu0 %v7805
  %v8134 = vpop.f32.mrf.mxu0
  %v8135 = vadd.f32 %v7715, %v8134
  %v8136 = vpop.f32.mrf.mxu0
  %8137 = vmatprep.mubr.f32.mxu0 0.0
  %8138 = vmatmul.mubr.f32.gmra.mxu0 %v7807
  %v8139 = vpop.f32.mrf.mxu0
  %v8140 = vadd.f32 %v7715, %v8139
  %v8141 = vpop.f32.mrf.mxu0
  %8142 = vmatprep.mubr.f32.mxu0 0.0
  %8143 = vmatmul.mubr.f32.gmra.mxu0 %v7809
  %v8144 = vpop.f32.mrf.mxu0
  %v8145 = vadd.f32 %v7715, %v8144
  %v8146 = vpop.f32.mrf.mxu0
  %8147 = vmatprep.mubr.f32.mxu0 0.0
  %8148 = vmatmul.mubr.f32.gmra.mxu0 %v7811
  %v8149 = vpop.f32.mrf.mxu0
  %v8150 = vadd.f32 %v7715, %v8149
  %v8151 = vpop.f32.mrf.mxu0
  %8152 = vmatprep.mubr.f32.mxu0 0.0
  %8153 = vmatmul.mubr.f32.gmra.mxu0 %v7813
  %v8154 = vpop.f32.mrf.mxu0
  %v8155 = vadd.f32 %v7715, %v8154
  %v8156 = vpop.f32.mrf.mxu0
  %8157 = vmatprep.mubr.f32.mxu0 0.0
  %8158 = vmatmul.mubr.f32.gmra.mxu0 %v7815
  %v8159 = vpop.f32.mrf.mxu0
  %v8160 = vadd.f32 %v7715, %v8159
  %v8161 = vpop.f32.mrf.mxu0
  %8162 = vmatprep.mubr.f32.mxu0 0.0
  %8163 = vmatmul.mubr.f32.gmra.mxu0 %v7817
  %v8164 = vpop.f32.mrf.mxu0
  %v8165 = vadd.f32 %v7715, %v8164
  %v8166 = vpop.f32.mrf.mxu0
  %8167 = vmatprep.mubr.f32.mxu0 0.0
  %8168 = vmatmul.mubr.f32.gmra.mxu0 %v7819
  %v8169 = vpop.f32.mrf.mxu0
  %v8170 = vadd.f32 %v7715, %v8169
  %v8171 = vpop.f32.mrf.mxu0
  %8172 = vmatprep.mubr.f32.mxu0 0.0
  %8173 = vmatmul.mubr.f32.gmra.mxu0 %v7821
  %v8174 = vpop.f32.mrf.mxu0
  %v8175 = vadd.f32 %v7715, %v8174
  %v8176 = vpop.f32.mrf.mxu0
  %8177 = vmatprep.mubr.f32.mxu0 0.0
  %8178 = vmatmul.mubr.f32.gmra.mxu0 %v7823
  %v8179 = vpop.f32.mrf.mxu0
  %v8180 = vadd.f32 %v7715, %v8179
  %v8181 = vpop.f32.mrf.mxu0
  %8182 = vmatprep.mubr.f32.mxu0 0.0
  %8183 = vmatmul.mubr.f32.gmra.mxu0 %v7825
  %v8184 = vpop.f32.mrf.mxu0
  %v8185 = vadd.f32 %v7715, %v8184
  %v8186 = vpop.f32.mrf.mxu0
  %8187 = vmatprep.mubr.f32.mxu0 0.0
  %8188 = vmatmul.mubr.f32.gmra.mxu0 %v7827
  %v8189 = vpop.f32.mrf.mxu0
  %v8190 = vadd.f32 %v7715, %v8189
  %v8191 = vpop.f32.mrf.mxu0
  %8192 = vmatprep.mubr.f32.mxu0 0.0
  %8193 = vmatmul.mubr.f32.gmra.mxu0 %v7829
  %v8194 = vpop.f32.mrf.mxu0
  %v8195 = vadd.f32 %v7715, %v8194
  %v8196 = vpop.f32.mrf.mxu0
  %8197 = vmatprep.mubr.f32.mxu0 0.0
  %8198 = vmatmul.mubr.f32.gmra.mxu0 %v7831
  %v8199 = vpop.f32.mrf.mxu0
  %v8200 = vadd.f32 %v7715, %v8199
  %v8201 = vpop.f32.mrf.mxu0
  %8202 = vmatprep.mubr.f32.mxu0 0.0
  %8203 = vmatmul.mubr.f32.gmra.mxu0 %v7833
  %v8204 = vpop.f32.mrf.mxu0
  %v8205 = vadd.f32 %v7715, %v8204
  %v8206 = vpop.f32.mrf.mxu0
  %8207 = vmatprep.mubr.f32.mxu0 0.0
  %8208 = vmatmul.mubr.f32.gmra.mxu0 %v7835
  %v8209 = vpop.f32.mrf.mxu0
  %v8210 = vadd.f32 %v7715, %v8209
  %v8211 = vpop.f32.mrf.mxu0
  %8212 = vmatprep.mubr.f32.mxu0 0.0
  %8213 = vmatmul.mubr.f32.gmra.mxu0 %v7837
  %v8214 = vpop.f32.mrf.mxu0
  %v8215 = vadd.f32 %v7715, %v8214
  %v8216 = vpop.f32.mrf.mxu0
  %8217 = vmatprep.mubr.f32.mxu0 0.0
  %8218 = vmatmul.mubr.f32.gmra.mxu0 %v7839
  %v8219 = vpop.f32.mrf.mxu0
  %v8220 = vadd.f32 %v7715, %v8219
  %v8221 = vpop.f32.mrf.mxu0
  %8222 = vmatprep.mubr.f32.mxu0 0.0
  %8223 = vmatmul.mubr.f32.gmra.mxu0 %v7841
  %v8224 = vpop.f32.mrf.mxu0
  %v8225 = vadd.f32 %v7715, %v8224
  %v8226 = vpop.f32.mrf.mxu0
  %8227 = vmatprep.mubr.f32.mxu0 0.0
  %8228 = vmatmul.mubr.f32.gmra.mxu0 %v7843
  %v8229 = vpop.f32.mrf.mxu0
  %v8230 = vadd.f32 %v7715, %v8229
  %v8231 = vpop.f32.mrf.mxu0
  %8232 = vdwg.mxu0
  %v8233 = vadd.f32 %v7391, %v7915
  %v8234 = vadd.f32 %v7396, %v7920
  %v8235 = vadd.f32 %v7401, %v7925
  %v8236 = vadd.f32 %v7406, %v7930
  %v8237 = vadd.f32 %v7411, %v7935
  %v8238 = vadd.f32 %v7416, %v7940
  %v8239 = vadd.f32 %v7421, %v7945
  %v8240 = vadd.f32 %v7426, %v7950
  %v8241 = vadd.f32 %v7431, %v7955
  %v8242 = vadd.f32 %v7436, %v7960
  %v8243 = vadd.f32 %v7441, %v7965
  %v8244 = vadd.f32 %v7446, %v7970
  %v8245 = vadd.f32 %v7451, %v7975
  %v8246 = vadd.f32 %v7456, %v7980
  %v8247 = vadd.f32 %v7461, %v7985
  %v8248 = vadd.f32 %v7466, %v7990
  %v8249 = vadd.f32 %v7471, %v7995
  %v8250 = vadd.f32 %v7476, %v8000
  %v8251 = vadd.f32 %v7481, %v8005
  %v8252 = vadd.f32 %v7486, %v8010
  %v8253 = vadd.f32 %v7491, %v8015
  %v8254 = vadd.f32 %v7496, %v8020
  %v8255 = vadd.f32 %v7501, %v8025
  %v8256 = vadd.f32 %v7506, %v8030
  %v8257 = vadd.f32 %v7511, %v8035
  %v8258 = vadd.f32 %v7516, %v8040
  %v8259 = vadd.f32 %v7521, %v8045
  %v8260 = vadd.f32 %v7526, %v8050
  %v8261 = vadd.f32 %v7531, %v8055
  %v8262 = vadd.f32 %v7536, %v8060
  %v8263 = vadd.f32 %v7541, %v8065
  %v8264 = vadd.f32 %v7546, %v8070
  %v8265 = vadd.f32 %v7551, %v8075
  %v8266 = vadd.f32 %v7556, %v8080
  %v8267 = vadd.f32 %v7561, %v8085
  %v8268 = vadd.f32 %v7566, %v8090
  %v8269 = vadd.f32 %v7571, %v8095
  %v8270 = vadd.f32 %v7576, %v8100
  %v8271 = vadd.f32 %v7581, %v8105
  %v8272 = vadd.f32 %v7586, %v8110
  %v8273 = vadd.f32 %v7591, %v8115
  %v8274 = vadd.f32 %v7596, %v8120
  %v8275 = vadd.f32 %v7601, %v8125
  %v8276 = vadd.f32 %v7606, %v8130
  %v8277 = vadd.f32 %v7611, %v8135
  %v8278 = vadd.f32 %v7616, %v8140
  %v8279 = vadd.f32 %v7621, %v8145
  %v8280 = vadd.f32 %v7626, %v8150
  %v8281 = vadd.f32 %v7631, %v8155
  %v8282 = vadd.f32 %v7636, %v8160
  %v8283 = vadd.f32 %v7641, %v8165
  %v8284 = vadd.f32 %v7646, %v8170
  %v8285 = vadd.f32 %v7651, %v8175
  %v8286 = vadd.f32 %v7656, %v8180
  %v8287 = vadd.f32 %v7661, %v8185
  %v8288 = vadd.f32 %v7666, %v8190
  %v8289 = vadd.f32 %v7671, %v8195
  %v8290 = vadd.f32 %v7676, %v8200
  %v8291 = vadd.f32 %v7681, %v8205
  %v8292 = vadd.f32 %v7686, %v8210
  %v8293 = vadd.f32 %v7691, %v8215
  %v8294 = vadd.f32 %v7696, %v8220
  %v8295 = vadd.f32 %v7701, %v8225
  %v8296 = vadd.f32 %v7706, %v8230
  %v8297 = vmax.f32 %v8233, 0.0
  %v8298 = vmax.f32 %v8234, 0.0
  %v8299 = vmax.f32 %v8235, 0.0
  %v8300 = vmax.f32 %v8236, 0.0
  %v8301 = vmax.f32 %v8237, 0.0
  %v8302 = vmax.f32 %v8238, 0.0
  %v8303 = vmax.f32 %v8239, 0.0
  %v8304 = vmax.f32 %v8240, 0.0
  %v8305 = vmax.f32 %v8241, 0.0
  %v8306 = vmax.f32 %v8242, 0.0
  %v8307 = vmax.f32 %v8243, 0.0
  %v8308 = vmax.f32 %v8244, 0.0
  %v8309 = vmax.f32 %v8245, 0.0
  %v8310 = vmax.f32 %v8246, 0.0
  %v8311 = vmax.f32 %v8247, 0.0
  %v8312 = vmax.f32 %v8248, 0.0
  %v8313 = vmax.f32 %v8249, 0.0
  %v8314 = vmax.f32 %v8250, 0.0
  %v8315 = vmax.f32 %v8251, 0.0
  %v8316 = vmax.f32 %v8252, 0.0
  %v8317 = vmax.f32 %v8253, 0.0
  %v8318 = vmax.f32 %v8254, 0.0
  %v8319 = vmax.f32 %v8255, 0.0
  %v8320 = vmax.f32 %v8256, 0.0
  %v8321 = vmax.f32 %v8257, 0.0
  %v8322 = vmax.f32 %v8258, 0.0
  %v8323 = vmax.f32 %v8259, 0.0
  %v8324 = vmax.f32 %v8260, 0.0
  %v8325 = vmax.f32 %v8261, 0.0
  %v8326 = vmax.f32 %v8262, 0.0
  %v8327 = vmax.f32 %v8263, 0.0
  %v8328 = vmax.f32 %v8264, 0.0
  %v8329 = vmax.f32 %v8265, 0.0
  %v8330 = vmax.f32 %v8266, 0.0
  %v8331 = vmax.f32 %v8267, 0.0
  %v8332 = vmax.f32 %v8268, 0.0
  %v8333 = vmax.f32 %v8269, 0.0
  %v8334 = vmax.f32 %v8270, 0.0
  %v8335 = vmax.f32 %v8271, 0.0
  %v8336 = vmax.f32 %v8272, 0.0
  %v8337 = vmax.f32 %v8273, 0.0
  %v8338 = vmax.f32 %v8274, 0.0
  %v8339 = vmax.f32 %v8275, 0.0
  %v8340 = vmax.f32 %v8276, 0.0
  %v8341 = vmax.f32 %v8277, 0.0
  %v8342 = vmax.f32 %v8278, 0.0
  %v8343 = vmax.f32 %v8279, 0.0
  %v8344 = vmax.f32 %v8280, 0.0
  %v8345 = vmax.f32 %v8281, 0.0
  %v8346 = vmax.f32 %v8282, 0.0
  %v8347 = vmax.f32 %v8283, 0.0
  %v8348 = vmax.f32 %v8284, 0.0
  %v8349 = vmax.f32 %v8285, 0.0
  %v8350 = vmax.f32 %v8286, 0.0
  %v8351 = vmax.f32 %v8287, 0.0
  %v8352 = vmax.f32 %v8288, 0.0
  %v8353 = vmax.f32 %v8289, 0.0
  %v8354 = vmax.f32 %v8290, 0.0
  %v8355 = vmax.f32 %v8291, 0.0
  %v8356 = vmax.f32 %v8292, 0.0
  %v8357 = vmax.f32 %v8293, 0.0
  %v8358 = vmax.f32 %v8294, 0.0
  %v8359 = vmax.f32 %v8295, 0.0
  %v8360 = vmax.f32 %v8296, 0.0
  %8361 = vst.msk [vmem:[%s7] sm:$0xff] %vm2717, %v8297
  %8362 = vst.msk [vmem:[%s7 + $0x8] sm:$0xff] %vm2717, %v8298
  %8363 = vst.msk [vmem:[%s7 + $0x10] sm:$0xff] %vm2717, %v8299
  %8364 = vst.msk [vmem:[%s7 + $0x18] sm:$0xff] %vm2717, %v8300
  %8365 = vst.msk [vmem:[%s7 + $0x20] sm:$0xff] %vm2717, %v8301
  %8366 = vst.msk [vmem:[%s7 + $0x28] sm:$0xff] %vm2717, %v8302
  %8367 = vst.msk [vmem:[%s7 + $0x30] sm:$0xff] %vm2717, %v8303
  %8368 = vst.msk [vmem:[%s7 + $0x38] sm:$0xff] %vm2717, %v8304
  %8369 = vst.msk [vmem:[%s7 + $0x40] sm:$0xff] %vm2717, %v8305
  %8370 = vst.msk [vmem:[%s7 + $0x48] sm:$0xff] %vm2717, %v8306
  %8371 = vst.msk [vmem:[%s7 + $0x50] sm:$0xff] %vm2717, %v8307
  %8372 = vst.msk [vmem:[%s7 + $0x58] sm:$0xff] %vm2717, %v8308
  %8373 = vst.msk [vmem:[%s7 + $0x60] sm:$0xff] %vm2717, %v8309
  %8374 = vst.msk [vmem:[%s7 + $0x68] sm:$0xff] %vm2717, %v8310
  %8375 = vst.msk [vmem:[%s7 + $0x70] sm:$0xff] %vm2717, %v8311
  %8376 = vst.msk [vmem:[%s7 + $0x78] sm:$0xff] %vm2717, %v8312
  %8377 = vst.msk [vmem:[%s7 + $0x80] sm:$0xff] %vm2717, %v8313
  %8378 = vst.msk [vmem:[%s7 + $0x88] sm:$0xff] %vm2717, %v8314
  %8379 = vst.msk [vmem:[%s7 + $0x90] sm:$0xff] %vm2717, %v8315
  %8380 = vst.msk [vmem:[%s7 + $0x98] sm:$0xff] %vm2717, %v8316
  %8381 = vst.msk [vmem:[%s7 + $0xa0] sm:$0xff] %vm2717, %v8317
  %8382 = vst.msk [vmem:[%s7 + $0xa8] sm:$0xff] %vm2717, %v8318
  %8383 = vst.msk [vmem:[%s7 + $0xb0] sm:$0xff] %vm2717, %v8319
  %8384 = vst.msk [vmem:[%s7 + $0xb8] sm:$0xff] %vm2717, %v8320
  %8385 = vst.msk [vmem:[%s7 + $0xc0] sm:$0xff] %vm2717, %v8321
  %8386 = vst.msk [vmem:[%s7 + $0xc8] sm:$0xff] %vm2717, %v8322
  %8387 = vst.msk [vmem:[%s7 + $0xd0] sm:$0xff] %vm2717, %v8323
  %8388 = vst.msk [vmem:[%s7 + $0xd8] sm:$0xff] %vm2717, %v8324
  %8389 = vst.msk [vmem:[%s7 + $0xe0] sm:$0xff] %vm2717, %v8325
  %8390 = vst.msk [vmem:[%s7 + $0xe8] sm:$0xff] %vm2717, %v8326
  %8391 = vst.msk [vmem:[%s7 + $0xf0] sm:$0xff] %vm2717, %v8327
  %8392 = vst.msk [vmem:[%s7 + $0xf8] sm:$0xff] %vm2717, %v8328
  %8393 = vst.msk [vmem:[%s7 + $0x100] sm:$0xff] %vm2717, %v8329
  %8394 = vst.msk [vmem:[%s7 + $0x108] sm:$0xff] %vm2717, %v8330
  %8395 = vst.msk [vmem:[%s7 + $0x110] sm:$0xff] %vm2717, %v8331
  %8396 = vst.msk [vmem:[%s7 + $0x118] sm:$0xff] %vm2717, %v8332
  %8397 = vst.msk [vmem:[%s7 + $0x120] sm:$0xff] %vm2717, %v8333
  %8398 = vst.msk [vmem:[%s7 + $0x128] sm:$0xff] %vm2717, %v8334
  %8399 = vst.msk [vmem:[%s7 + $0x130] sm:$0xff] %vm2717, %v8335
  %8400 = vst.msk [vmem:[%s7 + $0x138] sm:$0xff] %vm2717, %v8336
  %8401 = vst.msk [vmem:[%s7 + $0x140] sm:$0xff] %vm2717, %v8337
  %8402 = vst.msk [vmem:[%s7 + $0x148] sm:$0xff] %vm2717, %v8338
  %8403 = vst.msk [vmem:[%s7 + $0x150] sm:$0xff] %vm2717, %v8339
  %8404 = vst.msk [vmem:[%s7 + $0x158] sm:$0xff] %vm2717, %v8340
  %8405 = vst.msk [vmem:[%s7 + $0x160] sm:$0xff] %vm2717, %v8341
  %8406 = vst.msk [vmem:[%s7 + $0x168] sm:$0xff] %vm2717, %v8342
  %8407 = vst.msk [vmem:[%s7 + $0x170] sm:$0xff] %vm2717, %v8343
  %8408 = vst.msk [vmem:[%s7 + $0x178] sm:$0xff] %vm2717, %v8344
  %8409 = vst.msk [vmem:[%s7 + $0x180] sm:$0xff] %vm2717, %v8345
  %8410 = vst.msk [vmem:[%s7 + $0x188] sm:$0xff] %vm2717, %v8346
  %8411 = vst.msk [vmem:[%s7 + $0x190] sm:$0xff] %vm2717, %v8347
  %8412 = vst.msk [vmem:[%s7 + $0x198] sm:$0xff] %vm2717, %v8348
  %8413 = vst.msk [vmem:[%s7 + $0x1a0] sm:$0xff] %vm2717, %v8349
  %8414 = vst.msk [vmem:[%s7 + $0x1a8] sm:$0xff] %vm2717, %v8350
  %8415 = vst.msk [vmem:[%s7 + $0x1b0] sm:$0xff] %vm2717, %v8351
  %8416 = vst.msk [vmem:[%s7 + $0x1b8] sm:$0xff] %vm2717, %v8352
  %8417 = vst.msk [vmem:[%s7 + $0x1c0] sm:$0xff] %vm2717, %v8353
  %8418 = vst.msk [vmem:[%s7 + $0x1c8] sm:$0xff] %vm2717, %v8354
  %8419 = vst.msk [vmem:[%s7 + $0x1d0] sm:$0xff] %vm2717, %v8355
  %8420 = vst.msk [vmem:[%s7 + $0x1d8] sm:$0xff] %vm2717, %v8356
  %8421 = vst.msk [vmem:[%s7 + $0x1e0] sm:$0xff] %vm2717, %v8357
  %8422 = vst.msk [vmem:[%s7 + $0x1e8] sm:$0xff] %vm2717, %v8358
  %8423 = vst.msk [vmem:[%s7 + $0x1f0] sm:$0xff] %vm2717, %v8359
  %8424 = vst.msk [vmem:[%s7 + $0x1f8] sm:$0xff] %vm2717, %v8360
  // Predicated region
  $region30: #{tpu_custom_call.1} parent=0 // pred_check
    _
  $region31: #{tpu_custom_call.1} parent=0 // pred_check_branch
    %8426 = sbr.rel (0) target = $region33
  $region32: #{tpu_custom_call.1} parent=0 // pred_region
    _
  $region33: #{tpu_custom_call.1} parent=0 // pred_fallthru
    _
  // Predicated region
  $region34: #{tpu_custom_call.1} parent=0 // pred_check
    _
  $region35: #{tpu_custom_call.1} parent=0 // pred_check_branch
    %8428 = sbr.rel (0) target = $region37
  $region36: #{tpu_custom_call.1} parent=0 // pred_region
    _
  $region37: #{tpu_custom_call.1} parent=0 // pred_fallthru
    _

</llo_original>
